<compile_context>
chip_gen: v7x
topology: tpu7x:2x2x1
jax: 0.10.0
libtpu: 0.0.40
codegen_flags: <defaults>
</compile_context>

<pallas_src>
import functools

import jax
import jax.numpy as jnp
from jax.experimental import pallas as pl
from jax.experimental.pallas import tpu as pltpu


@functools.lru_cache(maxsize=None)
def _vmem_limit():
    """Generation-aware VMEM budget: <=48 MiB and <=60% of physical capacity."""
    cap = 128 * 1024 * 1024
    try:
        cap = int(pltpu.get_tpu_info().vmem_capacity_bytes)
    except Exception:
        pass
    return min(48 * 1024 * 1024, (cap * 3) // 5)


def _pick_row_block(total, target):
    """Largest multiple-of-8 divisor of `total` <= target.  Falls back to `total`
    itself (a full-dim block is always layout-legal and fits VMEM at these sizes)."""
    best = total
    d = 8
    while d <= min(total, target):
        if total % d == 0:
            best = d
        d += 8
    return best


# --------------------------------------------------------------------------
# layer1: Conv2d(1 -> 8, 3x3, pad=1) + ReLU + MaxPool2d(2, 2), fully fused
# --------------------------------------------------------------------------
def _layer1_kernel(x_ref, colsel_ref, w_ref, b_ref, o_ref, *, trp, width):
    """x_ref: (T+2, F+2) zero-padded image (resident per batch), VMEM
    colsel_ref: (F, F) f32 0/1 column selector [even picks | odd picks], VMEM
    w_ref: (9, 8) SMEM conv weights (row = dy*3+dx), b_ref: (1, 8) SMEM bias
    o_ref: (trp, 8*(F/2)) pooled rows, channel-planar lanes (co*(F/2) + w2)."""
    wo = width // 2
    r = pl.program_id(1)
    h0 = pl.multiple_of(r * (2 * trp), 2 * trp)

    # slab[s][j, :] == padded input row h0 + 2*j + s  (pure strided vld, no MXU)
    slab = [x_ref[pl.ds(h0 + s, trp, stride=2), :] for s in range(4)]
    # hoisted dx-shifted views: 12 lane shifts shared by all 8 output channels
    sl = [[slab[s][:, dx:dx + width] for dx in range(3)] for s in range(4)]

    # conv weights / bias as SMEM scalars (free scalar slots, no masked vld)
    wv = [[w_ref[t, co] for t in range(9)] for co in range(8)]
    bv = [b_ref[0, co] for co in range(8)]

    ms = []
    for co in range(8):
        acc_e = wv[co][0] * sl[0][0]            # conv rows 2j   (even parity)
        acc_o = wv[co][0] * sl[1][0]            # conv rows 2j+1 (odd parity)
        for t in range(1, 9):
            dy, dx = divmod(t, 3)
            acc_e = acc_e + wv[co][t] * sl[dy][dx]
            acc_o = acc_o + wv[co][t] * sl[dy + 1][dx]
        # ReLU(max(a,b)) == max(ReLU(a),ReLU(b)); pool the two rows, then ReLU.
        ms.append(jnp.maximum(jnp.maximum(acc_e, acc_o) + bv[co], 0.0))

    m = jnp.concatenate(ms, axis=0)                        # (8*trp, width)
    # ONE exact 0/1 selection matmul for both column parities, all channels (M=8*trp)
    prod = jnp.dot(m, colsel_ref[...],
                   preferred_element_type=jnp.float32)     # (8*trp, 2*wo)
    pooled = jnp.maximum(prod[:, :wo], prod[:, wo:])       # (8*trp, wo)
    o_ref[...] = jnp.concatenate(
        [pooled[co * trp:(co + 1) * trp, :] for co in range(8)], axis=1)


def conv1_relu_pool(x, w1, b1, *, target_rows=32):
    """x: (B, T, F) single-channel image -> (B, T//2, 8*(F//2)) f32 (channel-planar)."""
    B, T, F = x.shape
    assert T % 2 == 0 and F % 4 == 0, "layer1/layer2 assume even spatial dims"
    Ho, Wo = T // 2, F // 2
    trp = _pick_row_block(Ho, target_rows)
    xp = jnp.pad(x, ((0, 0), (1, 1), (1, 1)))              # conv zero padding
    # exact 0/1 column selectors (even | odd), built once on host, DMA'd once
    fi = jnp.arange(F)[:, None]
    wi = jnp.arange(Wo)[None, :]
    colsel = jnp.concatenate([(fi == 2 * wi).astype(jnp.float32),
                              (fi == 2 * wi + 1).astype(jnp.float32)], axis=1)
    kern = functools.partial(_layer1_kernel, trp=trp, width=F)
    return pl.pallas_call(
        kern,
        out_shape=jax.ShapeDtypeStruct((B, Ho, 8 * Wo), jnp.float32),
        grid=(B, Ho // trp),
        in_specs=[
            pl.BlockSpec((None, T + 2, F + 2), lambda b, r: (b, 0, 0)),
            pl.BlockSpec((F, F), lambda b, r: (0, 0)),
            pl.BlockSpec(memory_space=pltpu.MemorySpace.SMEM),
            pl.BlockSpec(memory_space=pltpu.MemorySpace.SMEM),
        ],
        out_specs=pl.BlockSpec((None, trp, 8 * Wo), lambda b, r: (b, r, 0)),
        compiler_params=pltpu.CompilerParams(
            dimension_semantics=("parallel", "parallel"),
            vmem_limit_bytes=_vmem_limit()),
    )(xp, colsel, w1, b1)


# --------------------------------------------------------------------------
# layer2: Conv2d(8 -> 16, 3x3, pad=1) + ReLU + MaxPool2d(1,2) as ONE K=72 GEMM
#         evaluated only at the even (h, w) output positions (fused subsample)
# --------------------------------------------------------------------------
def _pick_hb(ho2, wo2, target_m=8192):
    """Largest divisor hb of ho2 with hb*wo2 a multiple of 8 and <= target_m
    (falls back to the full ho2, which is always a layout-legal block)."""
    best = ho2
    for hb in range(1, ho2 + 1):
        if ho2 % hb == 0 and (hb * wo2) % 8 == 0 and hb * wo2 <= target_m:
            best = hb
    return best


def _layer2_kernel(y_ref, w_ref, b_ref, o_ref, *, hb, wo2, half):
    """y_ref: (L2h, 16) pair-packed padded layer-1 activations:
         row = (ph*Wo1p + pw)//2, lane = (pw % 2)*8 + cin   (Wo1p even)
    w_ref: (72, 16) bf16 weights, K ordered as (dy*3+dx)*8 + cin
    b_ref: (1, 16) f32 bias
    o_ref: (hb*wo2, 16) conv+ReLU at even (h, w) only == fused MaxPool2d(1,2)."""
    h2_0 = pl.program_id(1) * hb
    rows = []
    for j in range(hb):
        taps = []
        for dy in range(3):
            rbase = (2 * (h2_0 + j) + dy) * half
            for dx in range(3):
                lo = 8 * (dx % 2)
                taps.append(y_ref[pl.ds(rbase + dx // 2, wo2), lo:lo + 8])
        rows.append(jnp.concatenate(taps, axis=1))         # (wo2, 72)
    patches = rows[0] if hb == 1 else jnp.concatenate(rows, axis=0)
    acc = jnp.dot(patches.astype(jnp.bfloat16), w_ref[...],
                  preferred_element_type=jnp.float32)      # (hb*wo2, 16)
    o_ref[...] = jnp.maximum(acc + b_ref[...], 0.0)


def conv2_relu_subsample(y1, w2, b2):
    """y1: (B, Ho1, 8*Wo1) channel-planar layer-1 output.
    Returns (B, Ho2*Wo2, 16) f32 with row = h2*Wo2 + w2, lane = co."""
    B, Ho1, L = y1.shape
    Wo1 = L // 8
    Wo1p = Wo1 + 2
    Ho2 = (Ho1 + 1) // 2
    Wo2 = (Wo1 + 1) // 2
    assert Wo1 % 2 == 0, "pair-packed layout assumes an even padded width"
    # TODO(synk): this transpose+pad of the small layer-1 activation is the one
    # remaining piece of XLA glue between the conv kernels; folding it into a
    # kernel would require a lane<->sublane transpose that costs more than it saves.
    y = y1.reshape(B, Ho1, 8, Wo1).transpose(0, 1, 3, 2)   # (B, Ho1, Wo1, 8)
    yp = jnp.pad(y, ((0, 0), (1, 1), (1, 1), (0, 0)))      # (B, Ho1+2, Wo1p, 8)
    L2h = (Ho1 + 2) * Wo1p // 2
    yp = yp.reshape(B, L2h, 16)                            # pair-packed, lane-denser
    hb = _pick_hb(Ho2, Wo2)
    kern = functools.partial(_layer2_kernel, hb=hb, wo2=Wo2, half=Wo1p // 2)
    return pl.pallas_call(
        kern,
        out_shape=jax.ShapeDtypeStruct((B, Ho2 * Wo2, 16), jnp.float32),
        grid=(B, Ho2 // hb),
        in_specs=[
            pl.BlockSpec((None, L2h, 16), lambda b, r: (b, 0, 0)),
            pl.BlockSpec((72, 16), lambda b, r: (0, 0)),
            pl.BlockSpec((1, 16), lambda b, r: (0, 0)),
        ],
        out_specs=pl.BlockSpec((None, hb * Wo2, 16), lambda b, r: (b, r, 0)),
        compiler_params=pltpu.CompilerParams(
            dimension_semantics=("parallel", "parallel"),
            vmem_limit_bytes=_vmem_limit()),
    )(yp, w2, b2)


# --------------------------------------------------------------------------
# MLP head: fc1..fc5 with LeakyReLU(0.01), fc1 tiled over its contraction dim
# --------------------------------------------------------------------------
def _mlp_kernel(x_ref, w1_ref, b1_ref, w2_ref, b2_ref, w3_ref, b3_ref,
                w4_ref, b4_ref, w5_ref, b5_ref, o_ref, acc_ref):
    k = pl.program_id(0)

    @pl.when(k == 0)
    def _():
        acc_ref[...] = jnp.zeros_like(acc_ref)

    acc_ref[...] += jnp.dot(x_ref[...], w1_ref[...],
                            preferred_element_type=jnp.float32)

    @pl.when(k == pl.num_programs(0) - 1)
    def _():
        def lrelu(h):
            return jnp.where(h >= 0.0, h, 0.01 * h)

        def layer(h, w_r, b_r):
            return jnp.dot(h.astype(jnp.bfloat16), w_r[...],
                           preferred_element_type=jnp.float32) + b_r[...]

        h = lrelu(acc_ref[...] + b1_ref[...])
        h = lrelu(layer(h, w2_ref, b2_ref))
        h = lrelu(layer(h, w3_ref, b3_ref))
        h = lrelu(layer(h, w4_ref, b4_ref))
        o_ref[...] = layer(h, w5_ref, b5_ref)


def _pick_kb(d0p, target=4096):
    """Largest multiple-of-128 divisor of d0p that is <= target (d0p itself if small).
    Big contraction tiles amortize the ~0.35us per-grid-step overhead against the
    fc1 weight-streaming roofline (real d0p=113664 -> kb=3072, 37 steps)."""
    if d0p <= target:
        return d0p
    best = d0p
    for kb in range(128, target + 1, 128):
        if d0p % kb == 0:
            best = kb
    return best


def mlp_head(x, fcs):
    """x: (B, flat) f32 activations.  fcs: padded (bf16 weight, f32 bias) pairs."""
    B, D0 = x.shape
    BP = 8
    (w1, b1), (w2, b2), (w3, b3), (w4, b4), (w5, b5) = fcs
    d0p = w1.shape[0]
    kb = _pick_kb(d0p)
    d1, d2, d3, d4, d5 = (b1.shape[1], b2.shape[1], b3.shape[1],
                          b4.shape[1], b5.shape[1])
    xp = jnp.zeros((BP, d0p), jnp.bfloat16).at[:B, :D0].set(x.astype(jnp.bfloat16))
    # TODO(synk): on v7x the fc1 weight stream could additionally use both
    # TensorCores (parallel split of d1 + a tiny follow-up call for fc2..fc5).
    out = pl.pallas_call(
        _mlp_kernel,
        out_shape=jax.ShapeDtypeStruct((BP, d5), jnp.float32),
        grid=(d0p // kb,),
        in_specs=[
            pl.BlockSpec((BP, kb), lambda k: (0, k)),
            pl.BlockSpec((kb, d1), lambda k: (k, 0)),
            pl.BlockSpec((1, d1), lambda k: (0, 0)),
            pl.BlockSpec((d1, d2), lambda k: (0, 0)),
            pl.BlockSpec((1, d2), lambda k: (0, 0)),
            pl.BlockSpec((d2, d3), lambda k: (0, 0)),
            pl.BlockSpec((1, d3), lambda k: (0, 0)),
            pl.BlockSpec((d3, d4), lambda k: (0, 0)),
            pl.BlockSpec((1, d4), lambda k: (0, 0)),
            pl.BlockSpec((d4, d5), lambda k: (0, 0)),
            pl.BlockSpec((1, d5), lambda k: (0, 0)),
        ],
        out_specs=pl.BlockSpec((BP, d5), lambda k: (0, 0)),
        scratch_shapes=[pltpu.VMEM((BP, d1), jnp.float32)],
        compiler_params=pltpu.CompilerParams(
            dimension_semantics=("arbitrary",),
            vmem_limit_bytes=_vmem_limit()),
    )(xp, w1, b1, w2, b2, w3, b3, w4, b4, w5, b5)
    return out[:B, :1]


# --------------------------------------------------------------------------
# parameters & forward
# --------------------------------------------------------------------------
def _uniform(key, shape, bound):
    return jax.random.uniform(key, shape, jnp.float32, -bound, bound)


def _pad_to(a, shape):
    return jnp.pad(a, [(0, t - s) for s, t in zip(a.shape, shape)])


def init_params(key, t_frames, feat_dim):
    ho1, wo1 = t_frames // 2, feat_dim // 2       # after Conv1 + MaxPool2d(2,2)
    ho2, wo2 = (ho1 + 1) // 2, (wo1 + 1) // 2     # after Conv2 + MaxPool2d(1,2)
    flat = 16 * ho2 * wo2                         # analog of 16*37*192
    keys = jax.random.split(key, 14)
    p = {}
    bnd = 1.0 / (9 * 1) ** 0.5
    p["conv1_w"] = _uniform(keys[0], (3, 3, 8), bnd).reshape(9, 8)
    p["conv1_b"] = _uniform(keys[1], (8,), bnd).reshape(1, 8)
    bnd = 1.0 / (9 * 8) ** 0.5
    p["conv2_w"] = _uniform(keys[2], (3, 3, 8, 16), bnd).reshape(72, 16).astype(jnp.bfloat16)
    p["conv2_b"] = _uniform(keys[3], (16,), bnd).reshape(1, 16)

    # Our conv2 kernel emits features in (h2, w2, co) order; PyTorch's NCHW
    # flatten is (co, h2, w2).  Permute fc1's input rows once at init instead of
    # transposing activations at runtime.
    perm = (jnp.arange(flat) % 16) * (ho2 * wo2) + jnp.arange(flat) // 16

    d0p = flat if flat <= 512 else ((flat + 511) // 512) * 512
    real_dims = [flat, 500, 250, 100, 10, 1]
    pad_dims = [d0p, 512, 256, 128, 128, 128]     # lane-friendly zero padding
    fcs = []
    kidx = 4
    for li in range(5):
        fi, fo = real_dims[li], real_dims[li + 1]
        pi, po = pad_dims[li], pad_dims[li + 1]
        bound = 1.0 / fi ** 0.5
        w = _uniform(keys[kidx], (fi, fo), bound); kidx += 1
        bvec = _uniform(keys[kidx], (1, fo), bound); kidx += 1
        if li == 0:
            w = w[perm]
        fcs.append((_pad_to(w, (pi, po)).astype(jnp.bfloat16),
                    _pad_to(bvec, (1, po))))
    p["fcs"] = fcs
    return p


def mohapatra_forward(feat_btf, params):
    """feat_btf: (B, T, F) stand-in for the frozen wav2vec2 output features."""
    B = feat_btf.shape[0]
    # layer1: Conv2d(1->8,3,pad=1)+ReLU+MaxPool2d(2,2)   (Dropout == identity)
    y1 = conv1_relu_pool(feat_btf, params["conv1_w"], params["conv1_b"])
    # layer2: Conv2d(8->16,3,pad=1)+ReLU with the MaxPool2d(1,2) subsample fused
    y2 = conv2_relu_subsample(y1, params["conv2_w"], params["conv2_b"])
    x = y2.reshape(B, -1)           # (h2, w2, co) order; fc1 rows pre-permuted
    return mlp_head(x, params["fcs"])


if __name__ == "__main__":
    B, T, F = 2, 32, 64   # small stand-in for wav2vec2 features (real: T~148, F=768)
    feat = jax.random.normal(jax.random.PRNGKey(0), (B, T, F), jnp.float32)
    params = init_params(jax.random.PRNGKey(1), T, F)
    out = jax.jit(mohapatra_forward)(feat, params)
    jax.block_until_ready(out)
    assert out.shape == (B, 1), out.shape
    print("KERNEL_OK")
</pallas_src>

<mosaic_0001>
module attributes {stable_mosaic.version = 11 : i64} {
  func.func @_layer1_kernel(%arg0: i32, %arg1: i32, %arg2: memref<1x34x66xf32, #tpu.memory_space<vmem>>, %arg3: memref<64x64xf32, #tpu.memory_space<vmem>>, %arg4: memref<9x8xf32, #tpu.memory_space<smem>>, %arg5: memref<1x8xf32, #tpu.memory_space<smem>>, %arg6: memref<1x16x256xf32, #tpu.memory_space<vmem>>) attributes {dimension_semantics = [#tpu.dimension_semantics<parallel>, #tpu.dimension_semantics<parallel>], iteration_bounds = array<i64: 2, 1>, scalar_prefetch = 0 : i64, scratch_operands = 0 : i64, tpu.core_type = #tpu.core_type<tc>, window_params = [{transform_indices = @transform_0, window_bounds = array<i64: 1, 34, 66>}, {pipeline_mode = #tpu.pipeline_mode<synchronous>, transform_indices = @transform_1, window_bounds = array<i64: 64, 64>}, {transform_indices = @transform_2, window_bounds = array<i64: 9, 8>}, {transform_indices = @transform_3, window_bounds = array<i64: 1, 8>}, {transform_indices = @transform_4, window_bounds = array<i64: 1, 16, 256>}]} {
    %c32_i32 = arith.constant 32 : i32
    %0 = arith.muli %arg1, %c32_i32 : i32
    %1 = tpu.assume_multiple %0, 32 : i32
    %c0_i32 = arith.constant 0 : i32
    %2 = arith.addi %1, %c0_i32 : i32
    %c0 = arith.constant 0 : index
    %3 = arith.index_cast %2 : i32 to index
    %c0_0 = arith.constant 0 : index
    %4 = tpu.strided_load %arg2[%c0, %3, %c0_0] {strides = array<i32: 1, 2, 1>} : memref<1x34x66xf32, #tpu.memory_space<vmem>>, vector<1x16x66xf32>
    %5 = vector.shape_cast %4 : vector<1x16x66xf32> to vector<16x66xf32>
    %c1_i32 = arith.constant 1 : i32
    %6 = arith.addi %1, %c1_i32 : i32
    %c0_1 = arith.constant 0 : index
    %7 = arith.index_cast %6 : i32 to index
    %c0_2 = arith.constant 0 : index
    %8 = tpu.strided_load %arg2[%c0_1, %7, %c0_2] {strides = array<i32: 1, 2, 1>} : memref<1x34x66xf32, #tpu.memory_space<vmem>>, vector<1x16x66xf32>
    %9 = vector.shape_cast %8 : vector<1x16x66xf32> to vector<16x66xf32>
    %c2_i32 = arith.constant 2 : i32
    %10 = arith.addi %1, %c2_i32 : i32
    %c0_3 = arith.constant 0 : index
    %11 = arith.index_cast %10 : i32 to index
    %c0_4 = arith.constant 0 : index
    %12 = tpu.strided_load %arg2[%c0_3, %11, %c0_4] {strides = array<i32: 1, 2, 1>} : memref<1x34x66xf32, #tpu.memory_space<vmem>>, vector<1x16x66xf32>
    %13 = vector.shape_cast %12 : vector<1x16x66xf32> to vector<16x66xf32>
    %c3_i32 = arith.constant 3 : i32
    %14 = arith.addi %1, %c3_i32 : i32
    %c0_5 = arith.constant 0 : index
    %15 = arith.index_cast %14 : i32 to index
    %c0_6 = arith.constant 0 : index
    %16 = tpu.strided_load %arg2[%c0_5, %15, %c0_6] {strides = array<i32: 1, 2, 1>} : memref<1x34x66xf32, #tpu.memory_space<vmem>>, vector<1x16x66xf32>
    %17 = vector.shape_cast %16 : vector<1x16x66xf32> to vector<16x66xf32>
    %18 = vector.extract_strided_slice %5 {offsets = [0, 0], sizes = [16, 64], strides = [1, 1]} : vector<16x66xf32> to vector<16x64xf32>
    %19 = vector.extract_strided_slice %5 {offsets = [0, 1], sizes = [16, 64], strides = [1, 1]} : vector<16x66xf32> to vector<16x64xf32>
    %20 = vector.extract_strided_slice %5 {offsets = [0, 2], sizes = [16, 64], strides = [1, 1]} : vector<16x66xf32> to vector<16x64xf32>
    %21 = vector.extract_strided_slice %9 {offsets = [0, 0], sizes = [16, 64], strides = [1, 1]} : vector<16x66xf32> to vector<16x64xf32>
    %22 = vector.extract_strided_slice %9 {offsets = [0, 1], sizes = [16, 64], strides = [1, 1]} : vector<16x66xf32> to vector<16x64xf32>
    %23 = vector.extract_strided_slice %9 {offsets = [0, 2], sizes = [16, 64], strides = [1, 1]} : vector<16x66xf32> to vector<16x64xf32>
    %24 = vector.extract_strided_slice %13 {offsets = [0, 0], sizes = [16, 64], strides = [1, 1]} : vector<16x66xf32> to vector<16x64xf32>
    %25 = vector.extract_strided_slice %13 {offsets = [0, 1], sizes = [16, 64], strides = [1, 1]} : vector<16x66xf32> to vector<16x64xf32>
    %26 = vector.extract_strided_slice %13 {offsets = [0, 2], sizes = [16, 64], strides = [1, 1]} : vector<16x66xf32> to vector<16x64xf32>
    %27 = vector.extract_strided_slice %17 {offsets = [0, 0], sizes = [16, 64], strides = [1, 1]} : vector<16x66xf32> to vector<16x64xf32>
    %28 = vector.extract_strided_slice %17 {offsets = [0, 1], sizes = [16, 64], strides = [1, 1]} : vector<16x66xf32> to vector<16x64xf32>
    %29 = vector.extract_strided_slice %17 {offsets = [0, 2], sizes = [16, 64], strides = [1, 1]} : vector<16x66xf32> to vector<16x64xf32>
    %c0_7 = arith.constant 0 : index
    %c0_8 = arith.constant 0 : index
    %30 = memref.load %arg4[%c0_7, %c0_8] : memref<9x8xf32, #tpu.memory_space<smem>>
    %c1 = arith.constant 1 : index
    %c0_9 = arith.constant 0 : index
    %31 = memref.load %arg4[%c1, %c0_9] : memref<9x8xf32, #tpu.memory_space<smem>>
    %c2 = arith.constant 2 : index
    %c0_10 = arith.constant 0 : index
    %32 = memref.load %arg4[%c2, %c0_10] : memref<9x8xf32, #tpu.memory_space<smem>>
    %c3 = arith.constant 3 : index
    %c0_11 = arith.constant 0 : index
    %33 = memref.load %arg4[%c3, %c0_11] : memref<9x8xf32, #tpu.memory_space<smem>>
    %c4 = arith.constant 4 : index
    %c0_12 = arith.constant 0 : index
    %34 = memref.load %arg4[%c4, %c0_12] : memref<9x8xf32, #tpu.memory_space<smem>>
    %c5 = arith.constant 5 : index
    %c0_13 = arith.constant 0 : index
    %35 = memref.load %arg4[%c5, %c0_13] : memref<9x8xf32, #tpu.memory_space<smem>>
    %c6 = arith.constant 6 : index
    %c0_14 = arith.constant 0 : index
    %36 = memref.load %arg4[%c6, %c0_14] : memref<9x8xf32, #tpu.memory_space<smem>>
    %c7 = arith.constant 7 : index
    %c0_15 = arith.constant 0 : index
    %37 = memref.load %arg4[%c7, %c0_15] : memref<9x8xf32, #tpu.memory_space<smem>>
    %c8 = arith.constant 8 : index
    %c0_16 = arith.constant 0 : index
    %38 = memref.load %arg4[%c8, %c0_16] : memref<9x8xf32, #tpu.memory_space<smem>>
    %c0_17 = arith.constant 0 : index
    %c1_18 = arith.constant 1 : index
    %39 = memref.load %arg4[%c0_17, %c1_18] : memref<9x8xf32, #tpu.memory_space<smem>>
    %c1_19 = arith.constant 1 : index
    %c1_20 = arith.constant 1 : index
    %40 = memref.load %arg4[%c1_19, %c1_20] : memref<9x8xf32, #tpu.memory_space<smem>>
    %c2_21 = arith.constant 2 : index
    %c1_22 = arith.constant 1 : index
    %41 = memref.load %arg4[%c2_21, %c1_22] : memref<9x8xf32, #tpu.memory_space<smem>>
    %c3_23 = arith.constant 3 : index
    %c1_24 = arith.constant 1 : index
    %42 = memref.load %arg4[%c3_23, %c1_24] : memref<9x8xf32, #tpu.memory_space<smem>>
    %c4_25 = arith.constant 4 : index
    %c1_26 = arith.constant 1 : index
    %43 = memref.load %arg4[%c4_25, %c1_26] : memref<9x8xf32, #tpu.memory_space<smem>>
    %c5_27 = arith.constant 5 : index
    %c1_28 = arith.constant 1 : index
    %44 = memref.load %arg4[%c5_27, %c1_28] : memref<9x8xf32, #tpu.memory_space<smem>>
    %c6_29 = arith.constant 6 : index
    %c1_30 = arith.constant 1 : index
    %45 = memref.load %arg4[%c6_29, %c1_30] : memref<9x8xf32, #tpu.memory_space<smem>>
    %c7_31 = arith.constant 7 : index
    %c1_32 = arith.constant 1 : index
    %46 = memref.load %arg4[%c7_31, %c1_32] : memref<9x8xf32, #tpu.memory_space<smem>>
    %c8_33 = arith.constant 8 : index
    %c1_34 = arith.constant 1 : index
    %47 = memref.load %arg4[%c8_33, %c1_34] : memref<9x8xf32, #tpu.memory_space<smem>>
    %c0_35 = arith.constant 0 : index
    %c2_36 = arith.constant 2 : index
    %48 = memref.load %arg4[%c0_35, %c2_36] : memref<9x8xf32, #tpu.memory_space<smem>>
    %c1_37 = arith.constant 1 : index
    %c2_38 = arith.constant 2 : index
    %49 = memref.load %arg4[%c1_37, %c2_38] : memref<9x8xf32, #tpu.memory_space<smem>>
    %c2_39 = arith.constant 2 : index
    %c2_40 = arith.constant 2 : index
    %50 = memref.load %arg4[%c2_39, %c2_40] : memref<9x8xf32, #tpu.memory_space<smem>>
    %c3_41 = arith.constant 3 : index
    %c2_42 = arith.constant 2 : index
    %51 = memref.load %arg4[%c3_41, %c2_42] : memref<9x8xf32, #tpu.memory_space<smem>>
    %c4_43 = arith.constant 4 : index
    %c2_44 = arith.constant 2 : index
    %52 = memref.load %arg4[%c4_43, %c2_44] : memref<9x8xf32, #tpu.memory_space<smem>>
    %c5_45 = arith.constant 5 : index
    %c2_46 = arith.constant 2 : index
    %53 = memref.load %arg4[%c5_45, %c2_46] : memref<9x8xf32, #tpu.memory_space<smem>>
    %c6_47 = arith.constant 6 : index
    %c2_48 = arith.constant 2 : index
    %54 = memref.load %arg4[%c6_47, %c2_48] : memref<9x8xf32, #tpu.memory_space<smem>>
    %c7_49 = arith.constant 7 : index
    %c2_50 = arith.constant 2 : index
    %55 = memref.load %arg4[%c7_49, %c2_50] : memref<9x8xf32, #tpu.memory_space<smem>>
    %c8_51 = arith.constant 8 : index
    %c2_52 = arith.constant 2 : index
    %56 = memref.load %arg4[%c8_51, %c2_52] : memref<9x8xf32, #tpu.memory_space<smem>>
    %c0_53 = arith.constant 0 : index
    %c3_54 = arith.constant 3 : index
    %57 = memref.load %arg4[%c0_53, %c3_54] : memref<9x8xf32, #tpu.memory_space<smem>>
    %c1_55 = arith.constant 1 : index
    %c3_56 = arith.constant 3 : index
    %58 = memref.load %arg4[%c1_55, %c3_56] : memref<9x8xf32, #tpu.memory_space<smem>>
    %c2_57 = arith.constant 2 : index
    %c3_58 = arith.constant 3 : index
    %59 = memref.load %arg4[%c2_57, %c3_58] : memref<9x8xf32, #tpu.memory_space<smem>>
    %c3_59 = arith.constant 3 : index
    %c3_60 = arith.constant 3 : index
    %60 = memref.load %arg4[%c3_59, %c3_60] : memref<9x8xf32, #tpu.memory_space<smem>>
    %c4_61 = arith.constant 4 : index
    %c3_62 = arith.constant 3 : index
    %61 = memref.load %arg4[%c4_61, %c3_62] : memref<9x8xf32, #tpu.memory_space<smem>>
    %c5_63 = arith.constant 5 : index
    %c3_64 = arith.constant 3 : index
    %62 = memref.load %arg4[%c5_63, %c3_64] : memref<9x8xf32, #tpu.memory_space<smem>>
    %c6_65 = arith.constant 6 : index
    %c3_66 = arith.constant 3 : index
    %63 = memref.load %arg4[%c6_65, %c3_66] : memref<9x8xf32, #tpu.memory_space<smem>>
    %c7_67 = arith.constant 7 : index
    %c3_68 = arith.constant 3 : index
    %64 = memref.load %arg4[%c7_67, %c3_68] : memref<9x8xf32, #tpu.memory_space<smem>>
    %c8_69 = arith.constant 8 : index
    %c3_70 = arith.constant 3 : index
    %65 = memref.load %arg4[%c8_69, %c3_70] : memref<9x8xf32, #tpu.memory_space<smem>>
    %c0_71 = arith.constant 0 : index
    %c4_72 = arith.constant 4 : index
    %66 = memref.load %arg4[%c0_71, %c4_72] : memref<9x8xf32, #tpu.memory_space<smem>>
    %c1_73 = arith.constant 1 : index
    %c4_74 = arith.constant 4 : index
    %67 = memref.load %arg4[%c1_73, %c4_74] : memref<9x8xf32, #tpu.memory_space<smem>>
    %c2_75 = arith.constant 2 : index
    %c4_76 = arith.constant 4 : index
    %68 = memref.load %arg4[%c2_75, %c4_76] : memref<9x8xf32, #tpu.memory_space<smem>>
    %c3_77 = arith.constant 3 : index
    %c4_78 = arith.constant 4 : index
    %69 = memref.load %arg4[%c3_77, %c4_78] : memref<9x8xf32, #tpu.memory_space<smem>>
    %c4_79 = arith.constant 4 : index
    %c4_80 = arith.constant 4 : index
    %70 = memref.load %arg4[%c4_79, %c4_80] : memref<9x8xf32, #tpu.memory_space<smem>>
    %c5_81 = arith.constant 5 : index
    %c4_82 = arith.constant 4 : index
    %71 = memref.load %arg4[%c5_81, %c4_82] : memref<9x8xf32, #tpu.memory_space<smem>>
    %c6_83 = arith.constant 6 : index
    %c4_84 = arith.constant 4 : index
    %72 = memref.load %arg4[%c6_83, %c4_84] : memref<9x8xf32, #tpu.memory_space<smem>>
    %c7_85 = arith.constant 7 : index
    %c4_86 = arith.constant 4 : index
    %73 = memref.load %arg4[%c7_85, %c4_86] : memref<9x8xf32, #tpu.memory_space<smem>>
    %c8_87 = arith.constant 8 : index
    %c4_88 = arith.constant 4 : index
    %74 = memref.load %arg4[%c8_87, %c4_88] : memref<9x8xf32, #tpu.memory_space<smem>>
    %c0_89 = arith.constant 0 : index
    %c5_90 = arith.constant 5 : index
    %75 = memref.load %arg4[%c0_89, %c5_90] : memref<9x8xf32, #tpu.memory_space<smem>>
    %c1_91 = arith.constant 1 : index
    %c5_92 = arith.constant 5 : index
    %76 = memref.load %arg4[%c1_91, %c5_92] : memref<9x8xf32, #tpu.memory_space<smem>>
    %c2_93 = arith.constant 2 : index
    %c5_94 = arith.constant 5 : index
    %77 = memref.load %arg4[%c2_93, %c5_94] : memref<9x8xf32, #tpu.memory_space<smem>>
    %c3_95 = arith.constant 3 : index
    %c5_96 = arith.constant 5 : index
    %78 = memref.load %arg4[%c3_95, %c5_96] : memref<9x8xf32, #tpu.memory_space<smem>>
    %c4_97 = arith.constant 4 : index
    %c5_98 = arith.constant 5 : index
    %79 = memref.load %arg4[%c4_97, %c5_98] : memref<9x8xf32, #tpu.memory_space<smem>>
    %c5_99 = arith.constant 5 : index
    %c5_100 = arith.constant 5 : index
    %80 = memref.load %arg4[%c5_99, %c5_100] : memref<9x8xf32, #tpu.memory_space<smem>>
    %c6_101 = arith.constant 6 : index
    %c5_102 = arith.constant 5 : index
    %81 = memref.load %arg4[%c6_101, %c5_102] : memref<9x8xf32, #tpu.memory_space<smem>>
    %c7_103 = arith.constant 7 : index
    %c5_104 = arith.constant 5 : index
    %82 = memref.load %arg4[%c7_103, %c5_104] : memref<9x8xf32, #tpu.memory_space<smem>>
    %c8_105 = arith.constant 8 : index
    %c5_106 = arith.constant 5 : index
    %83 = memref.load %arg4[%c8_105, %c5_106] : memref<9x8xf32, #tpu.memory_space<smem>>
    %c0_107 = arith.constant 0 : index
    %c6_108 = arith.constant 6 : index
    %84 = memref.load %arg4[%c0_107, %c6_108] : memref<9x8xf32, #tpu.memory_space<smem>>
    %c1_109 = arith.constant 1 : index
    %c6_110 = arith.constant 6 : index
    %85 = memref.load %arg4[%c1_109, %c6_110] : memref<9x8xf32, #tpu.memory_space<smem>>
    %c2_111 = arith.constant 2 : index
    %c6_112 = arith.constant 6 : index
    %86 = memref.load %arg4[%c2_111, %c6_112] : memref<9x8xf32, #tpu.memory_space<smem>>
    %c3_113 = arith.constant 3 : index
    %c6_114 = arith.constant 6 : index
    %87 = memref.load %arg4[%c3_113, %c6_114] : memref<9x8xf32, #tpu.memory_space<smem>>
    %c4_115 = arith.constant 4 : index
    %c6_116 = arith.constant 6 : index
    %88 = memref.load %arg4[%c4_115, %c6_116] : memref<9x8xf32, #tpu.memory_space<smem>>
    %c5_117 = arith.constant 5 : index
    %c6_118 = arith.constant 6 : index
    %89 = memref.load %arg4[%c5_117, %c6_118] : memref<9x8xf32, #tpu.memory_space<smem>>
    %c6_119 = arith.constant 6 : index
    %c6_120 = arith.constant 6 : index
    %90 = memref.load %arg4[%c6_119, %c6_120] : memref<9x8xf32, #tpu.memory_space<smem>>
    %c7_121 = arith.constant 7 : index
    %c6_122 = arith.constant 6 : index
    %91 = memref.load %arg4[%c7_121, %c6_122] : memref<9x8xf32, #tpu.memory_space<smem>>
    %c8_123 = arith.constant 8 : index
    %c6_124 = arith.constant 6 : index
    %92 = memref.load %arg4[%c8_123, %c6_124] : memref<9x8xf32, #tpu.memory_space<smem>>
    %c0_125 = arith.constant 0 : index
    %c7_126 = arith.constant 7 : index
    %93 = memref.load %arg4[%c0_125, %c7_126] : memref<9x8xf32, #tpu.memory_space<smem>>
    %c1_127 = arith.constant 1 : index
    %c7_128 = arith.constant 7 : index
    %94 = memref.load %arg4[%c1_127, %c7_128] : memref<9x8xf32, #tpu.memory_space<smem>>
    %c2_129 = arith.constant 2 : index
    %c7_130 = arith.constant 7 : index
    %95 = memref.load %arg4[%c2_129, %c7_130] : memref<9x8xf32, #tpu.memory_space<smem>>
    %c3_131 = arith.constant 3 : index
    %c7_132 = arith.constant 7 : index
    %96 = memref.load %arg4[%c3_131, %c7_132] : memref<9x8xf32, #tpu.memory_space<smem>>
    %c4_133 = arith.constant 4 : index
    %c7_134 = arith.constant 7 : index
    %97 = memref.load %arg4[%c4_133, %c7_134] : memref<9x8xf32, #tpu.memory_space<smem>>
    %c5_135 = arith.constant 5 : index
    %c7_136 = arith.constant 7 : index
    %98 = memref.load %arg4[%c5_135, %c7_136] : memref<9x8xf32, #tpu.memory_space<smem>>
    %c6_137 = arith.constant 6 : index
    %c7_138 = arith.constant 7 : index
    %99 = memref.load %arg4[%c6_137, %c7_138] : memref<9x8xf32, #tpu.memory_space<smem>>
    %c7_139 = arith.constant 7 : index
    %c7_140 = arith.constant 7 : index
    %100 = memref.load %arg4[%c7_139, %c7_140] : memref<9x8xf32, #tpu.memory_space<smem>>
    %c8_141 = arith.constant 8 : index
    %c7_142 = arith.constant 7 : index
    %101 = memref.load %arg4[%c8_141, %c7_142] : memref<9x8xf32, #tpu.memory_space<smem>>
    %c0_143 = arith.constant 0 : index
    %c0_144 = arith.constant 0 : index
    %102 = memref.load %arg5[%c0_143, %c0_144] : memref<1x8xf32, #tpu.memory_space<smem>>
    %c0_145 = arith.constant 0 : index
    %c1_146 = arith.constant 1 : index
    %103 = memref.load %arg5[%c0_145, %c1_146] : memref<1x8xf32, #tpu.memory_space<smem>>
    %c0_147 = arith.constant 0 : index
    %c2_148 = arith.constant 2 : index
    %104 = memref.load %arg5[%c0_147, %c2_148] : memref<1x8xf32, #tpu.memory_space<smem>>
    %c0_149 = arith.constant 0 : index
    %c3_150 = arith.constant 3 : index
    %105 = memref.load %arg5[%c0_149, %c3_150] : memref<1x8xf32, #tpu.memory_space<smem>>
    %c0_151 = arith.constant 0 : index
    %c4_152 = arith.constant 4 : index
    %106 = memref.load %arg5[%c0_151, %c4_152] : memref<1x8xf32, #tpu.memory_space<smem>>
    %c0_153 = arith.constant 0 : index
    %c5_154 = arith.constant 5 : index
    %107 = memref.load %arg5[%c0_153, %c5_154] : memref<1x8xf32, #tpu.memory_space<smem>>
    %c0_155 = arith.constant 0 : index
    %c6_156 = arith.constant 6 : index
    %108 = memref.load %arg5[%c0_155, %c6_156] : memref<1x8xf32, #tpu.memory_space<smem>>
    %c0_157 = arith.constant 0 : index
    %c7_158 = arith.constant 7 : index
    %109 = memref.load %arg5[%c0_157, %c7_158] : memref<1x8xf32, #tpu.memory_space<smem>>
    %110 = vector.broadcast %30 : f32 to vector<16x64xf32>
    %111 = arith.mulf %110, %18 : vector<16x64xf32>
    %112 = vector.broadcast %30 : f32 to vector<16x64xf32>
    %113 = arith.mulf %112, %21 : vector<16x64xf32>
    %114 = vector.broadcast %31 : f32 to vector<16x64xf32>
    %115 = arith.mulf %114, %19 : vector<16x64xf32>
    %116 = arith.addf %111, %115 : vector<16x64xf32>
    %117 = vector.broadcast %31 : f32 to vector<16x64xf32>
    %118 = arith.mulf %117, %22 : vector<16x64xf32>
    %119 = arith.addf %113, %118 : vector<16x64xf32>
    %120 = vector.broadcast %32 : f32 to vector<16x64xf32>
    %121 = arith.mulf %120, %20 : vector<16x64xf32>
    %122 = arith.addf %116, %121 : vector<16x64xf32>
    %123 = vector.broadcast %32 : f32 to vector<16x64xf32>
    %124 = arith.mulf %123, %23 : vector<16x64xf32>
    %125 = arith.addf %119, %124 : vector<16x64xf32>
    %126 = vector.broadcast %33 : f32 to vector<16x64xf32>
    %127 = arith.mulf %126, %21 : vector<16x64xf32>
    %128 = arith.addf %122, %127 : vector<16x64xf32>
    %129 = vector.broadcast %33 : f32 to vector<16x64xf32>
    %130 = arith.mulf %129, %24 : vector<16x64xf32>
    %131 = arith.addf %125, %130 : vector<16x64xf32>
    %132 = vector.broadcast %34 : f32 to vector<16x64xf32>
    %133 = arith.mulf %132, %22 : vector<16x64xf32>
    %134 = arith.addf %128, %133 : vector<16x64xf32>
    %135 = vector.broadcast %34 : f32 to vector<16x64xf32>
    %136 = arith.mulf %135, %25 : vector<16x64xf32>
    %137 = arith.addf %131, %136 : vector<16x64xf32>
    %138 = vector.broadcast %35 : f32 to vector<16x64xf32>
    %139 = arith.mulf %138, %23 : vector<16x64xf32>
    %140 = arith.addf %134, %139 : vector<16x64xf32>
    %141 = vector.broadcast %35 : f32 to vector<16x64xf32>
    %142 = arith.mulf %141, %26 : vector<16x64xf32>
    %143 = arith.addf %137, %142 : vector<16x64xf32>
    %144 = vector.broadcast %36 : f32 to vector<16x64xf32>
    %145 = arith.mulf %144, %24 : vector<16x64xf32>
    %146 = arith.addf %140, %145 : vector<16x64xf32>
    %147 = vector.broadcast %36 : f32 to vector<16x64xf32>
    %148 = arith.mulf %147, %27 : vector<16x64xf32>
    %149 = arith.addf %143, %148 : vector<16x64xf32>
    %150 = vector.broadcast %37 : f32 to vector<16x64xf32>
    %151 = arith.mulf %150, %25 : vector<16x64xf32>
    %152 = arith.addf %146, %151 : vector<16x64xf32>
    %153 = vector.broadcast %37 : f32 to vector<16x64xf32>
    %154 = arith.mulf %153, %28 : vector<16x64xf32>
    %155 = arith.addf %149, %154 : vector<16x64xf32>
    %156 = vector.broadcast %38 : f32 to vector<16x64xf32>
    %157 = arith.mulf %156, %26 : vector<16x64xf32>
    %158 = arith.addf %152, %157 : vector<16x64xf32>
    %159 = vector.broadcast %38 : f32 to vector<16x64xf32>
    %160 = arith.mulf %159, %29 : vector<16x64xf32>
    %161 = arith.addf %155, %160 : vector<16x64xf32>
    %162 = arith.maximumf %158, %161 : vector<16x64xf32>
    %163 = vector.broadcast %102 : f32 to vector<16x64xf32>
    %164 = arith.addf %162, %163 : vector<16x64xf32>
    %cst = arith.constant 0.000000e+00 : f32
    %165 = vector.broadcast %cst : f32 to vector<16x64xf32>
    %166 = arith.maximumf %164, %165 : vector<16x64xf32>
    %167 = vector.broadcast %39 : f32 to vector<16x64xf32>
    %168 = arith.mulf %167, %18 : vector<16x64xf32>
    %169 = vector.broadcast %39 : f32 to vector<16x64xf32>
    %170 = arith.mulf %169, %21 : vector<16x64xf32>
    %171 = vector.broadcast %40 : f32 to vector<16x64xf32>
    %172 = arith.mulf %171, %19 : vector<16x64xf32>
    %173 = arith.addf %168, %172 : vector<16x64xf32>
    %174 = vector.broadcast %40 : f32 to vector<16x64xf32>
    %175 = arith.mulf %174, %22 : vector<16x64xf32>
    %176 = arith.addf %170, %175 : vector<16x64xf32>
    %177 = vector.broadcast %41 : f32 to vector<16x64xf32>
    %178 = arith.mulf %177, %20 : vector<16x64xf32>
    %179 = arith.addf %173, %178 : vector<16x64xf32>
    %180 = vector.broadcast %41 : f32 to vector<16x64xf32>
    %181 = arith.mulf %180, %23 : vector<16x64xf32>
    %182 = arith.addf %176, %181 : vector<16x64xf32>
    %183 = vector.broadcast %42 : f32 to vector<16x64xf32>
    %184 = arith.mulf %183, %21 : vector<16x64xf32>
    %185 = arith.addf %179, %184 : vector<16x64xf32>
    %186 = vector.broadcast %42 : f32 to vector<16x64xf32>
    %187 = arith.mulf %186, %24 : vector<16x64xf32>
    %188 = arith.addf %182, %187 : vector<16x64xf32>
    %189 = vector.broadcast %43 : f32 to vector<16x64xf32>
    %190 = arith.mulf %189, %22 : vector<16x64xf32>
    %191 = arith.addf %185, %190 : vector<16x64xf32>
    %192 = vector.broadcast %43 : f32 to vector<16x64xf32>
    %193 = arith.mulf %192, %25 : vector<16x64xf32>
    %194 = arith.addf %188, %193 : vector<16x64xf32>
    %195 = vector.broadcast %44 : f32 to vector<16x64xf32>
    %196 = arith.mulf %195, %23 : vector<16x64xf32>
    %197 = arith.addf %191, %196 : vector<16x64xf32>
    %198 = vector.broadcast %44 : f32 to vector<16x64xf32>
    %199 = arith.mulf %198, %26 : vector<16x64xf32>
    %200 = arith.addf %194, %199 : vector<16x64xf32>
    %201 = vector.broadcast %45 : f32 to vector<16x64xf32>
    %202 = arith.mulf %201, %24 : vector<16x64xf32>
    %203 = arith.addf %197, %202 : vector<16x64xf32>
    %204 = vector.broadcast %45 : f32 to vector<16x64xf32>
    %205 = arith.mulf %204, %27 : vector<16x64xf32>
    %206 = arith.addf %200, %205 : vector<16x64xf32>
    %207 = vector.broadcast %46 : f32 to vector<16x64xf32>
    %208 = arith.mulf %207, %25 : vector<16x64xf32>
    %209 = arith.addf %203, %208 : vector<16x64xf32>
    %210 = vector.broadcast %46 : f32 to vector<16x64xf32>
    %211 = arith.mulf %210, %28 : vector<16x64xf32>
    %212 = arith.addf %206, %211 : vector<16x64xf32>
    %213 = vector.broadcast %47 : f32 to vector<16x64xf32>
    %214 = arith.mulf %213, %26 : vector<16x64xf32>
    %215 = arith.addf %209, %214 : vector<16x64xf32>
    %216 = vector.broadcast %47 : f32 to vector<16x64xf32>
    %217 = arith.mulf %216, %29 : vector<16x64xf32>
    %218 = arith.addf %212, %217 : vector<16x64xf32>
    %219 = arith.maximumf %215, %218 : vector<16x64xf32>
    %220 = vector.broadcast %103 : f32 to vector<16x64xf32>
    %221 = arith.addf %219, %220 : vector<16x64xf32>
    %cst_159 = arith.constant 0.000000e+00 : f32
    %222 = vector.broadcast %cst_159 : f32 to vector<16x64xf32>
    %223 = arith.maximumf %221, %222 : vector<16x64xf32>
    %224 = vector.broadcast %48 : f32 to vector<16x64xf32>
    %225 = arith.mulf %224, %18 : vector<16x64xf32>
    %226 = vector.broadcast %48 : f32 to vector<16x64xf32>
    %227 = arith.mulf %226, %21 : vector<16x64xf32>
    %228 = vector.broadcast %49 : f32 to vector<16x64xf32>
    %229 = arith.mulf %228, %19 : vector<16x64xf32>
    %230 = arith.addf %225, %229 : vector<16x64xf32>
    %231 = vector.broadcast %49 : f32 to vector<16x64xf32>
    %232 = arith.mulf %231, %22 : vector<16x64xf32>
    %233 = arith.addf %227, %232 : vector<16x64xf32>
    %234 = vector.broadcast %50 : f32 to vector<16x64xf32>
    %235 = arith.mulf %234, %20 : vector<16x64xf32>
    %236 = arith.addf %230, %235 : vector<16x64xf32>
    %237 = vector.broadcast %50 : f32 to vector<16x64xf32>
    %238 = arith.mulf %237, %23 : vector<16x64xf32>
    %239 = arith.addf %233, %238 : vector<16x64xf32>
    %240 = vector.broadcast %51 : f32 to vector<16x64xf32>
    %241 = arith.mulf %240, %21 : vector<16x64xf32>
    %242 = arith.addf %236, %241 : vector<16x64xf32>
    %243 = vector.broadcast %51 : f32 to vector<16x64xf32>
    %244 = arith.mulf %243, %24 : vector<16x64xf32>
    %245 = arith.addf %239, %244 : vector<16x64xf32>
    %246 = vector.broadcast %52 : f32 to vector<16x64xf32>
    %247 = arith.mulf %246, %22 : vector<16x64xf32>
    %248 = arith.addf %242, %247 : vector<16x64xf32>
    %249 = vector.broadcast %52 : f32 to vector<16x64xf32>
    %250 = arith.mulf %249, %25 : vector<16x64xf32>
    %251 = arith.addf %245, %250 : vector<16x64xf32>
    %252 = vector.broadcast %53 : f32 to vector<16x64xf32>
    %253 = arith.mulf %252, %23 : vector<16x64xf32>
    %254 = arith.addf %248, %253 : vector<16x64xf32>
    %255 = vector.broadcast %53 : f32 to vector<16x64xf32>
    %256 = arith.mulf %255, %26 : vector<16x64xf32>
    %257 = arith.addf %251, %256 : vector<16x64xf32>
    %258 = vector.broadcast %54 : f32 to vector<16x64xf32>
    %259 = arith.mulf %258, %24 : vector<16x64xf32>
    %260 = arith.addf %254, %259 : vector<16x64xf32>
    %261 = vector.broadcast %54 : f32 to vector<16x64xf32>
    %262 = arith.mulf %261, %27 : vector<16x64xf32>
    %263 = arith.addf %257, %262 : vector<16x64xf32>
    %264 = vector.broadcast %55 : f32 to vector<16x64xf32>
    %265 = arith.mulf %264, %25 : vector<16x64xf32>
    %266 = arith.addf %260, %265 : vector<16x64xf32>
    %267 = vector.broadcast %55 : f32 to vector<16x64xf32>
    %268 = arith.mulf %267, %28 : vector<16x64xf32>
    %269 = arith.addf %263, %268 : vector<16x64xf32>
    %270 = vector.broadcast %56 : f32 to vector<16x64xf32>
    %271 = arith.mulf %270, %26 : vector<16x64xf32>
    %272 = arith.addf %266, %271 : vector<16x64xf32>
    %273 = vector.broadcast %56 : f32 to vector<16x64xf32>
    %274 = arith.mulf %273, %29 : vector<16x64xf32>
    %275 = arith.addf %269, %274 : vector<16x64xf32>
    %276 = arith.maximumf %272, %275 : vector<16x64xf32>
    %277 = vector.broadcast %104 : f32 to vector<16x64xf32>
    %278 = arith.addf %276, %277 : vector<16x64xf32>
    %cst_160 = arith.constant 0.000000e+00 : f32
    %279 = vector.broadcast %cst_160 : f32 to vector<16x64xf32>
    %280 = arith.maximumf %278, %279 : vector<16x64xf32>
    %281 = vector.broadcast %57 : f32 to vector<16x64xf32>
    %282 = arith.mulf %281, %18 : vector<16x64xf32>
    %283 = vector.broadcast %57 : f32 to vector<16x64xf32>
    %284 = arith.mulf %283, %21 : vector<16x64xf32>
    %285 = vector.broadcast %58 : f32 to vector<16x64xf32>
    %286 = arith.mulf %285, %19 : vector<16x64xf32>
    %287 = arith.addf %282, %286 : vector<16x64xf32>
    %288 = vector.broadcast %58 : f32 to vector<16x64xf32>
    %289 = arith.mulf %288, %22 : vector<16x64xf32>
    %290 = arith.addf %284, %289 : vector<16x64xf32>
    %291 = vector.broadcast %59 : f32 to vector<16x64xf32>
    %292 = arith.mulf %291, %20 : vector<16x64xf32>
    %293 = arith.addf %287, %292 : vector<16x64xf32>
    %294 = vector.broadcast %59 : f32 to vector<16x64xf32>
    %295 = arith.mulf %294, %23 : vector<16x64xf32>
    %296 = arith.addf %290, %295 : vector<16x64xf32>
    %297 = vector.broadcast %60 : f32 to vector<16x64xf32>
    %298 = arith.mulf %297, %21 : vector<16x64xf32>
    %299 = arith.addf %293, %298 : vector<16x64xf32>
    %300 = vector.broadcast %60 : f32 to vector<16x64xf32>
    %301 = arith.mulf %300, %24 : vector<16x64xf32>
    %302 = arith.addf %296, %301 : vector<16x64xf32>
    %303 = vector.broadcast %61 : f32 to vector<16x64xf32>
    %304 = arith.mulf %303, %22 : vector<16x64xf32>
    %305 = arith.addf %299, %304 : vector<16x64xf32>
    %306 = vector.broadcast %61 : f32 to vector<16x64xf32>
    %307 = arith.mulf %306, %25 : vector<16x64xf32>
    %308 = arith.addf %302, %307 : vector<16x64xf32>
    %309 = vector.broadcast %62 : f32 to vector<16x64xf32>
    %310 = arith.mulf %309, %23 : vector<16x64xf32>
    %311 = arith.addf %305, %310 : vector<16x64xf32>
    %312 = vector.broadcast %62 : f32 to vector<16x64xf32>
    %313 = arith.mulf %312, %26 : vector<16x64xf32>
    %314 = arith.addf %308, %313 : vector<16x64xf32>
    %315 = vector.broadcast %63 : f32 to vector<16x64xf32>
    %316 = arith.mulf %315, %24 : vector<16x64xf32>
    %317 = arith.addf %311, %316 : vector<16x64xf32>
    %318 = vector.broadcast %63 : f32 to vector<16x64xf32>
    %319 = arith.mulf %318, %27 : vector<16x64xf32>
    %320 = arith.addf %314, %319 : vector<16x64xf32>
    %321 = vector.broadcast %64 : f32 to vector<16x64xf32>
    %322 = arith.mulf %321, %25 : vector<16x64xf32>
    %323 = arith.addf %317, %322 : vector<16x64xf32>
    %324 = vector.broadcast %64 : f32 to vector<16x64xf32>
    %325 = arith.mulf %324, %28 : vector<16x64xf32>
    %326 = arith.addf %320, %325 : vector<16x64xf32>
    %327 = vector.broadcast %65 : f32 to vector<16x64xf32>
    %328 = arith.mulf %327, %26 : vector<16x64xf32>
    %329 = arith.addf %323, %328 : vector<16x64xf32>
    %330 = vector.broadcast %65 : f32 to vector<16x64xf32>
    %331 = arith.mulf %330, %29 : vector<16x64xf32>
    %332 = arith.addf %326, %331 : vector<16x64xf32>
    %333 = arith.maximumf %329, %332 : vector<16x64xf32>
    %334 = vector.broadcast %105 : f32 to vector<16x64xf32>
    %335 = arith.addf %333, %334 : vector<16x64xf32>
    %cst_161 = arith.constant 0.000000e+00 : f32
    %336 = vector.broadcast %cst_161 : f32 to vector<16x64xf32>
    %337 = arith.maximumf %335, %336 : vector<16x64xf32>
    %338 = vector.broadcast %66 : f32 to vector<16x64xf32>
    %339 = arith.mulf %338, %18 : vector<16x64xf32>
    %340 = vector.broadcast %66 : f32 to vector<16x64xf32>
    %341 = arith.mulf %340, %21 : vector<16x64xf32>
    %342 = vector.broadcast %67 : f32 to vector<16x64xf32>
    %343 = arith.mulf %342, %19 : vector<16x64xf32>
    %344 = arith.addf %339, %343 : vector<16x64xf32>
    %345 = vector.broadcast %67 : f32 to vector<16x64xf32>
    %346 = arith.mulf %345, %22 : vector<16x64xf32>
    %347 = arith.addf %341, %346 : vector<16x64xf32>
    %348 = vector.broadcast %68 : f32 to vector<16x64xf32>
    %349 = arith.mulf %348, %20 : vector<16x64xf32>
    %350 = arith.addf %344, %349 : vector<16x64xf32>
    %351 = vector.broadcast %68 : f32 to vector<16x64xf32>
    %352 = arith.mulf %351, %23 : vector<16x64xf32>
    %353 = arith.addf %347, %352 : vector<16x64xf32>
    %354 = vector.broadcast %69 : f32 to vector<16x64xf32>
    %355 = arith.mulf %354, %21 : vector<16x64xf32>
    %356 = arith.addf %350, %355 : vector<16x64xf32>
    %357 = vector.broadcast %69 : f32 to vector<16x64xf32>
    %358 = arith.mulf %357, %24 : vector<16x64xf32>
    %359 = arith.addf %353, %358 : vector<16x64xf32>
    %360 = vector.broadcast %70 : f32 to vector<16x64xf32>
    %361 = arith.mulf %360, %22 : vector<16x64xf32>
    %362 = arith.addf %356, %361 : vector<16x64xf32>
    %363 = vector.broadcast %70 : f32 to vector<16x64xf32>
    %364 = arith.mulf %363, %25 : vector<16x64xf32>
    %365 = arith.addf %359, %364 : vector<16x64xf32>
    %366 = vector.broadcast %71 : f32 to vector<16x64xf32>
    %367 = arith.mulf %366, %23 : vector<16x64xf32>
    %368 = arith.addf %362, %367 : vector<16x64xf32>
    %369 = vector.broadcast %71 : f32 to vector<16x64xf32>
    %370 = arith.mulf %369, %26 : vector<16x64xf32>
    %371 = arith.addf %365, %370 : vector<16x64xf32>
    %372 = vector.broadcast %72 : f32 to vector<16x64xf32>
    %373 = arith.mulf %372, %24 : vector<16x64xf32>
    %374 = arith.addf %368, %373 : vector<16x64xf32>
    %375 = vector.broadcast %72 : f32 to vector<16x64xf32>
    %376 = arith.mulf %375, %27 : vector<16x64xf32>
    %377 = arith.addf %371, %376 : vector<16x64xf32>
    %378 = vector.broadcast %73 : f32 to vector<16x64xf32>
    %379 = arith.mulf %378, %25 : vector<16x64xf32>
    %380 = arith.addf %374, %379 : vector<16x64xf32>
    %381 = vector.broadcast %73 : f32 to vector<16x64xf32>
    %382 = arith.mulf %381, %28 : vector<16x64xf32>
    %383 = arith.addf %377, %382 : vector<16x64xf32>
    %384 = vector.broadcast %74 : f32 to vector<16x64xf32>
    %385 = arith.mulf %384, %26 : vector<16x64xf32>
    %386 = arith.addf %380, %385 : vector<16x64xf32>
    %387 = vector.broadcast %74 : f32 to vector<16x64xf32>
    %388 = arith.mulf %387, %29 : vector<16x64xf32>
    %389 = arith.addf %383, %388 : vector<16x64xf32>
    %390 = arith.maximumf %386, %389 : vector<16x64xf32>
    %391 = vector.broadcast %106 : f32 to vector<16x64xf32>
    %392 = arith.addf %390, %391 : vector<16x64xf32>
    %cst_162 = arith.constant 0.000000e+00 : f32
    %393 = vector.broadcast %cst_162 : f32 to vector<16x64xf32>
    %394 = arith.maximumf %392, %393 : vector<16x64xf32>
    %395 = vector.broadcast %75 : f32 to vector<16x64xf32>
    %396 = arith.mulf %395, %18 : vector<16x64xf32>
    %397 = vector.broadcast %75 : f32 to vector<16x64xf32>
    %398 = arith.mulf %397, %21 : vector<16x64xf32>
    %399 = vector.broadcast %76 : f32 to vector<16x64xf32>
    %400 = arith.mulf %399, %19 : vector<16x64xf32>
    %401 = arith.addf %396, %400 : vector<16x64xf32>
    %402 = vector.broadcast %76 : f32 to vector<16x64xf32>
    %403 = arith.mulf %402, %22 : vector<16x64xf32>
    %404 = arith.addf %398, %403 : vector<16x64xf32>
    %405 = vector.broadcast %77 : f32 to vector<16x64xf32>
    %406 = arith.mulf %405, %20 : vector<16x64xf32>
    %407 = arith.addf %401, %406 : vector<16x64xf32>
    %408 = vector.broadcast %77 : f32 to vector<16x64xf32>
    %409 = arith.mulf %408, %23 : vector<16x64xf32>
    %410 = arith.addf %404, %409 : vector<16x64xf32>
    %411 = vector.broadcast %78 : f32 to vector<16x64xf32>
    %412 = arith.mulf %411, %21 : vector<16x64xf32>
    %413 = arith.addf %407, %412 : vector<16x64xf32>
    %414 = vector.broadcast %78 : f32 to vector<16x64xf32>
    %415 = arith.mulf %414, %24 : vector<16x64xf32>
    %416 = arith.addf %410, %415 : vector<16x64xf32>
    %417 = vector.broadcast %79 : f32 to vector<16x64xf32>
    %418 = arith.mulf %417, %22 : vector<16x64xf32>
    %419 = arith.addf %413, %418 : vector<16x64xf32>
    %420 = vector.broadcast %79 : f32 to vector<16x64xf32>
    %421 = arith.mulf %420, %25 : vector<16x64xf32>
    %422 = arith.addf %416, %421 : vector<16x64xf32>
    %423 = vector.broadcast %80 : f32 to vector<16x64xf32>
    %424 = arith.mulf %423, %23 : vector<16x64xf32>
    %425 = arith.addf %419, %424 : vector<16x64xf32>
    %426 = vector.broadcast %80 : f32 to vector<16x64xf32>
    %427 = arith.mulf %426, %26 : vector<16x64xf32>
    %428 = arith.addf %422, %427 : vector<16x64xf32>
    %429 = vector.broadcast %81 : f32 to vector<16x64xf32>
    %430 = arith.mulf %429, %24 : vector<16x64xf32>
    %431 = arith.addf %425, %430 : vector<16x64xf32>
    %432 = vector.broadcast %81 : f32 to vector<16x64xf32>
    %433 = arith.mulf %432, %27 : vector<16x64xf32>
    %434 = arith.addf %428, %433 : vector<16x64xf32>
    %435 = vector.broadcast %82 : f32 to vector<16x64xf32>
    %436 = arith.mulf %435, %25 : vector<16x64xf32>
    %437 = arith.addf %431, %436 : vector<16x64xf32>
    %438 = vector.broadcast %82 : f32 to vector<16x64xf32>
    %439 = arith.mulf %438, %28 : vector<16x64xf32>
    %440 = arith.addf %434, %439 : vector<16x64xf32>
    %441 = vector.broadcast %83 : f32 to vector<16x64xf32>
    %442 = arith.mulf %441, %26 : vector<16x64xf32>
    %443 = arith.addf %437, %442 : vector<16x64xf32>
    %444 = vector.broadcast %83 : f32 to vector<16x64xf32>
    %445 = arith.mulf %444, %29 : vector<16x64xf32>
    %446 = arith.addf %440, %445 : vector<16x64xf32>
    %447 = arith.maximumf %443, %446 : vector<16x64xf32>
    %448 = vector.broadcast %107 : f32 to vector<16x64xf32>
    %449 = arith.addf %447, %448 : vector<16x64xf32>
    %cst_163 = arith.constant 0.000000e+00 : f32
    %450 = vector.broadcast %cst_163 : f32 to vector<16x64xf32>
    %451 = arith.maximumf %449, %450 : vector<16x64xf32>
    %452 = vector.broadcast %84 : f32 to vector<16x64xf32>
    %453 = arith.mulf %452, %18 : vector<16x64xf32>
    %454 = vector.broadcast %84 : f32 to vector<16x64xf32>
    %455 = arith.mulf %454, %21 : vector<16x64xf32>
    %456 = vector.broadcast %85 : f32 to vector<16x64xf32>
    %457 = arith.mulf %456, %19 : vector<16x64xf32>
    %458 = arith.addf %453, %457 : vector<16x64xf32>
    %459 = vector.broadcast %85 : f32 to vector<16x64xf32>
    %460 = arith.mulf %459, %22 : vector<16x64xf32>
    %461 = arith.addf %455, %460 : vector<16x64xf32>
    %462 = vector.broadcast %86 : f32 to vector<16x64xf32>
    %463 = arith.mulf %462, %20 : vector<16x64xf32>
    %464 = arith.addf %458, %463 : vector<16x64xf32>
    %465 = vector.broadcast %86 : f32 to vector<16x64xf32>
    %466 = arith.mulf %465, %23 : vector<16x64xf32>
    %467 = arith.addf %461, %466 : vector<16x64xf32>
    %468 = vector.broadcast %87 : f32 to vector<16x64xf32>
    %469 = arith.mulf %468, %21 : vector<16x64xf32>
    %470 = arith.addf %464, %469 : vector<16x64xf32>
    %471 = vector.broadcast %87 : f32 to vector<16x64xf32>
    %472 = arith.mulf %471, %24 : vector<16x64xf32>
    %473 = arith.addf %467, %472 : vector<16x64xf32>
    %474 = vector.broadcast %88 : f32 to vector<16x64xf32>
    %475 = arith.mulf %474, %22 : vector<16x64xf32>
    %476 = arith.addf %470, %475 : vector<16x64xf32>
    %477 = vector.broadcast %88 : f32 to vector<16x64xf32>
    %478 = arith.mulf %477, %25 : vector<16x64xf32>
    %479 = arith.addf %473, %478 : vector<16x64xf32>
    %480 = vector.broadcast %89 : f32 to vector<16x64xf32>
    %481 = arith.mulf %480, %23 : vector<16x64xf32>
    %482 = arith.addf %476, %481 : vector<16x64xf32>
    %483 = vector.broadcast %89 : f32 to vector<16x64xf32>
    %484 = arith.mulf %483, %26 : vector<16x64xf32>
    %485 = arith.addf %479, %484 : vector<16x64xf32>
    %486 = vector.broadcast %90 : f32 to vector<16x64xf32>
    %487 = arith.mulf %486, %24 : vector<16x64xf32>
    %488 = arith.addf %482, %487 : vector<16x64xf32>
    %489 = vector.broadcast %90 : f32 to vector<16x64xf32>
    %490 = arith.mulf %489, %27 : vector<16x64xf32>
    %491 = arith.addf %485, %490 : vector<16x64xf32>
    %492 = vector.broadcast %91 : f32 to vector<16x64xf32>
    %493 = arith.mulf %492, %25 : vector<16x64xf32>
    %494 = arith.addf %488, %493 : vector<16x64xf32>
    %495 = vector.broadcast %91 : f32 to vector<16x64xf32>
    %496 = arith.mulf %495, %28 : vector<16x64xf32>
    %497 = arith.addf %491, %496 : vector<16x64xf32>
    %498 = vector.broadcast %92 : f32 to vector<16x64xf32>
    %499 = arith.mulf %498, %26 : vector<16x64xf32>
    %500 = arith.addf %494, %499 : vector<16x64xf32>
    %501 = vector.broadcast %92 : f32 to vector<16x64xf32>
    %502 = arith.mulf %501, %29 : vector<16x64xf32>
    %503 = arith.addf %497, %502 : vector<16x64xf32>
    %504 = arith.maximumf %500, %503 : vector<16x64xf32>
    %505 = vector.broadcast %108 : f32 to vector<16x64xf32>
    %506 = arith.addf %504, %505 : vector<16x64xf32>
    %cst_164 = arith.constant 0.000000e+00 : f32
    %507 = vector.broadcast %cst_164 : f32 to vector<16x64xf32>
    %508 = arith.maximumf %506, %507 : vector<16x64xf32>
    %509 = vector.broadcast %93 : f32 to vector<16x64xf32>
    %510 = arith.mulf %509, %18 : vector<16x64xf32>
    %511 = vector.broadcast %93 : f32 to vector<16x64xf32>
    %512 = arith.mulf %511, %21 : vector<16x64xf32>
    %513 = vector.broadcast %94 : f32 to vector<16x64xf32>
    %514 = arith.mulf %513, %19 : vector<16x64xf32>
    %515 = arith.addf %510, %514 : vector<16x64xf32>
    %516 = vector.broadcast %94 : f32 to vector<16x64xf32>
    %517 = arith.mulf %516, %22 : vector<16x64xf32>
    %518 = arith.addf %512, %517 : vector<16x64xf32>
    %519 = vector.broadcast %95 : f32 to vector<16x64xf32>
    %520 = arith.mulf %519, %20 : vector<16x64xf32>
    %521 = arith.addf %515, %520 : vector<16x64xf32>
    %522 = vector.broadcast %95 : f32 to vector<16x64xf32>
    %523 = arith.mulf %522, %23 : vector<16x64xf32>
    %524 = arith.addf %518, %523 : vector<16x64xf32>
    %525 = vector.broadcast %96 : f32 to vector<16x64xf32>
    %526 = arith.mulf %525, %21 : vector<16x64xf32>
    %527 = arith.addf %521, %526 : vector<16x64xf32>
    %528 = vector.broadcast %96 : f32 to vector<16x64xf32>
    %529 = arith.mulf %528, %24 : vector<16x64xf32>
    %530 = arith.addf %524, %529 : vector<16x64xf32>
    %531 = vector.broadcast %97 : f32 to vector<16x64xf32>
    %532 = arith.mulf %531, %22 : vector<16x64xf32>
    %533 = arith.addf %527, %532 : vector<16x64xf32>
    %534 = vector.broadcast %97 : f32 to vector<16x64xf32>
    %535 = arith.mulf %534, %25 : vector<16x64xf32>
    %536 = arith.addf %530, %535 : vector<16x64xf32>
    %537 = vector.broadcast %98 : f32 to vector<16x64xf32>
    %538 = arith.mulf %537, %23 : vector<16x64xf32>
    %539 = arith.addf %533, %538 : vector<16x64xf32>
    %540 = vector.broadcast %98 : f32 to vector<16x64xf32>
    %541 = arith.mulf %540, %26 : vector<16x64xf32>
    %542 = arith.addf %536, %541 : vector<16x64xf32>
    %543 = vector.broadcast %99 : f32 to vector<16x64xf32>
    %544 = arith.mulf %543, %24 : vector<16x64xf32>
    %545 = arith.addf %539, %544 : vector<16x64xf32>
    %546 = vector.broadcast %99 : f32 to vector<16x64xf32>
    %547 = arith.mulf %546, %27 : vector<16x64xf32>
    %548 = arith.addf %542, %547 : vector<16x64xf32>
    %549 = vector.broadcast %100 : f32 to vector<16x64xf32>
    %550 = arith.mulf %549, %25 : vector<16x64xf32>
    %551 = arith.addf %545, %550 : vector<16x64xf32>
    %552 = vector.broadcast %100 : f32 to vector<16x64xf32>
    %553 = arith.mulf %552, %28 : vector<16x64xf32>
    %554 = arith.addf %548, %553 : vector<16x64xf32>
    %555 = vector.broadcast %101 : f32 to vector<16x64xf32>
    %556 = arith.mulf %555, %26 : vector<16x64xf32>
    %557 = arith.addf %551, %556 : vector<16x64xf32>
    %558 = vector.broadcast %101 : f32 to vector<16x64xf32>
    %559 = arith.mulf %558, %29 : vector<16x64xf32>
    %560 = arith.addf %554, %559 : vector<16x64xf32>
    %561 = arith.maximumf %557, %560 : vector<16x64xf32>
    %562 = vector.broadcast %109 : f32 to vector<16x64xf32>
    %563 = arith.addf %561, %562 : vector<16x64xf32>
    %cst_165 = arith.constant 0.000000e+00 : f32
    %564 = vector.broadcast %cst_165 : f32 to vector<16x64xf32>
    %565 = arith.maximumf %563, %564 : vector<16x64xf32>
    %566 = tpu.concatenate %166, %223, %280, %337, %394, %451, %508, %565 in 0 : vector<16x64xf32>, vector<16x64xf32>, vector<16x64xf32>, vector<16x64xf32>, vector<16x64xf32>, vector<16x64xf32>, vector<16x64xf32>, vector<16x64xf32> -> vector<128x64xf32>
    %c0_166 = arith.constant 0 : index
    %c0_167 = arith.constant 0 : index
    %567 = vector.load %arg3[%c0_166, %c0_167] : memref<64x64xf32, #tpu.memory_space<vmem>>, vector<64x64xf32>
    %cst_168 = arith.constant dense<0.000000e+00> : vector<128x64xf32>
    %568 = tpu.matmul %566, %567, %cst_168 {dimension_numbers = #tpu.dot_dimension_numbers<[1], [0], [0], [1], [0, 0, 1, 1], [], []>} : vector<128x64xf32>, vector<64x64xf32>, vector<128x64xf32> -> vector<128x64xf32>
    %569 = vector.extract_strided_slice %568 {offsets = [0, 0], sizes = [128, 32], strides = [1, 1]} : vector<128x64xf32> to vector<128x32xf32>
    %570 = vector.extract_strided_slice %568 {offsets = [0, 32], sizes = [128, 32], strides = [1, 1]} : vector<128x64xf32> to vector<128x32xf32>
    %571 = arith.maximumf %569, %570 : vector<128x32xf32>
    %572 = vector.extract_strided_slice %571 {offsets = [0, 0], sizes = [16, 32], strides = [1, 1]} : vector<128x32xf32> to vector<16x32xf32>
    %573 = vector.extract_strided_slice %571 {offsets = [16, 0], sizes = [16, 32], strides = [1, 1]} : vector<128x32xf32> to vector<16x32xf32>
    %574 = vector.extract_strided_slice %571 {offsets = [32, 0], sizes = [16, 32], strides = [1, 1]} : vector<128x32xf32> to vector<16x32xf32>
    %575 = vector.extract_strided_slice %571 {offsets = [48, 0], sizes = [16, 32], strides = [1, 1]} : vector<128x32xf32> to vector<16x32xf32>
    %576 = vector.extract_strided_slice %571 {offsets = [64, 0], sizes = [16, 32], strides = [1, 1]} : vector<128x32xf32> to vector<16x32xf32>
    %577 = vector.extract_strided_slice %571 {offsets = [80, 0], sizes = [16, 32], strides = [1, 1]} : vector<128x32xf32> to vector<16x32xf32>
    %578 = vector.extract_strided_slice %571 {offsets = [96, 0], sizes = [16, 32], strides = [1, 1]} : vector<128x32xf32> to vector<16x32xf32>
    %579 = vector.extract_strided_slice %571 {offsets = [112, 0], sizes = [16, 32], strides = [1, 1]} : vector<128x32xf32> to vector<16x32xf32>
    %580 = tpu.concatenate %572, %573, %574, %575, %576, %577, %578, %579 in 1 : vector<16x32xf32>, vector<16x32xf32>, vector<16x32xf32>, vector<16x32xf32>, vector<16x32xf32>, vector<16x32xf32>, vector<16x32xf32>, vector<16x32xf32> -> vector<16x256xf32>
    %c0_169 = arith.constant 0 : index
    %c0_170 = arith.constant 0 : index
    %c0_171 = arith.constant 0 : index
    %581 = vector.load %arg6[%c0_169, %c0_170, %c0_171] : memref<1x16x256xf32, #tpu.memory_space<vmem>>, vector<1x16x256xf32>
    %582 = vector.shape_cast %581 : vector<1x16x256xf32> to vector<16x256xf32>
    %583 = vector.shape_cast %580 : vector<16x256xf32> to vector<1x16x256xf32>
    tpu.vector_store %arg6[%c0_169, %c0_170, %c0_171], %583 {strides = array<i32>} : memref<1x16x256xf32, #tpu.memory_space<vmem>>, vector<1x16x256xf32>,
    return
  }
  func.func @transform_0(%arg0: i32, %arg1: i32) -> (i32, i32, i32) {
    %c0_i32 = arith.constant 0 : i32
    %c0_i32_0 = arith.constant 0 : i32
    %c0_i32_1 = arith.constant 0 : i32
    return %arg0, %c0_i32, %c0_i32_0 : i32, i32, i32
  }
  func.func @transform_1(%arg0: i32, %arg1: i32) -> (i32, i32) {
    %c0_i32 = arith.constant 0 : i32
    %c0_i32_0 = arith.constant 0 : i32
    %c0_i32_1 = arith.constant 0 : i32
    return %c0_i32, %c0_i32_0 : i32, i32
  }
  func.func @transform_2(%arg0: i32, %arg1: i32) -> (i32, i32) {
    %c0_i32 = arith.constant 0 : i32
    %c0_i32_0 = arith.constant 0 : i32
    %c0_i32_1 = arith.constant 0 : i32
    return %c0_i32, %c0_i32_0 : i32, i32
  }
  func.func @transform_3(%arg0: i32, %arg1: i32) -> (i32, i32) {
    %c0_i32 = arith.constant 0 : i32
    %c0_i32_0 = arith.constant 0 : i32
    %c0_i32_1 = arith.constant 0 : i32
    return %c0_i32, %c0_i32_0 : i32, i32
  }
  func.func @transform_4(%arg0: i32, %arg1: i32) -> (i32, i32, i32) {
    %c0_i32 = arith.constant 0 : i32
    %c0_i32_0 = arith.constant 0 : i32
    return %arg0, %arg1, %c0_i32 : i32, i32, i32
  }
}

module attributes {stable_mosaic.version = 11 : i64} {
  func.func @_layer2_kernel(%arg0: i32, %arg1: i32, %arg2: memref<1x306x16xf32, #tpu.memory_space<vmem>>, %arg3: memref<72x16xbf16, #tpu.memory_space<vmem>>, %arg4: memref<1x16xf32, #tpu.memory_space<vmem>>, %arg5: memref<1x128x16xf32, #tpu.memory_space<vmem>>) attributes {dimension_semantics = [#tpu.dimension_semantics<parallel>, #tpu.dimension_semantics<parallel>], iteration_bounds = array<i64: 2, 1>, scalar_prefetch = 0 : i64, scratch_operands = 0 : i64, tpu.core_type = #tpu.core_type<tc>, window_params = [{transform_indices = @transform_0, window_bounds = array<i64: 1, 306, 16>}, {pipeline_mode = #tpu.pipeline_mode<synchronous>, transform_indices = @transform_1, window_bounds = array<i64: 72, 16>}, {pipeline_mode = #tpu.pipeline_mode<synchronous>, transform_indices = @transform_2, window_bounds = array<i64: 1, 16>}, {transform_indices = @transform_3, window_bounds = array<i64: 1, 128, 16>}]} {
    %c8_i32 = arith.constant 8 : i32
    %0 = arith.muli %arg1, %c8_i32 : i32
    %c0_i32 = arith.constant 0 : i32
    %1 = arith.addi %0, %c0_i32 : i32
    %c2_i32 = arith.constant 2 : i32
    %2 = arith.muli %c2_i32, %1 : i32
    %c0_i32_0 = arith.constant 0 : i32
    %3 = arith.addi %2, %c0_i32_0 : i32
    %c17_i32 = arith.constant 17 : i32
    %4 = arith.muli %3, %c17_i32 : i32
    %c0_i32_1 = arith.constant 0 : i32
    %5 = arith.addi %4, %c0_i32_1 : i32
    %c0 = arith.constant 0 : index
    %6 = arith.index_cast %5 : i32 to index
    %c0_2 = arith.constant 0 : index
    %7 = vector.load %arg2[%c0, %6, %c0_2] : memref<1x306x16xf32, #tpu.memory_space<vmem>>, vector<1x16x8xf32>
    %8 = vector.shape_cast %7 : vector<1x16x8xf32> to vector<16x8xf32>
    %c0_i32_3 = arith.constant 0 : i32
    %9 = arith.addi %4, %c0_i32_3 : i32
    %c0_4 = arith.constant 0 : index
    %10 = arith.index_cast %9 : i32 to index
    %c8 = arith.constant 8 : index
    %11 = vector.load %arg2[%c0_4, %10, %c8] : memref<1x306x16xf32, #tpu.memory_space<vmem>>, vector<1x16x8xf32>
    %12 = vector.shape_cast %11 : vector<1x16x8xf32> to vector<16x8xf32>
    %c1_i32 = arith.constant 1 : i32
    %13 = arith.addi %4, %c1_i32 : i32
    %c0_5 = arith.constant 0 : index
    %14 = arith.index_cast %13 : i32 to index
    %c0_6 = arith.constant 0 : index
    %15 = vector.load %arg2[%c0_5, %14, %c0_6] : memref<1x306x16xf32, #tpu.memory_space<vmem>>, vector<1x16x8xf32>
    %16 = vector.shape_cast %15 : vector<1x16x8xf32> to vector<16x8xf32>
    %c0_i32_7 = arith.constant 0 : i32
    %17 = arith.addi %0, %c0_i32_7 : i32
    %c2_i32_8 = arith.constant 2 : i32
    %18 = arith.muli %c2_i32_8, %17 : i32
    %c1_i32_9 = arith.constant 1 : i32
    %19 = arith.addi %18, %c1_i32_9 : i32
    %c17_i32_10 = arith.constant 17 : i32
    %20 = arith.muli %19, %c17_i32_10 : i32
    %c0_i32_11 = arith.constant 0 : i32
    %21 = arith.addi %20, %c0_i32_11 : i32
    %c0_12 = arith.constant 0 : index
    %22 = arith.index_cast %21 : i32 to index
    %c0_13 = arith.constant 0 : index
    %23 = vector.load %arg2[%c0_12, %22, %c0_13] : memref<1x306x16xf32, #tpu.memory_space<vmem>>, vector<1x16x8xf32>
    %24 = vector.shape_cast %23 : vector<1x16x8xf32> to vector<16x8xf32>
    %c0_i32_14 = arith.constant 0 : i32
    %25 = arith.addi %20, %c0_i32_14 : i32
    %c0_15 = arith.constant 0 : index
    %26 = arith.index_cast %25 : i32 to index
    %c8_16 = arith.constant 8 : index
    %27 = vector.load %arg2[%c0_15, %26, %c8_16] : memref<1x306x16xf32, #tpu.memory_space<vmem>>, vector<1x16x8xf32>
    %28 = vector.shape_cast %27 : vector<1x16x8xf32> to vector<16x8xf32>
    %c1_i32_17 = arith.constant 1 : i32
    %29 = arith.addi %20, %c1_i32_17 : i32
    %c0_18 = arith.constant 0 : index
    %30 = arith.index_cast %29 : i32 to index
    %c0_19 = arith.constant 0 : index
    %31 = vector.load %arg2[%c0_18, %30, %c0_19] : memref<1x306x16xf32, #tpu.memory_space<vmem>>, vector<1x16x8xf32>
    %32 = vector.shape_cast %31 : vector<1x16x8xf32> to vector<16x8xf32>
    %c0_i32_20 = arith.constant 0 : i32
    %33 = arith.addi %0, %c0_i32_20 : i32
    %c2_i32_21 = arith.constant 2 : i32
    %34 = arith.muli %c2_i32_21, %33 : i32
    %c2_i32_22 = arith.constant 2 : i32
    %35 = arith.addi %34, %c2_i32_22 : i32
    %c17_i32_23 = arith.constant 17 : i32
    %36 = arith.muli %35, %c17_i32_23 : i32
    %c0_i32_24 = arith.constant 0 : i32
    %37 = arith.addi %36, %c0_i32_24 : i32
    %c0_25 = arith.constant 0 : index
    %38 = arith.index_cast %37 : i32 to index
    %c0_26 = arith.constant 0 : index
    %39 = vector.load %arg2[%c0_25, %38, %c0_26] : memref<1x306x16xf32, #tpu.memory_space<vmem>>, vector<1x16x8xf32>
    %40 = vector.shape_cast %39 : vector<1x16x8xf32> to vector<16x8xf32>
    %c0_i32_27 = arith.constant 0 : i32
    %41 = arith.addi %36, %c0_i32_27 : i32
    %c0_28 = arith.constant 0 : index
    %42 = arith.index_cast %41 : i32 to index
    %c8_29 = arith.constant 8 : index
    %43 = vector.load %arg2[%c0_28, %42, %c8_29] : memref<1x306x16xf32, #tpu.memory_space<vmem>>, vector<1x16x8xf32>
    %44 = vector.shape_cast %43 : vector<1x16x8xf32> to vector<16x8xf32>
    %c1_i32_30 = arith.constant 1 : i32
    %45 = arith.addi %36, %c1_i32_30 : i32
    %c0_31 = arith.constant 0 : index
    %46 = arith.index_cast %45 : i32 to index
    %c0_32 = arith.constant 0 : index
    %47 = vector.load %arg2[%c0_31, %46, %c0_32] : memref<1x306x16xf32, #tpu.memory_space<vmem>>, vector<1x16x8xf32>
    %48 = vector.shape_cast %47 : vector<1x16x8xf32> to vector<16x8xf32>
    %49 = tpu.concatenate %8, %12, %16, %24, %28, %32, %40, %44, %48 in 1 : vector<16x8xf32>, vector<16x8xf32>, vector<16x8xf32>, vector<16x8xf32>, vector<16x8xf32>, vector<16x8xf32>, vector<16x8xf32>, vector<16x8xf32>, vector<16x8xf32> -> vector<16x72xf32>
    %c1_i32_33 = arith.constant 1 : i32
    %50 = arith.addi %0, %c1_i32_33 : i32
    %c2_i32_34 = arith.constant 2 : i32
    %51 = arith.muli %c2_i32_34, %50 : i32
    %c0_i32_35 = arith.constant 0 : i32
    %52 = arith.addi %51, %c0_i32_35 : i32
    %c17_i32_36 = arith.constant 17 : i32
    %53 = arith.muli %52, %c17_i32_36 : i32
    %c0_i32_37 = arith.constant 0 : i32
    %54 = arith.addi %53, %c0_i32_37 : i32
    %c0_38 = arith.constant 0 : index
    %55 = arith.index_cast %54 : i32 to index
    %c0_39 = arith.constant 0 : index
    %56 = vector.load %arg2[%c0_38, %55, %c0_39] : memref<1x306x16xf32, #tpu.memory_space<vmem>>, vector<1x16x8xf32>
    %57 = vector.shape_cast %56 : vector<1x16x8xf32> to vector<16x8xf32>
    %c0_i32_40 = arith.constant 0 : i32
    %58 = arith.addi %53, %c0_i32_40 : i32
    %c0_41 = arith.constant 0 : index
    %59 = arith.index_cast %58 : i32 to index
    %c8_42 = arith.constant 8 : index
    %60 = vector.load %arg2[%c0_41, %59, %c8_42] : memref<1x306x16xf32, #tpu.memory_space<vmem>>, vector<1x16x8xf32>
    %61 = vector.shape_cast %60 : vector<1x16x8xf32> to vector<16x8xf32>
    %c1_i32_43 = arith.constant 1 : i32
    %62 = arith.addi %53, %c1_i32_43 : i32
    %c0_44 = arith.constant 0 : index
    %63 = arith.index_cast %62 : i32 to index
    %c0_45 = arith.constant 0 : index
    %64 = vector.load %arg2[%c0_44, %63, %c0_45] : memref<1x306x16xf32, #tpu.memory_space<vmem>>, vector<1x16x8xf32>
    %65 = vector.shape_cast %64 : vector<1x16x8xf32> to vector<16x8xf32>
    %c1_i32_46 = arith.constant 1 : i32
    %66 = arith.addi %0, %c1_i32_46 : i32
    %c2_i32_47 = arith.constant 2 : i32
    %67 = arith.muli %c2_i32_47, %66 : i32
    %c1_i32_48 = arith.constant 1 : i32
    %68 = arith.addi %67, %c1_i32_48 : i32
    %c17_i32_49 = arith.constant 17 : i32
    %69 = arith.muli %68, %c17_i32_49 : i32
    %c0_i32_50 = arith.constant 0 : i32
    %70 = arith.addi %69, %c0_i32_50 : i32
    %c0_51 = arith.constant 0 : index
    %71 = arith.index_cast %70 : i32 to index
    %c0_52 = arith.constant 0 : index
    %72 = vector.load %arg2[%c0_51, %71, %c0_52] : memref<1x306x16xf32, #tpu.memory_space<vmem>>, vector<1x16x8xf32>
    %73 = vector.shape_cast %72 : vector<1x16x8xf32> to vector<16x8xf32>
    %c0_i32_53 = arith.constant 0 : i32
    %74 = arith.addi %69, %c0_i32_53 : i32
    %c0_54 = arith.constant 0 : index
    %75 = arith.index_cast %74 : i32 to index
    %c8_55 = arith.constant 8 : index
    %76 = vector.load %arg2[%c0_54, %75, %c8_55] : memref<1x306x16xf32, #tpu.memory_space<vmem>>, vector<1x16x8xf32>
    %77 = vector.shape_cast %76 : vector<1x16x8xf32> to vector<16x8xf32>
    %c1_i32_56 = arith.constant 1 : i32
    %78 = arith.addi %69, %c1_i32_56 : i32
    %c0_57 = arith.constant 0 : index
    %79 = arith.index_cast %78 : i32 to index
    %c0_58 = arith.constant 0 : index
    %80 = vector.load %arg2[%c0_57, %79, %c0_58] : memref<1x306x16xf32, #tpu.memory_space<vmem>>, vector<1x16x8xf32>
    %81 = vector.shape_cast %80 : vector<1x16x8xf32> to vector<16x8xf32>
    %c1_i32_59 = arith.constant 1 : i32
    %82 = arith.addi %0, %c1_i32_59 : i32
    %c2_i32_60 = arith.constant 2 : i32
    %83 = arith.muli %c2_i32_60, %82 : i32
    %c2_i32_61 = arith.constant 2 : i32
    %84 = arith.addi %83, %c2_i32_61 : i32
    %c17_i32_62 = arith.constant 17 : i32
    %85 = arith.muli %84, %c17_i32_62 : i32
    %c0_i32_63 = arith.constant 0 : i32
    %86 = arith.addi %85, %c0_i32_63 : i32
    %c0_64 = arith.constant 0 : index
    %87 = arith.index_cast %86 : i32 to index
    %c0_65 = arith.constant 0 : index
    %88 = vector.load %arg2[%c0_64, %87, %c0_65] : memref<1x306x16xf32, #tpu.memory_space<vmem>>, vector<1x16x8xf32>
    %89 = vector.shape_cast %88 : vector<1x16x8xf32> to vector<16x8xf32>
    %c0_i32_66 = arith.constant 0 : i32
    %90 = arith.addi %85, %c0_i32_66 : i32
    %c0_67 = arith.constant 0 : index
    %91 = arith.index_cast %90 : i32 to index
    %c8_68 = arith.constant 8 : index
    %92 = vector.load %arg2[%c0_67, %91, %c8_68] : memref<1x306x16xf32, #tpu.memory_space<vmem>>, vector<1x16x8xf32>
    %93 = vector.shape_cast %92 : vector<1x16x8xf32> to vector<16x8xf32>
    %c1_i32_69 = arith.constant 1 : i32
    %94 = arith.addi %85, %c1_i32_69 : i32
    %c0_70 = arith.constant 0 : index
    %95 = arith.index_cast %94 : i32 to index
    %c0_71 = arith.constant 0 : index
    %96 = vector.load %arg2[%c0_70, %95, %c0_71] : memref<1x306x16xf32, #tpu.memory_space<vmem>>, vector<1x16x8xf32>
    %97 = vector.shape_cast %96 : vector<1x16x8xf32> to vector<16x8xf32>
    %98 = tpu.concatenate %57, %61, %65, %73, %77, %81, %89, %93, %97 in 1 : vector<16x8xf32>, vector<16x8xf32>, vector<16x8xf32>, vector<16x8xf32>, vector<16x8xf32>, vector<16x8xf32>, vector<16x8xf32>, vector<16x8xf32>, vector<16x8xf32> -> vector<16x72xf32>
    %c2_i32_72 = arith.constant 2 : i32
    %99 = arith.addi %0, %c2_i32_72 : i32
    %c2_i32_73 = arith.constant 2 : i32
    %100 = arith.muli %c2_i32_73, %99 : i32
    %c0_i32_74 = arith.constant 0 : i32
    %101 = arith.addi %100, %c0_i32_74 : i32
    %c17_i32_75 = arith.constant 17 : i32
    %102 = arith.muli %101, %c17_i32_75 : i32
    %c0_i32_76 = arith.constant 0 : i32
    %103 = arith.addi %102, %c0_i32_76 : i32
    %c0_77 = arith.constant 0 : index
    %104 = arith.index_cast %103 : i32 to index
    %c0_78 = arith.constant 0 : index
    %105 = vector.load %arg2[%c0_77, %104, %c0_78] : memref<1x306x16xf32, #tpu.memory_space<vmem>>, vector<1x16x8xf32>
    %106 = vector.shape_cast %105 : vector<1x16x8xf32> to vector<16x8xf32>
    %c0_i32_79 = arith.constant 0 : i32
    %107 = arith.addi %102, %c0_i32_79 : i32
    %c0_80 = arith.constant 0 : index
    %108 = arith.index_cast %107 : i32 to index
    %c8_81 = arith.constant 8 : index
    %109 = vector.load %arg2[%c0_80, %108, %c8_81] : memref<1x306x16xf32, #tpu.memory_space<vmem>>, vector<1x16x8xf32>
    %110 = vector.shape_cast %109 : vector<1x16x8xf32> to vector<16x8xf32>
    %c1_i32_82 = arith.constant 1 : i32
    %111 = arith.addi %102, %c1_i32_82 : i32
    %c0_83 = arith.constant 0 : index
    %112 = arith.index_cast %111 : i32 to index
    %c0_84 = arith.constant 0 : index
    %113 = vector.load %arg2[%c0_83, %112, %c0_84] : memref<1x306x16xf32, #tpu.memory_space<vmem>>, vector<1x16x8xf32>
    %114 = vector.shape_cast %113 : vector<1x16x8xf32> to vector<16x8xf32>
    %c2_i32_85 = arith.constant 2 : i32
    %115 = arith.addi %0, %c2_i32_85 : i32
    %c2_i32_86 = arith.constant 2 : i32
    %116 = arith.muli %c2_i32_86, %115 : i32
    %c1_i32_87 = arith.constant 1 : i32
    %117 = arith.addi %116, %c1_i32_87 : i32
    %c17_i32_88 = arith.constant 17 : i32
    %118 = arith.muli %117, %c17_i32_88 : i32
    %c0_i32_89 = arith.constant 0 : i32
    %119 = arith.addi %118, %c0_i32_89 : i32
    %c0_90 = arith.constant 0 : index
    %120 = arith.index_cast %119 : i32 to index
    %c0_91 = arith.constant 0 : index
    %121 = vector.load %arg2[%c0_90, %120, %c0_91] : memref<1x306x16xf32, #tpu.memory_space<vmem>>, vector<1x16x8xf32>
    %122 = vector.shape_cast %121 : vector<1x16x8xf32> to vector<16x8xf32>
    %c0_i32_92 = arith.constant 0 : i32
    %123 = arith.addi %118, %c0_i32_92 : i32
    %c0_93 = arith.constant 0 : index
    %124 = arith.index_cast %123 : i32 to index
    %c8_94 = arith.constant 8 : index
    %125 = vector.load %arg2[%c0_93, %124, %c8_94] : memref<1x306x16xf32, #tpu.memory_space<vmem>>, vector<1x16x8xf32>
    %126 = vector.shape_cast %125 : vector<1x16x8xf32> to vector<16x8xf32>
    %c1_i32_95 = arith.constant 1 : i32
    %127 = arith.addi %118, %c1_i32_95 : i32
    %c0_96 = arith.constant 0 : index
    %128 = arith.index_cast %127 : i32 to index
    %c0_97 = arith.constant 0 : index
    %129 = vector.load %arg2[%c0_96, %128, %c0_97] : memref<1x306x16xf32, #tpu.memory_space<vmem>>, vector<1x16x8xf32>
    %130 = vector.shape_cast %129 : vector<1x16x8xf32> to vector<16x8xf32>
    %c2_i32_98 = arith.constant 2 : i32
    %131 = arith.addi %0, %c2_i32_98 : i32
    %c2_i32_99 = arith.constant 2 : i32
    %132 = arith.muli %c2_i32_99, %131 : i32
    %c2_i32_100 = arith.constant 2 : i32
    %133 = arith.addi %132, %c2_i32_100 : i32
    %c17_i32_101 = arith.constant 17 : i32
    %134 = arith.muli %133, %c17_i32_101 : i32
    %c0_i32_102 = arith.constant 0 : i32
    %135 = arith.addi %134, %c0_i32_102 : i32
    %c0_103 = arith.constant 0 : index
    %136 = arith.index_cast %135 : i32 to index
    %c0_104 = arith.constant 0 : index
    %137 = vector.load %arg2[%c0_103, %136, %c0_104] : memref<1x306x16xf32, #tpu.memory_space<vmem>>, vector<1x16x8xf32>
    %138 = vector.shape_cast %137 : vector<1x16x8xf32> to vector<16x8xf32>
    %c0_i32_105 = arith.constant 0 : i32
    %139 = arith.addi %134, %c0_i32_105 : i32
    %c0_106 = arith.constant 0 : index
    %140 = arith.index_cast %139 : i32 to index
    %c8_107 = arith.constant 8 : index
    %141 = vector.load %arg2[%c0_106, %140, %c8_107] : memref<1x306x16xf32, #tpu.memory_space<vmem>>, vector<1x16x8xf32>
    %142 = vector.shape_cast %141 : vector<1x16x8xf32> to vector<16x8xf32>
    %c1_i32_108 = arith.constant 1 : i32
    %143 = arith.addi %134, %c1_i32_108 : i32
    %c0_109 = arith.constant 0 : index
    %144 = arith.index_cast %143 : i32 to index
    %c0_110 = arith.constant 0 : index
    %145 = vector.load %arg2[%c0_109, %144, %c0_110] : memref<1x306x16xf32, #tpu.memory_space<vmem>>, vector<1x16x8xf32>
    %146 = vector.shape_cast %145 : vector<1x16x8xf32> to vector<16x8xf32>
    %147 = tpu.concatenate %106, %110, %114, %122, %126, %130, %138, %142, %146 in 1 : vector<16x8xf32>, vector<16x8xf32>, vector<16x8xf32>, vector<16x8xf32>, vector<16x8xf32>, vector<16x8xf32>, vector<16x8xf32>, vector<16x8xf32>, vector<16x8xf32> -> vector<16x72xf32>
    %c3_i32 = arith.constant 3 : i32
    %148 = arith.addi %0, %c3_i32 : i32
    %c2_i32_111 = arith.constant 2 : i32
    %149 = arith.muli %c2_i32_111, %148 : i32
    %c0_i32_112 = arith.constant 0 : i32
    %150 = arith.addi %149, %c0_i32_112 : i32
    %c17_i32_113 = arith.constant 17 : i32
    %151 = arith.muli %150, %c17_i32_113 : i32
    %c0_i32_114 = arith.constant 0 : i32
    %152 = arith.addi %151, %c0_i32_114 : i32
    %c0_115 = arith.constant 0 : index
    %153 = arith.index_cast %152 : i32 to index
    %c0_116 = arith.constant 0 : index
    %154 = vector.load %arg2[%c0_115, %153, %c0_116] : memref<1x306x16xf32, #tpu.memory_space<vmem>>, vector<1x16x8xf32>
    %155 = vector.shape_cast %154 : vector<1x16x8xf32> to vector<16x8xf32>
    %c0_i32_117 = arith.constant 0 : i32
    %156 = arith.addi %151, %c0_i32_117 : i32
    %c0_118 = arith.constant 0 : index
    %157 = arith.index_cast %156 : i32 to index
    %c8_119 = arith.constant 8 : index
    %158 = vector.load %arg2[%c0_118, %157, %c8_119] : memref<1x306x16xf32, #tpu.memory_space<vmem>>, vector<1x16x8xf32>
    %159 = vector.shape_cast %158 : vector<1x16x8xf32> to vector<16x8xf32>
    %c1_i32_120 = arith.constant 1 : i32
    %160 = arith.addi %151, %c1_i32_120 : i32
    %c0_121 = arith.constant 0 : index
    %161 = arith.index_cast %160 : i32 to index
    %c0_122 = arith.constant 0 : index
    %162 = vector.load %arg2[%c0_121, %161, %c0_122] : memref<1x306x16xf32, #tpu.memory_space<vmem>>, vector<1x16x8xf32>
    %163 = vector.shape_cast %162 : vector<1x16x8xf32> to vector<16x8xf32>
    %c3_i32_123 = arith.constant 3 : i32
    %164 = arith.addi %0, %c3_i32_123 : i32
    %c2_i32_124 = arith.constant 2 : i32
    %165 = arith.muli %c2_i32_124, %164 : i32
    %c1_i32_125 = arith.constant 1 : i32
    %166 = arith.addi %165, %c1_i32_125 : i32
    %c17_i32_126 = arith.constant 17 : i32
    %167 = arith.muli %166, %c17_i32_126 : i32
    %c0_i32_127 = arith.constant 0 : i32
    %168 = arith.addi %167, %c0_i32_127 : i32
    %c0_128 = arith.constant 0 : index
    %169 = arith.index_cast %168 : i32 to index
    %c0_129 = arith.constant 0 : index
    %170 = vector.load %arg2[%c0_128, %169, %c0_129] : memref<1x306x16xf32, #tpu.memory_space<vmem>>, vector<1x16x8xf32>
    %171 = vector.shape_cast %170 : vector<1x16x8xf32> to vector<16x8xf32>
    %c0_i32_130 = arith.constant 0 : i32
    %172 = arith.addi %167, %c0_i32_130 : i32
    %c0_131 = arith.constant 0 : index
    %173 = arith.index_cast %172 : i32 to index
    %c8_132 = arith.constant 8 : index
    %174 = vector.load %arg2[%c0_131, %173, %c8_132] : memref<1x306x16xf32, #tpu.memory_space<vmem>>, vector<1x16x8xf32>
    %175 = vector.shape_cast %174 : vector<1x16x8xf32> to vector<16x8xf32>
    %c1_i32_133 = arith.constant 1 : i32
    %176 = arith.addi %167, %c1_i32_133 : i32
    %c0_134 = arith.constant 0 : index
    %177 = arith.index_cast %176 : i32 to index
    %c0_135 = arith.constant 0 : index
    %178 = vector.load %arg2[%c0_134, %177, %c0_135] : memref<1x306x16xf32, #tpu.memory_space<vmem>>, vector<1x16x8xf32>
    %179 = vector.shape_cast %178 : vector<1x16x8xf32> to vector<16x8xf32>
    %c3_i32_136 = arith.constant 3 : i32
    %180 = arith.addi %0, %c3_i32_136 : i32
    %c2_i32_137 = arith.constant 2 : i32
    %181 = arith.muli %c2_i32_137, %180 : i32
    %c2_i32_138 = arith.constant 2 : i32
    %182 = arith.addi %181, %c2_i32_138 : i32
    %c17_i32_139 = arith.constant 17 : i32
    %183 = arith.muli %182, %c17_i32_139 : i32
    %c0_i32_140 = arith.constant 0 : i32
    %184 = arith.addi %183, %c0_i32_140 : i32
    %c0_141 = arith.constant 0 : index
    %185 = arith.index_cast %184 : i32 to index
    %c0_142 = arith.constant 0 : index
    %186 = vector.load %arg2[%c0_141, %185, %c0_142] : memref<1x306x16xf32, #tpu.memory_space<vmem>>, vector<1x16x8xf32>
    %187 = vector.shape_cast %186 : vector<1x16x8xf32> to vector<16x8xf32>
    %c0_i32_143 = arith.constant 0 : i32
    %188 = arith.addi %183, %c0_i32_143 : i32
    %c0_144 = arith.constant 0 : index
    %189 = arith.index_cast %188 : i32 to index
    %c8_145 = arith.constant 8 : index
    %190 = vector.load %arg2[%c0_144, %189, %c8_145] : memref<1x306x16xf32, #tpu.memory_space<vmem>>, vector<1x16x8xf32>
    %191 = vector.shape_cast %190 : vector<1x16x8xf32> to vector<16x8xf32>
    %c1_i32_146 = arith.constant 1 : i32
    %192 = arith.addi %183, %c1_i32_146 : i32
    %c0_147 = arith.constant 0 : index
    %193 = arith.index_cast %192 : i32 to index
    %c0_148 = arith.constant 0 : index
    %194 = vector.load %arg2[%c0_147, %193, %c0_148] : memref<1x306x16xf32, #tpu.memory_space<vmem>>, vector<1x16x8xf32>
    %195 = vector.shape_cast %194 : vector<1x16x8xf32> to vector<16x8xf32>
    %196 = tpu.concatenate %155, %159, %163, %171, %175, %179, %187, %191, %195 in 1 : vector<16x8xf32>, vector<16x8xf32>, vector<16x8xf32>, vector<16x8xf32>, vector<16x8xf32>, vector<16x8xf32>, vector<16x8xf32>, vector<16x8xf32>, vector<16x8xf32> -> vector<16x72xf32>
    %c4_i32 = arith.constant 4 : i32
    %197 = arith.addi %0, %c4_i32 : i32
    %c2_i32_149 = arith.constant 2 : i32
    %198 = arith.muli %c2_i32_149, %197 : i32
    %c0_i32_150 = arith.constant 0 : i32
    %199 = arith.addi %198, %c0_i32_150 : i32
    %c17_i32_151 = arith.constant 17 : i32
    %200 = arith.muli %199, %c17_i32_151 : i32
    %c0_i32_152 = arith.constant 0 : i32
    %201 = arith.addi %200, %c0_i32_152 : i32
    %c0_153 = arith.constant 0 : index
    %202 = arith.index_cast %201 : i32 to index
    %c0_154 = arith.constant 0 : index
    %203 = vector.load %arg2[%c0_153, %202, %c0_154] : memref<1x306x16xf32, #tpu.memory_space<vmem>>, vector<1x16x8xf32>
    %204 = vector.shape_cast %203 : vector<1x16x8xf32> to vector<16x8xf32>
    %c0_i32_155 = arith.constant 0 : i32
    %205 = arith.addi %200, %c0_i32_155 : i32
    %c0_156 = arith.constant 0 : index
    %206 = arith.index_cast %205 : i32 to index
    %c8_157 = arith.constant 8 : index
    %207 = vector.load %arg2[%c0_156, %206, %c8_157] : memref<1x306x16xf32, #tpu.memory_space<vmem>>, vector<1x16x8xf32>
    %208 = vector.shape_cast %207 : vector<1x16x8xf32> to vector<16x8xf32>
    %c1_i32_158 = arith.constant 1 : i32
    %209 = arith.addi %200, %c1_i32_158 : i32
    %c0_159 = arith.constant 0 : index
    %210 = arith.index_cast %209 : i32 to index
    %c0_160 = arith.constant 0 : index
    %211 = vector.load %arg2[%c0_159, %210, %c0_160] : memref<1x306x16xf32, #tpu.memory_space<vmem>>, vector<1x16x8xf32>
    %212 = vector.shape_cast %211 : vector<1x16x8xf32> to vector<16x8xf32>
    %c4_i32_161 = arith.constant 4 : i32
    %213 = arith.addi %0, %c4_i32_161 : i32
    %c2_i32_162 = arith.constant 2 : i32
    %214 = arith.muli %c2_i32_162, %213 : i32
    %c1_i32_163 = arith.constant 1 : i32
    %215 = arith.addi %214, %c1_i32_163 : i32
    %c17_i32_164 = arith.constant 17 : i32
    %216 = arith.muli %215, %c17_i32_164 : i32
    %c0_i32_165 = arith.constant 0 : i32
    %217 = arith.addi %216, %c0_i32_165 : i32
    %c0_166 = arith.constant 0 : index
    %218 = arith.index_cast %217 : i32 to index
    %c0_167 = arith.constant 0 : index
    %219 = vector.load %arg2[%c0_166, %218, %c0_167] : memref<1x306x16xf32, #tpu.memory_space<vmem>>, vector<1x16x8xf32>
    %220 = vector.shape_cast %219 : vector<1x16x8xf32> to vector<16x8xf32>
    %c0_i32_168 = arith.constant 0 : i32
    %221 = arith.addi %216, %c0_i32_168 : i32
    %c0_169 = arith.constant 0 : index
    %222 = arith.index_cast %221 : i32 to index
    %c8_170 = arith.constant 8 : index
    %223 = vector.load %arg2[%c0_169, %222, %c8_170] : memref<1x306x16xf32, #tpu.memory_space<vmem>>, vector<1x16x8xf32>
    %224 = vector.shape_cast %223 : vector<1x16x8xf32> to vector<16x8xf32>
    %c1_i32_171 = arith.constant 1 : i32
    %225 = arith.addi %216, %c1_i32_171 : i32
    %c0_172 = arith.constant 0 : index
    %226 = arith.index_cast %225 : i32 to index
    %c0_173 = arith.constant 0 : index
    %227 = vector.load %arg2[%c0_172, %226, %c0_173] : memref<1x306x16xf32, #tpu.memory_space<vmem>>, vector<1x16x8xf32>
    %228 = vector.shape_cast %227 : vector<1x16x8xf32> to vector<16x8xf32>
    %c4_i32_174 = arith.constant 4 : i32
    %229 = arith.addi %0, %c4_i32_174 : i32
    %c2_i32_175 = arith.constant 2 : i32
    %230 = arith.muli %c2_i32_175, %229 : i32
    %c2_i32_176 = arith.constant 2 : i32
    %231 = arith.addi %230, %c2_i32_176 : i32
    %c17_i32_177 = arith.constant 17 : i32
    %232 = arith.muli %231, %c17_i32_177 : i32
    %c0_i32_178 = arith.constant 0 : i32
    %233 = arith.addi %232, %c0_i32_178 : i32
    %c0_179 = arith.constant 0 : index
    %234 = arith.index_cast %233 : i32 to index
    %c0_180 = arith.constant 0 : index
    %235 = vector.load %arg2[%c0_179, %234, %c0_180] : memref<1x306x16xf32, #tpu.memory_space<vmem>>, vector<1x16x8xf32>
    %236 = vector.shape_cast %235 : vector<1x16x8xf32> to vector<16x8xf32>
    %c0_i32_181 = arith.constant 0 : i32
    %237 = arith.addi %232, %c0_i32_181 : i32
    %c0_182 = arith.constant 0 : index
    %238 = arith.index_cast %237 : i32 to index
    %c8_183 = arith.constant 8 : index
    %239 = vector.load %arg2[%c0_182, %238, %c8_183] : memref<1x306x16xf32, #tpu.memory_space<vmem>>, vector<1x16x8xf32>
    %240 = vector.shape_cast %239 : vector<1x16x8xf32> to vector<16x8xf32>
    %c1_i32_184 = arith.constant 1 : i32
    %241 = arith.addi %232, %c1_i32_184 : i32
    %c0_185 = arith.constant 0 : index
    %242 = arith.index_cast %241 : i32 to index
    %c0_186 = arith.constant 0 : index
    %243 = vector.load %arg2[%c0_185, %242, %c0_186] : memref<1x306x16xf32, #tpu.memory_space<vmem>>, vector<1x16x8xf32>
    %244 = vector.shape_cast %243 : vector<1x16x8xf32> to vector<16x8xf32>
    %245 = tpu.concatenate %204, %208, %212, %220, %224, %228, %236, %240, %244 in 1 : vector<16x8xf32>, vector<16x8xf32>, vector<16x8xf32>, vector<16x8xf32>, vector<16x8xf32>, vector<16x8xf32>, vector<16x8xf32>, vector<16x8xf32>, vector<16x8xf32> -> vector<16x72xf32>
    %c5_i32 = arith.constant 5 : i32
    %246 = arith.addi %0, %c5_i32 : i32
    %c2_i32_187 = arith.constant 2 : i32
    %247 = arith.muli %c2_i32_187, %246 : i32
    %c0_i32_188 = arith.constant 0 : i32
    %248 = arith.addi %247, %c0_i32_188 : i32
    %c17_i32_189 = arith.constant 17 : i32
    %249 = arith.muli %248, %c17_i32_189 : i32
    %c0_i32_190 = arith.constant 0 : i32
    %250 = arith.addi %249, %c0_i32_190 : i32
    %c0_191 = arith.constant 0 : index
    %251 = arith.index_cast %250 : i32 to index
    %c0_192 = arith.constant 0 : index
    %252 = vector.load %arg2[%c0_191, %251, %c0_192] : memref<1x306x16xf32, #tpu.memory_space<vmem>>, vector<1x16x8xf32>
    %253 = vector.shape_cast %252 : vector<1x16x8xf32> to vector<16x8xf32>
    %c0_i32_193 = arith.constant 0 : i32
    %254 = arith.addi %249, %c0_i32_193 : i32
    %c0_194 = arith.constant 0 : index
    %255 = arith.index_cast %254 : i32 to index
    %c8_195 = arith.constant 8 : index
    %256 = vector.load %arg2[%c0_194, %255, %c8_195] : memref<1x306x16xf32, #tpu.memory_space<vmem>>, vector<1x16x8xf32>
    %257 = vector.shape_cast %256 : vector<1x16x8xf32> to vector<16x8xf32>
    %c1_i32_196 = arith.constant 1 : i32
    %258 = arith.addi %249, %c1_i32_196 : i32
    %c0_197 = arith.constant 0 : index
    %259 = arith.index_cast %258 : i32 to index
    %c0_198 = arith.constant 0 : index
    %260 = vector.load %arg2[%c0_197, %259, %c0_198] : memref<1x306x16xf32, #tpu.memory_space<vmem>>, vector<1x16x8xf32>
    %261 = vector.shape_cast %260 : vector<1x16x8xf32> to vector<16x8xf32>
    %c5_i32_199 = arith.constant 5 : i32
    %262 = arith.addi %0, %c5_i32_199 : i32
    %c2_i32_200 = arith.constant 2 : i32
    %263 = arith.muli %c2_i32_200, %262 : i32
    %c1_i32_201 = arith.constant 1 : i32
    %264 = arith.addi %263, %c1_i32_201 : i32
    %c17_i32_202 = arith.constant 17 : i32
    %265 = arith.muli %264, %c17_i32_202 : i32
    %c0_i32_203 = arith.constant 0 : i32
    %266 = arith.addi %265, %c0_i32_203 : i32
    %c0_204 = arith.constant 0 : index
    %267 = arith.index_cast %266 : i32 to index
    %c0_205 = arith.constant 0 : index
    %268 = vector.load %arg2[%c0_204, %267, %c0_205] : memref<1x306x16xf32, #tpu.memory_space<vmem>>, vector<1x16x8xf32>
    %269 = vector.shape_cast %268 : vector<1x16x8xf32> to vector<16x8xf32>
    %c0_i32_206 = arith.constant 0 : i32
    %270 = arith.addi %265, %c0_i32_206 : i32
    %c0_207 = arith.constant 0 : index
    %271 = arith.index_cast %270 : i32 to index
    %c8_208 = arith.constant 8 : index
    %272 = vector.load %arg2[%c0_207, %271, %c8_208] : memref<1x306x16xf32, #tpu.memory_space<vmem>>, vector<1x16x8xf32>
    %273 = vector.shape_cast %272 : vector<1x16x8xf32> to vector<16x8xf32>
    %c1_i32_209 = arith.constant 1 : i32
    %274 = arith.addi %265, %c1_i32_209 : i32
    %c0_210 = arith.constant 0 : index
    %275 = arith.index_cast %274 : i32 to index
    %c0_211 = arith.constant 0 : index
    %276 = vector.load %arg2[%c0_210, %275, %c0_211] : memref<1x306x16xf32, #tpu.memory_space<vmem>>, vector<1x16x8xf32>
    %277 = vector.shape_cast %276 : vector<1x16x8xf32> to vector<16x8xf32>
    %c5_i32_212 = arith.constant 5 : i32
    %278 = arith.addi %0, %c5_i32_212 : i32
    %c2_i32_213 = arith.constant 2 : i32
    %279 = arith.muli %c2_i32_213, %278 : i32
    %c2_i32_214 = arith.constant 2 : i32
    %280 = arith.addi %279, %c2_i32_214 : i32
    %c17_i32_215 = arith.constant 17 : i32
    %281 = arith.muli %280, %c17_i32_215 : i32
    %c0_i32_216 = arith.constant 0 : i32
    %282 = arith.addi %281, %c0_i32_216 : i32
    %c0_217 = arith.constant 0 : index
    %283 = arith.index_cast %282 : i32 to index
    %c0_218 = arith.constant 0 : index
    %284 = vector.load %arg2[%c0_217, %283, %c0_218] : memref<1x306x16xf32, #tpu.memory_space<vmem>>, vector<1x16x8xf32>
    %285 = vector.shape_cast %284 : vector<1x16x8xf32> to vector<16x8xf32>
    %c0_i32_219 = arith.constant 0 : i32
    %286 = arith.addi %281, %c0_i32_219 : i32
    %c0_220 = arith.constant 0 : index
    %287 = arith.index_cast %286 : i32 to index
    %c8_221 = arith.constant 8 : index
    %288 = vector.load %arg2[%c0_220, %287, %c8_221] : memref<1x306x16xf32, #tpu.memory_space<vmem>>, vector<1x16x8xf32>
    %289 = vector.shape_cast %288 : vector<1x16x8xf32> to vector<16x8xf32>
    %c1_i32_222 = arith.constant 1 : i32
    %290 = arith.addi %281, %c1_i32_222 : i32
    %c0_223 = arith.constant 0 : index
    %291 = arith.index_cast %290 : i32 to index
    %c0_224 = arith.constant 0 : index
    %292 = vector.load %arg2[%c0_223, %291, %c0_224] : memref<1x306x16xf32, #tpu.memory_space<vmem>>, vector<1x16x8xf32>
    %293 = vector.shape_cast %292 : vector<1x16x8xf32> to vector<16x8xf32>
    %294 = tpu.concatenate %253, %257, %261, %269, %273, %277, %285, %289, %293 in 1 : vector<16x8xf32>, vector<16x8xf32>, vector<16x8xf32>, vector<16x8xf32>, vector<16x8xf32>, vector<16x8xf32>, vector<16x8xf32>, vector<16x8xf32>, vector<16x8xf32> -> vector<16x72xf32>
    %c6_i32 = arith.constant 6 : i32
    %295 = arith.addi %0, %c6_i32 : i32
    %c2_i32_225 = arith.constant 2 : i32
    %296 = arith.muli %c2_i32_225, %295 : i32
    %c0_i32_226 = arith.constant 0 : i32
    %297 = arith.addi %296, %c0_i32_226 : i32
    %c17_i32_227 = arith.constant 17 : i32
    %298 = arith.muli %297, %c17_i32_227 : i32
    %c0_i32_228 = arith.constant 0 : i32
    %299 = arith.addi %298, %c0_i32_228 : i32
    %c0_229 = arith.constant 0 : index
    %300 = arith.index_cast %299 : i32 to index
    %c0_230 = arith.constant 0 : index
    %301 = vector.load %arg2[%c0_229, %300, %c0_230] : memref<1x306x16xf32, #tpu.memory_space<vmem>>, vector<1x16x8xf32>
    %302 = vector.shape_cast %301 : vector<1x16x8xf32> to vector<16x8xf32>
    %c0_i32_231 = arith.constant 0 : i32
    %303 = arith.addi %298, %c0_i32_231 : i32
    %c0_232 = arith.constant 0 : index
    %304 = arith.index_cast %303 : i32 to index
    %c8_233 = arith.constant 8 : index
    %305 = vector.load %arg2[%c0_232, %304, %c8_233] : memref<1x306x16xf32, #tpu.memory_space<vmem>>, vector<1x16x8xf32>
    %306 = vector.shape_cast %305 : vector<1x16x8xf32> to vector<16x8xf32>
    %c1_i32_234 = arith.constant 1 : i32
    %307 = arith.addi %298, %c1_i32_234 : i32
    %c0_235 = arith.constant 0 : index
    %308 = arith.index_cast %307 : i32 to index
    %c0_236 = arith.constant 0 : index
    %309 = vector.load %arg2[%c0_235, %308, %c0_236] : memref<1x306x16xf32, #tpu.memory_space<vmem>>, vector<1x16x8xf32>
    %310 = vector.shape_cast %309 : vector<1x16x8xf32> to vector<16x8xf32>
    %c6_i32_237 = arith.constant 6 : i32
    %311 = arith.addi %0, %c6_i32_237 : i32
    %c2_i32_238 = arith.constant 2 : i32
    %312 = arith.muli %c2_i32_238, %311 : i32
    %c1_i32_239 = arith.constant 1 : i32
    %313 = arith.addi %312, %c1_i32_239 : i32
    %c17_i32_240 = arith.constant 17 : i32
    %314 = arith.muli %313, %c17_i32_240 : i32
    %c0_i32_241 = arith.constant 0 : i32
    %315 = arith.addi %314, %c0_i32_241 : i32
    %c0_242 = arith.constant 0 : index
    %316 = arith.index_cast %315 : i32 to index
    %c0_243 = arith.constant 0 : index
    %317 = vector.load %arg2[%c0_242, %316, %c0_243] : memref<1x306x16xf32, #tpu.memory_space<vmem>>, vector<1x16x8xf32>
    %318 = vector.shape_cast %317 : vector<1x16x8xf32> to vector<16x8xf32>
    %c0_i32_244 = arith.constant 0 : i32
    %319 = arith.addi %314, %c0_i32_244 : i32
    %c0_245 = arith.constant 0 : index
    %320 = arith.index_cast %319 : i32 to index
    %c8_246 = arith.constant 8 : index
    %321 = vector.load %arg2[%c0_245, %320, %c8_246] : memref<1x306x16xf32, #tpu.memory_space<vmem>>, vector<1x16x8xf32>
    %322 = vector.shape_cast %321 : vector<1x16x8xf32> to vector<16x8xf32>
    %c1_i32_247 = arith.constant 1 : i32
    %323 = arith.addi %314, %c1_i32_247 : i32
    %c0_248 = arith.constant 0 : index
    %324 = arith.index_cast %323 : i32 to index
    %c0_249 = arith.constant 0 : index
    %325 = vector.load %arg2[%c0_248, %324, %c0_249] : memref<1x306x16xf32, #tpu.memory_space<vmem>>, vector<1x16x8xf32>
    %326 = vector.shape_cast %325 : vector<1x16x8xf32> to vector<16x8xf32>
    %c6_i32_250 = arith.constant 6 : i32
    %327 = arith.addi %0, %c6_i32_250 : i32
    %c2_i32_251 = arith.constant 2 : i32
    %328 = arith.muli %c2_i32_251, %327 : i32
    %c2_i32_252 = arith.constant 2 : i32
    %329 = arith.addi %328, %c2_i32_252 : i32
    %c17_i32_253 = arith.constant 17 : i32
    %330 = arith.muli %329, %c17_i32_253 : i32
    %c0_i32_254 = arith.constant 0 : i32
    %331 = arith.addi %330, %c0_i32_254 : i32
    %c0_255 = arith.constant 0 : index
    %332 = arith.index_cast %331 : i32 to index
    %c0_256 = arith.constant 0 : index
    %333 = vector.load %arg2[%c0_255, %332, %c0_256] : memref<1x306x16xf32, #tpu.memory_space<vmem>>, vector<1x16x8xf32>
    %334 = vector.shape_cast %333 : vector<1x16x8xf32> to vector<16x8xf32>
    %c0_i32_257 = arith.constant 0 : i32
    %335 = arith.addi %330, %c0_i32_257 : i32
    %c0_258 = arith.constant 0 : index
    %336 = arith.index_cast %335 : i32 to index
    %c8_259 = arith.constant 8 : index
    %337 = vector.load %arg2[%c0_258, %336, %c8_259] : memref<1x306x16xf32, #tpu.memory_space<vmem>>, vector<1x16x8xf32>
    %338 = vector.shape_cast %337 : vector<1x16x8xf32> to vector<16x8xf32>
    %c1_i32_260 = arith.constant 1 : i32
    %339 = arith.addi %330, %c1_i32_260 : i32
    %c0_261 = arith.constant 0 : index
    %340 = arith.index_cast %339 : i32 to index
    %c0_262 = arith.constant 0 : index
    %341 = vector.load %arg2[%c0_261, %340, %c0_262] : memref<1x306x16xf32, #tpu.memory_space<vmem>>, vector<1x16x8xf32>
    %342 = vector.shape_cast %341 : vector<1x16x8xf32> to vector<16x8xf32>
    %343 = tpu.concatenate %302, %306, %310, %318, %322, %326, %334, %338, %342 in 1 : vector<16x8xf32>, vector<16x8xf32>, vector<16x8xf32>, vector<16x8xf32>, vector<16x8xf32>, vector<16x8xf32>, vector<16x8xf32>, vector<16x8xf32>, vector<16x8xf32> -> vector<16x72xf32>
    %c7_i32 = arith.constant 7 : i32
    %344 = arith.addi %0, %c7_i32 : i32
    %c2_i32_263 = arith.constant 2 : i32
    %345 = arith.muli %c2_i32_263, %344 : i32
    %c0_i32_264 = arith.constant 0 : i32
    %346 = arith.addi %345, %c0_i32_264 : i32
    %c17_i32_265 = arith.constant 17 : i32
    %347 = arith.muli %346, %c17_i32_265 : i32
    %c0_i32_266 = arith.constant 0 : i32
    %348 = arith.addi %347, %c0_i32_266 : i32
    %c0_267 = arith.constant 0 : index
    %349 = arith.index_cast %348 : i32 to index
    %c0_268 = arith.constant 0 : index
    %350 = vector.load %arg2[%c0_267, %349, %c0_268] : memref<1x306x16xf32, #tpu.memory_space<vmem>>, vector<1x16x8xf32>
    %351 = vector.shape_cast %350 : vector<1x16x8xf32> to vector<16x8xf32>
    %c0_i32_269 = arith.constant 0 : i32
    %352 = arith.addi %347, %c0_i32_269 : i32
    %c0_270 = arith.constant 0 : index
    %353 = arith.index_cast %352 : i32 to index
    %c8_271 = arith.constant 8 : index
    %354 = vector.load %arg2[%c0_270, %353, %c8_271] : memref<1x306x16xf32, #tpu.memory_space<vmem>>, vector<1x16x8xf32>
    %355 = vector.shape_cast %354 : vector<1x16x8xf32> to vector<16x8xf32>
    %c1_i32_272 = arith.constant 1 : i32
    %356 = arith.addi %347, %c1_i32_272 : i32
    %c0_273 = arith.constant 0 : index
    %357 = arith.index_cast %356 : i32 to index
    %c0_274 = arith.constant 0 : index
    %358 = vector.load %arg2[%c0_273, %357, %c0_274] : memref<1x306x16xf32, #tpu.memory_space<vmem>>, vector<1x16x8xf32>
    %359 = vector.shape_cast %358 : vector<1x16x8xf32> to vector<16x8xf32>
    %c7_i32_275 = arith.constant 7 : i32
    %360 = arith.addi %0, %c7_i32_275 : i32
    %c2_i32_276 = arith.constant 2 : i32
    %361 = arith.muli %c2_i32_276, %360 : i32
    %c1_i32_277 = arith.constant 1 : i32
    %362 = arith.addi %361, %c1_i32_277 : i32
    %c17_i32_278 = arith.constant 17 : i32
    %363 = arith.muli %362, %c17_i32_278 : i32
    %c0_i32_279 = arith.constant 0 : i32
    %364 = arith.addi %363, %c0_i32_279 : i32
    %c0_280 = arith.constant 0 : index
    %365 = arith.index_cast %364 : i32 to index
    %c0_281 = arith.constant 0 : index
    %366 = vector.load %arg2[%c0_280, %365, %c0_281] : memref<1x306x16xf32, #tpu.memory_space<vmem>>, vector<1x16x8xf32>
    %367 = vector.shape_cast %366 : vector<1x16x8xf32> to vector<16x8xf32>
    %c0_i32_282 = arith.constant 0 : i32
    %368 = arith.addi %363, %c0_i32_282 : i32
    %c0_283 = arith.constant 0 : index
    %369 = arith.index_cast %368 : i32 to index
    %c8_284 = arith.constant 8 : index
    %370 = vector.load %arg2[%c0_283, %369, %c8_284] : memref<1x306x16xf32, #tpu.memory_space<vmem>>, vector<1x16x8xf32>
    %371 = vector.shape_cast %370 : vector<1x16x8xf32> to vector<16x8xf32>
    %c1_i32_285 = arith.constant 1 : i32
    %372 = arith.addi %363, %c1_i32_285 : i32
    %c0_286 = arith.constant 0 : index
    %373 = arith.index_cast %372 : i32 to index
    %c0_287 = arith.constant 0 : index
    %374 = vector.load %arg2[%c0_286, %373, %c0_287] : memref<1x306x16xf32, #tpu.memory_space<vmem>>, vector<1x16x8xf32>
    %375 = vector.shape_cast %374 : vector<1x16x8xf32> to vector<16x8xf32>
    %c7_i32_288 = arith.constant 7 : i32
    %376 = arith.addi %0, %c7_i32_288 : i32
    %c2_i32_289 = arith.constant 2 : i32
    %377 = arith.muli %c2_i32_289, %376 : i32
    %c2_i32_290 = arith.constant 2 : i32
    %378 = arith.addi %377, %c2_i32_290 : i32
    %c17_i32_291 = arith.constant 17 : i32
    %379 = arith.muli %378, %c17_i32_291 : i32
    %c0_i32_292 = arith.constant 0 : i32
    %380 = arith.addi %379, %c0_i32_292 : i32
    %c0_293 = arith.constant 0 : index
    %381 = arith.index_cast %380 : i32 to index
    %c0_294 = arith.constant 0 : index
    %382 = vector.load %arg2[%c0_293, %381, %c0_294] : memref<1x306x16xf32, #tpu.memory_space<vmem>>, vector<1x16x8xf32>
    %383 = vector.shape_cast %382 : vector<1x16x8xf32> to vector<16x8xf32>
    %c0_i32_295 = arith.constant 0 : i32
    %384 = arith.addi %379, %c0_i32_295 : i32
    %c0_296 = arith.constant 0 : index
    %385 = arith.index_cast %384 : i32 to index
    %c8_297 = arith.constant 8 : index
    %386 = vector.load %arg2[%c0_296, %385, %c8_297] : memref<1x306x16xf32, #tpu.memory_space<vmem>>, vector<1x16x8xf32>
    %387 = vector.shape_cast %386 : vector<1x16x8xf32> to vector<16x8xf32>
    %c1_i32_298 = arith.constant 1 : i32
    %388 = arith.addi %379, %c1_i32_298 : i32
    %c0_299 = arith.constant 0 : index
    %389 = arith.index_cast %388 : i32 to index
    %c0_300 = arith.constant 0 : index
    %390 = vector.load %arg2[%c0_299, %389, %c0_300] : memref<1x306x16xf32, #tpu.memory_space<vmem>>, vector<1x16x8xf32>
    %391 = vector.shape_cast %390 : vector<1x16x8xf32> to vector<16x8xf32>
    %392 = tpu.concatenate %351, %355, %359, %367, %371, %375, %383, %387, %391 in 1 : vector<16x8xf32>, vector<16x8xf32>, vector<16x8xf32>, vector<16x8xf32>, vector<16x8xf32>, vector<16x8xf32>, vector<16x8xf32>, vector<16x8xf32>, vector<16x8xf32> -> vector<16x72xf32>
    %393 = tpu.concatenate %49, %98, %147, %196, %245, %294, %343, %392 in 0 : vector<16x72xf32>, vector<16x72xf32>, vector<16x72xf32>, vector<16x72xf32>, vector<16x72xf32>, vector<16x72xf32>, vector<16x72xf32>, vector<16x72xf32> -> vector<128x72xf32>
    %394 = arith.truncf %393 : vector<128x72xf32> to vector<128x72xbf16>
    %c0_301 = arith.constant 0 : index
    %c0_302 = arith.constant 0 : index
    %395 = vector.load %arg3[%c0_301, %c0_302] : memref<72x16xbf16, #tpu.memory_space<vmem>>, vector<72x16xbf16>
    %cst = arith.constant dense<0.000000e+00> : vector<128x16xf32>
    %396 = tpu.matmul %394, %395, %cst {dimension_numbers = #tpu.dot_dimension_numbers<[1], [0], [0], [1], [0, 0, 1, 1], [], []>} : vector<128x72xbf16>, vector<72x16xbf16>, vector<128x16xf32> -> vector<128x16xf32>
    %c0_303 = arith.constant 0 : index
    %c0_304 = arith.constant 0 : index
    %397 = vector.load %arg4[%c0_303, %c0_304] : memref<1x16xf32, #tpu.memory_space<vmem>>, vector<1x16xf32>
    %398 = vector.broadcast %397 : vector<1x16xf32> to vector<128x16xf32>
    %399 = arith.addf %396, %398 : vector<128x16xf32>
    %cst_305 = arith.constant 0.000000e+00 : f32
    %400 = vector.broadcast %cst_305 : f32 to vector<128x16xf32>
    %401 = arith.maximumf %399, %400 : vector<128x16xf32>
    %c0_306 = arith.constant 0 : index
    %c0_307 = arith.constant 0 : index
    %c0_308 = arith.constant 0 : index
    %402 = vector.load %arg5[%c0_306, %c0_307, %c0_308] : memref<1x128x16xf32, #tpu.memory_space<vmem>>, vector<1x128x16xf32>
    %403 = vector.shape_cast %402 : vector<1x128x16xf32> to vector<128x16xf32>
    %404 = vector.shape_cast %401 : vector<128x16xf32> to vector<1x128x16xf32>
    tpu.vector_store %arg5[%c0_306, %c0_307, %c0_308], %404 {strides = array<i32>} : memref<1x128x16xf32, #tpu.memory_space<vmem>>, vector<1x128x16xf32>,
    return
  }
  func.func @transform_0(%arg0: i32, %arg1: i32) -> (i32, i32, i32) {
    %c0_i32 = arith.constant 0 : i32
    %c0_i32_0 = arith.constant 0 : i32
    %c0_i32_1 = arith.constant 0 : i32
    return %arg0, %c0_i32, %c0_i32_0 : i32, i32, i32
  }
  func.func @transform_1(%arg0: i32, %arg1: i32) -> (i32, i32) {
    %c0_i32 = arith.constant 0 : i32
    %c0_i32_0 = arith.constant 0 : i32
    %c0_i32_1 = arith.constant 0 : i32
    return %c0_i32, %c0_i32_0 : i32, i32
  }
  func.func @transform_2(%arg0: i32, %arg1: i32) -> (i32, i32) {
    %c0_i32 = arith.constant 0 : i32
    %c0_i32_0 = arith.constant 0 : i32
    %c0_i32_1 = arith.constant 0 : i32
    return %c0_i32, %c0_i32_0 : i32, i32
  }
  func.func @transform_3(%arg0: i32, %arg1: i32) -> (i32, i32, i32) {
    %c0_i32 = arith.constant 0 : i32
    %c0_i32_0 = arith.constant 0 : i32
    return %arg0, %arg1, %c0_i32 : i32, i32, i32
  }
}

module attributes {stable_mosaic.version = 11 : i64} {
  func.func @_mlp_kernel(%arg0: i32, %arg1: memref<8x2048xbf16, #tpu.memory_space<vmem>>, %arg2: memref<2048x512xbf16, #tpu.memory_space<vmem>>, %arg3: memref<1x512xf32, #tpu.memory_space<vmem>>, %arg4: memref<512x256xbf16, #tpu.memory_space<vmem>>, %arg5: memref<1x256xf32, #tpu.memory_space<vmem>>, %arg6: memref<256x128xbf16, #tpu.memory_space<vmem>>, %arg7: memref<1x128xf32, #tpu.memory_space<vmem>>, %arg8: memref<128x128xbf16, #tpu.memory_space<vmem>>, %arg9: memref<1x128xf32, #tpu.memory_space<vmem>>, %arg10: memref<128x128xbf16, #tpu.memory_space<vmem>>, %arg11: memref<1x128xf32, #tpu.memory_space<vmem>>, %arg12: memref<8x128xf32, #tpu.memory_space<vmem>>, %arg13: memref<8x512xf32, #tpu.memory_space<vmem>>) attributes {dimension_semantics = [#tpu.dimension_semantics<arbitrary>], iteration_bounds = array<i64: 1>, scalar_prefetch = 0 : i64, scratch_operands = 1 : i64, tpu.core_type = #tpu.core_type<tc>, window_params = [{transform_indices = @transform_0, window_bounds = array<i64: 8, 2048>}, {transform_indices = @transform_1, window_bounds = array<i64: 2048, 512>}, {pipeline_mode = #tpu.pipeline_mode<synchronous>, transform_indices = @transform_2, window_bounds = array<i64: 1, 512>}, {pipeline_mode = #tpu.pipeline_mode<synchronous>, transform_indices = @transform_3, window_bounds = array<i64: 512, 256>}, {pipeline_mode = #tpu.pipeline_mode<synchronous>, transform_indices = @transform_4, window_bounds = array<i64: 1, 256>}, {pipeline_mode = #tpu.pipeline_mode<synchronous>, transform_indices = @transform_5, window_bounds = array<i64: 256, 128>}, {pipeline_mode = #tpu.pipeline_mode<synchronous>, transform_indices = @transform_6, window_bounds = array<i64: 1, 128>}, {pipeline_mode = #tpu.pipeline_mode<synchronous>, transform_indices = @transform_7, window_bounds = array<i64: 128, 128>}, {pipeline_mode = #tpu.pipeline_mode<synchronous>, transform_indices = @transform_8, window_bounds = array<i64: 1, 128>}, {pipeline_mode = #tpu.pipeline_mode<synchronous>, transform_indices = @transform_9, window_bounds = array<i64: 128, 128>}, {pipeline_mode = #tpu.pipeline_mode<synchronous>, transform_indices = @transform_10, window_bounds = array<i64: 1, 128>}, {pipeline_mode = #tpu.pipeline_mode<synchronous>, transform_indices = @transform_11, window_bounds = array<i64: 8, 128>}]} {
    %c0_i32 = arith.constant 0 : i32
    %0 = arith.cmpi eq, %arg0, %c0_i32 : i32
    %1 = arith.extui %0 : i1 to i32
    %c0_i32_0 = arith.constant 0 : i32
    %2 = arith.cmpi ne, %1, %c0_i32_0 : i32
    scf.if %2 {
      %cst_10 = arith.constant 0.000000e+00 : f32
      %12 = vector.broadcast %cst_10 : f32 to vector<8x512xf32>
      %c0_11 = arith.constant 0 : index
      %c0_12 = arith.constant 0 : index
      %13 = vector.load %arg13[%c0_11, %c0_12] : memref<8x512xf32, #tpu.memory_space<vmem>>, vector<8x512xf32>
      tpu.vector_store %arg13[%c0_11, %c0_12], %12 {strides = array<i32>} : memref<8x512xf32, #tpu.memory_space<vmem>>, vector<8x512xf32>,
    } else {
    }
    %c0 = arith.constant 0 : index
    %c0_1 = arith.constant 0 : index
    %3 = vector.load %arg13[%c0, %c0_1] : memref<8x512xf32, #tpu.memory_space<vmem>>, vector<8x512xf32>
    %c0_2 = arith.constant 0 : index
    %c0_3 = arith.constant 0 : index
    %4 = vector.load %arg1[%c0_2, %c0_3] : memref<8x2048xbf16, #tpu.memory_space<vmem>>, vector<8x2048xbf16>
    %c0_4 = arith.constant 0 : index
    %c0_5 = arith.constant 0 : index
    %5 = vector.load %arg2[%c0_4, %c0_5] : memref<2048x512xbf16, #tpu.memory_space<vmem>>, vector<2048x512xbf16>
    %cst = arith.constant dense<0.000000e+00> : vector<8x512xf32>
    %6 = tpu.matmul %4, %5, %cst {dimension_numbers = #tpu.dot_dimension_numbers<[1], [0], [0], [1], [0, 0, 1, 1], [], []>} : vector<8x2048xbf16>, vector<2048x512xbf16>, vector<8x512xf32> -> vector<8x512xf32>
    %7 = arith.addf %3, %6 : vector<8x512xf32>
    %c0_6 = arith.constant 0 : index
    %c0_7 = arith.constant 0 : index
    %8 = vector.load %arg13[%c0_6, %c0_7] : memref<8x512xf32, #tpu.memory_space<vmem>>, vector<8x512xf32>
    tpu.vector_store %arg13[%c0_6, %c0_7], %7 {strides = array<i32>} : memref<8x512xf32, #tpu.memory_space<vmem>>, vector<8x512xf32>,
    %c0_i32_8 = arith.constant 0 : i32
    %9 = arith.cmpi eq, %arg0, %c0_i32_8 : i32
    %10 = arith.extui %9 : i1 to i32
    %c0_i32_9 = arith.constant 0 : i32
    %11 = arith.cmpi ne, %10, %c0_i32_9 : i32
    scf.if %11 {
      %c0_10 = arith.constant 0 : index
      %c0_11 = arith.constant 0 : index
      %12 = vector.load %arg13[%c0_10, %c0_11] : memref<8x512xf32, #tpu.memory_space<vmem>>, vector<8x512xf32>
      %c0_12 = arith.constant 0 : index
      %c0_13 = arith.constant 0 : index
      %13 = vector.load %arg3[%c0_12, %c0_13] : memref<1x512xf32, #tpu.memory_space<vmem>>, vector<1x512xf32>
      %14 = vector.broadcast %13 : vector<1x512xf32> to vector<8x512xf32>
      %15 = arith.addf %12, %14 : vector<8x512xf32>
      %cst_14 = arith.constant 0.000000e+00 : f32
      %16 = vector.broadcast %cst_14 : f32 to vector<8x512xf32>
      %17 = arith.cmpf oge, %15, %16 : vector<8x512xf32>
      %cst_15 = arith.constant 0.00999999977 : f32
      %18 = vector.broadcast %cst_15 : f32 to vector<8x512xf32>
      %19 = arith.mulf %18, %15 : vector<8x512xf32>
      %20 = arith.select %17, %15, %19 : vector<8x512xi1>, vector<8x512xf32>
      %21 = arith.truncf %20 : vector<8x512xf32> to vector<8x512xbf16>
      %c0_16 = arith.constant 0 : index
      %c0_17 = arith.constant 0 : index
      %22 = vector.load %arg4[%c0_16, %c0_17] : memref<512x256xbf16, #tpu.memory_space<vmem>>, vector<512x256xbf16>
      %cst_18 = arith.constant dense<0.000000e+00> : vector<8x256xf32>
      %23 = tpu.matmul %21, %22, %cst_18 {dimension_numbers = #tpu.dot_dimension_numbers<[1], [0], [0], [1], [0, 0, 1, 1], [], []>} : vector<8x512xbf16>, vector<512x256xbf16>, vector<8x256xf32> -> vector<8x256xf32>
      %c0_19 = arith.constant 0 : index
      %c0_20 = arith.constant 0 : index
      %24 = vector.load %arg5[%c0_19, %c0_20] : memref<1x256xf32, #tpu.memory_space<vmem>>, vector<1x256xf32>
      %25 = vector.broadcast %24 : vector<1x256xf32> to vector<8x256xf32>
      %26 = arith.addf %23, %25 : vector<8x256xf32>
      %cst_21 = arith.constant 0.000000e+00 : f32
      %27 = vector.broadcast %cst_21 : f32 to vector<8x256xf32>
      %28 = arith.cmpf oge, %26, %27 : vector<8x256xf32>
      %cst_22 = arith.constant 0.00999999977 : f32
      %29 = vector.broadcast %cst_22 : f32 to vector<8x256xf32>
      %30 = arith.mulf %29, %26 : vector<8x256xf32>
      %31 = arith.select %28, %26, %30 : vector<8x256xi1>, vector<8x256xf32>
      %32 = arith.truncf %31 : vector<8x256xf32> to vector<8x256xbf16>
      %c0_23 = arith.constant 0 : index
      %c0_24 = arith.constant 0 : index
      %33 = vector.load %arg6[%c0_23, %c0_24] : memref<256x128xbf16, #tpu.memory_space<vmem>>, vector<256x128xbf16>
      %cst_25 = arith.constant dense<0.000000e+00> : vector<8x128xf32>
      %34 = tpu.matmul %32, %33, %cst_25 {dimension_numbers = #tpu.dot_dimension_numbers<[1], [0], [0], [1], [0, 0, 1, 1], [], []>} : vector<8x256xbf16>, vector<256x128xbf16>, vector<8x128xf32> -> vector<8x128xf32>
      %c0_26 = arith.constant 0 : index
      %c0_27 = arith.constant 0 : index
      %35 = vector.load %arg7[%c0_26, %c0_27] : memref<1x128xf32, #tpu.memory_space<vmem>>, vector<1x128xf32>
      %36 = vector.broadcast %35 : vector<1x128xf32> to vector<8x128xf32>
      %37 = arith.addf %34, %36 : vector<8x128xf32>
      %cst_28 = arith.constant 0.000000e+00 : f32
      %38 = vector.broadcast %cst_28 : f32 to vector<8x128xf32>
      %39 = arith.cmpf oge, %37, %38 : vector<8x128xf32>
      %cst_29 = arith.constant 0.00999999977 : f32
      %40 = vector.broadcast %cst_29 : f32 to vector<8x128xf32>
      %41 = arith.mulf %40, %37 : vector<8x128xf32>
      %42 = arith.select %39, %37, %41 : vector<8x128xi1>, vector<8x128xf32>
      %43 = arith.truncf %42 : vector<8x128xf32> to vector<8x128xbf16>
      %c0_30 = arith.constant 0 : index
      %c0_31 = arith.constant 0 : index
      %44 = vector.load %arg8[%c0_30, %c0_31] : memref<128x128xbf16, #tpu.memory_space<vmem>>, vector<128x128xbf16>
      %cst_32 = arith.constant dense<0.000000e+00> : vector<8x128xf32>
      %45 = tpu.matmul %43, %44, %cst_32 {dimension_numbers = #tpu.dot_dimension_numbers<[1], [0], [0], [1], [0, 0, 1, 1], [], []>} : vector<8x128xbf16>, vector<128x128xbf16>, vector<8x128xf32> -> vector<8x128xf32>
      %c0_33 = arith.constant 0 : index
      %c0_34 = arith.constant 0 : index
      %46 = vector.load %arg9[%c0_33, %c0_34] : memref<1x128xf32, #tpu.memory_space<vmem>>, vector<1x128xf32>
      %47 = vector.broadcast %46 : vector<1x128xf32> to vector<8x128xf32>
      %48 = arith.addf %45, %47 : vector<8x128xf32>
      %cst_35 = arith.constant 0.000000e+00 : f32
      %49 = vector.broadcast %cst_35 : f32 to vector<8x128xf32>
      %50 = arith.cmpf oge, %48, %49 : vector<8x128xf32>
      %cst_36 = arith.constant 0.00999999977 : f32
      %51 = vector.broadcast %cst_36 : f32 to vector<8x128xf32>
      %52 = arith.mulf %51, %48 : vector<8x128xf32>
      %53 = arith.select %50, %48, %52 : vector<8x128xi1>, vector<8x128xf32>
      %54 = arith.truncf %53 : vector<8x128xf32> to vector<8x128xbf16>
      %c0_37 = arith.constant 0 : index
      %c0_38 = arith.constant 0 : index
      %55 = vector.load %arg10[%c0_37, %c0_38] : memref<128x128xbf16, #tpu.memory_space<vmem>>, vector<128x128xbf16>
      %cst_39 = arith.constant dense<0.000000e+00> : vector<8x128xf32>
      %56 = tpu.matmul %54, %55, %cst_39 {dimension_numbers = #tpu.dot_dimension_numbers<[1], [0], [0], [1], [0, 0, 1, 1], [], []>} : vector<8x128xbf16>, vector<128x128xbf16>, vector<8x128xf32> -> vector<8x128xf32>
      %c0_40 = arith.constant 0 : index
      %c0_41 = arith.constant 0 : index
      %57 = vector.load %arg11[%c0_40, %c0_41] : memref<1x128xf32, #tpu.memory_space<vmem>>, vector<1x128xf32>
      %58 = vector.broadcast %57 : vector<1x128xf32> to vector<8x128xf32>
      %59 = arith.addf %56, %58 : vector<8x128xf32>
      %c0_42 = arith.constant 0 : index
      %c0_43 = arith.constant 0 : index
      %60 = vector.load %arg12[%c0_42, %c0_43] : memref<8x128xf32, #tpu.memory_space<vmem>>, vector<8x128xf32>
      tpu.vector_store %arg12[%c0_42, %c0_43], %59 {strides = array<i32>} : memref<8x128xf32, #tpu.memory_space<vmem>>, vector<8x128xf32>,
    } else {
    }
    return
  }
  func.func @transform_0(%arg0: i32) -> (i32, i32) {
    %c0_i32 = arith.constant 0 : i32
    %c0_i32_0 = arith.constant 0 : i32
    return %c0_i32, %arg0 : i32, i32
  }
  func.func @transform_1(%arg0: i32) -> (i32, i32) {
    %c0_i32 = arith.constant 0 : i32
    %c0_i32_0 = arith.constant 0 : i32
    return %arg0, %c0_i32 : i32, i32
  }
  func.func @transform_2(%arg0: i32) -> (i32, i32) {
    %c0_i32 = arith.constant 0 : i32
    %c0_i32_0 = arith.constant 0 : i32
    %c0_i32_1 = arith.constant 0 : i32
    return %c0_i32, %c0_i32_0 : i32, i32
  }
  func.func @transform_3(%arg0: i32) -> (i32, i32) {
    %c0_i32 = arith.constant 0 : i32
    %c0_i32_0 = arith.constant 0 : i32
    %c0_i32_1 = arith.constant 0 : i32
    return %c0_i32, %c0_i32_0 : i32, i32
  }
  func.func @transform_4(%arg0: i32) -> (i32, i32) {
    %c0_i32 = arith.constant 0 : i32
    %c0_i32_0 = arith.constant 0 : i32
    %c0_i32_1 = arith.constant 0 : i32
    return %c0_i32, %c0_i32_0 : i32, i32
  }
  func.func @transform_5(%arg0: i32) -> (i32, i32) {
    %c0_i32 = arith.constant 0 : i32
    %c0_i32_0 = arith.constant 0 : i32
    %c0_i32_1 = arith.constant 0 : i32
    return %c0_i32, %c0_i32_0 : i32, i32
  }
  func.func @transform_6(%arg0: i32) -> (i32, i32) {
    %c0_i32 = arith.constant 0 : i32
    %c0_i32_0 = arith.constant 0 : i32
    %c0_i32_1 = arith.constant 0 : i32
    return %c0_i32, %c0_i32_0 : i32, i32
  }
  func.func @transform_7(%arg0: i32) -> (i32, i32) {
    %c0_i32 = arith.constant 0 : i32
    %c0_i32_0 = arith.constant 0 : i32
    %c0_i32_1 = arith.constant 0 : i32
    return %c0_i32, %c0_i32_0 : i32, i32
  }
  func.func @transform_8(%arg0: i32) -> (i32, i32) {
    %c0_i32 = arith.constant 0 : i32
    %c0_i32_0 = arith.constant 0 : i32
    %c0_i32_1 = arith.constant 0 : i32
    return %c0_i32, %c0_i32_0 : i32, i32
  }
  func.func @transform_9(%arg0: i32) -> (i32, i32) {
    %c0_i32 = arith.constant 0 : i32
    %c0_i32_0 = arith.constant 0 : i32
    %c0_i32_1 = arith.constant 0 : i32
    return %c0_i32, %c0_i32_0 : i32, i32
  }
  func.func @transform_10(%arg0: i32) -> (i32, i32) {
    %c0_i32 = arith.constant 0 : i32
    %c0_i32_0 = arith.constant 0 : i32
    %c0_i32_1 = arith.constant 0 : i32
    return %c0_i32, %c0_i32_0 : i32, i32
  }
  func.func @transform_11(%arg0: i32) -> (i32, i32) {
    %c0_i32 = arith.constant 0 : i32
    %c0_i32_0 = arith.constant 0 : i32
    %c0_i32_1 = arith.constant 0 : i32
    return %c0_i32, %c0_i32_0 : i32, i32
  }
}

</mosaic_0001>

<llo_original>
// kernel: mohapatra_forward.4
$region0: #{mohapatra_forward.4}
  #allocation0 [shape = 'u32[]', space=smem, size = 0x4, offset = 0x4, fixed_abs, tag = 'smem constant byte address 0x4 - core index']
  #allocation1 [shape = 'u32[144,128]{1,0:T(1,128)}', space=vmem, size = 0x12000, scoped, tag = 'internal scratch']
  %s0 = inlined_call_operand.vmem [shape: f32[2,306,16], index: 0, kind: input, shape index: {}]
  %s1 = inlined_call_operand.vmem [shape: bf16[72,16], index: 1, kind: input, shape index: {}]
  %s2 = inlined_call_operand.vmem [shape: f32[1,16], index: 2, kind: input, shape index: {}]
  %s3 = inlined_call_operand.vmem [shape: f32[2,128,16], index: 3, kind: output, shape index: {}]
  %s4 = sld [smem:[#allocation0]]
  $region45: #{mohapatra_forward.4} parent=0
    _
  %s6 = ssub.s32 1, %s4
  %s7 = scalar_select 0, %s6, %s4
  loop: start=0, step=1, limit=4
  $region2: #{mohapatra_forward.4} parent=0 // loop_pre_header
    _
  $region3: #{mohapatra_forward.4} parent=0 // loop_header
    %s9 = sphi 0, %s13
    %p10 = scmp.ge.s32.totalorder %s9, 4
    %s16 = sphi 0, %s28
    %s17 = sphi 0, %s24
    %s18 = sphi 0, %s16
    %s19 = sphi 0, %s17
    %s20 = sphi 0, %s18
    %s21 = sphi 0, %s19
    %s31 = sphi 0, %s33
    %s34 = sphi 0, %s31
    %s35 = sphi 0, %s34
    %s51 = sphi 0, %s35
    %s55 = sphi 0, %s55
    %s57 = sphi 0, %s55
    %s58 = sphi 0, %s57
    %s72 = sphi 0, %s58
    %s76 = sphi 0, %s76
    %s78 = sphi 0, %s76
    %s79 = sphi 0, %s78
    %s93 = sphi 0, %s79
    %s101 = sphi 0, %s103
    %s104 = sphi 0, %s101
    %s105 = sphi 0, %s104
    %s121 = sphi 0, %s105
  $region4: #{mohapatra_forward.4} parent=0 // loop_header_branch
    %12 = sbr.rel (%p10) target = $region8
  $region5: #{mohapatra_forward.4} parent=0 // loop_body
    %s14 = ssub.s32 %s9, 1
    %s15 = ssub.s32 %s9, 2
    %s22 = sadd.s32 1, %s17
    %p23 = scmp.ge.s32.totalorder %s22, 1
    %s24 = scalar_select %p23, 0, %s22
    %s25 = sadd.s32 1, %s16
    %s26 = scalar_select %p23, %s25, %s16
    %p27 = scmp.ge.s32.totalorder %s26, 2
    %s28 = scalar_select %p27, 0, %s26
    %s29 = ssub.s32 %s16, %s28
    %p30 = scmp.eq.s32.totalorder %s29, 0
    %s32 = sadd.s32 %s31, 1
    %s33 = scalar_select %p30, %s31, %s32
    %p36 = pneg %p30
    %p37 = scmp.eq.s32.totalorder %s9, 1
    %p38 = por %p36, %p37
    %p39 = scmp.ne.s32.totalorder %s31, %s34
    %p40 = scmp.eq.s32.totalorder %s9, 0
    %p41 = por %p39, %p40
    %p42 = scmp.ne.s32.totalorder %s31, %s34
    %p43 = scmp.eq.s32.totalorder %s14, 1
    %p44 = por %p42, %p43
    %p45 = scmp.ne.s32.totalorder %s34, %s35
    %p46 = scmp.eq.s32.totalorder %s14, 0
    %p47 = por %p45, %p46
    %p48 = scmp.ne.s32.totalorder %s34, %s35
    %p49 = scmp.eq.s32.totalorder %s15, 1
    %p50 = por %p48, %p49
    %p52 = scmp.ne.s32.totalorder %s35, %s51
    %p53 = scmp.eq.s32.totalorder %s15, 0
    %p54 = por %p52, %p53
    %s56 = sadd.s32 %s55, 1
    %p59 = scmp.eq.s32.totalorder %s9, 1
    %p60 = scmp.ne.s32.totalorder %s55, %s57
    %p61 = scmp.eq.s32.totalorder %s9, 0
    %p62 = por %p60, %p61
    %p63 = scmp.ne.s32.totalorder %s55, %s57
    %p64 = scmp.eq.s32.totalorder %s14, 1
    %p65 = por %p63, %p64
    %p66 = scmp.ne.s32.totalorder %s57, %s58
    %p67 = scmp.eq.s32.totalorder %s14, 0
    %p68 = por %p66, %p67
    %p69 = scmp.ne.s32.totalorder %s57, %s58
    %p70 = scmp.eq.s32.totalorder %s15, 1
    %p71 = por %p69, %p70
    %p73 = scmp.ne.s32.totalorder %s58, %s72
    %p74 = scmp.eq.s32.totalorder %s15, 0
    %p75 = por %p73, %p74
    %s77 = sadd.s32 %s76, 1
    %p80 = scmp.eq.s32.totalorder %s9, 1
    %p81 = scmp.ne.s32.totalorder %s76, %s78
    %p82 = scmp.eq.s32.totalorder %s9, 0
    %p83 = por %p81, %p82
    %p84 = scmp.ne.s32.totalorder %s76, %s78
    %p85 = scmp.eq.s32.totalorder %s14, 1
    %p86 = por %p84, %p85
    %p87 = scmp.ne.s32.totalorder %s78, %s79
    %p88 = scmp.eq.s32.totalorder %s14, 0
    %p89 = por %p87, %p88
    %p90 = scmp.ne.s32.totalorder %s78, %s79
    %p91 = scmp.eq.s32.totalorder %s15, 1
    %p92 = por %p90, %p91
    %p94 = scmp.ne.s32.totalorder %s79, %s93
    %p95 = scmp.eq.s32.totalorder %s15, 0
    %p96 = por %p94, %p95
    %s97 = ssub.s32 %s16, %s28
    %s98 = ssub.s32 %s17, %s24
    %s99 = sor.u32 %s97, %s98
    %p100 = scmp.eq.s32.totalorder %s99, 0
    %s102 = sadd.s32 %s101, 1
    %s103 = scalar_select %p100, %s101, %s102
    %p106 = pneg %p100
    %p107 = scmp.eq.s32.totalorder %s9, 1
    %p108 = por %p106, %p107
    %p109 = scmp.ne.s32.totalorder %s101, %s104
    %p110 = scmp.eq.s32.totalorder %s9, 0
    %p111 = por %p109, %p110
    %p112 = scmp.ne.s32.totalorder %s101, %s104
    %p113 = scmp.eq.s32.totalorder %s14, 1
    %p114 = por %p112, %p113
    %p115 = scmp.ne.s32.totalorder %s104, %s105
    %p116 = scmp.eq.s32.totalorder %s14, 0
    %p117 = por %p115, %p116
    %p118 = scmp.ne.s32.totalorder %s104, %s105
    %p119 = scmp.eq.s32.totalorder %s15, 1
    %p120 = por %p118, %p119
    %p122 = scmp.ne.s32.totalorder %s105, %s121
    %p123 = scmp.eq.s32.totalorder %s15, 0
    %p124 = por %p122, %p123
    %p125 = scmp.le.s32.totalorder 1, %s9
    %p126 = scmp.lt.s32.totalorder %s9, 3
    %p127 = pnand %p125, %p126
    %p128 = pneg %p127
    // Predicated region
    $region9: #{mohapatra_forward.4} parent=5 // pred_check
      _
    $region10: #{mohapatra_forward.4} parent=5 // pred_check_branch
      %130 = sbr.rel (%p127) target = $region12
    $region11: #{mohapatra_forward.4} parent=5 // pred_region
      %s131 = ssub.s32 %s9, 1
      // Predicated region
      $region13: #{mohapatra_forward.4} parent=11 // pred_check
        %p132 = pneg %p68
      $region14: #{mohapatra_forward.4} parent=11 // pred_check_branch
        %134 = sbr.rel (%p132) target = $region16
      $region15: #{mohapatra_forward.4} parent=11 // pred_region
        _
      $region16: #{mohapatra_forward.4} parent=11 // pred_fallthru
        _
      // Predicated region
      $region17: #{mohapatra_forward.4} parent=11 // pred_check
        %p135 = pneg %p89
      $region18: #{mohapatra_forward.4} parent=11 // pred_check_branch
        %137 = sbr.rel (%p135) target = $region20
      $region19: #{mohapatra_forward.4} parent=11 // pred_region
        _
      $region20: #{mohapatra_forward.4} parent=11 // pred_fallthru
        _
    $region12: #{mohapatra_forward.4} parent=5 // pred_fallthru
      _
    %p138 = scmp.lt.s32.totalorder %s9, 2
    // Predicated region
    $region21: #{mohapatra_forward.4} parent=5 // pred_check
      %p139 = pneg %p138
    $region22: #{mohapatra_forward.4} parent=5 // pred_check_branch
      %141 = sbr.rel (%p139) target = $region24
    $region23: #{mohapatra_forward.4} parent=5 // pred_region
      // Predicated region
      $region25: #{mohapatra_forward.4} parent=23 // pred_check
        %p142 = pneg %p41
      $region26: #{mohapatra_forward.4} parent=23 // pred_check_branch
        %144 = sbr.rel (%p142) target = $region28
      $region27: #{mohapatra_forward.4} parent=23 // pred_region
        %p145 = scmp.lt.s32.totalorder %s16, 1
        %s146 = scalar_select %p145, %s16, 1
        %s147 = smul.addr %s146, 39
        %s148 = smul.addr %s147, 8
        %s149 = scalar_lea.vmem %s0, %s148
      $region28: #{mohapatra_forward.4} parent=23 // pred_fallthru
        _
    $region24: #{mohapatra_forward.4} parent=5 // pred_fallthru
      _
    %p150 = scmp.le.s32.totalorder 1, %s9
    %p151 = scmp.lt.s32.totalorder %s9, 3
    %p152 = pnand %p150, %p151
    %p153 = pneg %p152
    // Predicated region
    $region29: #{mohapatra_forward.4} parent=5 // pred_check
      _
    $region30: #{mohapatra_forward.4} parent=5 // pred_check_branch
      %155 = sbr.rel (%p152) target = $region32
    $region31: #{mohapatra_forward.4} parent=5 // pred_region
      %s156 = ssub.s32 %s9, 1
      %p157 = scmp.lt.s32.totalorder %s18, 1
      %s158 = scalar_select %p157, %s18, 1
      %s159 = smul.addr %s158, 39
      %s160 = smul.addr %s159, 8
      %s161 = scalar_lea.vmem %s0, %s160
      %p162 = pneg %p47
      %p163 = pneg %p44
      %p164 = pneg %p68
      %p165 = pneg %p65
      %p166 = pneg %p89
      %p167 = pneg %p86
      %p168 = pneg %p117
      %p169 = pneg %p114
      %s170 = smul.u32 16, %s19
      %p171 = scmp.lt.s32.totalorder %s18, 1
      %s172 = scalar_select %p171, %s18, 1
      %p173 = scmp.lt.s32.totalorder %s170, 15
      %s174 = scalar_select %p173, %s170, 15
      %s175 = smul.addr %s172, 16
      %s176 = sadd.s32 %s174, %s175
      %s177 = smul.addr %s176, 8
      %s178 = scalar_lea.vmem %s3, %s177
      %p179 = scmp.lt.s32.totalorder %s18, 1
      %s180 = scalar_select %p179, %s18, 1
      %s181 = smul.addr %s180, 39
      %s182 = smul.addr %s181, 8
      %s183 = scalar_lea.vmem %s0, %s182
      %s184 = smul.u32 16, %s19
      %p185 = scmp.lt.s32.totalorder %s18, 1
      %s186 = scalar_select %p185, %s18, 1
      %p187 = scmp.lt.s32.totalorder %s184, 15
      %s188 = scalar_select %p187, %s184, 15
      %s189 = smul.addr %s186, 16
      %s190 = sadd.s32 %s188, %s189
      %s191 = smul.addr %s190, 8
      %s192 = scalar_lea.vmem %s3, %s191
      %s193 = smul.u32 16, %s19
      %s195 = smul.u32 %s19, 8
      %s196 = smul.u32 %s19, 272
      %s197 = scalar_lea.vmem %s183, %s196
      %v198 = vld [vmem:[%s197] sm:$0xff]
      %v199 = vld [vmem:[%s197 + $0x8] sm:$0xff]
      %s200 = sadd.s32 %s196, 1
      %s201 = scalar_lea.vmem %s183, %s200
      %v202 = vld [vmem:[%s201] sm:$0xff]
      %v203 = vld [vmem:[%s201 + $0x8] sm:$0xff]
      %s204 = smul.u32 %s19, 16
      %s205 = sadd.s32 %s204, 1
      %s206 = smul.u32 %s205, 17
      %s207 = scalar_lea.vmem %s183, %s206
      %v208 = vld [vmem:[%s207] sm:$0xff]
      %v209 = vld [vmem:[%s207 + $0x8] sm:$0xff]
      %s210 = sadd.s32 %s206, 1
      %s211 = scalar_lea.vmem %s183, %s210
      %v212 = vld [vmem:[%s211] sm:$0xff]
      %v213 = vld [vmem:[%s211 + $0x8] sm:$0xff]
      %s214 = sadd.s32 %s204, 2
      %s215 = smul.u32 %s214, 17
      %s216 = scalar_lea.vmem %s183, %s215
      %v217 = vld [vmem:[%s216] sm:$0xff]
      %v218 = vld [vmem:[%s216 + $0x8] sm:$0xff]
      %s219 = sadd.s32 %s215, 1
      %s220 = scalar_lea.vmem %s183, %s219
      %v221 = vld [vmem:[%s220] sm:$0xff]
      %v222 = vld [vmem:[%s220 + $0x8] sm:$0xff]
      %225 = vrot.lane.b32.xlu0 %v202, 16
      %v226 = vpop.permute.xlu0 %225
      %227 = vrot.lane.b32.xlu0 %v203, 16
      %v228 = vpop.permute.xlu0 %227
      %233 = vrot.lane.b32.xlu0 %v208, 24
      %v234 = vpop.permute.xlu0 %233
      %235 = vrot.lane.b32.xlu0 %v209, 24
      %v236 = vpop.permute.xlu0 %235
      %241 = vrot.lane.b32.xlu0 %v212, 40
      %v242 = vpop.permute.xlu0 %241
      %243 = vrot.lane.b32.xlu0 %v213, 40
      %v244 = vpop.permute.xlu0 %243
      %249 = vrot.lane.b32.xlu0 %v217, 48
      %v250 = vpop.permute.xlu0 %249
      %251 = vrot.lane.b32.xlu0 %v218, 48
      %v252 = vpop.permute.xlu0 %251
      %257 = vrot.lane.b32.xlu0 %v221, 64
      %v258 = vpop.permute.xlu0 %257
      %259 = vrot.lane.b32.xlu0 %v222, 64
      %v260 = vpop.permute.xlu0 %259
      %vm263 = vcmask 130048
      %v264 = vsel %vm263, %v198, %v226
      %v265 = vsel %vm263, %v199, %v228
      %vm266 = vcmask 195584
      %v267 = vsel %vm266, %v264, %v234
      %v268 = vsel %vm266, %v265, %v236
      %vm269 = vcmask 261120
      %v270 = vsel %vm269, %v267, %v234
      %v271 = vsel %vm269, %v268, %v236
      %vm272 = vcmask 326656
      %v273 = vsel %vm272, %v270, %v242
      %v274 = vsel %vm272, %v271, %v244
      %vm275 = vcmask 392192
      %v276 = vsel %vm275, %v273, %v250
      %v277 = vsel %vm275, %v274, %v252
      %vm278 = vcmask 457728
      %v279 = vsel %vm278, %v276, %v250
      %v280 = vsel %vm278, %v277, %v252
      %vm281 = vcmask 523264
      %v282 = vsel %vm281, %v279, %v258
      %v283 = vsel %vm281, %v280, %v260
      %s284 = sadd.s32 %s195, 1
      %s285 = smul.u32 %s284, 34
      %s286 = scalar_lea.vmem %s183, %s285
      %v287 = vld [vmem:[%s286] sm:$0xff]
      %v288 = vld [vmem:[%s286 + $0x8] sm:$0xff]
      %s289 = sadd.s32 %s285, 1
      %s290 = scalar_lea.vmem %s183, %s289
      %v291 = vld [vmem:[%s290] sm:$0xff]
      %v292 = vld [vmem:[%s290 + $0x8] sm:$0xff]
      %s293 = smul.u32 %s284, 2
      %s294 = sadd.s32 %s293, 1
      %s295 = smul.u32 %s294, 17
      %s296 = scalar_lea.vmem %s183, %s295
      %v297 = vld [vmem:[%s296] sm:$0xff]
      %v298 = vld [vmem:[%s296 + $0x8] sm:$0xff]
      %s299 = sadd.s32 %s295, 1
      %s300 = scalar_lea.vmem %s183, %s299
      %v301 = vld [vmem:[%s300] sm:$0xff]
      %v302 = vld [vmem:[%s300 + $0x8] sm:$0xff]
      %s303 = sadd.s32 %s293, 2
      %s304 = smul.u32 %s303, 17
      %s305 = scalar_lea.vmem %s183, %s304
      %v306 = vld [vmem:[%s305] sm:$0xff]
      %v307 = vld [vmem:[%s305 + $0x8] sm:$0xff]
      %s308 = sadd.s32 %s304, 1
      %s309 = scalar_lea.vmem %s183, %s308
      %v310 = vld [vmem:[%s309] sm:$0xff]
      %v311 = vld [vmem:[%s309 + $0x8] sm:$0xff]
      %314 = vrot.lane.b32.xlu0 %v291, 16
      %v315 = vpop.permute.xlu0 %314
      %316 = vrot.lane.b32.xlu0 %v292, 16
      %v317 = vpop.permute.xlu0 %316
      %322 = vrot.lane.b32.xlu0 %v297, 24
      %v323 = vpop.permute.xlu0 %322
      %324 = vrot.lane.b32.xlu0 %v298, 24
      %v325 = vpop.permute.xlu0 %324
      %330 = vrot.lane.b32.xlu0 %v301, 40
      %v331 = vpop.permute.xlu0 %330
      %332 = vrot.lane.b32.xlu0 %v302, 40
      %v333 = vpop.permute.xlu0 %332
      %338 = vrot.lane.b32.xlu0 %v306, 48
      %v339 = vpop.permute.xlu0 %338
      %340 = vrot.lane.b32.xlu0 %v307, 48
      %v341 = vpop.permute.xlu0 %340
      %346 = vrot.lane.b32.xlu0 %v310, 64
      %v347 = vpop.permute.xlu0 %346
      %348 = vrot.lane.b32.xlu0 %v311, 64
      %v349 = vpop.permute.xlu0 %348
      %v352 = vsel %vm263, %v287, %v315
      %v353 = vsel %vm263, %v288, %v317
      %v354 = vsel %vm266, %v352, %v323
      %v355 = vsel %vm266, %v353, %v325
      %v356 = vsel %vm269, %v354, %v323
      %v357 = vsel %vm269, %v355, %v325
      %v358 = vsel %vm272, %v356, %v331
      %v359 = vsel %vm272, %v357, %v333
      %v360 = vsel %vm275, %v358, %v339
      %v361 = vsel %vm275, %v359, %v341
      %v362 = vsel %vm278, %v360, %v339
      %v363 = vsel %vm278, %v361, %v341
      %v364 = vsel %vm281, %v362, %v347
      %v365 = vsel %vm281, %v363, %v349
      %s366 = sadd.s32 %s195, 2
      %s367 = smul.u32 %s366, 34
      %s368 = scalar_lea.vmem %s183, %s367
      %v369 = vld [vmem:[%s368] sm:$0xff]
      %v370 = vld [vmem:[%s368 + $0x8] sm:$0xff]
      %s371 = sadd.s32 %s367, 1
      %s372 = scalar_lea.vmem %s183, %s371
      %v373 = vld [vmem:[%s372] sm:$0xff]
      %v374 = vld [vmem:[%s372 + $0x8] sm:$0xff]
      %s375 = smul.u32 %s366, 2
      %s376 = sadd.s32 %s375, 1
      %s377 = smul.u32 %s376, 17
      %s378 = scalar_lea.vmem %s183, %s377
      %v379 = vld [vmem:[%s378] sm:$0xff]
      %v380 = vld [vmem:[%s378 + $0x8] sm:$0xff]
      %s381 = sadd.s32 %s377, 1
      %s382 = scalar_lea.vmem %s183, %s381
      %v383 = vld [vmem:[%s382] sm:$0xff]
      %v384 = vld [vmem:[%s382 + $0x8] sm:$0xff]
      %s385 = sadd.s32 %s375, 2
      %s386 = smul.u32 %s385, 17
      %s387 = scalar_lea.vmem %s183, %s386
      %v388 = vld [vmem:[%s387] sm:$0xff]
      %v389 = vld [vmem:[%s387 + $0x8] sm:$0xff]
      %s390 = sadd.s32 %s386, 1
      %s391 = scalar_lea.vmem %s183, %s390
      %v392 = vld [vmem:[%s391] sm:$0xff]
      %v393 = vld [vmem:[%s391 + $0x8] sm:$0xff]
      %396 = vrot.lane.b32.xlu0 %v373, 16
      %v397 = vpop.permute.xlu0 %396
      %398 = vrot.lane.b32.xlu0 %v374, 16
      %v399 = vpop.permute.xlu0 %398
      %404 = vrot.lane.b32.xlu0 %v379, 24
      %v405 = vpop.permute.xlu0 %404
      %406 = vrot.lane.b32.xlu0 %v380, 24
      %v407 = vpop.permute.xlu0 %406
      %412 = vrot.lane.b32.xlu0 %v383, 40
      %v413 = vpop.permute.xlu0 %412
      %414 = vrot.lane.b32.xlu0 %v384, 40
      %v415 = vpop.permute.xlu0 %414
      %420 = vrot.lane.b32.xlu0 %v388, 48
      %v421 = vpop.permute.xlu0 %420
      %422 = vrot.lane.b32.xlu0 %v389, 48
      %v423 = vpop.permute.xlu0 %422
      %428 = vrot.lane.b32.xlu0 %v392, 64
      %v429 = vpop.permute.xlu0 %428
      %430 = vrot.lane.b32.xlu0 %v393, 64
      %v431 = vpop.permute.xlu0 %430
      %v434 = vsel %vm263, %v369, %v397
      %v435 = vsel %vm263, %v370, %v399
      %v436 = vsel %vm266, %v434, %v405
      %v437 = vsel %vm266, %v435, %v407
      %v438 = vsel %vm269, %v436, %v405
      %v439 = vsel %vm269, %v437, %v407
      %v440 = vsel %vm272, %v438, %v413
      %v441 = vsel %vm272, %v439, %v415
      %v442 = vsel %vm275, %v440, %v421
      %v443 = vsel %vm275, %v441, %v423
      %v444 = vsel %vm278, %v442, %v421
      %v445 = vsel %vm278, %v443, %v423
      %v446 = vsel %vm281, %v444, %v429
      %v447 = vsel %vm281, %v445, %v431
      %s448 = sadd.s32 %s195, 3
      %s449 = smul.u32 %s448, 34
      %s450 = scalar_lea.vmem %s183, %s449
      %v451 = vld [vmem:[%s450] sm:$0xff]
      %v452 = vld [vmem:[%s450 + $0x8] sm:$0xff]
      %s453 = sadd.s32 %s449, 1
      %s454 = scalar_lea.vmem %s183, %s453
      %v455 = vld [vmem:[%s454] sm:$0xff]
      %v456 = vld [vmem:[%s454 + $0x8] sm:$0xff]
      %s457 = smul.u32 %s448, 2
      %s458 = sadd.s32 %s457, 1
      %s459 = smul.u32 %s458, 17
      %s460 = scalar_lea.vmem %s183, %s459
      %v461 = vld [vmem:[%s460] sm:$0xff]
      %v462 = vld [vmem:[%s460 + $0x8] sm:$0xff]
      %s463 = sadd.s32 %s459, 1
      %s464 = scalar_lea.vmem %s183, %s463
      %v465 = vld [vmem:[%s464] sm:$0xff]
      %v466 = vld [vmem:[%s464 + $0x8] sm:$0xff]
      %s467 = sadd.s32 %s457, 2
      %s468 = smul.u32 %s467, 17
      %s469 = scalar_lea.vmem %s183, %s468
      %v470 = vld [vmem:[%s469] sm:$0xff]
      %v471 = vld [vmem:[%s469 + $0x8] sm:$0xff]
      %s472 = sadd.s32 %s468, 1
      %s473 = scalar_lea.vmem %s183, %s472
      %v474 = vld [vmem:[%s473] sm:$0xff]
      %v475 = vld [vmem:[%s473 + $0x8] sm:$0xff]
      %478 = vrot.lane.b32.xlu0 %v455, 16
      %v479 = vpop.permute.xlu0 %478
      %480 = vrot.lane.b32.xlu0 %v456, 16
      %v481 = vpop.permute.xlu0 %480
      %486 = vrot.lane.b32.xlu0 %v461, 24
      %v487 = vpop.permute.xlu0 %486
      %488 = vrot.lane.b32.xlu0 %v462, 24
      %v489 = vpop.permute.xlu0 %488
      %494 = vrot.lane.b32.xlu0 %v465, 40
      %v495 = vpop.permute.xlu0 %494
      %496 = vrot.lane.b32.xlu0 %v466, 40
      %v497 = vpop.permute.xlu0 %496
      %502 = vrot.lane.b32.xlu0 %v470, 48
      %v503 = vpop.permute.xlu0 %502
      %504 = vrot.lane.b32.xlu0 %v471, 48
      %v505 = vpop.permute.xlu0 %504
      %510 = vrot.lane.b32.xlu0 %v474, 64
      %v511 = vpop.permute.xlu0 %510
      %512 = vrot.lane.b32.xlu0 %v475, 64
      %v513 = vpop.permute.xlu0 %512
      %v516 = vsel %vm263, %v451, %v479
      %v517 = vsel %vm263, %v452, %v481
      %v518 = vsel %vm266, %v516, %v487
      %v519 = vsel %vm266, %v517, %v489
      %v520 = vsel %vm269, %v518, %v487
      %v521 = vsel %vm269, %v519, %v489
      %v522 = vsel %vm272, %v520, %v495
      %v523 = vsel %vm272, %v521, %v497
      %v524 = vsel %vm275, %v522, %v503
      %v525 = vsel %vm275, %v523, %v505
      %v526 = vsel %vm278, %v524, %v503
      %v527 = vsel %vm278, %v525, %v505
      %v528 = vsel %vm281, %v526, %v511
      %v529 = vsel %vm281, %v527, %v513
      %s530 = sadd.s32 %s195, 4
      %s531 = smul.u32 %s530, 34
      %s532 = scalar_lea.vmem %s183, %s531
      %v533 = vld [vmem:[%s532] sm:$0xff]
      %v534 = vld [vmem:[%s532 + $0x8] sm:$0xff]
      %s535 = sadd.s32 %s531, 1
      %s536 = scalar_lea.vmem %s183, %s535
      %v537 = vld [vmem:[%s536] sm:$0xff]
      %v538 = vld [vmem:[%s536 + $0x8] sm:$0xff]
      %s539 = smul.u32 %s530, 2
      %s540 = sadd.s32 %s539, 1
      %s541 = smul.u32 %s540, 17
      %s542 = scalar_lea.vmem %s183, %s541
      %v543 = vld [vmem:[%s542] sm:$0xff]
      %v544 = vld [vmem:[%s542 + $0x8] sm:$0xff]
      %s545 = sadd.s32 %s541, 1
      %s546 = scalar_lea.vmem %s183, %s545
      %v547 = vld [vmem:[%s546] sm:$0xff]
      %v548 = vld [vmem:[%s546 + $0x8] sm:$0xff]
      %s549 = sadd.s32 %s539, 2
      %s550 = smul.u32 %s549, 17
      %s551 = scalar_lea.vmem %s183, %s550
      %v552 = vld [vmem:[%s551] sm:$0xff]
      %v553 = vld [vmem:[%s551 + $0x8] sm:$0xff]
      %s554 = sadd.s32 %s550, 1
      %s555 = scalar_lea.vmem %s183, %s554
      %v556 = vld [vmem:[%s555] sm:$0xff]
      %v557 = vld [vmem:[%s555 + $0x8] sm:$0xff]
      %560 = vrot.lane.b32.xlu0 %v537, 16
      %v561 = vpop.permute.xlu0 %560
      %562 = vrot.lane.b32.xlu0 %v538, 16
      %v563 = vpop.permute.xlu0 %562
      %568 = vrot.lane.b32.xlu0 %v543, 24
      %v569 = vpop.permute.xlu0 %568
      %570 = vrot.lane.b32.xlu0 %v544, 24
      %v571 = vpop.permute.xlu0 %570
      %576 = vrot.lane.b32.xlu0 %v547, 40
      %v577 = vpop.permute.xlu0 %576
      %578 = vrot.lane.b32.xlu0 %v548, 40
      %v579 = vpop.permute.xlu0 %578
      %584 = vrot.lane.b32.xlu0 %v552, 48
      %v585 = vpop.permute.xlu0 %584
      %586 = vrot.lane.b32.xlu0 %v553, 48
      %v587 = vpop.permute.xlu0 %586
      %592 = vrot.lane.b32.xlu0 %v556, 64
      %v593 = vpop.permute.xlu0 %592
      %594 = vrot.lane.b32.xlu0 %v557, 64
      %v595 = vpop.permute.xlu0 %594
      %v598 = vsel %vm263, %v533, %v561
      %v599 = vsel %vm263, %v534, %v563
      %v600 = vsel %vm266, %v598, %v569
      %v601 = vsel %vm266, %v599, %v571
      %v602 = vsel %vm269, %v600, %v569
      %v603 = vsel %vm269, %v601, %v571
      %v604 = vsel %vm272, %v602, %v577
      %v605 = vsel %vm272, %v603, %v579
      %v606 = vsel %vm275, %v604, %v585
      %v607 = vsel %vm275, %v605, %v587
      %v608 = vsel %vm278, %v606, %v585
      %v609 = vsel %vm278, %v607, %v587
      %v610 = vsel %vm281, %v608, %v593
      %v611 = vsel %vm281, %v609, %v595
      %s612 = sadd.s32 %s195, 5
      %s613 = smul.u32 %s612, 34
      %s614 = scalar_lea.vmem %s183, %s613
      %v615 = vld [vmem:[%s614] sm:$0xff]
      %v616 = vld [vmem:[%s614 + $0x8] sm:$0xff]
      %s617 = sadd.s32 %s613, 1
      %s618 = scalar_lea.vmem %s183, %s617
      %v619 = vld [vmem:[%s618] sm:$0xff]
      %v620 = vld [vmem:[%s618 + $0x8] sm:$0xff]
      %s621 = smul.u32 %s612, 2
      %s622 = sadd.s32 %s621, 1
      %s623 = smul.u32 %s622, 17
      %s624 = scalar_lea.vmem %s183, %s623
      %v625 = vld [vmem:[%s624] sm:$0xff]
      %v626 = vld [vmem:[%s624 + $0x8] sm:$0xff]
      %s627 = sadd.s32 %s623, 1
      %s628 = scalar_lea.vmem %s183, %s627
      %v629 = vld [vmem:[%s628] sm:$0xff]
      %v630 = vld [vmem:[%s628 + $0x8] sm:$0xff]
      %s631 = sadd.s32 %s621, 2
      %s632 = smul.u32 %s631, 17
      %s633 = scalar_lea.vmem %s183, %s632
      %v634 = vld [vmem:[%s633] sm:$0xff]
      %v635 = vld [vmem:[%s633 + $0x8] sm:$0xff]
      %s636 = sadd.s32 %s632, 1
      %s637 = scalar_lea.vmem %s183, %s636
      %v638 = vld [vmem:[%s637] sm:$0xff]
      %v639 = vld [vmem:[%s637 + $0x8] sm:$0xff]
      %642 = vrot.lane.b32.xlu0 %v619, 16
      %v643 = vpop.permute.xlu0 %642
      %644 = vrot.lane.b32.xlu0 %v620, 16
      %v645 = vpop.permute.xlu0 %644
      %650 = vrot.lane.b32.xlu0 %v625, 24
      %v651 = vpop.permute.xlu0 %650
      %652 = vrot.lane.b32.xlu0 %v626, 24
      %v653 = vpop.permute.xlu0 %652
      %658 = vrot.lane.b32.xlu0 %v629, 40
      %v659 = vpop.permute.xlu0 %658
      %660 = vrot.lane.b32.xlu0 %v630, 40
      %v661 = vpop.permute.xlu0 %660
      %666 = vrot.lane.b32.xlu0 %v634, 48
      %v667 = vpop.permute.xlu0 %666
      %668 = vrot.lane.b32.xlu0 %v635, 48
      %v669 = vpop.permute.xlu0 %668
      %674 = vrot.lane.b32.xlu0 %v638, 64
      %v675 = vpop.permute.xlu0 %674
      %676 = vrot.lane.b32.xlu0 %v639, 64
      %v677 = vpop.permute.xlu0 %676
      %v680 = vsel %vm263, %v615, %v643
      %v681 = vsel %vm263, %v616, %v645
      %v682 = vsel %vm266, %v680, %v651
      %v683 = vsel %vm266, %v681, %v653
      %v684 = vsel %vm269, %v682, %v651
      %v685 = vsel %vm269, %v683, %v653
      %v686 = vsel %vm272, %v684, %v659
      %v687 = vsel %vm272, %v685, %v661
      %v688 = vsel %vm275, %v686, %v667
      %v689 = vsel %vm275, %v687, %v669
      %v690 = vsel %vm278, %v688, %v667
      %v691 = vsel %vm278, %v689, %v669
      %v692 = vsel %vm281, %v690, %v675
      %v693 = vsel %vm281, %v691, %v677
      %s694 = sadd.s32 %s195, 6
      %s695 = smul.u32 %s694, 34
      %s696 = scalar_lea.vmem %s183, %s695
      %v697 = vld [vmem:[%s696] sm:$0xff]
      %v698 = vld [vmem:[%s696 + $0x8] sm:$0xff]
      %s699 = sadd.s32 %s695, 1
      %s700 = scalar_lea.vmem %s183, %s699
      %v701 = vld [vmem:[%s700] sm:$0xff]
      %v702 = vld [vmem:[%s700 + $0x8] sm:$0xff]
      %s703 = smul.u32 %s694, 2
      %s704 = sadd.s32 %s703, 1
      %s705 = smul.u32 %s704, 17
      %s706 = scalar_lea.vmem %s183, %s705
      %v707 = vld [vmem:[%s706] sm:$0xff]
      %v708 = vld [vmem:[%s706 + $0x8] sm:$0xff]
      %s709 = sadd.s32 %s705, 1
      %s710 = scalar_lea.vmem %s183, %s709
      %v711 = vld [vmem:[%s710] sm:$0xff]
      %v712 = vld [vmem:[%s710 + $0x8] sm:$0xff]
      %s713 = sadd.s32 %s703, 2
      %s714 = smul.u32 %s713, 17
      %s715 = scalar_lea.vmem %s183, %s714
      %v716 = vld [vmem:[%s715] sm:$0xff]
      %v717 = vld [vmem:[%s715 + $0x8] sm:$0xff]
      %s718 = sadd.s32 %s714, 1
      %s719 = scalar_lea.vmem %s183, %s718
      %v720 = vld [vmem:[%s719] sm:$0xff]
      %v721 = vld [vmem:[%s719 + $0x8] sm:$0xff]
      %724 = vrot.lane.b32.xlu0 %v701, 16
      %v725 = vpop.permute.xlu0 %724
      %726 = vrot.lane.b32.xlu0 %v702, 16
      %v727 = vpop.permute.xlu0 %726
      %732 = vrot.lane.b32.xlu0 %v707, 24
      %v733 = vpop.permute.xlu0 %732
      %734 = vrot.lane.b32.xlu0 %v708, 24
      %v735 = vpop.permute.xlu0 %734
      %740 = vrot.lane.b32.xlu0 %v711, 40
      %v741 = vpop.permute.xlu0 %740
      %742 = vrot.lane.b32.xlu0 %v712, 40
      %v743 = vpop.permute.xlu0 %742
      %748 = vrot.lane.b32.xlu0 %v716, 48
      %v749 = vpop.permute.xlu0 %748
      %750 = vrot.lane.b32.xlu0 %v717, 48
      %v751 = vpop.permute.xlu0 %750
      %756 = vrot.lane.b32.xlu0 %v720, 64
      %v757 = vpop.permute.xlu0 %756
      %758 = vrot.lane.b32.xlu0 %v721, 64
      %v759 = vpop.permute.xlu0 %758
      %v762 = vsel %vm263, %v697, %v725
      %v763 = vsel %vm263, %v698, %v727
      %v764 = vsel %vm266, %v762, %v733
      %v765 = vsel %vm266, %v763, %v735
      %v766 = vsel %vm269, %v764, %v733
      %v767 = vsel %vm269, %v765, %v735
      %v768 = vsel %vm272, %v766, %v741
      %v769 = vsel %vm272, %v767, %v743
      %v770 = vsel %vm275, %v768, %v749
      %v771 = vsel %vm275, %v769, %v751
      %v772 = vsel %vm278, %v770, %v749
      %v773 = vsel %vm278, %v771, %v751
      %v774 = vsel %vm281, %v772, %v757
      %v775 = vsel %vm281, %v773, %v759
      %s776 = sadd.s32 %s195, 7
      %s777 = smul.u32 %s776, 34
      %s778 = scalar_lea.vmem %s183, %s777
      %v779 = vld [vmem:[%s778] sm:$0xff]
      %v780 = vld [vmem:[%s778 + $0x8] sm:$0xff]
      %s781 = sadd.s32 %s777, 1
      %s782 = scalar_lea.vmem %s183, %s781
      %v783 = vld [vmem:[%s782] sm:$0xff]
      %v784 = vld [vmem:[%s782 + $0x8] sm:$0xff]
      %s785 = smul.u32 %s776, 2
      %s786 = sadd.s32 %s785, 1
      %s787 = smul.u32 %s786, 17
      %s788 = scalar_lea.vmem %s183, %s787
      %v789 = vld [vmem:[%s788] sm:$0xff]
      %v790 = vld [vmem:[%s788 + $0x8] sm:$0xff]
      %s791 = sadd.s32 %s787, 1
      %s792 = scalar_lea.vmem %s183, %s791
      %v793 = vld [vmem:[%s792] sm:$0xff]
      %v794 = vld [vmem:[%s792 + $0x8] sm:$0xff]
      %s795 = sadd.s32 %s785, 2
      %s796 = smul.u32 %s795, 17
      %s797 = scalar_lea.vmem %s183, %s796
      %v798 = vld [vmem:[%s797] sm:$0xff]
      %v799 = vld [vmem:[%s797 + $0x8] sm:$0xff]
      %s800 = sadd.s32 %s796, 1
      %s801 = scalar_lea.vmem %s183, %s800
      %v802 = vld [vmem:[%s801] sm:$0xff]
      %v803 = vld [vmem:[%s801 + $0x8] sm:$0xff]
      %806 = vrot.lane.b32.xlu0 %v783, 16
      %v807 = vpop.permute.xlu0 %806
      %808 = vrot.lane.b32.xlu0 %v784, 16
      %v809 = vpop.permute.xlu0 %808
      %814 = vrot.lane.b32.xlu0 %v789, 24
      %v815 = vpop.permute.xlu0 %814
      %816 = vrot.lane.b32.xlu0 %v790, 24
      %v817 = vpop.permute.xlu0 %816
      %822 = vrot.lane.b32.xlu0 %v793, 40
      %v823 = vpop.permute.xlu0 %822
      %824 = vrot.lane.b32.xlu0 %v794, 40
      %v825 = vpop.permute.xlu0 %824
      %830 = vrot.lane.b32.xlu0 %v798, 48
      %v831 = vpop.permute.xlu0 %830
      %832 = vrot.lane.b32.xlu0 %v799, 48
      %v833 = vpop.permute.xlu0 %832
      %838 = vrot.lane.b32.xlu0 %v802, 64
      %v839 = vpop.permute.xlu0 %838
      %840 = vrot.lane.b32.xlu0 %v803, 64
      %v841 = vpop.permute.xlu0 %840
      %v844 = vsel %vm263, %v779, %v807
      %v845 = vsel %vm263, %v780, %v809
      %v846 = vsel %vm266, %v844, %v815
      %v847 = vsel %vm266, %v845, %v817
      %v848 = vsel %vm269, %v846, %v815
      %v849 = vsel %vm269, %v847, %v817
      %v850 = vsel %vm272, %v848, %v823
      %v851 = vsel %vm272, %v849, %v825
      %v852 = vsel %vm275, %v850, %v831
      %v853 = vsel %vm275, %v851, %v833
      %v854 = vsel %vm278, %v852, %v831
      %v855 = vsel %vm278, %v853, %v833
      %v856 = vsel %vm281, %v854, %v839
      %v857 = vsel %vm281, %v855, %v841
      %v858 = vpack.c.bf16 %v283, %v282
      %v859 = vpack.c.bf16 %v365, %v364
      %v860 = vpack.c.bf16 %v447, %v446
      %v861 = vpack.c.bf16 %v529, %v528
      %v862 = vpack.c.bf16 %v611, %v610
      %v863 = vpack.c.bf16 %v693, %v692
      %v864 = vpack.c.bf16 %v775, %v774
      %v865 = vpack.c.bf16 %v857, %v856
      %v866 = vld [vmem:[%s1] sm:$0xf]
      %v867 = vld [vmem:[%s1 + $0x4] sm:$0xf]
      %v868 = vld [vmem:[%s1 + $0x8] sm:$0xf]
      %v869 = vld [vmem:[%s1 + $0xc] sm:$0xf]
      %v870 = vld [vmem:[%s1 + $0x10] sm:$0xf]
      %v871 = vld [vmem:[%s1 + $0x14] sm:$0xf]
      %v872 = vld [vmem:[%s1 + $0x18] sm:$0xf]
      %v873 = vld [vmem:[%s1 + $0x1c] sm:$0xf]
      %v874 = vld [vmem:[%s1 + $0x20] sm:$0xf]
      %v875 = vld [vmem:[%s2] sm:$0x1]
      %v877 = vlaneseq
      %v878 = vshrl.u32 %v877, 7
      %v879 = vsub.s32 0, %v878
      %v880 = vrot.slane %v875, %v879
      %v891 = vunpack.c.l.b16 %v866
      %v892 = vunpack.c.l.b16 %v867
      %v893 = vunpack.c.l.b16 %v868
      %v894 = vunpack.c.l.b16 %v869
      %v895 = vunpack.c.l.b16 %v870
      %v896 = vunpack.c.l.b16 %v871
      %v897 = vunpack.c.l.b16 %v872
      %v898 = vunpack.c.l.b16 %v873
      %v899 = vunpack.c.l.b16 %v874
      %v900 = vpack.c.b16 %v892, %v891
      %v901 = vpack.c.b16 %v894, %v893
      %v902 = vpack.c.b16 %v896, %v895
      %v903 = vpack.c.b16 %v898, %v897
      %v904 = vpack.c.b16 %v899, %v899
      %vm909 = vcmask 588800
      %v911 = vsel %vm909, %v858, 0
      %v914 = vsel %vm909, %v859, 0
      %v917 = vsel %vm909, %v860, 0
      %v920 = vsel %vm909, %v861, 0
      %v923 = vsel %vm909, %v862, 0
      %v926 = vsel %vm909, %v863, 0
      %v929 = vsel %vm909, %v864, 0
      %v932 = vsel %vm909, %v865, 0
      %vm934 = vcmask 1043456
      %v936 = vsel %vm934, %v904, 0
      %938 = vmatprep.subr.bf16.mxu0 0
      %939 = vmatpush1.bf16.msra.mxu0 %v900
      %940 = vmatprep.subr.bf16.mxu0 0
      %941 = vmatpush1.bf16.msra.mxu0 %v901
      %942 = vmatprep.subr.bf16.mxu0 0
      %943 = vmatpush1.bf16.msra.mxu0 %v902
      %944 = vmatprep.subr.bf16.mxu0 0
      %945 = vmatpush1.bf16.msra.mxu0 %v903
      %946 = vmatprep.subr.bf16.mxu0 0
      %947 = vmatpush1.bf16.msra.mxu0 %v936
      %948 = vmatprep.subr.bf16.mxu0 0
      %949 = vmatpush1.bf16.msra.mxu0 0
      %950 = vmatprep.subr.bf16.mxu0 0
      %951 = vmatpush1.bf16.msra.mxu0 0
      %952 = vmatprep.subr.bf16.mxu0 0
      %953 = vmatpush1.bf16.msra.mxu0 0
      %954 = vmatprep.subr.bf16.mxu0 0
      %955 = vmatpush1.bf16.msra.mxu0 0
      %956 = vmatprep.subr.bf16.mxu0 0
      %957 = vmatpush1.bf16.msra.mxu0 0
      %958 = vmatprep.subr.bf16.mxu0 0
      %959 = vmatpush1.bf16.msra.mxu0 0
      %960 = vmatprep.subr.bf16.mxu0 0
      %961 = vmatpush1.bf16.msra.mxu0 0
      %962 = vmatprep.subr.bf16.mxu0 0
      %963 = vmatpush1.bf16.msra.mxu0 0
      %964 = vmatprep.subr.bf16.mxu0 0
      %965 = vmatpush1.bf16.msra.mxu0 0
      %966 = vmatprep.subr.bf16.mxu0 0
      %967 = vmatpush1.bf16.msra.mxu0 0
      %968 = vmatprep.subr.bf16.mxu0 0
      %969 = vmatpush1.bf16.msra.mxu0 0
      %970 = vmatprep.mubr.bf16.mxu0 0
      %971 = vmatmul.mubr.bf16.gmra.mrb[0].mxu0 %v911
      %v972 = vpop.f32.mrb[0].mxu0
      %v973 = vadd.f32 %v880, %v972
      %v974 = vpop.f32.mrb[0].mxu0
      %v975 = vpop.f32.mrb[0].mxu0
      %v976 = vadd.f32 %v880, %v975
      %v977 = vpop.f32.mrb[0].mxu0
      %978 = vmatprep.mubr.bf16.mxu0 0
      %979 = vmatmul.mubr.bf16.gmra.mrb[0].mxu0 %v914
      %v980 = vpop.f32.mrb[0].mxu0
      %v981 = vadd.f32 %v880, %v980
      %v982 = vpop.f32.mrb[0].mxu0
      %v983 = vpop.f32.mrb[0].mxu0
      %v984 = vadd.f32 %v880, %v983
      %v985 = vpop.f32.mrb[0].mxu0
      %986 = vmatprep.mubr.bf16.mxu0 0
      %987 = vmatmul.mubr.bf16.gmra.mrb[0].mxu0 %v917
      %v988 = vpop.f32.mrb[0].mxu0
      %v989 = vadd.f32 %v880, %v988
      %v990 = vpop.f32.mrb[0].mxu0
      %v991 = vpop.f32.mrb[0].mxu0
      %v992 = vadd.f32 %v880, %v991
      %v993 = vpop.f32.mrb[0].mxu0
      %994 = vmatprep.mubr.bf16.mxu0 0
      %995 = vmatmul.mubr.bf16.gmra.mrb[0].mxu0 %v920
      %v996 = vpop.f32.mrb[0].mxu0
      %v997 = vadd.f32 %v880, %v996
      %v998 = vpop.f32.mrb[0].mxu0
      %v999 = vpop.f32.mrb[0].mxu0
      %v1000 = vadd.f32 %v880, %v999
      %v1001 = vpop.f32.mrb[0].mxu0
      %1002 = vmatprep.mubr.bf16.mxu0 0
      %1003 = vmatmul.mubr.bf16.gmra.mrb[0].mxu0 %v923
      %v1004 = vpop.f32.mrb[0].mxu0
      %v1005 = vadd.f32 %v880, %v1004
      %v1006 = vpop.f32.mrb[0].mxu0
      %v1007 = vpop.f32.mrb[0].mxu0
      %v1008 = vadd.f32 %v880, %v1007
      %v1009 = vpop.f32.mrb[0].mxu0
      %1010 = vmatprep.mubr.bf16.mxu0 0
      %1011 = vmatmul.mubr.bf16.gmra.mrb[0].mxu0 %v926
      %v1012 = vpop.f32.mrb[0].mxu0
      %v1013 = vadd.f32 %v880, %v1012
      %v1014 = vpop.f32.mrb[0].mxu0
      %v1015 = vpop.f32.mrb[0].mxu0
      %v1016 = vadd.f32 %v880, %v1015
      %v1017 = vpop.f32.mrb[0].mxu0
      %1018 = vmatprep.mubr.bf16.mxu0 0
      %1019 = vmatmul.mubr.bf16.gmra.mrb[0].mxu0 %v929
      %v1020 = vpop.f32.mrb[0].mxu0
      %v1021 = vadd.f32 %v880, %v1020
      %v1022 = vpop.f32.mrb[0].mxu0
      %v1023 = vpop.f32.mrb[0].mxu0
      %v1024 = vadd.f32 %v880, %v1023
      %v1025 = vpop.f32.mrb[0].mxu0
      %1026 = vmatprep.mubr.bf16.mxu0 0
      %1027 = vmatmul.mubr.bf16.gmra.mrb[0].mxu0 %v932
      %v1028 = vpop.f32.mrb[0].mxu0
      %v1029 = vadd.f32 %v880, %v1028
      %v1030 = vpop.f32.mrb[0].mxu0
      %v1031 = vpop.f32.mrb[0].mxu0
      %v1032 = vadd.f32 %v880, %v1031
      %v1033 = vpop.f32.mrb[0].mxu0
      %1034 = vdwg.mxu0
      %v1035 = vmax.f32 %v973, 0.0
      %v1036 = vmax.f32 %v976, 0.0
      %v1037 = vmax.f32 %v981, 0.0
      %v1038 = vmax.f32 %v984, 0.0
      %v1039 = vmax.f32 %v989, 0.0
      %v1040 = vmax.f32 %v992, 0.0
      %v1041 = vmax.f32 %v997, 0.0
      %v1042 = vmax.f32 %v1000, 0.0
      %v1043 = vmax.f32 %v1005, 0.0
      %v1044 = vmax.f32 %v1008, 0.0
      %v1045 = vmax.f32 %v1013, 0.0
      %v1046 = vmax.f32 %v1016, 0.0
      %v1047 = vmax.f32 %v1021, 0.0
      %v1048 = vmax.f32 %v1024, 0.0
      %v1049 = vmax.f32 %v1029, 0.0
      %v1050 = vmax.f32 %v1032, 0.0
      %1051 = vst.msk [vmem:[%s192] sm:$0xff] %vm263, %v1035
      %1052 = vst.msk [vmem:[%s192 + $0x8] sm:$0xff] %vm263, %v1036
      %1053 = vst.msk [vmem:[%s192 + $0x10] sm:$0xff] %vm263, %v1037
      %1054 = vst.msk [vmem:[%s192 + $0x18] sm:$0xff] %vm263, %v1038
      %1055 = vst.msk [vmem:[%s192 + $0x20] sm:$0xff] %vm263, %v1039
      %1056 = vst.msk [vmem:[%s192 + $0x28] sm:$0xff] %vm263, %v1040
      %1057 = vst.msk [vmem:[%s192 + $0x30] sm:$0xff] %vm263, %v1041
      %1058 = vst.msk [vmem:[%s192 + $0x38] sm:$0xff] %vm263, %v1042
      %1059 = vst.msk [vmem:[%s192 + $0x40] sm:$0xff] %vm263, %v1043
      %1060 = vst.msk [vmem:[%s192 + $0x48] sm:$0xff] %vm263, %v1044
      %1061 = vst.msk [vmem:[%s192 + $0x50] sm:$0xff] %vm263, %v1045
      %1062 = vst.msk [vmem:[%s192 + $0x58] sm:$0xff] %vm263, %v1046
      %1063 = vst.msk [vmem:[%s192 + $0x60] sm:$0xff] %vm263, %v1047
      %1064 = vst.msk [vmem:[%s192 + $0x68] sm:$0xff] %vm263, %v1048
      %1065 = vst.msk [vmem:[%s192 + $0x70] sm:$0xff] %vm263, %v1049
      %1066 = vst.msk [vmem:[%s192 + $0x78] sm:$0xff] %vm263, %v1050
      %s1067 = smul.u32 16, %s19
      %p1068 = scmp.lt.s32.totalorder %s18, 1
      %s1069 = scalar_select %p1068, %s18, 1
      %p1070 = scmp.lt.s32.totalorder %s1067, 15
      %s1071 = scalar_select %p1070, %s1067, 15
      %s1072 = smul.addr %s1069, 16
      %s1073 = sadd.s32 %s1071, %s1072
      %s1074 = smul.addr %s1073, 8
      %s1075 = scalar_lea.vmem %s3, %s1074
      // Predicated region
      $region33: #{mohapatra_forward.4} parent=31 // pred_check
        %p1076 = pneg %p114
      $region34: #{mohapatra_forward.4} parent=31 // pred_check_branch
        %1078 = sbr.rel (%p1076) target = $region36
      $region35: #{mohapatra_forward.4} parent=31 // pred_region
        %s1079 = smul.u32 16, %s19
      $region36: #{mohapatra_forward.4} parent=31 // pred_fallthru
        _
    $region32: #{mohapatra_forward.4} parent=5 // pred_fallthru
      _
    %p1080 = scmp.le.s32.totalorder 2, %s9
    // Predicated region
    $region37: #{mohapatra_forward.4} parent=5 // pred_check
      %p1081 = pneg %p1080
    $region38: #{mohapatra_forward.4} parent=5 // pred_check_branch
      %1083 = sbr.rel (%p1081) target = $region40
    $region39: #{mohapatra_forward.4} parent=5 // pred_region
      %s1084 = ssub.s32 %s9, 2
      // Predicated region
      $region41: #{mohapatra_forward.4} parent=39 // pred_check
        %p1085 = pneg %p120
      $region42: #{mohapatra_forward.4} parent=39 // pred_check_branch
        %1087 = sbr.rel (%p1085) target = $region44
      $region43: #{mohapatra_forward.4} parent=39 // pred_region
        %s1088 = smul.u32 16, %s21
        %p1089 = scmp.lt.s32.totalorder %s20, 1
        %s1090 = scalar_select %p1089, %s20, 1
        %p1091 = scmp.lt.s32.totalorder %s1088, 15
        %s1092 = scalar_select %p1091, %s1088, 15
        %s1093 = smul.addr %s1090, 16
        %s1094 = sadd.s32 %s1092, %s1093
        %s1095 = smul.addr %s1094, 8
        %s1096 = scalar_lea.vmem %s3, %s1095
      $region44: #{mohapatra_forward.4} parent=39 // pred_fallthru
        _
    $region40: #{mohapatra_forward.4} parent=5 // pred_fallthru
      _
  $region6: #{mohapatra_forward.4} parent=0 // loop_footer
    %s13 = sadd.s32 1, %s9
  $region7: #{mohapatra_forward.4} parent=0 // loop_footer_branch
    %8 = sbr.rel target = $region3
  $region8: #{mohapatra_forward.4} parent=0 // loop_exit
    _

// kernel: mohapatra_forward.3
$region0: #{mohapatra_forward.3}
  #allocation0 [shape = 'u32[]', space=smem, size = 0x4, offset = 0x4, fixed_abs, tag = 'smem constant byte address 0x4 - core index']
  #allocation1 [shape = 'u32[144,128]{1,0:T(1,128)}', space=vmem, size = 0x12000, scoped, tag = 'internal scratch']
  %s0 = inlined_call_operand.vmem [shape: f32[2,34,66], index: 0, kind: input, shape index: {}]
  %s1 = inlined_call_operand.vmem [shape: f32[64,64], index: 1, kind: input, shape index: {}]
  %s2 = inlined_call_operand.vmem [shape: f32[9,8], index: 2, kind: input, shape index: {}]
  %s3 = inlined_call_operand.hbm [shape: f32[1,8], index: 3, kind: input, shape index: {}]
  %s4 = inlined_call_operand.vmem [shape: f32[2,16,256], index: 4, kind: output, shape index: {}]
  %s5 = sld [smem:[#allocation0]]
  $region57: #{mohapatra_forward.3} parent=0
    _
  %s7 = ssub.s32 1, %s5
  %s8 = scalar_select 0, %s7, %s5
  $region1: #{mohapatra_forward.3} parent=0
    #allocation2 [shape = 'u8[8192]{0}', space=smem, size = 0x2000, scoped, tag = 'input window, operand 2, single buffered']
    #allocation3 [shape = 's32[2]{0}', space=sflag, size = 0x8, scoped, tag = 'scoped memory for mohapatra_forward.3']
    #allocation4 [shape = 's32[2]{0}', space=sflag, size = 0x8, scoped, tag = 'scoped memory for mohapatra_forward.3']
    #allocation5 [shape = 'u8[512]{0}', space=smem, size = 0x200, scoped, tag = 'input window, operand 3, single buffered']
    %9 = vsyncpa [#allocation4], 0
    %10 = vsyncpa [#allocation3], 0
    loop: start=0, step=1, limit=4
    $region2: #{mohapatra_forward.3} parent=1 // loop_pre_header
      _
    $region3: #{mohapatra_forward.3} parent=1 // loop_header
      %s12 = sphi 0, %s16
      %p13 = scmp.ge.s32.totalorder %s12, 4
      %s19 = sphi 0, %s31
      %s20 = sphi 0, %s27
      %s21 = sphi 0, %s19
      %s22 = sphi 0, %s20
      %s23 = sphi 0, %s21
      %s24 = sphi 0, %s22
      %s34 = sphi 0, %s36
      %s37 = sphi 0, %s34
      %s38 = sphi 0, %s37
      %s54 = sphi 0, %s38
      %s58 = sphi 0, %s58
      %s60 = sphi 0, %s58
      %s61 = sphi 0, %s60
      %s75 = sphi 0, %s61
      %s79 = sphi 0, %s79
      %s81 = sphi 0, %s79
      %s82 = sphi 0, %s81
      %s96 = sphi 0, %s82
      %s100 = sphi 0, %s100
      %s102 = sphi 0, %s100
      %s103 = sphi 0, %s102
      %s117 = sphi 0, %s103
      %s125 = sphi 0, %s127
      %s128 = sphi 0, %s125
      %s129 = sphi 0, %s128
      %s145 = sphi 0, %s129
    $region4: #{mohapatra_forward.3} parent=1 // loop_header_branch
      %15 = sbr.rel (%p13) target = $region8
    $region5: #{mohapatra_forward.3} parent=1 // loop_body
      %s17 = ssub.s32 %s12, 1
      %s18 = ssub.s32 %s12, 2
      %s25 = sadd.s32 1, %s20
      %p26 = scmp.ge.s32.totalorder %s25, 1
      %s27 = scalar_select %p26, 0, %s25
      %s28 = sadd.s32 1, %s19
      %s29 = scalar_select %p26, %s28, %s19
      %p30 = scmp.ge.s32.totalorder %s29, 2
      %s31 = scalar_select %p30, 0, %s29
      %s32 = ssub.s32 %s19, %s31
      %p33 = scmp.eq.s32.totalorder %s32, 0
      %s35 = sadd.s32 %s34, 1
      %s36 = scalar_select %p33, %s34, %s35
      %p39 = pneg %p33
      %p40 = scmp.eq.s32.totalorder %s12, 1
      %p41 = por %p39, %p40
      %p42 = scmp.ne.s32.totalorder %s34, %s37
      %p43 = scmp.eq.s32.totalorder %s12, 0
      %p44 = por %p42, %p43
      %p45 = scmp.ne.s32.totalorder %s34, %s37
      %p46 = scmp.eq.s32.totalorder %s17, 1
      %p47 = por %p45, %p46
      %p48 = scmp.ne.s32.totalorder %s37, %s38
      %p49 = scmp.eq.s32.totalorder %s17, 0
      %p50 = por %p48, %p49
      %p51 = scmp.ne.s32.totalorder %s37, %s38
      %p52 = scmp.eq.s32.totalorder %s18, 1
      %p53 = por %p51, %p52
      %p55 = scmp.ne.s32.totalorder %s38, %s54
      %p56 = scmp.eq.s32.totalorder %s18, 0
      %p57 = por %p55, %p56
      %s59 = sadd.s32 %s58, 1
      %p62 = scmp.eq.s32.totalorder %s12, 1
      %p63 = scmp.ne.s32.totalorder %s58, %s60
      %p64 = scmp.eq.s32.totalorder %s12, 0
      %p65 = por %p63, %p64
      %p66 = scmp.ne.s32.totalorder %s58, %s60
      %p67 = scmp.eq.s32.totalorder %s17, 1
      %p68 = por %p66, %p67
      %p69 = scmp.ne.s32.totalorder %s60, %s61
      %p70 = scmp.eq.s32.totalorder %s17, 0
      %p71 = por %p69, %p70
      %p72 = scmp.ne.s32.totalorder %s60, %s61
      %p73 = scmp.eq.s32.totalorder %s18, 1
      %p74 = por %p72, %p73
      %p76 = scmp.ne.s32.totalorder %s61, %s75
      %p77 = scmp.eq.s32.totalorder %s18, 0
      %p78 = por %p76, %p77
      %s80 = sadd.s32 %s79, 1
      %p83 = scmp.eq.s32.totalorder %s12, 1
      %p84 = scmp.ne.s32.totalorder %s79, %s81
      %p85 = scmp.eq.s32.totalorder %s12, 0
      %p86 = por %p84, %p85
      %p87 = scmp.ne.s32.totalorder %s79, %s81
      %p88 = scmp.eq.s32.totalorder %s17, 1
      %p89 = por %p87, %p88
      %p90 = scmp.ne.s32.totalorder %s81, %s82
      %p91 = scmp.eq.s32.totalorder %s17, 0
      %p92 = por %p90, %p91
      %p93 = scmp.ne.s32.totalorder %s81, %s82
      %p94 = scmp.eq.s32.totalorder %s18, 1
      %p95 = por %p93, %p94
      %p97 = scmp.ne.s32.totalorder %s82, %s96
      %p98 = scmp.eq.s32.totalorder %s18, 0
      %p99 = por %p97, %p98
      %s101 = sadd.s32 %s100, 1
      %p104 = scmp.eq.s32.totalorder %s12, 1
      %p105 = scmp.ne.s32.totalorder %s100, %s102
      %p106 = scmp.eq.s32.totalorder %s12, 0
      %p107 = por %p105, %p106
      %p108 = scmp.ne.s32.totalorder %s100, %s102
      %p109 = scmp.eq.s32.totalorder %s17, 1
      %p110 = por %p108, %p109
      %p111 = scmp.ne.s32.totalorder %s102, %s103
      %p112 = scmp.eq.s32.totalorder %s17, 0
      %p113 = por %p111, %p112
      %p114 = scmp.ne.s32.totalorder %s102, %s103
      %p115 = scmp.eq.s32.totalorder %s18, 1
      %p116 = por %p114, %p115
      %p118 = scmp.ne.s32.totalorder %s103, %s117
      %p119 = scmp.eq.s32.totalorder %s18, 0
      %p120 = por %p118, %p119
      %s121 = ssub.s32 %s19, %s31
      %s122 = ssub.s32 %s20, %s27
      %s123 = sor.u32 %s121, %s122
      %p124 = scmp.eq.s32.totalorder %s123, 0
      %s126 = sadd.s32 %s125, 1
      %s127 = scalar_select %p124, %s125, %s126
      %p130 = pneg %p124
      %p131 = scmp.eq.s32.totalorder %s12, 1
      %p132 = por %p130, %p131
      %p133 = scmp.ne.s32.totalorder %s125, %s128
      %p134 = scmp.eq.s32.totalorder %s12, 0
      %p135 = por %p133, %p134
      %p136 = scmp.ne.s32.totalorder %s125, %s128
      %p137 = scmp.eq.s32.totalorder %s17, 1
      %p138 = por %p136, %p137
      %p139 = scmp.ne.s32.totalorder %s128, %s129
      %p140 = scmp.eq.s32.totalorder %s17, 0
      %p141 = por %p139, %p140
      %p142 = scmp.ne.s32.totalorder %s128, %s129
      %p143 = scmp.eq.s32.totalorder %s18, 1
      %p144 = por %p142, %p143
      %p146 = scmp.ne.s32.totalorder %s129, %s145
      %p147 = scmp.eq.s32.totalorder %s18, 0
      %p148 = por %p146, %p147
      %p149 = scmp.le.s32.totalorder 1, %s12
      %p150 = scmp.lt.s32.totalorder %s12, 3
      %p151 = pnand %p149, %p150
      %p152 = pneg %p151
      // Predicated region
      $region9: #{mohapatra_forward.3} parent=5 // pred_check
        _
      $region10: #{mohapatra_forward.3} parent=5 // pred_check_branch
        %154 = sbr.rel (%p151) target = $region12
      $region11: #{mohapatra_forward.3} parent=5 // pred_region
        %s155 = ssub.s32 %s12, 1
        // Predicated region
        $region13: #{mohapatra_forward.3} parent=11 // pred_check
          %p156 = pneg %p71
        $region14: #{mohapatra_forward.3} parent=11 // pred_check_branch
          %158 = sbr.rel (%p156) target = $region16
        $region15: #{mohapatra_forward.3} parent=11 // pred_region
          _
        $region16: #{mohapatra_forward.3} parent=11 // pred_fallthru
          _
        // Predicated region
        $region17: #{mohapatra_forward.3} parent=11 // pred_check
          %p159 = pneg %p92
        $region18: #{mohapatra_forward.3} parent=11 // pred_check_branch
          %161 = sbr.rel (%p159) target = $region20
        $region19: #{mohapatra_forward.3} parent=11 // pred_region
          %s163 = ssub.s32 256, 256
          %164 = vsyncadd [#allocation4], %s163
          %s165 = sshll.u32 %s2, 4
          %s166 = int_to_ptr.vmem [resolvable:$true] %s165
          %171 = dma.vmem_to_smem %s166, 256, [#allocation2], [#allocation4], 128, 128, 8
        $region20: #{mohapatra_forward.3} parent=11 // pred_fallthru
          _
        // Predicated region
        $region21: #{mohapatra_forward.3} parent=11 // pred_check
          %p172 = pneg %p113
        $region22: #{mohapatra_forward.3} parent=11 // pred_check_branch
          %174 = sbr.rel (%p172) target = $region24
        $region23: #{mohapatra_forward.3} parent=11 // pred_region
          %s176 = ssub.s32 16, 16
          %177 = vsyncadd [#allocation3], %s176
          %180 = dma.hbm_to_smem %s3, 16, [#allocation5], [#allocation3]
        $region24: #{mohapatra_forward.3} parent=11 // pred_fallthru
          _
      $region12: #{mohapatra_forward.3} parent=5 // pred_fallthru
        _
      %p181 = scmp.lt.s32.totalorder %s12, 2
      // Predicated region
      $region25: #{mohapatra_forward.3} parent=5 // pred_check
        %p182 = pneg %p181
      $region26: #{mohapatra_forward.3} parent=5 // pred_check_branch
        %184 = sbr.rel (%p182) target = $region28
      $region27: #{mohapatra_forward.3} parent=5 // pred_region
        // Predicated region
        $region29: #{mohapatra_forward.3} parent=27 // pred_check
          %p185 = pneg %p44
        $region30: #{mohapatra_forward.3} parent=27 // pred_check_branch
          %187 = sbr.rel (%p185) target = $region32
        $region31: #{mohapatra_forward.3} parent=27 // pred_region
          %p188 = scmp.lt.s32.totalorder %s19, 1
          %s189 = scalar_select %p188, %s19, 1
          %s190 = smul.addr %s189, 5
          %s191 = smul.addr %s190, 8
          %s192 = scalar_lea.vmem %s0, %s191
        $region32: #{mohapatra_forward.3} parent=27 // pred_fallthru
          _
      $region28: #{mohapatra_forward.3} parent=5 // pred_fallthru
        _
      %p193 = scmp.le.s32.totalorder 1, %s12
      %p194 = scmp.lt.s32.totalorder %s12, 3
      %p195 = pnand %p193, %p194
      %p196 = pneg %p195
      // Predicated region
      $region33: #{mohapatra_forward.3} parent=5 // pred_check
        _
      $region34: #{mohapatra_forward.3} parent=5 // pred_check_branch
        %198 = sbr.rel (%p195) target = $region36
      $region35: #{mohapatra_forward.3} parent=5 // pred_region
        %s199 = ssub.s32 %s12, 1
        // Predicated region
        $region37: #{mohapatra_forward.3} parent=35 // pred_check
          %p200 = pneg %p92
        $region38: #{mohapatra_forward.3} parent=35 // pred_check_branch
          %202 = sbr.rel (%p200) target = $region40
        $region39: #{mohapatra_forward.3} parent=35 // pred_region
          %203 = dma.done [#allocation4], 256
        $region40: #{mohapatra_forward.3} parent=35 // pred_fallthru
          _
        // Predicated region
        $region41: #{mohapatra_forward.3} parent=35 // pred_check
          %p204 = pneg %p113
        $region42: #{mohapatra_forward.3} parent=35 // pred_check_branch
          %206 = sbr.rel (%p204) target = $region44
        $region43: #{mohapatra_forward.3} parent=35 // pred_region
          %207 = dma.done [#allocation3], 16
        $region44: #{mohapatra_forward.3} parent=35 // pred_fallthru
          _
        %208 = sfence
        %p209 = scmp.lt.s32.totalorder %s21, 1
        %s210 = scalar_select %p209, %s21, 1
        %s211 = smul.addr %s210, 5
        %s212 = smul.addr %s211, 8
        %s213 = scalar_lea.vmem %s0, %s212
        %p214 = pneg %p50
        %p215 = pneg %p47
        %p216 = pneg %p71
        %p217 = pneg %p68
        %p218 = pneg %p92
        %p219 = pneg %p89
        %p220 = pneg %p113
        %p221 = pneg %p110
        %p222 = pneg %p141
        %p223 = pneg %p138
        %s224 = smul.u32 2, %s22
        %p225 = scmp.lt.s32.totalorder %s21, 1
        %s226 = scalar_select %p225, %s21, 1
        %p227 = scmp.lt.s32.totalorder %s224, 1
        %s228 = scalar_select %p227, %s224, 1
        %s229 = smul.addr %s228, 2
        %s230 = smul.addr %s226, 4
        %s231 = sadd.s32 %s229, %s230
        %s232 = smul.addr %s231, 8
        %s233 = scalar_lea.vmem %s4, %s232
        %p234 = scmp.lt.s32.totalorder %s21, 1
        %s235 = scalar_select %p234, %s21, 1
        %s236 = smul.addr %s235, 5
        %s237 = smul.addr %s236, 8
        %s238 = scalar_lea.vmem %s0, %s237
        %s239 = smul.u32 2, %s22
        %p240 = scmp.lt.s32.totalorder %s21, 1
        %s241 = scalar_select %p240, %s21, 1
        %p242 = scmp.lt.s32.totalorder %s239, 1
        %s243 = scalar_select %p242, %s239, 1
        %s244 = smul.addr %s243, 2
        %s245 = smul.addr %s241, 4
        %s246 = sadd.s32 %s244, %s245
        %s247 = smul.addr %s246, 8
        %s248 = scalar_lea.vmem %s4, %s247
        %s249 = smul.u32 2, %s22
        %s250 = smul.u32 %s22, 32
        %s251 = scalar_lea.vmem %s238, %s250
        %v252 = vld [vmem:[%s251] ss:$2 sm:$0xff]
        %s253 = scalar_lea.vmem %s251, 16
        %v254 = vld [vmem:[%s253] ss:$2 sm:$0xff]
        %s255 = sadd.s32 %s250, 1
        %s256 = scalar_lea.vmem %s238, %s255
        %v257 = vld [vmem:[%s256] ss:$2 sm:$0xff]
        %s258 = scalar_lea.vmem %s256, 16
        %v259 = vld [vmem:[%s258] ss:$2 sm:$0xff]
        %s260 = sadd.s32 %s250, 2
        %s261 = scalar_lea.vmem %s238, %s260
        %v262 = vld [vmem:[%s261] ss:$2 sm:$0xff]
        %s263 = scalar_lea.vmem %s261, 16
        %v264 = vld [vmem:[%s263] ss:$2 sm:$0xff]
        %s265 = sadd.s32 %s250, 3
        %s266 = scalar_lea.vmem %s238, %s265
        %v267 = vld [vmem:[%s266] ss:$2 sm:$0xff]
        %s268 = scalar_lea.vmem %s266, 16
        %v269 = vld [vmem:[%s268] ss:$2 sm:$0xff]
        %s270 = sld [smem:[#allocation2]]
        %s271 = sld [smem:[#allocation2 + $0x80]]
        %s272 = sld [smem:[#allocation2 + $0x100]]
        %s273 = sld [smem:[#allocation2 + $0x180]]
        %s274 = sld [smem:[#allocation2 + $0x200]]
        %s275 = sld [smem:[#allocation2 + $0x280]]
        %s276 = sld [smem:[#allocation2 + $0x300]]
        %s277 = sld [smem:[#allocation2 + $0x380]]
        %s278 = sld [smem:[#allocation2 + $0x400]]
        %s279 = sld [smem:[#allocation2 + $0x1]]
        %s280 = sld [smem:[#allocation2 + $0x81]]
        %s281 = sld [smem:[#allocation2 + $0x101]]
        %s282 = sld [smem:[#allocation2 + $0x181]]
        %s283 = sld [smem:[#allocation2 + $0x201]]
        %s284 = sld [smem:[#allocation2 + $0x281]]
        %s285 = sld [smem:[#allocation2 + $0x301]]
        %s286 = sld [smem:[#allocation2 + $0x381]]
        %s287 = sld [smem:[#allocation2 + $0x401]]
        %s288 = sld [smem:[#allocation2 + $0x2]]
        %s289 = sld [smem:[#allocation2 + $0x82]]
        %s290 = sld [smem:[#allocation2 + $0x102]]
        %s291 = sld [smem:[#allocation2 + $0x182]]
        %s292 = sld [smem:[#allocation2 + $0x202]]
        %s293 = sld [smem:[#allocation2 + $0x282]]
        %s294 = sld [smem:[#allocation2 + $0x302]]
        %s295 = sld [smem:[#allocation2 + $0x382]]
        %s296 = sld [smem:[#allocation2 + $0x402]]
        %s297 = sld [smem:[#allocation2 + $0x3]]
        %s298 = sld [smem:[#allocation2 + $0x83]]
        %s299 = sld [smem:[#allocation2 + $0x103]]
        %s300 = sld [smem:[#allocation2 + $0x183]]
        %s301 = sld [smem:[#allocation2 + $0x203]]
        %s302 = sld [smem:[#allocation2 + $0x283]]
        %s303 = sld [smem:[#allocation2 + $0x303]]
        %s304 = sld [smem:[#allocation2 + $0x383]]
        %s305 = sld [smem:[#allocation2 + $0x403]]
        %s306 = sld [smem:[#allocation2 + $0x4]]
        %s307 = sld [smem:[#allocation2 + $0x84]]
        %s308 = sld [smem:[#allocation2 + $0x104]]
        %s309 = sld [smem:[#allocation2 + $0x184]]
        %s310 = sld [smem:[#allocation2 + $0x204]]
        %s311 = sld [smem:[#allocation2 + $0x284]]
        %s312 = sld [smem:[#allocation2 + $0x304]]
        %s313 = sld [smem:[#allocation2 + $0x384]]
        %s314 = sld [smem:[#allocation2 + $0x404]]
        %s315 = sld [smem:[#allocation2 + $0x5]]
        %s316 = sld [smem:[#allocation2 + $0x85]]
        %s317 = sld [smem:[#allocation2 + $0x105]]
        %s318 = sld [smem:[#allocation2 + $0x185]]
        %s319 = sld [smem:[#allocation2 + $0x205]]
        %s320 = sld [smem:[#allocation2 + $0x285]]
        %s321 = sld [smem:[#allocation2 + $0x305]]
        %s322 = sld [smem:[#allocation2 + $0x385]]
        %s323 = sld [smem:[#allocation2 + $0x405]]
        %s324 = sld [smem:[#allocation2 + $0x6]]
        %s325 = sld [smem:[#allocation2 + $0x86]]
        %s326 = sld [smem:[#allocation2 + $0x106]]
        %s327 = sld [smem:[#allocation2 + $0x186]]
        %s328 = sld [smem:[#allocation2 + $0x206]]
        %s329 = sld [smem:[#allocation2 + $0x286]]
        %s330 = sld [smem:[#allocation2 + $0x306]]
        %s331 = sld [smem:[#allocation2 + $0x386]]
        %s332 = sld [smem:[#allocation2 + $0x406]]
        %s333 = sld [smem:[#allocation2 + $0x7]]
        %s334 = sld [smem:[#allocation2 + $0x87]]
        %s335 = sld [smem:[#allocation2 + $0x107]]
        %s336 = sld [smem:[#allocation2 + $0x187]]
        %s337 = sld [smem:[#allocation2 + $0x207]]
        %s338 = sld [smem:[#allocation2 + $0x287]]
        %s339 = sld [smem:[#allocation2 + $0x307]]
        %s340 = sld [smem:[#allocation2 + $0x387]]
        %s341 = sld [smem:[#allocation2 + $0x407]]
        %s342 = sld [smem:[#allocation5]]
        %s343 = sld [smem:[#allocation5 + $0x1]]
        %s344 = sld [smem:[#allocation5 + $0x2]]
        %s345 = sld [smem:[#allocation5 + $0x3]]
        %s346 = sld [smem:[#allocation5 + $0x4]]
        %s347 = sld [smem:[#allocation5 + $0x5]]
        %s348 = sld [smem:[#allocation5 + $0x6]]
        %s349 = sld [smem:[#allocation5 + $0x7]]
        %v350 = vstv %s270
        %v351 = vmul.f32 %v350, %v252
        %v352 = vmul.f32 %v350, %v254
        %v353 = vmul.f32 %v350, %v257
        %v354 = vmul.f32 %v350, %v259
        %v355 = vstv %s271
        %v356 = vmul.f32 %v355, %v252
        %v357 = vmul.f32 %v355, %v254
        %360 = vrot.lane.b32.xlu0 %v356, 127
        %v361 = vpop.permute.xlu0 %360
        %362 = vrot.lane.b32.xlu0 %v357, 127
        %v363 = vpop.permute.xlu0 %362
        %v366 = vadd.f32 %v351, %v361
        %v367 = vadd.f32 %v352, %v363
        %v368 = vmul.f32 %v355, %v257
        %v369 = vmul.f32 %v355, %v259
        %372 = vrot.lane.b32.xlu0 %v368, 127
        %v373 = vpop.permute.xlu0 %372
        %374 = vrot.lane.b32.xlu0 %v369, 127
        %v375 = vpop.permute.xlu0 %374
        %v378 = vadd.f32 %v353, %v373
        %v379 = vadd.f32 %v354, %v375
        %v380 = vstv %s272
        %v381 = vmul.f32 %v380, %v252
        %v382 = vmul.f32 %v380, %v254
        %385 = vrot.lane.b32.xlu0 %v381, 126
        %v386 = vpop.permute.xlu0 %385
        %387 = vrot.lane.b32.xlu0 %v382, 126
        %v388 = vpop.permute.xlu0 %387
        %v391 = vadd.f32 %v366, %v386
        %v392 = vadd.f32 %v367, %v388
        %v393 = vmul.f32 %v380, %v257
        %v394 = vmul.f32 %v380, %v259
        %397 = vrot.lane.b32.xlu0 %v393, 126
        %v398 = vpop.permute.xlu0 %397
        %399 = vrot.lane.b32.xlu0 %v394, 126
        %v400 = vpop.permute.xlu0 %399
        %v403 = vadd.f32 %v378, %v398
        %v404 = vadd.f32 %v379, %v400
        %v405 = vstv %s273
        %v406 = vmul.f32 %v405, %v257
        %v407 = vmul.f32 %v405, %v259
        %v408 = vadd.f32 %v391, %v406
        %v409 = vadd.f32 %v392, %v407
        %v410 = vmul.f32 %v405, %v262
        %v411 = vmul.f32 %v405, %v264
        %v412 = vadd.f32 %v403, %v410
        %v413 = vadd.f32 %v404, %v411
        %v414 = vstv %s274
        %v415 = vmul.f32 %v414, %v257
        %v416 = vmul.f32 %v414, %v259
        %419 = vrot.lane.b32.xlu0 %v415, 127
        %v420 = vpop.permute.xlu0 %419
        %421 = vrot.lane.b32.xlu0 %v416, 127
        %v422 = vpop.permute.xlu0 %421
        %v425 = vadd.f32 %v408, %v420
        %v426 = vadd.f32 %v409, %v422
        %v427 = vmul.f32 %v414, %v262
        %v428 = vmul.f32 %v414, %v264
        %431 = vrot.lane.b32.xlu0 %v427, 127
        %v432 = vpop.permute.xlu0 %431
        %433 = vrot.lane.b32.xlu0 %v428, 127
        %v434 = vpop.permute.xlu0 %433
        %v437 = vadd.f32 %v412, %v432
        %v438 = vadd.f32 %v413, %v434
        %v439 = vstv %s275
        %v440 = vmul.f32 %v439, %v257
        %v441 = vmul.f32 %v439, %v259
        %444 = vrot.lane.b32.xlu0 %v440, 126
        %v445 = vpop.permute.xlu0 %444
        %446 = vrot.lane.b32.xlu0 %v441, 126
        %v447 = vpop.permute.xlu0 %446
        %v450 = vadd.f32 %v425, %v445
        %v451 = vadd.f32 %v426, %v447
        %v452 = vmul.f32 %v439, %v262
        %v453 = vmul.f32 %v439, %v264
        %456 = vrot.lane.b32.xlu0 %v452, 126
        %v457 = vpop.permute.xlu0 %456
        %458 = vrot.lane.b32.xlu0 %v453, 126
        %v459 = vpop.permute.xlu0 %458
        %v462 = vadd.f32 %v437, %v457
        %v463 = vadd.f32 %v438, %v459
        %v464 = vstv %s276
        %v465 = vmul.f32 %v464, %v262
        %v466 = vmul.f32 %v464, %v264
        %v467 = vadd.f32 %v450, %v465
        %v468 = vadd.f32 %v451, %v466
        %v469 = vmul.f32 %v464, %v267
        %v470 = vmul.f32 %v464, %v269
        %v471 = vadd.f32 %v462, %v469
        %v472 = vadd.f32 %v463, %v470
        %v473 = vstv %s277
        %v474 = vmul.f32 %v473, %v262
        %v475 = vmul.f32 %v473, %v264
        %478 = vrot.lane.b32.xlu0 %v474, 127
        %v479 = vpop.permute.xlu0 %478
        %480 = vrot.lane.b32.xlu0 %v475, 127
        %v481 = vpop.permute.xlu0 %480
        %v484 = vadd.f32 %v467, %v479
        %v485 = vadd.f32 %v468, %v481
        %v486 = vmul.f32 %v473, %v267
        %v487 = vmul.f32 %v473, %v269
        %490 = vrot.lane.b32.xlu0 %v486, 127
        %v491 = vpop.permute.xlu0 %490
        %492 = vrot.lane.b32.xlu0 %v487, 127
        %v493 = vpop.permute.xlu0 %492
        %v496 = vadd.f32 %v471, %v491
        %v497 = vadd.f32 %v472, %v493
        %v498 = vstv %s278
        %v499 = vmul.f32 %v498, %v262
        %v500 = vmul.f32 %v498, %v264
        %503 = vrot.lane.b32.xlu0 %v499, 126
        %v504 = vpop.permute.xlu0 %503
        %505 = vrot.lane.b32.xlu0 %v500, 126
        %v506 = vpop.permute.xlu0 %505
        %v509 = vadd.f32 %v484, %v504
        %v510 = vadd.f32 %v485, %v506
        %v511 = vmul.f32 %v498, %v267
        %v512 = vmul.f32 %v498, %v269
        %515 = vrot.lane.b32.xlu0 %v511, 126
        %v516 = vpop.permute.xlu0 %515
        %517 = vrot.lane.b32.xlu0 %v512, 126
        %v518 = vpop.permute.xlu0 %517
        %v521 = vadd.f32 %v496, %v516
        %v522 = vadd.f32 %v497, %v518
        %v523 = vmax.f32 %v509, %v521
        %v524 = vmax.f32 %v510, %v522
        %v525 = vstv %s342
        %v526 = vadd.f32 %v523, %v525
        %v527 = vadd.f32 %v524, %v525
        %v528 = vmax.f32 %v526, 0.0
        %v529 = vmax.f32 %v527, 0.0
        %v530 = vstv %s279
        %v531 = vmul.f32 %v530, %v252
        %v532 = vmul.f32 %v530, %v254
        %v533 = vmul.f32 %v530, %v257
        %v534 = vmul.f32 %v530, %v259
        %v535 = vstv %s280
        %v536 = vmul.f32 %v535, %v252
        %v537 = vmul.f32 %v535, %v254
        %540 = vrot.lane.b32.xlu0 %v536, 127
        %v541 = vpop.permute.xlu0 %540
        %542 = vrot.lane.b32.xlu0 %v537, 127
        %v543 = vpop.permute.xlu0 %542
        %v546 = vadd.f32 %v531, %v541
        %v547 = vadd.f32 %v532, %v543
        %v548 = vmul.f32 %v535, %v257
        %v549 = vmul.f32 %v535, %v259
        %552 = vrot.lane.b32.xlu0 %v548, 127
        %v553 = vpop.permute.xlu0 %552
        %554 = vrot.lane.b32.xlu0 %v549, 127
        %v555 = vpop.permute.xlu0 %554
        %v558 = vadd.f32 %v533, %v553
        %v559 = vadd.f32 %v534, %v555
        %v560 = vstv %s281
        %v561 = vmul.f32 %v560, %v252
        %v562 = vmul.f32 %v560, %v254
        %565 = vrot.lane.b32.xlu0 %v561, 126
        %v566 = vpop.permute.xlu0 %565
        %567 = vrot.lane.b32.xlu0 %v562, 126
        %v568 = vpop.permute.xlu0 %567
        %v571 = vadd.f32 %v546, %v566
        %v572 = vadd.f32 %v547, %v568
        %v573 = vmul.f32 %v560, %v257
        %v574 = vmul.f32 %v560, %v259
        %577 = vrot.lane.b32.xlu0 %v573, 126
        %v578 = vpop.permute.xlu0 %577
        %579 = vrot.lane.b32.xlu0 %v574, 126
        %v580 = vpop.permute.xlu0 %579
        %v583 = vadd.f32 %v558, %v578
        %v584 = vadd.f32 %v559, %v580
        %v585 = vstv %s282
        %v586 = vmul.f32 %v585, %v257
        %v587 = vmul.f32 %v585, %v259
        %v588 = vadd.f32 %v571, %v586
        %v589 = vadd.f32 %v572, %v587
        %v590 = vmul.f32 %v585, %v262
        %v591 = vmul.f32 %v585, %v264
        %v592 = vadd.f32 %v583, %v590
        %v593 = vadd.f32 %v584, %v591
        %v594 = vstv %s283
        %v595 = vmul.f32 %v594, %v257
        %v596 = vmul.f32 %v594, %v259
        %599 = vrot.lane.b32.xlu0 %v595, 127
        %v600 = vpop.permute.xlu0 %599
        %601 = vrot.lane.b32.xlu0 %v596, 127
        %v602 = vpop.permute.xlu0 %601
        %v605 = vadd.f32 %v588, %v600
        %v606 = vadd.f32 %v589, %v602
        %v607 = vmul.f32 %v594, %v262
        %v608 = vmul.f32 %v594, %v264
        %611 = vrot.lane.b32.xlu0 %v607, 127
        %v612 = vpop.permute.xlu0 %611
        %613 = vrot.lane.b32.xlu0 %v608, 127
        %v614 = vpop.permute.xlu0 %613
        %v617 = vadd.f32 %v592, %v612
        %v618 = vadd.f32 %v593, %v614
        %v619 = vstv %s284
        %v620 = vmul.f32 %v619, %v257
        %v621 = vmul.f32 %v619, %v259
        %624 = vrot.lane.b32.xlu0 %v620, 126
        %v625 = vpop.permute.xlu0 %624
        %626 = vrot.lane.b32.xlu0 %v621, 126
        %v627 = vpop.permute.xlu0 %626
        %v630 = vadd.f32 %v605, %v625
        %v631 = vadd.f32 %v606, %v627
        %v632 = vmul.f32 %v619, %v262
        %v633 = vmul.f32 %v619, %v264
        %636 = vrot.lane.b32.xlu0 %v632, 126
        %v637 = vpop.permute.xlu0 %636
        %638 = vrot.lane.b32.xlu0 %v633, 126
        %v639 = vpop.permute.xlu0 %638
        %v642 = vadd.f32 %v617, %v637
        %v643 = vadd.f32 %v618, %v639
        %v644 = vstv %s285
        %v645 = vmul.f32 %v644, %v262
        %v646 = vmul.f32 %v644, %v264
        %v647 = vadd.f32 %v630, %v645
        %v648 = vadd.f32 %v631, %v646
        %v649 = vmul.f32 %v644, %v267
        %v650 = vmul.f32 %v644, %v269
        %v651 = vadd.f32 %v642, %v649
        %v652 = vadd.f32 %v643, %v650
        %v653 = vstv %s286
        %v654 = vmul.f32 %v653, %v262
        %v655 = vmul.f32 %v653, %v264
        %658 = vrot.lane.b32.xlu0 %v654, 127
        %v659 = vpop.permute.xlu0 %658
        %660 = vrot.lane.b32.xlu0 %v655, 127
        %v661 = vpop.permute.xlu0 %660
        %v664 = vadd.f32 %v647, %v659
        %v665 = vadd.f32 %v648, %v661
        %v666 = vmul.f32 %v653, %v267
        %v667 = vmul.f32 %v653, %v269
        %670 = vrot.lane.b32.xlu0 %v666, 127
        %v671 = vpop.permute.xlu0 %670
        %672 = vrot.lane.b32.xlu0 %v667, 127
        %v673 = vpop.permute.xlu0 %672
        %v676 = vadd.f32 %v651, %v671
        %v677 = vadd.f32 %v652, %v673
        %v678 = vstv %s287
        %v679 = vmul.f32 %v678, %v262
        %v680 = vmul.f32 %v678, %v264
        %683 = vrot.lane.b32.xlu0 %v679, 126
        %v684 = vpop.permute.xlu0 %683
        %685 = vrot.lane.b32.xlu0 %v680, 126
        %v686 = vpop.permute.xlu0 %685
        %v689 = vadd.f32 %v664, %v684
        %v690 = vadd.f32 %v665, %v686
        %v691 = vmul.f32 %v678, %v267
        %v692 = vmul.f32 %v678, %v269
        %695 = vrot.lane.b32.xlu0 %v691, 126
        %v696 = vpop.permute.xlu0 %695
        %697 = vrot.lane.b32.xlu0 %v692, 126
        %v698 = vpop.permute.xlu0 %697
        %v701 = vadd.f32 %v676, %v696
        %v702 = vadd.f32 %v677, %v698
        %v703 = vmax.f32 %v689, %v701
        %v704 = vmax.f32 %v690, %v702
        %v705 = vstv %s343
        %v706 = vadd.f32 %v703, %v705
        %v707 = vadd.f32 %v704, %v705
        %v708 = vmax.f32 %v706, 0.0
        %v709 = vmax.f32 %v707, 0.0
        %v710 = vstv %s288
        %v711 = vmul.f32 %v710, %v252
        %v712 = vmul.f32 %v710, %v254
        %v713 = vmul.f32 %v710, %v257
        %v714 = vmul.f32 %v710, %v259
        %v715 = vstv %s289
        %v716 = vmul.f32 %v715, %v252
        %v717 = vmul.f32 %v715, %v254
        %720 = vrot.lane.b32.xlu0 %v716, 127
        %v721 = vpop.permute.xlu0 %720
        %722 = vrot.lane.b32.xlu0 %v717, 127
        %v723 = vpop.permute.xlu0 %722
        %v726 = vadd.f32 %v711, %v721
        %v727 = vadd.f32 %v712, %v723
        %v728 = vmul.f32 %v715, %v257
        %v729 = vmul.f32 %v715, %v259
        %732 = vrot.lane.b32.xlu0 %v728, 127
        %v733 = vpop.permute.xlu0 %732
        %734 = vrot.lane.b32.xlu0 %v729, 127
        %v735 = vpop.permute.xlu0 %734
        %v738 = vadd.f32 %v713, %v733
        %v739 = vadd.f32 %v714, %v735
        %v740 = vstv %s290
        %v741 = vmul.f32 %v740, %v252
        %v742 = vmul.f32 %v740, %v254
        %745 = vrot.lane.b32.xlu0 %v741, 126
        %v746 = vpop.permute.xlu0 %745
        %747 = vrot.lane.b32.xlu0 %v742, 126
        %v748 = vpop.permute.xlu0 %747
        %v751 = vadd.f32 %v726, %v746
        %v752 = vadd.f32 %v727, %v748
        %v753 = vmul.f32 %v740, %v257
        %v754 = vmul.f32 %v740, %v259
        %757 = vrot.lane.b32.xlu0 %v753, 126
        %v758 = vpop.permute.xlu0 %757
        %759 = vrot.lane.b32.xlu0 %v754, 126
        %v760 = vpop.permute.xlu0 %759
        %v763 = vadd.f32 %v738, %v758
        %v764 = vadd.f32 %v739, %v760
        %v765 = vstv %s291
        %v766 = vmul.f32 %v765, %v257
        %v767 = vmul.f32 %v765, %v259
        %v768 = vadd.f32 %v751, %v766
        %v769 = vadd.f32 %v752, %v767
        %v770 = vmul.f32 %v765, %v262
        %v771 = vmul.f32 %v765, %v264
        %v772 = vadd.f32 %v763, %v770
        %v773 = vadd.f32 %v764, %v771
        %v774 = vstv %s292
        %v775 = vmul.f32 %v774, %v257
        %v776 = vmul.f32 %v774, %v259
        %779 = vrot.lane.b32.xlu0 %v775, 127
        %v780 = vpop.permute.xlu0 %779
        %781 = vrot.lane.b32.xlu0 %v776, 127
        %v782 = vpop.permute.xlu0 %781
        %v785 = vadd.f32 %v768, %v780
        %v786 = vadd.f32 %v769, %v782
        %v787 = vmul.f32 %v774, %v262
        %v788 = vmul.f32 %v774, %v264
        %791 = vrot.lane.b32.xlu0 %v787, 127
        %v792 = vpop.permute.xlu0 %791
        %793 = vrot.lane.b32.xlu0 %v788, 127
        %v794 = vpop.permute.xlu0 %793
        %v797 = vadd.f32 %v772, %v792
        %v798 = vadd.f32 %v773, %v794
        %v799 = vstv %s293
        %v800 = vmul.f32 %v799, %v257
        %v801 = vmul.f32 %v799, %v259
        %804 = vrot.lane.b32.xlu0 %v800, 126
        %v805 = vpop.permute.xlu0 %804
        %806 = vrot.lane.b32.xlu0 %v801, 126
        %v807 = vpop.permute.xlu0 %806
        %v810 = vadd.f32 %v785, %v805
        %v811 = vadd.f32 %v786, %v807
        %v812 = vmul.f32 %v799, %v262
        %v813 = vmul.f32 %v799, %v264
        %816 = vrot.lane.b32.xlu0 %v812, 126
        %v817 = vpop.permute.xlu0 %816
        %818 = vrot.lane.b32.xlu0 %v813, 126
        %v819 = vpop.permute.xlu0 %818
        %v822 = vadd.f32 %v797, %v817
        %v823 = vadd.f32 %v798, %v819
        %v824 = vstv %s294
        %v825 = vmul.f32 %v824, %v262
        %v826 = vmul.f32 %v824, %v264
        %v827 = vadd.f32 %v810, %v825
        %v828 = vadd.f32 %v811, %v826
        %v829 = vmul.f32 %v824, %v267
        %v830 = vmul.f32 %v824, %v269
        %v831 = vadd.f32 %v822, %v829
        %v832 = vadd.f32 %v823, %v830
        %v833 = vstv %s295
        %v834 = vmul.f32 %v833, %v262
        %v835 = vmul.f32 %v833, %v264
        %838 = vrot.lane.b32.xlu0 %v834, 127
        %v839 = vpop.permute.xlu0 %838
        %840 = vrot.lane.b32.xlu0 %v835, 127
        %v841 = vpop.permute.xlu0 %840
        %v844 = vadd.f32 %v827, %v839
        %v845 = vadd.f32 %v828, %v841
        %v846 = vmul.f32 %v833, %v267
        %v847 = vmul.f32 %v833, %v269
        %850 = vrot.lane.b32.xlu0 %v846, 127
        %v851 = vpop.permute.xlu0 %850
        %852 = vrot.lane.b32.xlu0 %v847, 127
        %v853 = vpop.permute.xlu0 %852
        %v856 = vadd.f32 %v831, %v851
        %v857 = vadd.f32 %v832, %v853
        %v858 = vstv %s296
        %v859 = vmul.f32 %v858, %v262
        %v860 = vmul.f32 %v858, %v264
        %863 = vrot.lane.b32.xlu0 %v859, 126
        %v864 = vpop.permute.xlu0 %863
        %865 = vrot.lane.b32.xlu0 %v860, 126
        %v866 = vpop.permute.xlu0 %865
        %v869 = vadd.f32 %v844, %v864
        %v870 = vadd.f32 %v845, %v866
        %v871 = vmul.f32 %v858, %v267
        %v872 = vmul.f32 %v858, %v269
        %875 = vrot.lane.b32.xlu0 %v871, 126
        %v876 = vpop.permute.xlu0 %875
        %877 = vrot.lane.b32.xlu0 %v872, 126
        %v878 = vpop.permute.xlu0 %877
        %v881 = vadd.f32 %v856, %v876
        %v882 = vadd.f32 %v857, %v878
        %v883 = vmax.f32 %v869, %v881
        %v884 = vmax.f32 %v870, %v882
        %v885 = vstv %s344
        %v886 = vadd.f32 %v883, %v885
        %v887 = vadd.f32 %v884, %v885
        %v888 = vmax.f32 %v886, 0.0
        %v889 = vmax.f32 %v887, 0.0
        %v890 = vstv %s297
        %v891 = vmul.f32 %v890, %v252
        %v892 = vmul.f32 %v890, %v254
        %v893 = vmul.f32 %v890, %v257
        %v894 = vmul.f32 %v890, %v259
        %v895 = vstv %s298
        %v896 = vmul.f32 %v895, %v252
        %v897 = vmul.f32 %v895, %v254
        %900 = vrot.lane.b32.xlu0 %v896, 127
        %v901 = vpop.permute.xlu0 %900
        %902 = vrot.lane.b32.xlu0 %v897, 127
        %v903 = vpop.permute.xlu0 %902
        %v906 = vadd.f32 %v891, %v901
        %v907 = vadd.f32 %v892, %v903
        %v908 = vmul.f32 %v895, %v257
        %v909 = vmul.f32 %v895, %v259
        %912 = vrot.lane.b32.xlu0 %v908, 127
        %v913 = vpop.permute.xlu0 %912
        %914 = vrot.lane.b32.xlu0 %v909, 127
        %v915 = vpop.permute.xlu0 %914
        %v918 = vadd.f32 %v893, %v913
        %v919 = vadd.f32 %v894, %v915
        %v920 = vstv %s299
        %v921 = vmul.f32 %v920, %v252
        %v922 = vmul.f32 %v920, %v254
        %925 = vrot.lane.b32.xlu0 %v921, 126
        %v926 = vpop.permute.xlu0 %925
        %927 = vrot.lane.b32.xlu0 %v922, 126
        %v928 = vpop.permute.xlu0 %927
        %v931 = vadd.f32 %v906, %v926
        %v932 = vadd.f32 %v907, %v928
        %v933 = vmul.f32 %v920, %v257
        %v934 = vmul.f32 %v920, %v259
        %937 = vrot.lane.b32.xlu0 %v933, 126
        %v938 = vpop.permute.xlu0 %937
        %939 = vrot.lane.b32.xlu0 %v934, 126
        %v940 = vpop.permute.xlu0 %939
        %v943 = vadd.f32 %v918, %v938
        %v944 = vadd.f32 %v919, %v940
        %v945 = vstv %s300
        %v946 = vmul.f32 %v945, %v257
        %v947 = vmul.f32 %v945, %v259
        %v948 = vadd.f32 %v931, %v946
        %v949 = vadd.f32 %v932, %v947
        %v950 = vmul.f32 %v945, %v262
        %v951 = vmul.f32 %v945, %v264
        %v952 = vadd.f32 %v943, %v950
        %v953 = vadd.f32 %v944, %v951
        %v954 = vstv %s301
        %v955 = vmul.f32 %v954, %v257
        %v956 = vmul.f32 %v954, %v259
        %959 = vrot.lane.b32.xlu0 %v955, 127
        %v960 = vpop.permute.xlu0 %959
        %961 = vrot.lane.b32.xlu0 %v956, 127
        %v962 = vpop.permute.xlu0 %961
        %v965 = vadd.f32 %v948, %v960
        %v966 = vadd.f32 %v949, %v962
        %v967 = vmul.f32 %v954, %v262
        %v968 = vmul.f32 %v954, %v264
        %971 = vrot.lane.b32.xlu0 %v967, 127
        %v972 = vpop.permute.xlu0 %971
        %973 = vrot.lane.b32.xlu0 %v968, 127
        %v974 = vpop.permute.xlu0 %973
        %v977 = vadd.f32 %v952, %v972
        %v978 = vadd.f32 %v953, %v974
        %v979 = vstv %s302
        %v980 = vmul.f32 %v979, %v257
        %v981 = vmul.f32 %v979, %v259
        %984 = vrot.lane.b32.xlu0 %v980, 126
        %v985 = vpop.permute.xlu0 %984
        %986 = vrot.lane.b32.xlu0 %v981, 126
        %v987 = vpop.permute.xlu0 %986
        %v990 = vadd.f32 %v965, %v985
        %v991 = vadd.f32 %v966, %v987
        %v992 = vmul.f32 %v979, %v262
        %v993 = vmul.f32 %v979, %v264
        %996 = vrot.lane.b32.xlu0 %v992, 126
        %v997 = vpop.permute.xlu0 %996
        %998 = vrot.lane.b32.xlu0 %v993, 126
        %v999 = vpop.permute.xlu0 %998
        %v1002 = vadd.f32 %v977, %v997
        %v1003 = vadd.f32 %v978, %v999
        %v1004 = vstv %s303
        %v1005 = vmul.f32 %v1004, %v262
        %v1006 = vmul.f32 %v1004, %v264
        %v1007 = vadd.f32 %v990, %v1005
        %v1008 = vadd.f32 %v991, %v1006
        %v1009 = vmul.f32 %v1004, %v267
        %v1010 = vmul.f32 %v1004, %v269
        %v1011 = vadd.f32 %v1002, %v1009
        %v1012 = vadd.f32 %v1003, %v1010
        %v1013 = vstv %s304
        %v1014 = vmul.f32 %v1013, %v262
        %v1015 = vmul.f32 %v1013, %v264
        %1018 = vrot.lane.b32.xlu0 %v1014, 127
        %v1019 = vpop.permute.xlu0 %1018
        %1020 = vrot.lane.b32.xlu0 %v1015, 127
        %v1021 = vpop.permute.xlu0 %1020
        %v1024 = vadd.f32 %v1007, %v1019
        %v1025 = vadd.f32 %v1008, %v1021
        %v1026 = vmul.f32 %v1013, %v267
        %v1027 = vmul.f32 %v1013, %v269
        %1030 = vrot.lane.b32.xlu0 %v1026, 127
        %v1031 = vpop.permute.xlu0 %1030
        %1032 = vrot.lane.b32.xlu0 %v1027, 127
        %v1033 = vpop.permute.xlu0 %1032
        %v1036 = vadd.f32 %v1011, %v1031
        %v1037 = vadd.f32 %v1012, %v1033
        %v1038 = vstv %s305
        %v1039 = vmul.f32 %v1038, %v262
        %v1040 = vmul.f32 %v1038, %v264
        %1043 = vrot.lane.b32.xlu0 %v1039, 126
        %v1044 = vpop.permute.xlu0 %1043
        %1045 = vrot.lane.b32.xlu0 %v1040, 126
        %v1046 = vpop.permute.xlu0 %1045
        %v1049 = vadd.f32 %v1024, %v1044
        %v1050 = vadd.f32 %v1025, %v1046
        %v1051 = vmul.f32 %v1038, %v267
        %v1052 = vmul.f32 %v1038, %v269
        %1055 = vrot.lane.b32.xlu0 %v1051, 126
        %v1056 = vpop.permute.xlu0 %1055
        %1057 = vrot.lane.b32.xlu0 %v1052, 126
        %v1058 = vpop.permute.xlu0 %1057
        %v1061 = vadd.f32 %v1036, %v1056
        %v1062 = vadd.f32 %v1037, %v1058
        %v1063 = vmax.f32 %v1049, %v1061
        %v1064 = vmax.f32 %v1050, %v1062
        %v1065 = vstv %s345
        %v1066 = vadd.f32 %v1063, %v1065
        %v1067 = vadd.f32 %v1064, %v1065
        %v1068 = vmax.f32 %v1066, 0.0
        %v1069 = vmax.f32 %v1067, 0.0
        %v1070 = vstv %s306
        %v1071 = vmul.f32 %v1070, %v252
        %v1072 = vmul.f32 %v1070, %v254
        %v1073 = vmul.f32 %v1070, %v257
        %v1074 = vmul.f32 %v1070, %v259
        %v1075 = vstv %s307
        %v1076 = vmul.f32 %v1075, %v252
        %v1077 = vmul.f32 %v1075, %v254
        %1080 = vrot.lane.b32.xlu0 %v1076, 127
        %v1081 = vpop.permute.xlu0 %1080
        %1082 = vrot.lane.b32.xlu0 %v1077, 127
        %v1083 = vpop.permute.xlu0 %1082
        %v1086 = vadd.f32 %v1071, %v1081
        %v1087 = vadd.f32 %v1072, %v1083
        %v1088 = vmul.f32 %v1075, %v257
        %v1089 = vmul.f32 %v1075, %v259
        %1092 = vrot.lane.b32.xlu0 %v1088, 127
        %v1093 = vpop.permute.xlu0 %1092
        %1094 = vrot.lane.b32.xlu0 %v1089, 127
        %v1095 = vpop.permute.xlu0 %1094
        %v1098 = vadd.f32 %v1073, %v1093
        %v1099 = vadd.f32 %v1074, %v1095
        %v1100 = vstv %s308
        %v1101 = vmul.f32 %v1100, %v252
        %v1102 = vmul.f32 %v1100, %v254
        %1105 = vrot.lane.b32.xlu0 %v1101, 126
        %v1106 = vpop.permute.xlu0 %1105
        %1107 = vrot.lane.b32.xlu0 %v1102, 126
        %v1108 = vpop.permute.xlu0 %1107
        %v1111 = vadd.f32 %v1086, %v1106
        %v1112 = vadd.f32 %v1087, %v1108
        %v1113 = vmul.f32 %v1100, %v257
        %v1114 = vmul.f32 %v1100, %v259
        %1117 = vrot.lane.b32.xlu0 %v1113, 126
        %v1118 = vpop.permute.xlu0 %1117
        %1119 = vrot.lane.b32.xlu0 %v1114, 126
        %v1120 = vpop.permute.xlu0 %1119
        %v1123 = vadd.f32 %v1098, %v1118
        %v1124 = vadd.f32 %v1099, %v1120
        %v1125 = vstv %s309
        %v1126 = vmul.f32 %v1125, %v257
        %v1127 = vmul.f32 %v1125, %v259
        %v1128 = vadd.f32 %v1111, %v1126
        %v1129 = vadd.f32 %v1112, %v1127
        %v1130 = vmul.f32 %v1125, %v262
        %v1131 = vmul.f32 %v1125, %v264
        %v1132 = vadd.f32 %v1123, %v1130
        %v1133 = vadd.f32 %v1124, %v1131
        %v1134 = vstv %s310
        %v1135 = vmul.f32 %v1134, %v257
        %v1136 = vmul.f32 %v1134, %v259
        %1139 = vrot.lane.b32.xlu0 %v1135, 127
        %v1140 = vpop.permute.xlu0 %1139
        %1141 = vrot.lane.b32.xlu0 %v1136, 127
        %v1142 = vpop.permute.xlu0 %1141
        %v1145 = vadd.f32 %v1128, %v1140
        %v1146 = vadd.f32 %v1129, %v1142
        %v1147 = vmul.f32 %v1134, %v262
        %v1148 = vmul.f32 %v1134, %v264
        %1151 = vrot.lane.b32.xlu0 %v1147, 127
        %v1152 = vpop.permute.xlu0 %1151
        %1153 = vrot.lane.b32.xlu0 %v1148, 127
        %v1154 = vpop.permute.xlu0 %1153
        %v1157 = vadd.f32 %v1132, %v1152
        %v1158 = vadd.f32 %v1133, %v1154
        %v1159 = vstv %s311
        %v1160 = vmul.f32 %v1159, %v257
        %v1161 = vmul.f32 %v1159, %v259
        %1164 = vrot.lane.b32.xlu0 %v1160, 126
        %v1165 = vpop.permute.xlu0 %1164
        %1166 = vrot.lane.b32.xlu0 %v1161, 126
        %v1167 = vpop.permute.xlu0 %1166
        %v1170 = vadd.f32 %v1145, %v1165
        %v1171 = vadd.f32 %v1146, %v1167
        %v1172 = vmul.f32 %v1159, %v262
        %v1173 = vmul.f32 %v1159, %v264
        %1176 = vrot.lane.b32.xlu0 %v1172, 126
        %v1177 = vpop.permute.xlu0 %1176
        %1178 = vrot.lane.b32.xlu0 %v1173, 126
        %v1179 = vpop.permute.xlu0 %1178
        %v1182 = vadd.f32 %v1157, %v1177
        %v1183 = vadd.f32 %v1158, %v1179
        %v1184 = vstv %s312
        %v1185 = vmul.f32 %v1184, %v262
        %v1186 = vmul.f32 %v1184, %v264
        %v1187 = vadd.f32 %v1170, %v1185
        %v1188 = vadd.f32 %v1171, %v1186
        %v1189 = vmul.f32 %v1184, %v267
        %v1190 = vmul.f32 %v1184, %v269
        %v1191 = vadd.f32 %v1182, %v1189
        %v1192 = vadd.f32 %v1183, %v1190
        %v1193 = vstv %s313
        %v1194 = vmul.f32 %v1193, %v262
        %v1195 = vmul.f32 %v1193, %v264
        %1198 = vrot.lane.b32.xlu0 %v1194, 127
        %v1199 = vpop.permute.xlu0 %1198
        %1200 = vrot.lane.b32.xlu0 %v1195, 127
        %v1201 = vpop.permute.xlu0 %1200
        %v1204 = vadd.f32 %v1187, %v1199
        %v1205 = vadd.f32 %v1188, %v1201
        %v1206 = vmul.f32 %v1193, %v267
        %v1207 = vmul.f32 %v1193, %v269
        %1210 = vrot.lane.b32.xlu0 %v1206, 127
        %v1211 = vpop.permute.xlu0 %1210
        %1212 = vrot.lane.b32.xlu0 %v1207, 127
        %v1213 = vpop.permute.xlu0 %1212
        %v1216 = vadd.f32 %v1191, %v1211
        %v1217 = vadd.f32 %v1192, %v1213
        %v1218 = vstv %s314
        %v1219 = vmul.f32 %v1218, %v262
        %v1220 = vmul.f32 %v1218, %v264
        %1223 = vrot.lane.b32.xlu0 %v1219, 126
        %v1224 = vpop.permute.xlu0 %1223
        %1225 = vrot.lane.b32.xlu0 %v1220, 126
        %v1226 = vpop.permute.xlu0 %1225
        %v1229 = vadd.f32 %v1204, %v1224
        %v1230 = vadd.f32 %v1205, %v1226
        %v1231 = vmul.f32 %v1218, %v267
        %v1232 = vmul.f32 %v1218, %v269
        %1235 = vrot.lane.b32.xlu0 %v1231, 126
        %v1236 = vpop.permute.xlu0 %1235
        %1237 = vrot.lane.b32.xlu0 %v1232, 126
        %v1238 = vpop.permute.xlu0 %1237
        %v1241 = vadd.f32 %v1216, %v1236
        %v1242 = vadd.f32 %v1217, %v1238
        %v1243 = vmax.f32 %v1229, %v1241
        %v1244 = vmax.f32 %v1230, %v1242
        %v1245 = vstv %s346
        %v1246 = vadd.f32 %v1243, %v1245
        %v1247 = vadd.f32 %v1244, %v1245
        %v1248 = vmax.f32 %v1246, 0.0
        %v1249 = vmax.f32 %v1247, 0.0
        %v1250 = vstv %s315
        %v1251 = vmul.f32 %v1250, %v252
        %v1252 = vmul.f32 %v1250, %v254
        %v1253 = vmul.f32 %v1250, %v257
        %v1254 = vmul.f32 %v1250, %v259
        %v1255 = vstv %s316
        %v1256 = vmul.f32 %v1255, %v252
        %v1257 = vmul.f32 %v1255, %v254
        %1260 = vrot.lane.b32.xlu0 %v1256, 127
        %v1261 = vpop.permute.xlu0 %1260
        %1262 = vrot.lane.b32.xlu0 %v1257, 127
        %v1263 = vpop.permute.xlu0 %1262
        %v1266 = vadd.f32 %v1251, %v1261
        %v1267 = vadd.f32 %v1252, %v1263
        %v1268 = vmul.f32 %v1255, %v257
        %v1269 = vmul.f32 %v1255, %v259
        %1272 = vrot.lane.b32.xlu0 %v1268, 127
        %v1273 = vpop.permute.xlu0 %1272
        %1274 = vrot.lane.b32.xlu0 %v1269, 127
        %v1275 = vpop.permute.xlu0 %1274
        %v1278 = vadd.f32 %v1253, %v1273
        %v1279 = vadd.f32 %v1254, %v1275
        %v1280 = vstv %s317
        %v1281 = vmul.f32 %v1280, %v252
        %v1282 = vmul.f32 %v1280, %v254
        %1285 = vrot.lane.b32.xlu0 %v1281, 126
        %v1286 = vpop.permute.xlu0 %1285
        %1287 = vrot.lane.b32.xlu0 %v1282, 126
        %v1288 = vpop.permute.xlu0 %1287
        %v1291 = vadd.f32 %v1266, %v1286
        %v1292 = vadd.f32 %v1267, %v1288
        %v1293 = vmul.f32 %v1280, %v257
        %v1294 = vmul.f32 %v1280, %v259
        %1297 = vrot.lane.b32.xlu0 %v1293, 126
        %v1298 = vpop.permute.xlu0 %1297
        %1299 = vrot.lane.b32.xlu0 %v1294, 126
        %v1300 = vpop.permute.xlu0 %1299
        %v1303 = vadd.f32 %v1278, %v1298
        %v1304 = vadd.f32 %v1279, %v1300
        %v1305 = vstv %s318
        %v1306 = vmul.f32 %v1305, %v257
        %v1307 = vmul.f32 %v1305, %v259
        %v1308 = vadd.f32 %v1291, %v1306
        %v1309 = vadd.f32 %v1292, %v1307
        %v1310 = vmul.f32 %v1305, %v262
        %v1311 = vmul.f32 %v1305, %v264
        %v1312 = vadd.f32 %v1303, %v1310
        %v1313 = vadd.f32 %v1304, %v1311
        %v1314 = vstv %s319
        %v1315 = vmul.f32 %v1314, %v257
        %v1316 = vmul.f32 %v1314, %v259
        %1319 = vrot.lane.b32.xlu0 %v1315, 127
        %v1320 = vpop.permute.xlu0 %1319
        %1321 = vrot.lane.b32.xlu0 %v1316, 127
        %v1322 = vpop.permute.xlu0 %1321
        %v1325 = vadd.f32 %v1308, %v1320
        %v1326 = vadd.f32 %v1309, %v1322
        %v1327 = vmul.f32 %v1314, %v262
        %v1328 = vmul.f32 %v1314, %v264
        %1331 = vrot.lane.b32.xlu0 %v1327, 127
        %v1332 = vpop.permute.xlu0 %1331
        %1333 = vrot.lane.b32.xlu0 %v1328, 127
        %v1334 = vpop.permute.xlu0 %1333
        %v1337 = vadd.f32 %v1312, %v1332
        %v1338 = vadd.f32 %v1313, %v1334
        %v1339 = vstv %s320
        %v1340 = vmul.f32 %v1339, %v257
        %v1341 = vmul.f32 %v1339, %v259
        %1344 = vrot.lane.b32.xlu0 %v1340, 126
        %v1345 = vpop.permute.xlu0 %1344
        %1346 = vrot.lane.b32.xlu0 %v1341, 126
        %v1347 = vpop.permute.xlu0 %1346
        %v1350 = vadd.f32 %v1325, %v1345
        %v1351 = vadd.f32 %v1326, %v1347
        %v1352 = vmul.f32 %v1339, %v262
        %v1353 = vmul.f32 %v1339, %v264
        %1356 = vrot.lane.b32.xlu0 %v1352, 126
        %v1357 = vpop.permute.xlu0 %1356
        %1358 = vrot.lane.b32.xlu0 %v1353, 126
        %v1359 = vpop.permute.xlu0 %1358
        %v1362 = vadd.f32 %v1337, %v1357
        %v1363 = vadd.f32 %v1338, %v1359
        %v1364 = vstv %s321
        %v1365 = vmul.f32 %v1364, %v262
        %v1366 = vmul.f32 %v1364, %v264
        %v1367 = vadd.f32 %v1350, %v1365
        %v1368 = vadd.f32 %v1351, %v1366
        %v1369 = vmul.f32 %v1364, %v267
        %v1370 = vmul.f32 %v1364, %v269
        %v1371 = vadd.f32 %v1362, %v1369
        %v1372 = vadd.f32 %v1363, %v1370
        %v1373 = vstv %s322
        %v1374 = vmul.f32 %v1373, %v262
        %v1375 = vmul.f32 %v1373, %v264
        %1378 = vrot.lane.b32.xlu0 %v1374, 127
        %v1379 = vpop.permute.xlu0 %1378
        %1380 = vrot.lane.b32.xlu0 %v1375, 127
        %v1381 = vpop.permute.xlu0 %1380
        %v1384 = vadd.f32 %v1367, %v1379
        %v1385 = vadd.f32 %v1368, %v1381
        %v1386 = vmul.f32 %v1373, %v267
        %v1387 = vmul.f32 %v1373, %v269
        %1390 = vrot.lane.b32.xlu0 %v1386, 127
        %v1391 = vpop.permute.xlu0 %1390
        %1392 = vrot.lane.b32.xlu0 %v1387, 127
        %v1393 = vpop.permute.xlu0 %1392
        %v1396 = vadd.f32 %v1371, %v1391
        %v1397 = vadd.f32 %v1372, %v1393
        %v1398 = vstv %s323
        %v1399 = vmul.f32 %v1398, %v262
        %v1400 = vmul.f32 %v1398, %v264
        %1403 = vrot.lane.b32.xlu0 %v1399, 126
        %v1404 = vpop.permute.xlu0 %1403
        %1405 = vrot.lane.b32.xlu0 %v1400, 126
        %v1406 = vpop.permute.xlu0 %1405
        %v1409 = vadd.f32 %v1384, %v1404
        %v1410 = vadd.f32 %v1385, %v1406
        %v1411 = vmul.f32 %v1398, %v267
        %v1412 = vmul.f32 %v1398, %v269
        %1415 = vrot.lane.b32.xlu0 %v1411, 126
        %v1416 = vpop.permute.xlu0 %1415
        %1417 = vrot.lane.b32.xlu0 %v1412, 126
        %v1418 = vpop.permute.xlu0 %1417
        %v1421 = vadd.f32 %v1396, %v1416
        %v1422 = vadd.f32 %v1397, %v1418
        %v1423 = vmax.f32 %v1409, %v1421
        %v1424 = vmax.f32 %v1410, %v1422
        %v1425 = vstv %s347
        %v1426 = vadd.f32 %v1423, %v1425
        %v1427 = vadd.f32 %v1424, %v1425
        %v1428 = vmax.f32 %v1426, 0.0
        %v1429 = vmax.f32 %v1427, 0.0
        %v1430 = vstv %s324
        %v1431 = vmul.f32 %v1430, %v252
        %v1432 = vmul.f32 %v1430, %v254
        %v1433 = vmul.f32 %v1430, %v257
        %v1434 = vmul.f32 %v1430, %v259
        %v1435 = vstv %s325
        %v1436 = vmul.f32 %v1435, %v252
        %v1437 = vmul.f32 %v1435, %v254
        %1440 = vrot.lane.b32.xlu0 %v1436, 127
        %v1441 = vpop.permute.xlu0 %1440
        %1442 = vrot.lane.b32.xlu0 %v1437, 127
        %v1443 = vpop.permute.xlu0 %1442
        %v1446 = vadd.f32 %v1431, %v1441
        %v1447 = vadd.f32 %v1432, %v1443
        %v1448 = vmul.f32 %v1435, %v257
        %v1449 = vmul.f32 %v1435, %v259
        %1452 = vrot.lane.b32.xlu0 %v1448, 127
        %v1453 = vpop.permute.xlu0 %1452
        %1454 = vrot.lane.b32.xlu0 %v1449, 127
        %v1455 = vpop.permute.xlu0 %1454
        %v1458 = vadd.f32 %v1433, %v1453
        %v1459 = vadd.f32 %v1434, %v1455
        %v1460 = vstv %s326
        %v1461 = vmul.f32 %v1460, %v252
        %v1462 = vmul.f32 %v1460, %v254
        %1465 = vrot.lane.b32.xlu0 %v1461, 126
        %v1466 = vpop.permute.xlu0 %1465
        %1467 = vrot.lane.b32.xlu0 %v1462, 126
        %v1468 = vpop.permute.xlu0 %1467
        %v1471 = vadd.f32 %v1446, %v1466
        %v1472 = vadd.f32 %v1447, %v1468
        %v1473 = vmul.f32 %v1460, %v257
        %v1474 = vmul.f32 %v1460, %v259
        %1477 = vrot.lane.b32.xlu0 %v1473, 126
        %v1478 = vpop.permute.xlu0 %1477
        %1479 = vrot.lane.b32.xlu0 %v1474, 126
        %v1480 = vpop.permute.xlu0 %1479
        %v1483 = vadd.f32 %v1458, %v1478
        %v1484 = vadd.f32 %v1459, %v1480
        %v1485 = vstv %s327
        %v1486 = vmul.f32 %v1485, %v257
        %v1487 = vmul.f32 %v1485, %v259
        %v1488 = vadd.f32 %v1471, %v1486
        %v1489 = vadd.f32 %v1472, %v1487
        %v1490 = vmul.f32 %v1485, %v262
        %v1491 = vmul.f32 %v1485, %v264
        %v1492 = vadd.f32 %v1483, %v1490
        %v1493 = vadd.f32 %v1484, %v1491
        %v1494 = vstv %s328
        %v1495 = vmul.f32 %v1494, %v257
        %v1496 = vmul.f32 %v1494, %v259
        %1499 = vrot.lane.b32.xlu0 %v1495, 127
        %v1500 = vpop.permute.xlu0 %1499
        %1501 = vrot.lane.b32.xlu0 %v1496, 127
        %v1502 = vpop.permute.xlu0 %1501
        %v1505 = vadd.f32 %v1488, %v1500
        %v1506 = vadd.f32 %v1489, %v1502
        %v1507 = vmul.f32 %v1494, %v262
        %v1508 = vmul.f32 %v1494, %v264
        %1511 = vrot.lane.b32.xlu0 %v1507, 127
        %v1512 = vpop.permute.xlu0 %1511
        %1513 = vrot.lane.b32.xlu0 %v1508, 127
        %v1514 = vpop.permute.xlu0 %1513
        %v1517 = vadd.f32 %v1492, %v1512
        %v1518 = vadd.f32 %v1493, %v1514
        %v1519 = vstv %s329
        %v1520 = vmul.f32 %v1519, %v257
        %v1521 = vmul.f32 %v1519, %v259
        %1524 = vrot.lane.b32.xlu0 %v1520, 126
        %v1525 = vpop.permute.xlu0 %1524
        %1526 = vrot.lane.b32.xlu0 %v1521, 126
        %v1527 = vpop.permute.xlu0 %1526
        %v1530 = vadd.f32 %v1505, %v1525
        %v1531 = vadd.f32 %v1506, %v1527
        %v1532 = vmul.f32 %v1519, %v262
        %v1533 = vmul.f32 %v1519, %v264
        %1536 = vrot.lane.b32.xlu0 %v1532, 126
        %v1537 = vpop.permute.xlu0 %1536
        %1538 = vrot.lane.b32.xlu0 %v1533, 126
        %v1539 = vpop.permute.xlu0 %1538
        %v1542 = vadd.f32 %v1517, %v1537
        %v1543 = vadd.f32 %v1518, %v1539
        %v1544 = vstv %s330
        %v1545 = vmul.f32 %v1544, %v262
        %v1546 = vmul.f32 %v1544, %v264
        %v1547 = vadd.f32 %v1530, %v1545
        %v1548 = vadd.f32 %v1531, %v1546
        %v1549 = vmul.f32 %v1544, %v267
        %v1550 = vmul.f32 %v1544, %v269
        %v1551 = vadd.f32 %v1542, %v1549
        %v1552 = vadd.f32 %v1543, %v1550
        %v1553 = vstv %s331
        %v1554 = vmul.f32 %v1553, %v262
        %v1555 = vmul.f32 %v1553, %v264
        %1558 = vrot.lane.b32.xlu0 %v1554, 127
        %v1559 = vpop.permute.xlu0 %1558
        %1560 = vrot.lane.b32.xlu0 %v1555, 127
        %v1561 = vpop.permute.xlu0 %1560
        %v1564 = vadd.f32 %v1547, %v1559
        %v1565 = vadd.f32 %v1548, %v1561
        %v1566 = vmul.f32 %v1553, %v267
        %v1567 = vmul.f32 %v1553, %v269
        %1570 = vrot.lane.b32.xlu0 %v1566, 127
        %v1571 = vpop.permute.xlu0 %1570
        %1572 = vrot.lane.b32.xlu0 %v1567, 127
        %v1573 = vpop.permute.xlu0 %1572
        %v1576 = vadd.f32 %v1551, %v1571
        %v1577 = vadd.f32 %v1552, %v1573
        %v1578 = vstv %s332
        %v1579 = vmul.f32 %v1578, %v262
        %v1580 = vmul.f32 %v1578, %v264
        %1583 = vrot.lane.b32.xlu0 %v1579, 126
        %v1584 = vpop.permute.xlu0 %1583
        %1585 = vrot.lane.b32.xlu0 %v1580, 126
        %v1586 = vpop.permute.xlu0 %1585
        %v1589 = vadd.f32 %v1564, %v1584
        %v1590 = vadd.f32 %v1565, %v1586
        %v1591 = vmul.f32 %v1578, %v267
        %v1592 = vmul.f32 %v1578, %v269
        %1595 = vrot.lane.b32.xlu0 %v1591, 126
        %v1596 = vpop.permute.xlu0 %1595
        %1597 = vrot.lane.b32.xlu0 %v1592, 126
        %v1598 = vpop.permute.xlu0 %1597
        %v1601 = vadd.f32 %v1576, %v1596
        %v1602 = vadd.f32 %v1577, %v1598
        %v1603 = vmax.f32 %v1589, %v1601
        %v1604 = vmax.f32 %v1590, %v1602
        %v1605 = vstv %s348
        %v1606 = vadd.f32 %v1603, %v1605
        %v1607 = vadd.f32 %v1604, %v1605
        %v1608 = vmax.f32 %v1606, 0.0
        %v1609 = vmax.f32 %v1607, 0.0
        %v1610 = vstv %s333
        %v1611 = vmul.f32 %v1610, %v252
        %v1612 = vmul.f32 %v1610, %v254
        %v1613 = vmul.f32 %v1610, %v257
        %v1614 = vmul.f32 %v1610, %v259
        %v1615 = vstv %s334
        %v1616 = vmul.f32 %v1615, %v252
        %v1617 = vmul.f32 %v1615, %v254
        %1620 = vrot.lane.b32.xlu0 %v1616, 127
        %v1621 = vpop.permute.xlu0 %1620
        %1622 = vrot.lane.b32.xlu0 %v1617, 127
        %v1623 = vpop.permute.xlu0 %1622
        %v1626 = vadd.f32 %v1611, %v1621
        %v1627 = vadd.f32 %v1612, %v1623
        %v1628 = vmul.f32 %v1615, %v257
        %v1629 = vmul.f32 %v1615, %v259
        %1632 = vrot.lane.b32.xlu0 %v1628, 127
        %v1633 = vpop.permute.xlu0 %1632
        %1634 = vrot.lane.b32.xlu0 %v1629, 127
        %v1635 = vpop.permute.xlu0 %1634
        %v1638 = vadd.f32 %v1613, %v1633
        %v1639 = vadd.f32 %v1614, %v1635
        %v1640 = vstv %s335
        %v1641 = vmul.f32 %v1640, %v252
        %v1642 = vmul.f32 %v1640, %v254
        %1645 = vrot.lane.b32.xlu0 %v1641, 126
        %v1646 = vpop.permute.xlu0 %1645
        %1647 = vrot.lane.b32.xlu0 %v1642, 126
        %v1648 = vpop.permute.xlu0 %1647
        %v1651 = vadd.f32 %v1626, %v1646
        %v1652 = vadd.f32 %v1627, %v1648
        %v1653 = vmul.f32 %v1640, %v257
        %v1654 = vmul.f32 %v1640, %v259
        %1657 = vrot.lane.b32.xlu0 %v1653, 126
        %v1658 = vpop.permute.xlu0 %1657
        %1659 = vrot.lane.b32.xlu0 %v1654, 126
        %v1660 = vpop.permute.xlu0 %1659
        %v1663 = vadd.f32 %v1638, %v1658
        %v1664 = vadd.f32 %v1639, %v1660
        %v1665 = vstv %s336
        %v1666 = vmul.f32 %v1665, %v257
        %v1667 = vmul.f32 %v1665, %v259
        %v1668 = vadd.f32 %v1651, %v1666
        %v1669 = vadd.f32 %v1652, %v1667
        %v1670 = vmul.f32 %v1665, %v262
        %v1671 = vmul.f32 %v1665, %v264
        %v1672 = vadd.f32 %v1663, %v1670
        %v1673 = vadd.f32 %v1664, %v1671
        %v1674 = vstv %s337
        %v1675 = vmul.f32 %v1674, %v257
        %v1676 = vmul.f32 %v1674, %v259
        %1679 = vrot.lane.b32.xlu0 %v1675, 127
        %v1680 = vpop.permute.xlu0 %1679
        %1681 = vrot.lane.b32.xlu0 %v1676, 127
        %v1682 = vpop.permute.xlu0 %1681
        %v1685 = vadd.f32 %v1668, %v1680
        %v1686 = vadd.f32 %v1669, %v1682
        %v1687 = vmul.f32 %v1674, %v262
        %v1688 = vmul.f32 %v1674, %v264
        %1691 = vrot.lane.b32.xlu0 %v1687, 127
        %v1692 = vpop.permute.xlu0 %1691
        %1693 = vrot.lane.b32.xlu0 %v1688, 127
        %v1694 = vpop.permute.xlu0 %1693
        %v1697 = vadd.f32 %v1672, %v1692
        %v1698 = vadd.f32 %v1673, %v1694
        %v1699 = vstv %s338
        %v1700 = vmul.f32 %v1699, %v257
        %v1701 = vmul.f32 %v1699, %v259
        %1704 = vrot.lane.b32.xlu0 %v1700, 126
        %v1705 = vpop.permute.xlu0 %1704
        %1706 = vrot.lane.b32.xlu0 %v1701, 126
        %v1707 = vpop.permute.xlu0 %1706
        %v1710 = vadd.f32 %v1685, %v1705
        %v1711 = vadd.f32 %v1686, %v1707
        %v1712 = vmul.f32 %v1699, %v262
        %v1713 = vmul.f32 %v1699, %v264
        %1716 = vrot.lane.b32.xlu0 %v1712, 126
        %v1717 = vpop.permute.xlu0 %1716
        %1718 = vrot.lane.b32.xlu0 %v1713, 126
        %v1719 = vpop.permute.xlu0 %1718
        %v1722 = vadd.f32 %v1697, %v1717
        %v1723 = vadd.f32 %v1698, %v1719
        %v1724 = vstv %s339
        %v1725 = vmul.f32 %v1724, %v262
        %v1726 = vmul.f32 %v1724, %v264
        %v1727 = vadd.f32 %v1710, %v1725
        %v1728 = vadd.f32 %v1711, %v1726
        %v1729 = vmul.f32 %v1724, %v267
        %v1730 = vmul.f32 %v1724, %v269
        %v1731 = vadd.f32 %v1722, %v1729
        %v1732 = vadd.f32 %v1723, %v1730
        %v1733 = vstv %s340
        %v1734 = vmul.f32 %v1733, %v262
        %v1735 = vmul.f32 %v1733, %v264
        %1738 = vrot.lane.b32.xlu0 %v1734, 127
        %v1739 = vpop.permute.xlu0 %1738
        %1740 = vrot.lane.b32.xlu0 %v1735, 127
        %v1741 = vpop.permute.xlu0 %1740
        %v1744 = vadd.f32 %v1727, %v1739
        %v1745 = vadd.f32 %v1728, %v1741
        %v1746 = vmul.f32 %v1733, %v267
        %v1747 = vmul.f32 %v1733, %v269
        %1750 = vrot.lane.b32.xlu0 %v1746, 127
        %v1751 = vpop.permute.xlu0 %1750
        %1752 = vrot.lane.b32.xlu0 %v1747, 127
        %v1753 = vpop.permute.xlu0 %1752
        %v1756 = vadd.f32 %v1731, %v1751
        %v1757 = vadd.f32 %v1732, %v1753
        %v1758 = vstv %s341
        %v1759 = vmul.f32 %v1758, %v262
        %v1760 = vmul.f32 %v1758, %v264
        %1763 = vrot.lane.b32.xlu0 %v1759, 126
        %v1764 = vpop.permute.xlu0 %1763
        %1765 = vrot.lane.b32.xlu0 %v1760, 126
        %v1766 = vpop.permute.xlu0 %1765
        %v1769 = vadd.f32 %v1744, %v1764
        %v1770 = vadd.f32 %v1745, %v1766
        %v1771 = vmul.f32 %v1758, %v267
        %v1772 = vmul.f32 %v1758, %v269
        %1775 = vrot.lane.b32.xlu0 %v1771, 126
        %v1776 = vpop.permute.xlu0 %1775
        %1777 = vrot.lane.b32.xlu0 %v1772, 126
        %v1778 = vpop.permute.xlu0 %1777
        %v1781 = vadd.f32 %v1756, %v1776
        %v1782 = vadd.f32 %v1757, %v1778
        %v1783 = vmax.f32 %v1769, %v1781
        %v1784 = vmax.f32 %v1770, %v1782
        %v1785 = vstv %s349
        %v1786 = vadd.f32 %v1783, %v1785
        %v1787 = vadd.f32 %v1784, %v1785
        %v1788 = vmax.f32 %v1786, 0.0
        %v1789 = vmax.f32 %v1787, 0.0
        %v1790 = vld [vmem:[%s1] sm:$0xff]
        %v1791 = vld [vmem:[%s1 + $0x8] sm:$0xff]
        %v1792 = vld [vmem:[%s1 + $0x10] sm:$0xff]
        %v1793 = vld [vmem:[%s1 + $0x18] sm:$0xff]
        %v1794 = vld [vmem:[%s1 + $0x20] sm:$0xff]
        %v1795 = vld [vmem:[%s1 + $0x28] sm:$0xff]
        %v1796 = vld [vmem:[%s1 + $0x30] sm:$0xff]
        %v1797 = vld [vmem:[%s1 + $0x38] sm:$0xff]
        %vm1798 = vcmask 523264
        %v1800 = vsel %vm1798, %v528, 0
        %v1803 = vsel %vm1798, %v529, 0
        %v1806 = vsel %vm1798, %v708, 0
        %v1809 = vsel %vm1798, %v709, 0
        %v1812 = vsel %vm1798, %v888, 0
        %v1815 = vsel %vm1798, %v889, 0
        %v1818 = vsel %vm1798, %v1068, 0
        %v1821 = vsel %vm1798, %v1069, 0
        %v1824 = vsel %vm1798, %v1248, 0
        %v1827 = vsel %vm1798, %v1249, 0
        %v1830 = vsel %vm1798, %v1428, 0
        %v1833 = vsel %vm1798, %v1429, 0
        %v1836 = vsel %vm1798, %v1608, 0
        %v1839 = vsel %vm1798, %v1609, 0
        %v1842 = vsel %vm1798, %v1788, 0
        %v1845 = vsel %vm1798, %v1789, 0
        %1847 = vmatprep.subr.mxu0 0.0
        %1848 = vmatpush1.msra.mxu0 %v1790
        %1849 = vmatprep.subr.mxu0 0.0
        %1850 = vmatpush1.msra.mxu0 %v1791
        %1851 = vmatprep.subr.mxu0 0.0
        %1852 = vmatpush1.msra.mxu0 %v1792
        %1853 = vmatprep.subr.mxu0 0.0
        %1854 = vmatpush1.msra.mxu0 %v1793
        %1855 = vmatprep.subr.mxu0 0.0
        %1856 = vmatpush1.msra.mxu0 %v1794
        %1857 = vmatprep.subr.mxu0 0.0
        %1858 = vmatpush1.msra.mxu0 %v1795
        %1859 = vmatprep.subr.mxu0 0.0
        %1860 = vmatpush1.msra.mxu0 %v1796
        %1861 = vmatprep.subr.mxu0 0.0
        %1862 = vmatpush1.msra.mxu0 %v1797
        %1863 = vmatprep.subr.mxu0 0.0
        %1864 = vmatpush1.msra.mxu0 0.0
        %1865 = vmatprep.subr.mxu0 0.0
        %1866 = vmatpush1.msra.mxu0 0.0
        %1867 = vmatprep.subr.mxu0 0.0
        %1868 = vmatpush1.msra.mxu0 0.0
        %1869 = vmatprep.subr.mxu0 0.0
        %1870 = vmatpush1.msra.mxu0 0.0
        %1871 = vmatprep.subr.mxu0 0.0
        %1872 = vmatpush1.msra.mxu0 0.0
        %1873 = vmatprep.subr.mxu0 0.0
        %1874 = vmatpush1.msra.mxu0 0.0
        %1875 = vmatprep.subr.mxu0 0.0
        %1876 = vmatpush1.msra.mxu0 0.0
        %1877 = vmatprep.subr.mxu0 0.0
        %1878 = vmatpush1.msra.mxu0 0.0
        %1879 = vmatprep.subr.mxu0 0.0
        %1880 = vmatpush1.msra.mxu0 0.0
        %1881 = vmatprep.subr.mxu0 0.0
        %1882 = vmatpush1.msra.mxu0 0.0
        %1883 = vmatprep.subr.mxu0 0.0
        %1884 = vmatpush1.msra.mxu0 0.0
        %1885 = vmatprep.subr.mxu0 0.0
        %1886 = vmatpush1.msra.mxu0 0.0
        %1887 = vmatprep.subr.mxu0 0.0
        %1888 = vmatpush1.msra.mxu0 0.0
        %1889 = vmatprep.subr.mxu0 0.0
        %1890 = vmatpush1.msra.mxu0 0.0
        %1891 = vmatprep.subr.mxu0 0.0
        %1892 = vmatpush1.msra.mxu0 0.0
        %1893 = vmatprep.subr.mxu0 0.0
        %1894 = vmatpush1.msra.mxu0 0.0
        %1895 = vmatprep.subr.mxu0 0.0
        %1896 = vmatpush1.msra.mxu0 0.0
        %1897 = vmatprep.subr.mxu0 0.0
        %1898 = vmatpush1.msra.mxu0 0.0
        %1899 = vmatprep.subr.mxu0 0.0
        %1900 = vmatpush1.msra.mxu0 0.0
        %1901 = vmatprep.subr.mxu0 0.0
        %1902 = vmatpush1.msra.mxu0 0.0
        %1903 = vmatprep.subr.mxu0 0.0
        %1904 = vmatpush1.msra.mxu0 0.0
        %1905 = vmatprep.subr.mxu0 0.0
        %1906 = vmatpush1.msra.mxu0 0.0
        %1907 = vmatprep.subr.mxu0 0.0
        %1908 = vmatpush1.msra.mxu0 0.0
        %1909 = vmatprep.subr.mxu0 0.0
        %1910 = vmatpush1.msra.mxu0 0.0
        %1911 = vmatprep.mubr.f32.mxu0 0.0
        %1912 = vmatmul.mubr.f32.gmra.mrb[0].mxu0 %v1800
        %v1913 = vpop.f32.mrb[0].mxu0
        %v1914 = vadd.f32 0.0, %v1913
        %v1915 = vpop.f32.mrb[0].mxu0
        %1916 = vmatprep.mubr.f32.mxu0 0.0
        %1917 = vmatmul.mubr.f32.gmra.mrb[0].mxu0 %v1803
        %v1918 = vpop.f32.mrb[0].mxu0
        %v1919 = vadd.f32 0.0, %v1918
        %v1920 = vpop.f32.mrb[0].mxu0
        %1921 = vmatprep.mubr.f32.mxu0 0.0
        %1922 = vmatmul.mubr.f32.gmra.mrb[0].mxu0 %v1806
        %v1923 = vpop.f32.mrb[0].mxu0
        %v1924 = vadd.f32 0.0, %v1923
        %v1925 = vpop.f32.mrb[0].mxu0
        %1926 = vmatprep.mubr.f32.mxu0 0.0
        %1927 = vmatmul.mubr.f32.gmra.mrb[0].mxu0 %v1809
        %v1928 = vpop.f32.mrb[0].mxu0
        %v1929 = vadd.f32 0.0, %v1928
        %v1930 = vpop.f32.mrb[0].mxu0
        %1931 = vmatprep.mubr.f32.mxu0 0.0
        %1932 = vmatmul.mubr.f32.gmra.mrb[0].mxu0 %v1812
        %v1933 = vpop.f32.mrb[0].mxu0
        %v1934 = vadd.f32 0.0, %v1933
        %v1935 = vpop.f32.mrb[0].mxu0
        %1936 = vmatprep.mubr.f32.mxu0 0.0
        %1937 = vmatmul.mubr.f32.gmra.mrb[0].mxu0 %v1815
        %v1938 = vpop.f32.mrb[0].mxu0
        %v1939 = vadd.f32 0.0, %v1938
        %v1940 = vpop.f32.mrb[0].mxu0
        %1941 = vmatprep.mubr.f32.mxu0 0.0
        %1942 = vmatmul.mubr.f32.gmra.mrb[0].mxu0 %v1818
        %v1943 = vpop.f32.mrb[0].mxu0
        %v1944 = vadd.f32 0.0, %v1943
        %v1945 = vpop.f32.mrb[0].mxu0
        %1946 = vmatprep.mubr.f32.mxu0 0.0
        %1947 = vmatmul.mubr.f32.gmra.mrb[0].mxu0 %v1821
        %v1948 = vpop.f32.mrb[0].mxu0
        %v1949 = vadd.f32 0.0, %v1948
        %v1950 = vpop.f32.mrb[0].mxu0
        %1951 = vmatprep.mubr.f32.mxu0 0.0
        %1952 = vmatmul.mubr.f32.gmra.mrb[0].mxu0 %v1824
        %v1953 = vpop.f32.mrb[0].mxu0
        %v1954 = vadd.f32 0.0, %v1953
        %v1955 = vpop.f32.mrb[0].mxu0
        %1956 = vmatprep.mubr.f32.mxu0 0.0
        %1957 = vmatmul.mubr.f32.gmra.mrb[0].mxu0 %v1827
        %v1958 = vpop.f32.mrb[0].mxu0
        %v1959 = vadd.f32 0.0, %v1958
        %v1960 = vpop.f32.mrb[0].mxu0
        %1961 = vmatprep.mubr.f32.mxu0 0.0
        %1962 = vmatmul.mubr.f32.gmra.mrb[0].mxu0 %v1830
        %v1963 = vpop.f32.mrb[0].mxu0
        %v1964 = vadd.f32 0.0, %v1963
        %v1965 = vpop.f32.mrb[0].mxu0
        %1966 = vmatprep.mubr.f32.mxu0 0.0
        %1967 = vmatmul.mubr.f32.gmra.mrb[0].mxu0 %v1833
        %v1968 = vpop.f32.mrb[0].mxu0
        %v1969 = vadd.f32 0.0, %v1968
        %v1970 = vpop.f32.mrb[0].mxu0
        %1971 = vmatprep.mubr.f32.mxu0 0.0
        %1972 = vmatmul.mubr.f32.gmra.mrb[0].mxu0 %v1836
        %v1973 = vpop.f32.mrb[0].mxu0
        %v1974 = vadd.f32 0.0, %v1973
        %v1975 = vpop.f32.mrb[0].mxu0
        %1976 = vmatprep.mubr.f32.mxu0 0.0
        %1977 = vmatmul.mubr.f32.gmra.mrb[0].mxu0 %v1839
        %v1978 = vpop.f32.mrb[0].mxu0
        %v1979 = vadd.f32 0.0, %v1978
        %v1980 = vpop.f32.mrb[0].mxu0
        %1981 = vmatprep.mubr.f32.mxu0 0.0
        %1982 = vmatmul.mubr.f32.gmra.mrb[0].mxu0 %v1842
        %v1983 = vpop.f32.mrb[0].mxu0
        %v1984 = vadd.f32 0.0, %v1983
        %v1985 = vpop.f32.mrb[0].mxu0
        %1986 = vmatprep.mubr.f32.mxu0 0.0
        %1987 = vmatmul.mubr.f32.gmra.mrb[0].mxu0 %v1845
        %v1988 = vpop.f32.mrb[0].mxu0
        %v1989 = vadd.f32 0.0, %v1988
        %v1990 = vpop.f32.mrb[0].mxu0
        %1991 = vdwg.mxu0
        %2008 = vrot.lane.b32.xlu0 %v1914, 96
        %v2009 = vpop.permute.xlu0 %2008
        %2010 = vrot.lane.b32.xlu0 %v1919, 96
        %v2011 = vpop.permute.xlu0 %2010
        %2012 = vrot.lane.b32.xlu0 %v1924, 96
        %v2013 = vpop.permute.xlu0 %2012
        %2014 = vrot.lane.b32.xlu0 %v1929, 96
        %v2015 = vpop.permute.xlu0 %2014
        %2016 = vrot.lane.b32.xlu0 %v1934, 96
        %v2017 = vpop.permute.xlu0 %2016
        %2018 = vrot.lane.b32.xlu0 %v1939, 96
        %v2019 = vpop.permute.xlu0 %2018
        %2020 = vrot.lane.b32.xlu0 %v1944, 96
        %v2021 = vpop.permute.xlu0 %2020
        %2022 = vrot.lane.b32.xlu0 %v1949, 96
        %v2023 = vpop.permute.xlu0 %2022
        %2024 = vrot.lane.b32.xlu0 %v1954, 96
        %v2025 = vpop.permute.xlu0 %2024
        %2026 = vrot.lane.b32.xlu0 %v1959, 96
        %v2027 = vpop.permute.xlu0 %2026
        %2028 = vrot.lane.b32.xlu0 %v1964, 96
        %v2029 = vpop.permute.xlu0 %2028
        %2030 = vrot.lane.b32.xlu0 %v1969, 96
        %v2031 = vpop.permute.xlu0 %2030
        %2032 = vrot.lane.b32.xlu0 %v1974, 96
        %v2033 = vpop.permute.xlu0 %2032
        %2034 = vrot.lane.b32.xlu0 %v1979, 96
        %v2035 = vpop.permute.xlu0 %2034
        %2036 = vrot.lane.b32.xlu0 %v1984, 96
        %v2037 = vpop.permute.xlu0 %2036
        %2038 = vrot.lane.b32.xlu0 %v1989, 96
        %v2039 = vpop.permute.xlu0 %2038
        %v2056 = vmax.f32 %v1914, %v2009
        %v2057 = vmax.f32 %v1919, %v2011
        %v2058 = vmax.f32 %v1924, %v2013
        %v2059 = vmax.f32 %v1929, %v2015
        %v2060 = vmax.f32 %v1934, %v2017
        %v2061 = vmax.f32 %v1939, %v2019
        %v2062 = vmax.f32 %v1944, %v2021
        %v2063 = vmax.f32 %v1949, %v2023
        %v2064 = vmax.f32 %v1954, %v2025
        %v2065 = vmax.f32 %v1959, %v2027
        %v2066 = vmax.f32 %v1964, %v2029
        %v2067 = vmax.f32 %v1969, %v2031
        %v2068 = vmax.f32 %v1974, %v2033
        %v2069 = vmax.f32 %v1979, %v2035
        %v2070 = vmax.f32 %v1984, %v2037
        %v2071 = vmax.f32 %v1989, %v2039
        %2074 = vrot.lane.b32.xlu0 %v2058, 32
        %v2075 = vpop.permute.xlu0 %2074
        %2076 = vrot.lane.b32.xlu0 %v2059, 32
        %v2077 = vpop.permute.xlu0 %2076
        %2082 = vrot.lane.b32.xlu0 %v2060, 64
        %v2083 = vpop.permute.xlu0 %2082
        %2084 = vrot.lane.b32.xlu0 %v2061, 64
        %v2085 = vpop.permute.xlu0 %2084
        %2090 = vrot.lane.b32.xlu0 %v2062, 96
        %v2091 = vpop.permute.xlu0 %2090
        %2092 = vrot.lane.b32.xlu0 %v2063, 96
        %v2093 = vpop.permute.xlu0 %2092
        %2098 = vrot.lane.b32.xlu0 %v2066, 32
        %v2099 = vpop.permute.xlu0 %2098
        %2100 = vrot.lane.b32.xlu0 %v2067, 32
        %v2101 = vpop.permute.xlu0 %2100
        %2106 = vrot.lane.b32.xlu0 %v2068, 64
        %v2107 = vpop.permute.xlu0 %2106
        %2108 = vrot.lane.b32.xlu0 %v2069, 64
        %v2109 = vpop.permute.xlu0 %2108
        %2114 = vrot.lane.b32.xlu0 %v2070, 96
        %v2115 = vpop.permute.xlu0 %2114
        %2116 = vrot.lane.b32.xlu0 %v2071, 96
        %v2117 = vpop.permute.xlu0 %2116
        %vm2120 = vcmask 261120
        %v2121 = vsel %vm2120, %v2056, %v2075
        %v2122 = vsel %vm2120, %v2057, %v2077
        %v2123 = vsel %vm1798, %v2121, %v2083
        %v2124 = vsel %vm1798, %v2122, %v2085
        %vm2125 = vcmask 785408
        %v2126 = vsel %vm2125, %v2123, %v2091
        %v2127 = vsel %vm2125, %v2124, %v2093
        %v2128 = vsel %vm2120, %v2064, %v2099
        %v2129 = vsel %vm2120, %v2065, %v2101
        %v2130 = vsel %vm1798, %v2128, %v2107
        %v2131 = vsel %vm1798, %v2129, %v2109
        %v2132 = vsel %vm2125, %v2130, %v2115
        %v2133 = vsel %vm2125, %v2131, %v2117
        %2134 = vst [vmem:[%s248] sm:$0xff] %v2126
        %2135 = vst [vmem:[%s248 + $0x8] sm:$0xff] %v2132
        %2136 = vst [vmem:[%s248 + $0x10] sm:$0xff] %v2127
        %2137 = vst [vmem:[%s248 + $0x18] sm:$0xff] %v2133
        %s2138 = smul.u32 2, %s22
        %p2139 = scmp.lt.s32.totalorder %s21, 1
        %s2140 = scalar_select %p2139, %s21, 1
        %p2141 = scmp.lt.s32.totalorder %s2138, 1
        %s2142 = scalar_select %p2141, %s2138, 1
        %s2143 = smul.addr %s2142, 2
        %s2144 = smul.addr %s2140, 4
        %s2145 = sadd.s32 %s2143, %s2144
        %s2146 = smul.addr %s2145, 8
        %s2147 = scalar_lea.vmem %s4, %s2146
        // Predicated region
        $region45: #{mohapatra_forward.3} parent=35 // pred_check
          %p2148 = pneg %p138
        $region46: #{mohapatra_forward.3} parent=35 // pred_check_branch
          %2150 = sbr.rel (%p2148) target = $region48
        $region47: #{mohapatra_forward.3} parent=35 // pred_region
          %s2151 = smul.u32 2, %s22
        $region48: #{mohapatra_forward.3} parent=35 // pred_fallthru
          _
      $region36: #{mohapatra_forward.3} parent=5 // pred_fallthru
        _
      %p2152 = scmp.le.s32.totalorder 2, %s12
      // Predicated region
      $region49: #{mohapatra_forward.3} parent=5 // pred_check
        %p2153 = pneg %p2152
      $region50: #{mohapatra_forward.3} parent=5 // pred_check_branch
        %2155 = sbr.rel (%p2153) target = $region52
      $region51: #{mohapatra_forward.3} parent=5 // pred_region
        %s2156 = ssub.s32 %s12, 2
        // Predicated region
        $region53: #{mohapatra_forward.3} parent=51 // pred_check
          %p2157 = pneg %p144
        $region54: #{mohapatra_forward.3} parent=51 // pred_check_branch
          %2159 = sbr.rel (%p2157) target = $region56
        $region55: #{mohapatra_forward.3} parent=51 // pred_region
          %s2160 = smul.u32 2, %s24
          %p2161 = scmp.lt.s32.totalorder %s23, 1
          %s2162 = scalar_select %p2161, %s23, 1
          %p2163 = scmp.lt.s32.totalorder %s2160, 1
          %s2164 = scalar_select %p2163, %s2160, 1
          %s2165 = smul.addr %s2164, 2
          %s2166 = smul.addr %s2162, 4
          %s2167 = sadd.s32 %s2165, %s2166
          %s2168 = smul.addr %s2167, 8
          %s2169 = scalar_lea.vmem %s4, %s2168
        $region56: #{mohapatra_forward.3} parent=51 // pred_fallthru
          _
      $region52: #{mohapatra_forward.3} parent=5 // pred_fallthru
        _
    $region6: #{mohapatra_forward.3} parent=1 // loop_footer
      %s16 = sadd.s32 1, %s12
    $region7: #{mohapatra_forward.3} parent=1 // loop_footer_branch
      %11 = sbr.rel target = $region3
    $region8: #{mohapatra_forward.3} parent=1 // loop_exit
      _
    %2170 = vsyncpa [#allocation3], 1
    %s2171 = scalar_lea.sflag [#allocation3], 1
    %2172 = vsyncpa %s2171, 1
    %2173 = vsyncpa [#allocation4], 1
    %s2174 = scalar_lea.sflag [#allocation4], 1
    %2175 = vsyncpa %s2174, 1

// kernel: mohapatra_forward.5
$region0: #{mohapatra_forward.5}
  #allocation0 [shape = 'u32[]', space=smem, size = 0x4, offset = 0x4, fixed_abs, tag = 'smem constant byte address 0x4 - core index']
  #allocation1 [shape = 'u32[144,128]{1,0:T(1,128)}', space=vmem, size = 0x12000, scoped, tag = 'internal scratch']
  #allocation2 [shape = 'f32[8,512]{1,0:T(8,128)}', space=vmem, size = 0x4000, scoped, tag = 'scratch operand']
  %s0 = inlined_call_operand.vmem [shape: bf16[8,2048], index: 0, kind: input, shape index: {}]
  %s1 = inlined_call_operand.vmem [shape: bf16[2048,512], index: 1, kind: input, shape index: {}]
  %s2 = inlined_call_operand.vmem [shape: f32[1,512], index: 2, kind: input, shape index: {}]
  %s3 = inlined_call_operand.vmem [shape: bf16[512,256], index: 3, kind: input, shape index: {}]
  %s4 = inlined_call_operand.vmem [shape: f32[1,256], index: 4, kind: input, shape index: {}]
  %s5 = inlined_call_operand.vmem [shape: bf16[256,128], index: 5, kind: input, shape index: {}]
  %s6 = inlined_call_operand.vmem [shape: f32[1,128], index: 6, kind: input, shape index: {}]
  %s7 = inlined_call_operand.vmem [shape: bf16[128,128], index: 7, kind: input, shape index: {}]
  %s8 = inlined_call_operand.vmem [shape: f32[1,128], index: 8, kind: input, shape index: {}]
  %s9 = inlined_call_operand.vmem [shape: bf16[128,128], index: 9, kind: input, shape index: {}]
  %s10 = inlined_call_operand.vmem [shape: f32[1,128], index: 10, kind: input, shape index: {}]
  %s11 = inlined_call_operand.vmem [shape: f32[8,128], index: 11, kind: output, shape index: {}]
  %s12 = sld [smem:[#allocation0]]
  $region62: #{mohapatra_forward.5} parent=0
    _
  %s14 = ssub.s32 1, %s12
  %s15 = scalar_select 0, %s14, %s12
  // Predicated region
  $region2: #{mohapatra_forward.5} parent=0 // pred_check
    _
  $region3: #{mohapatra_forward.5} parent=0 // pred_check_branch
    %17 = sbr.rel (0) target = $region5
  $region4: #{mohapatra_forward.5} parent=0 // pred_region
    _
  $region5: #{mohapatra_forward.5} parent=0 // pred_fallthru
    _
  // Predicated region
  $region6: #{mohapatra_forward.5} parent=0 // pred_check
    _
  $region7: #{mohapatra_forward.5} parent=0 // pred_check_branch
    %19 = sbr.rel (0) target = $region9
  $region8: #{mohapatra_forward.5} parent=0 // pred_region
    _
  $region9: #{mohapatra_forward.5} parent=0 // pred_fallthru
    _
  // Predicated region
  $region10: #{mohapatra_forward.5} parent=0 // pred_check
    _
  $region11: #{mohapatra_forward.5} parent=0 // pred_check_branch
    %21 = sbr.rel (0) target = $region13
  $region12: #{mohapatra_forward.5} parent=0 // pred_region
    _
  $region13: #{mohapatra_forward.5} parent=0 // pred_fallthru
    _
  // Predicated region
  $region14: #{mohapatra_forward.5} parent=0 // pred_check
    _
  $region15: #{mohapatra_forward.5} parent=0 // pred_check_branch
    %23 = sbr.rel (0) target = $region17
  $region16: #{mohapatra_forward.5} parent=0 // pred_region
    _
  $region17: #{mohapatra_forward.5} parent=0 // pred_fallthru
    _
  // Predicated region
  $region18: #{mohapatra_forward.5} parent=0 // pred_check
    _
  $region19: #{mohapatra_forward.5} parent=0 // pred_check_branch
    %25 = sbr.rel (0) target = $region21
  $region20: #{mohapatra_forward.5} parent=0 // pred_region
    _
  $region21: #{mohapatra_forward.5} parent=0 // pred_fallthru
    _
  // Predicated region
  $region22: #{mohapatra_forward.5} parent=0 // pred_check
    _
  $region23: #{mohapatra_forward.5} parent=0 // pred_check_branch
    %27 = sbr.rel (0) target = $region25
  $region24: #{mohapatra_forward.5} parent=0 // pred_region
    _
  $region25: #{mohapatra_forward.5} parent=0 // pred_fallthru
    _
  // Predicated region
  $region26: #{mohapatra_forward.5} parent=0 // pred_check
    _
  $region27: #{mohapatra_forward.5} parent=0 // pred_check_branch
    %29 = sbr.rel (0) target = $region29
  $region28: #{mohapatra_forward.5} parent=0 // pred_region
    _
  $region29: #{mohapatra_forward.5} parent=0 // pred_fallthru
    _
  // Predicated region
  $region30: #{mohapatra_forward.5} parent=0 // pred_check
    _
  $region31: #{mohapatra_forward.5} parent=0 // pred_check_branch
    %31 = sbr.rel (0) target = $region33
  $region32: #{mohapatra_forward.5} parent=0 // pred_region
    _
  $region33: #{mohapatra_forward.5} parent=0 // pred_fallthru
    _
  // Predicated region
  $region34: #{mohapatra_forward.5} parent=0 // pred_check
    _
  $region35: #{mohapatra_forward.5} parent=0 // pred_check_branch
    %33 = sbr.rel (0) target = $region37
  $region36: #{mohapatra_forward.5} parent=0 // pred_region
    _
  $region37: #{mohapatra_forward.5} parent=0 // pred_fallthru
    _
  // Predicated region
  $region38: #{mohapatra_forward.5} parent=0 // pred_check
    _
  $region39: #{mohapatra_forward.5} parent=0 // pred_check_branch
    %35 = sbr.rel (0) target = $region41
  $region40: #{mohapatra_forward.5} parent=0 // pred_region
    _
  $region41: #{mohapatra_forward.5} parent=0 // pred_fallthru
    _
  // Predicated region
  $region42: #{mohapatra_forward.5} parent=0 // pred_check
    _
  $region43: #{mohapatra_forward.5} parent=0 // pred_check_branch
    %37 = sbr.rel (0) target = $region45
  $region44: #{mohapatra_forward.5} parent=0 // pred_region
    _
  $region45: #{mohapatra_forward.5} parent=0 // pred_fallthru
    _
  %p39 = scmp.eq.s32.totalorder 0, 0
  // Predicated region
  $region46: #{mohapatra_forward.5} parent=0 // pred_check
    %p40 = pneg %p39
  $region47: #{mohapatra_forward.5} parent=0 // pred_check_branch
    %42 = sbr.rel (%p40) target = $region49
  $region48: #{mohapatra_forward.5} parent=0 // pred_region
    %43 = vst [vmem:[#allocation2] sm:$0xff] 0.0
    %44 = vst [vmem:[#allocation2 + $0x8] sm:$0xff] 0.0
    %45 = vst [vmem:[#allocation2 + $0x10] sm:$0xff] 0.0
    %46 = vst [vmem:[#allocation2 + $0x18] sm:$0xff] 0.0
  $region49: #{mohapatra_forward.5} parent=0 // pred_fallthru
    _
  %v47 = vld [vmem:[#allocation2] sm:$0xff]
  %v48 = vld [vmem:[#allocation2 + $0x8] sm:$0xff]
  %v49 = vld [vmem:[#allocation2 + $0x10] sm:$0xff]
  %v50 = vld [vmem:[#allocation2 + $0x18] sm:$0xff]
  %v51 = vld [vmem:[%s0] sm:$0xff]
  %v52 = vld [vmem:[%s0 + $0x8] sm:$0xff]
  %v53 = vld [vmem:[%s0 + $0x10] sm:$0xff]
  %v54 = vld [vmem:[%s0 + $0x18] sm:$0xff]
  %v55 = vld [vmem:[%s0 + $0x20] sm:$0xff]
  %v56 = vld [vmem:[%s0 + $0x28] sm:$0xff]
  %v57 = vld [vmem:[%s0 + $0x30] sm:$0xff]
  %v58 = vld [vmem:[%s0 + $0x38] sm:$0xff]
  %v59 = vld [vmem:[%s1] sm:$0xff]
  %v60 = vld [vmem:[%s1 + $0x8] sm:$0xff]
  %v61 = vld [vmem:[%s1 + $0x10] sm:$0xff]
  %v62 = vld [vmem:[%s1 + $0x18] sm:$0xff]
  %v63 = vld [vmem:[%s1 + $0x20] sm:$0xff]
  %v64 = vld [vmem:[%s1 + $0x28] sm:$0xff]
  %v65 = vld [vmem:[%s1 + $0x30] sm:$0xff]
  %v66 = vld [vmem:[%s1 + $0x38] sm:$0xff]
  %v67 = vld [vmem:[%s1 + $0x40] sm:$0xff]
  %v68 = vld [vmem:[%s1 + $0x48] sm:$0xff]
  %v69 = vld [vmem:[%s1 + $0x50] sm:$0xff]
  %v70 = vld [vmem:[%s1 + $0x58] sm:$0xff]
  %v71 = vld [vmem:[%s1 + $0x60] sm:$0xff]
  %v72 = vld [vmem:[%s1 + $0x68] sm:$0xff]
  %v73 = vld [vmem:[%s1 + $0x70] sm:$0xff]
  %v74 = vld [vmem:[%s1 + $0x78] sm:$0xff]
  %v75 = vld [vmem:[%s1 + $0x80] sm:$0xff]
  %v76 = vld [vmem:[%s1 + $0x88] sm:$0xff]
  %v77 = vld [vmem:[%s1 + $0x90] sm:$0xff]
  %v78 = vld [vmem:[%s1 + $0x98] sm:$0xff]
  %v79 = vld [vmem:[%s1 + $0xa0] sm:$0xff]
  %v80 = vld [vmem:[%s1 + $0xa8] sm:$0xff]
  %v81 = vld [vmem:[%s1 + $0xb0] sm:$0xff]
  %v82 = vld [vmem:[%s1 + $0xb8] sm:$0xff]
  %v83 = vld [vmem:[%s1 + $0xc0] sm:$0xff]
  %v84 = vld [vmem:[%s1 + $0xc8] sm:$0xff]
  %v85 = vld [vmem:[%s1 + $0xd0] sm:$0xff]
  %v86 = vld [vmem:[%s1 + $0xd8] sm:$0xff]
  %v87 = vld [vmem:[%s1 + $0xe0] sm:$0xff]
  %v88 = vld [vmem:[%s1 + $0xe8] sm:$0xff]
  %v89 = vld [vmem:[%s1 + $0xf0] sm:$0xff]
  %v90 = vld [vmem:[%s1 + $0xf8] sm:$0xff]
  %v91 = vld [vmem:[%s1 + $0x100] sm:$0xff]
  %v92 = vld [vmem:[%s1 + $0x108] sm:$0xff]
  %v93 = vld [vmem:[%s1 + $0x110] sm:$0xff]
  %v94 = vld [vmem:[%s1 + $0x118] sm:$0xff]
  %v95 = vld [vmem:[%s1 + $0x120] sm:$0xff]
  %v96 = vld [vmem:[%s1 + $0x128] sm:$0xff]
  %v97 = vld [vmem:[%s1 + $0x130] sm:$0xff]
  %v98 = vld [vmem:[%s1 + $0x138] sm:$0xff]
  %v99 = vld [vmem:[%s1 + $0x140] sm:$0xff]
  %v100 = vld [vmem:[%s1 + $0x148] sm:$0xff]
  %v101 = vld [vmem:[%s1 + $0x150] sm:$0xff]
  %v102 = vld [vmem:[%s1 + $0x158] sm:$0xff]
  %v103 = vld [vmem:[%s1 + $0x160] sm:$0xff]
  %v104 = vld [vmem:[%s1 + $0x168] sm:$0xff]
  %v105 = vld [vmem:[%s1 + $0x170] sm:$0xff]
  %v106 = vld [vmem:[%s1 + $0x178] sm:$0xff]
  %v107 = vld [vmem:[%s1 + $0x180] sm:$0xff]
  %v108 = vld [vmem:[%s1 + $0x188] sm:$0xff]
  %v109 = vld [vmem:[%s1 + $0x190] sm:$0xff]
  %v110 = vld [vmem:[%s1 + $0x198] sm:$0xff]
  %v111 = vld [vmem:[%s1 + $0x1a0] sm:$0xff]
  %v112 = vld [vmem:[%s1 + $0x1a8] sm:$0xff]
  %v113 = vld [vmem:[%s1 + $0x1b0] sm:$0xff]
  %v114 = vld [vmem:[%s1 + $0x1b8] sm:$0xff]
  %v115 = vld [vmem:[%s1 + $0x1c0] sm:$0xff]
  %v116 = vld [vmem:[%s1 + $0x1c8] sm:$0xff]
  %v117 = vld [vmem:[%s1 + $0x1d0] sm:$0xff]
  %v118 = vld [vmem:[%s1 + $0x1d8] sm:$0xff]
  %v119 = vld [vmem:[%s1 + $0x1e0] sm:$0xff]
  %v120 = vld [vmem:[%s1 + $0x1e8] sm:$0xff]
  %v121 = vld [vmem:[%s1 + $0x1f0] sm:$0xff]
  %v122 = vld [vmem:[%s1 + $0x1f8] sm:$0xff]
  %v123 = vld [vmem:[%s1 + $0x200] sm:$0xff]
  %v124 = vld [vmem:[%s1 + $0x208] sm:$0xff]
  %v125 = vld [vmem:[%s1 + $0x210] sm:$0xff]
  %v126 = vld [vmem:[%s1 + $0x218] sm:$0xff]
  %v127 = vld [vmem:[%s1 + $0x220] sm:$0xff]
  %v128 = vld [vmem:[%s1 + $0x228] sm:$0xff]
  %v129 = vld [vmem:[%s1 + $0x230] sm:$0xff]
  %v130 = vld [vmem:[%s1 + $0x238] sm:$0xff]
  %v131 = vld [vmem:[%s1 + $0x240] sm:$0xff]
  %v132 = vld [vmem:[%s1 + $0x248] sm:$0xff]
  %v133 = vld [vmem:[%s1 + $0x250] sm:$0xff]
  %v134 = vld [vmem:[%s1 + $0x258] sm:$0xff]
  %v135 = vld [vmem:[%s1 + $0x260] sm:$0xff]
  %v136 = vld [vmem:[%s1 + $0x268] sm:$0xff]
  %v137 = vld [vmem:[%s1 + $0x270] sm:$0xff]
  %v138 = vld [vmem:[%s1 + $0x278] sm:$0xff]
  %v139 = vld [vmem:[%s1 + $0x280] sm:$0xff]
  %v140 = vld [vmem:[%s1 + $0x288] sm:$0xff]
  %v141 = vld [vmem:[%s1 + $0x290] sm:$0xff]
  %v142 = vld [vmem:[%s1 + $0x298] sm:$0xff]
  %v143 = vld [vmem:[%s1 + $0x2a0] sm:$0xff]
  %v144 = vld [vmem:[%s1 + $0x2a8] sm:$0xff]
  %v145 = vld [vmem:[%s1 + $0x2b0] sm:$0xff]
  %v146 = vld [vmem:[%s1 + $0x2b8] sm:$0xff]
  %v147 = vld [vmem:[%s1 + $0x2c0] sm:$0xff]
  %v148 = vld [vmem:[%s1 + $0x2c8] sm:$0xff]
  %v149 = vld [vmem:[%s1 + $0x2d0] sm:$0xff]
  %v150 = vld [vmem:[%s1 + $0x2d8] sm:$0xff]
  %v151 = vld [vmem:[%s1 + $0x2e0] sm:$0xff]
  %v152 = vld [vmem:[%s1 + $0x2e8] sm:$0xff]
  %v153 = vld [vmem:[%s1 + $0x2f0] sm:$0xff]
  %v154 = vld [vmem:[%s1 + $0x2f8] sm:$0xff]
  %v155 = vld [vmem:[%s1 + $0x300] sm:$0xff]
  %v156 = vld [vmem:[%s1 + $0x308] sm:$0xff]
  %v157 = vld [vmem:[%s1 + $0x310] sm:$0xff]
  %v158 = vld [vmem:[%s1 + $0x318] sm:$0xff]
  %v159 = vld [vmem:[%s1 + $0x320] sm:$0xff]
  %v160 = vld [vmem:[%s1 + $0x328] sm:$0xff]
  %v161 = vld [vmem:[%s1 + $0x330] sm:$0xff]
  %v162 = vld [vmem:[%s1 + $0x338] sm:$0xff]
  %v163 = vld [vmem:[%s1 + $0x340] sm:$0xff]
  %v164 = vld [vmem:[%s1 + $0x348] sm:$0xff]
  %v165 = vld [vmem:[%s1 + $0x350] sm:$0xff]
  %v166 = vld [vmem:[%s1 + $0x358] sm:$0xff]
  %v167 = vld [vmem:[%s1 + $0x360] sm:$0xff]
  %v168 = vld [vmem:[%s1 + $0x368] sm:$0xff]
  %v169 = vld [vmem:[%s1 + $0x370] sm:$0xff]
  %v170 = vld [vmem:[%s1 + $0x378] sm:$0xff]
  %v171 = vld [vmem:[%s1 + $0x380] sm:$0xff]
  %v172 = vld [vmem:[%s1 + $0x388] sm:$0xff]
  %v173 = vld [vmem:[%s1 + $0x390] sm:$0xff]
  %v174 = vld [vmem:[%s1 + $0x398] sm:$0xff]
  %v175 = vld [vmem:[%s1 + $0x3a0] sm:$0xff]
  %v176 = vld [vmem:[%s1 + $0x3a8] sm:$0xff]
  %v177 = vld [vmem:[%s1 + $0x3b0] sm:$0xff]
  %v178 = vld [vmem:[%s1 + $0x3b8] sm:$0xff]
  %v179 = vld [vmem:[%s1 + $0x3c0] sm:$0xff]
  %v180 = vld [vmem:[%s1 + $0x3c8] sm:$0xff]
  %v181 = vld [vmem:[%s1 + $0x3d0] sm:$0xff]
  %v182 = vld [vmem:[%s1 + $0x3d8] sm:$0xff]
  %v183 = vld [vmem:[%s1 + $0x3e0] sm:$0xff]
  %v184 = vld [vmem:[%s1 + $0x3e8] sm:$0xff]
  %v185 = vld [vmem:[%s1 + $0x3f0] sm:$0xff]
  %v186 = vld [vmem:[%s1 + $0x3f8] sm:$0xff]
  %v187 = vld [vmem:[%s1 + $0x400] sm:$0xff]
  %v188 = vld [vmem:[%s1 + $0x408] sm:$0xff]
  %v189 = vld [vmem:[%s1 + $0x410] sm:$0xff]
  %v190 = vld [vmem:[%s1 + $0x418] sm:$0xff]
  %v191 = vld [vmem:[%s1 + $0x420] sm:$0xff]
  %v192 = vld [vmem:[%s1 + $0x428] sm:$0xff]
  %v193 = vld [vmem:[%s1 + $0x430] sm:$0xff]
  %v194 = vld [vmem:[%s1 + $0x438] sm:$0xff]
  %v195 = vld [vmem:[%s1 + $0x440] sm:$0xff]
  %v196 = vld [vmem:[%s1 + $0x448] sm:$0xff]
  %v197 = vld [vmem:[%s1 + $0x450] sm:$0xff]
  %v198 = vld [vmem:[%s1 + $0x458] sm:$0xff]
  %v199 = vld [vmem:[%s1 + $0x460] sm:$0xff]
  %v200 = vld [vmem:[%s1 + $0x468] sm:$0xff]
  %v201 = vld [vmem:[%s1 + $0x470] sm:$0xff]
  %v202 = vld [vmem:[%s1 + $0x478] sm:$0xff]
  %v203 = vld [vmem:[%s1 + $0x480] sm:$0xff]
  %v204 = vld [vmem:[%s1 + $0x488] sm:$0xff]
  %v205 = vld [vmem:[%s1 + $0x490] sm:$0xff]
  %v206 = vld [vmem:[%s1 + $0x498] sm:$0xff]
  %v207 = vld [vmem:[%s1 + $0x4a0] sm:$0xff]
  %v208 = vld [vmem:[%s1 + $0x4a8] sm:$0xff]
  %v209 = vld [vmem:[%s1 + $0x4b0] sm:$0xff]
  %v210 = vld [vmem:[%s1 + $0x4b8] sm:$0xff]
  %v211 = vld [vmem:[%s1 + $0x4c0] sm:$0xff]
  %v212 = vld [vmem:[%s1 + $0x4c8] sm:$0xff]
  %v213 = vld [vmem:[%s1 + $0x4d0] sm:$0xff]
  %v214 = vld [vmem:[%s1 + $0x4d8] sm:$0xff]
  %v215 = vld [vmem:[%s1 + $0x4e0] sm:$0xff]
  %v216 = vld [vmem:[%s1 + $0x4e8] sm:$0xff]
  %v217 = vld [vmem:[%s1 + $0x4f0] sm:$0xff]
  %v218 = vld [vmem:[%s1 + $0x4f8] sm:$0xff]
  %v219 = vld [vmem:[%s1 + $0x500] sm:$0xff]
  %v220 = vld [vmem:[%s1 + $0x508] sm:$0xff]
  %v221 = vld [vmem:[%s1 + $0x510] sm:$0xff]
  %v222 = vld [vmem:[%s1 + $0x518] sm:$0xff]
  %v223 = vld [vmem:[%s1 + $0x520] sm:$0xff]
  %v224 = vld [vmem:[%s1 + $0x528] sm:$0xff]
  %v225 = vld [vmem:[%s1 + $0x530] sm:$0xff]
  %v226 = vld [vmem:[%s1 + $0x538] sm:$0xff]
  %v227 = vld [vmem:[%s1 + $0x540] sm:$0xff]
  %v228 = vld [vmem:[%s1 + $0x548] sm:$0xff]
  %v229 = vld [vmem:[%s1 + $0x550] sm:$0xff]
  %v230 = vld [vmem:[%s1 + $0x558] sm:$0xff]
  %v231 = vld [vmem:[%s1 + $0x560] sm:$0xff]
  %v232 = vld [vmem:[%s1 + $0x568] sm:$0xff]
  %v233 = vld [vmem:[%s1 + $0x570] sm:$0xff]
  %v234 = vld [vmem:[%s1 + $0x578] sm:$0xff]
  %v235 = vld [vmem:[%s1 + $0x580] sm:$0xff]
  %v236 = vld [vmem:[%s1 + $0x588] sm:$0xff]
  %v237 = vld [vmem:[%s1 + $0x590] sm:$0xff]
  %v238 = vld [vmem:[%s1 + $0x598] sm:$0xff]
  %v239 = vld [vmem:[%s1 + $0x5a0] sm:$0xff]
  %v240 = vld [vmem:[%s1 + $0x5a8] sm:$0xff]
  %v241 = vld [vmem:[%s1 + $0x5b0] sm:$0xff]
  %v242 = vld [vmem:[%s1 + $0x5b8] sm:$0xff]
  %v243 = vld [vmem:[%s1 + $0x5c0] sm:$0xff]
  %v244 = vld [vmem:[%s1 + $0x5c8] sm:$0xff]
  %v245 = vld [vmem:[%s1 + $0x5d0] sm:$0xff]
  %v246 = vld [vmem:[%s1 + $0x5d8] sm:$0xff]
  %v247 = vld [vmem:[%s1 + $0x5e0] sm:$0xff]
  %v248 = vld [vmem:[%s1 + $0x5e8] sm:$0xff]
  %v249 = vld [vmem:[%s1 + $0x5f0] sm:$0xff]
  %v250 = vld [vmem:[%s1 + $0x5f8] sm:$0xff]
  %v251 = vld [vmem:[%s1 + $0x600] sm:$0xff]
  %v252 = vld [vmem:[%s1 + $0x608] sm:$0xff]
  %v253 = vld [vmem:[%s1 + $0x610] sm:$0xff]
  %v254 = vld [vmem:[%s1 + $0x618] sm:$0xff]
  %v255 = vld [vmem:[%s1 + $0x620] sm:$0xff]
  %v256 = vld [vmem:[%s1 + $0x628] sm:$0xff]
  %v257 = vld [vmem:[%s1 + $0x630] sm:$0xff]
  %v258 = vld [vmem:[%s1 + $0x638] sm:$0xff]
  %v259 = vld [vmem:[%s1 + $0x640] sm:$0xff]
  %v260 = vld [vmem:[%s1 + $0x648] sm:$0xff]
  %v261 = vld [vmem:[%s1 + $0x650] sm:$0xff]
  %v262 = vld [vmem:[%s1 + $0x658] sm:$0xff]
  %v263 = vld [vmem:[%s1 + $0x660] sm:$0xff]
  %v264 = vld [vmem:[%s1 + $0x668] sm:$0xff]
  %v265 = vld [vmem:[%s1 + $0x670] sm:$0xff]
  %v266 = vld [vmem:[%s1 + $0x678] sm:$0xff]
  %v267 = vld [vmem:[%s1 + $0x680] sm:$0xff]
  %v268 = vld [vmem:[%s1 + $0x688] sm:$0xff]
  %v269 = vld [vmem:[%s1 + $0x690] sm:$0xff]
  %v270 = vld [vmem:[%s1 + $0x698] sm:$0xff]
  %v271 = vld [vmem:[%s1 + $0x6a0] sm:$0xff]
  %v272 = vld [vmem:[%s1 + $0x6a8] sm:$0xff]
  %v273 = vld [vmem:[%s1 + $0x6b0] sm:$0xff]
  %v274 = vld [vmem:[%s1 + $0x6b8] sm:$0xff]
  %v275 = vld [vmem:[%s1 + $0x6c0] sm:$0xff]
  %v276 = vld [vmem:[%s1 + $0x6c8] sm:$0xff]
  %v277 = vld [vmem:[%s1 + $0x6d0] sm:$0xff]
  %v278 = vld [vmem:[%s1 + $0x6d8] sm:$0xff]
  %v279 = vld [vmem:[%s1 + $0x6e0] sm:$0xff]
  %v280 = vld [vmem:[%s1 + $0x6e8] sm:$0xff]
  %v281 = vld [vmem:[%s1 + $0x6f0] sm:$0xff]
  %v282 = vld [vmem:[%s1 + $0x6f8] sm:$0xff]
  %v283 = vld [vmem:[%s1 + $0x700] sm:$0xff]
  %v284 = vld [vmem:[%s1 + $0x708] sm:$0xff]
  %v285 = vld [vmem:[%s1 + $0x710] sm:$0xff]
  %v286 = vld [vmem:[%s1 + $0x718] sm:$0xff]
  %v287 = vld [vmem:[%s1 + $0x720] sm:$0xff]
  %v288 = vld [vmem:[%s1 + $0x728] sm:$0xff]
  %v289 = vld [vmem:[%s1 + $0x730] sm:$0xff]
  %v290 = vld [vmem:[%s1 + $0x738] sm:$0xff]
  %v291 = vld [vmem:[%s1 + $0x740] sm:$0xff]
  %v292 = vld [vmem:[%s1 + $0x748] sm:$0xff]
  %v293 = vld [vmem:[%s1 + $0x750] sm:$0xff]
  %v294 = vld [vmem:[%s1 + $0x758] sm:$0xff]
  %v295 = vld [vmem:[%s1 + $0x760] sm:$0xff]
  %v296 = vld [vmem:[%s1 + $0x768] sm:$0xff]
  %v297 = vld [vmem:[%s1 + $0x770] sm:$0xff]
  %v298 = vld [vmem:[%s1 + $0x778] sm:$0xff]
  %v299 = vld [vmem:[%s1 + $0x780] sm:$0xff]
  %v300 = vld [vmem:[%s1 + $0x788] sm:$0xff]
  %v301 = vld [vmem:[%s1 + $0x790] sm:$0xff]
  %v302 = vld [vmem:[%s1 + $0x798] sm:$0xff]
  %v303 = vld [vmem:[%s1 + $0x7a0] sm:$0xff]
  %v304 = vld [vmem:[%s1 + $0x7a8] sm:$0xff]
  %v305 = vld [vmem:[%s1 + $0x7b0] sm:$0xff]
  %v306 = vld [vmem:[%s1 + $0x7b8] sm:$0xff]
  %v307 = vld [vmem:[%s1 + $0x7c0] sm:$0xff]
  %v308 = vld [vmem:[%s1 + $0x7c8] sm:$0xff]
  %v309 = vld [vmem:[%s1 + $0x7d0] sm:$0xff]
  %v310 = vld [vmem:[%s1 + $0x7d8] sm:$0xff]
  %v311 = vld [vmem:[%s1 + $0x7e0] sm:$0xff]
  %v312 = vld [vmem:[%s1 + $0x7e8] sm:$0xff]
  %v313 = vld [vmem:[%s1 + $0x7f0] sm:$0xff]
  %v314 = vld [vmem:[%s1 + $0x7f8] sm:$0xff]
  %v315 = vld [vmem:[%s1 + $0x800] sm:$0xff]
  %v316 = vld [vmem:[%s1 + $0x808] sm:$0xff]
  %v317 = vld [vmem:[%s1 + $0x810] sm:$0xff]
  %v318 = vld [vmem:[%s1 + $0x818] sm:$0xff]
  %v319 = vld [vmem:[%s1 + $0x820] sm:$0xff]
  %v320 = vld [vmem:[%s1 + $0x828] sm:$0xff]
  %v321 = vld [vmem:[%s1 + $0x830] sm:$0xff]
  %v322 = vld [vmem:[%s1 + $0x838] sm:$0xff]
  %v323 = vld [vmem:[%s1 + $0x840] sm:$0xff]
  %v324 = vld [vmem:[%s1 + $0x848] sm:$0xff]
  %v325 = vld [vmem:[%s1 + $0x850] sm:$0xff]
  %v326 = vld [vmem:[%s1 + $0x858] sm:$0xff]
  %v327 = vld [vmem:[%s1 + $0x860] sm:$0xff]
  %v328 = vld [vmem:[%s1 + $0x868] sm:$0xff]
  %v329 = vld [vmem:[%s1 + $0x870] sm:$0xff]
  %v330 = vld [vmem:[%s1 + $0x878] sm:$0xff]
  %v331 = vld [vmem:[%s1 + $0x880] sm:$0xff]
  %v332 = vld [vmem:[%s1 + $0x888] sm:$0xff]
  %v333 = vld [vmem:[%s1 + $0x890] sm:$0xff]
  %v334 = vld [vmem:[%s1 + $0x898] sm:$0xff]
  %v335 = vld [vmem:[%s1 + $0x8a0] sm:$0xff]
  %v336 = vld [vmem:[%s1 + $0x8a8] sm:$0xff]
  %v337 = vld [vmem:[%s1 + $0x8b0] sm:$0xff]
  %v338 = vld [vmem:[%s1 + $0x8b8] sm:$0xff]
  %v339 = vld [vmem:[%s1 + $0x8c0] sm:$0xff]
  %v340 = vld [vmem:[%s1 + $0x8c8] sm:$0xff]
  %v341 = vld [vmem:[%s1 + $0x8d0] sm:$0xff]
  %v342 = vld [vmem:[%s1 + $0x8d8] sm:$0xff]
  %v343 = vld [vmem:[%s1 + $0x8e0] sm:$0xff]
  %v344 = vld [vmem:[%s1 + $0x8e8] sm:$0xff]
  %v345 = vld [vmem:[%s1 + $0x8f0] sm:$0xff]
  %v346 = vld [vmem:[%s1 + $0x8f8] sm:$0xff]
  %v347 = vld [vmem:[%s1 + $0x900] sm:$0xff]
  %v348 = vld [vmem:[%s1 + $0x908] sm:$0xff]
  %v349 = vld [vmem:[%s1 + $0x910] sm:$0xff]
  %v350 = vld [vmem:[%s1 + $0x918] sm:$0xff]
  %v351 = vld [vmem:[%s1 + $0x920] sm:$0xff]
  %v352 = vld [vmem:[%s1 + $0x928] sm:$0xff]
  %v353 = vld [vmem:[%s1 + $0x930] sm:$0xff]
  %v354 = vld [vmem:[%s1 + $0x938] sm:$0xff]
  %v355 = vld [vmem:[%s1 + $0x940] sm:$0xff]
  %v356 = vld [vmem:[%s1 + $0x948] sm:$0xff]
  %v357 = vld [vmem:[%s1 + $0x950] sm:$0xff]
  %v358 = vld [vmem:[%s1 + $0x958] sm:$0xff]
  %v359 = vld [vmem:[%s1 + $0x960] sm:$0xff]
  %v360 = vld [vmem:[%s1 + $0x968] sm:$0xff]
  %v361 = vld [vmem:[%s1 + $0x970] sm:$0xff]
  %v362 = vld [vmem:[%s1 + $0x978] sm:$0xff]
  %v363 = vld [vmem:[%s1 + $0x980] sm:$0xff]
  %v364 = vld [vmem:[%s1 + $0x988] sm:$0xff]
  %v365 = vld [vmem:[%s1 + $0x990] sm:$0xff]
  %v366 = vld [vmem:[%s1 + $0x998] sm:$0xff]
  %v367 = vld [vmem:[%s1 + $0x9a0] sm:$0xff]
  %v368 = vld [vmem:[%s1 + $0x9a8] sm:$0xff]
  %v369 = vld [vmem:[%s1 + $0x9b0] sm:$0xff]
  %v370 = vld [vmem:[%s1 + $0x9b8] sm:$0xff]
  %v371 = vld [vmem:[%s1 + $0x9c0] sm:$0xff]
  %v372 = vld [vmem:[%s1 + $0x9c8] sm:$0xff]
  %v373 = vld [vmem:[%s1 + $0x9d0] sm:$0xff]
  %v374 = vld [vmem:[%s1 + $0x9d8] sm:$0xff]
  %v375 = vld [vmem:[%s1 + $0x9e0] sm:$0xff]
  %v376 = vld [vmem:[%s1 + $0x9e8] sm:$0xff]
  %v377 = vld [vmem:[%s1 + $0x9f0] sm:$0xff]
  %v378 = vld [vmem:[%s1 + $0x9f8] sm:$0xff]
  %v379 = vld [vmem:[%s1 + $0xa00] sm:$0xff]
  %v380 = vld [vmem:[%s1 + $0xa08] sm:$0xff]
  %v381 = vld [vmem:[%s1 + $0xa10] sm:$0xff]
  %v382 = vld [vmem:[%s1 + $0xa18] sm:$0xff]
  %v383 = vld [vmem:[%s1 + $0xa20] sm:$0xff]
  %v384 = vld [vmem:[%s1 + $0xa28] sm:$0xff]
  %v385 = vld [vmem:[%s1 + $0xa30] sm:$0xff]
  %v386 = vld [vmem:[%s1 + $0xa38] sm:$0xff]
  %v387 = vld [vmem:[%s1 + $0xa40] sm:$0xff]
  %v388 = vld [vmem:[%s1 + $0xa48] sm:$0xff]
  %v389 = vld [vmem:[%s1 + $0xa50] sm:$0xff]
  %v390 = vld [vmem:[%s1 + $0xa58] sm:$0xff]
  %v391 = vld [vmem:[%s1 + $0xa60] sm:$0xff]
  %v392 = vld [vmem:[%s1 + $0xa68] sm:$0xff]
  %v393 = vld [vmem:[%s1 + $0xa70] sm:$0xff]
  %v394 = vld [vmem:[%s1 + $0xa78] sm:$0xff]
  %v395 = vld [vmem:[%s1 + $0xa80] sm:$0xff]
  %v396 = vld [vmem:[%s1 + $0xa88] sm:$0xff]
  %v397 = vld [vmem:[%s1 + $0xa90] sm:$0xff]
  %v398 = vld [vmem:[%s1 + $0xa98] sm:$0xff]
  %v399 = vld [vmem:[%s1 + $0xaa0] sm:$0xff]
  %v400 = vld [vmem:[%s1 + $0xaa8] sm:$0xff]
  %v401 = vld [vmem:[%s1 + $0xab0] sm:$0xff]
  %v402 = vld [vmem:[%s1 + $0xab8] sm:$0xff]
  %v403 = vld [vmem:[%s1 + $0xac0] sm:$0xff]
  %v404 = vld [vmem:[%s1 + $0xac8] sm:$0xff]
  %v405 = vld [vmem:[%s1 + $0xad0] sm:$0xff]
  %v406 = vld [vmem:[%s1 + $0xad8] sm:$0xff]
  %v407 = vld [vmem:[%s1 + $0xae0] sm:$0xff]
  %v408 = vld [vmem:[%s1 + $0xae8] sm:$0xff]
  %v409 = vld [vmem:[%s1 + $0xaf0] sm:$0xff]
  %v410 = vld [vmem:[%s1 + $0xaf8] sm:$0xff]
  %v411 = vld [vmem:[%s1 + $0xb00] sm:$0xff]
  %v412 = vld [vmem:[%s1 + $0xb08] sm:$0xff]
  %v413 = vld [vmem:[%s1 + $0xb10] sm:$0xff]
  %v414 = vld [vmem:[%s1 + $0xb18] sm:$0xff]
  %v415 = vld [vmem:[%s1 + $0xb20] sm:$0xff]
  %v416 = vld [vmem:[%s1 + $0xb28] sm:$0xff]
  %v417 = vld [vmem:[%s1 + $0xb30] sm:$0xff]
  %v418 = vld [vmem:[%s1 + $0xb38] sm:$0xff]
  %v419 = vld [vmem:[%s1 + $0xb40] sm:$0xff]
  %v420 = vld [vmem:[%s1 + $0xb48] sm:$0xff]
  %v421 = vld [vmem:[%s1 + $0xb50] sm:$0xff]
  %v422 = vld [vmem:[%s1 + $0xb58] sm:$0xff]
  %v423 = vld [vmem:[%s1 + $0xb60] sm:$0xff]
  %v424 = vld [vmem:[%s1 + $0xb68] sm:$0xff]
  %v425 = vld [vmem:[%s1 + $0xb70] sm:$0xff]
  %v426 = vld [vmem:[%s1 + $0xb78] sm:$0xff]
  %v427 = vld [vmem:[%s1 + $0xb80] sm:$0xff]
  %v428 = vld [vmem:[%s1 + $0xb88] sm:$0xff]
  %v429 = vld [vmem:[%s1 + $0xb90] sm:$0xff]
  %v430 = vld [vmem:[%s1 + $0xb98] sm:$0xff]
  %v431 = vld [vmem:[%s1 + $0xba0] sm:$0xff]
  %v432 = vld [vmem:[%s1 + $0xba8] sm:$0xff]
  %v433 = vld [vmem:[%s1 + $0xbb0] sm:$0xff]
  %v434 = vld [vmem:[%s1 + $0xbb8] sm:$0xff]
  %v435 = vld [vmem:[%s1 + $0xbc0] sm:$0xff]
  %v436 = vld [vmem:[%s1 + $0xbc8] sm:$0xff]
  %v437 = vld [vmem:[%s1 + $0xbd0] sm:$0xff]
  %v438 = vld [vmem:[%s1 + $0xbd8] sm:$0xff]
  %v439 = vld [vmem:[%s1 + $0xbe0] sm:$0xff]
  %v440 = vld [vmem:[%s1 + $0xbe8] sm:$0xff]
  %v441 = vld [vmem:[%s1 + $0xbf0] sm:$0xff]
  %v442 = vld [vmem:[%s1 + $0xbf8] sm:$0xff]
  %v443 = vld [vmem:[%s1 + $0xc00] sm:$0xff]
  %v444 = vld [vmem:[%s1 + $0xc08] sm:$0xff]
  %v445 = vld [vmem:[%s1 + $0xc10] sm:$0xff]
  %v446 = vld [vmem:[%s1 + $0xc18] sm:$0xff]
  %v447 = vld [vmem:[%s1 + $0xc20] sm:$0xff]
  %v448 = vld [vmem:[%s1 + $0xc28] sm:$0xff]
  %v449 = vld [vmem:[%s1 + $0xc30] sm:$0xff]
  %v450 = vld [vmem:[%s1 + $0xc38] sm:$0xff]
  %v451 = vld [vmem:[%s1 + $0xc40] sm:$0xff]
  %v452 = vld [vmem:[%s1 + $0xc48] sm:$0xff]
  %v453 = vld [vmem:[%s1 + $0xc50] sm:$0xff]
  %v454 = vld [vmem:[%s1 + $0xc58] sm:$0xff]
  %v455 = vld [vmem:[%s1 + $0xc60] sm:$0xff]
  %v456 = vld [vmem:[%s1 + $0xc68] sm:$0xff]
  %v457 = vld [vmem:[%s1 + $0xc70] sm:$0xff]
  %v458 = vld [vmem:[%s1 + $0xc78] sm:$0xff]
  %v459 = vld [vmem:[%s1 + $0xc80] sm:$0xff]
  %v460 = vld [vmem:[%s1 + $0xc88] sm:$0xff]
  %v461 = vld [vmem:[%s1 + $0xc90] sm:$0xff]
  %v462 = vld [vmem:[%s1 + $0xc98] sm:$0xff]
  %v463 = vld [vmem:[%s1 + $0xca0] sm:$0xff]
  %v464 = vld [vmem:[%s1 + $0xca8] sm:$0xff]
  %v465 = vld [vmem:[%s1 + $0xcb0] sm:$0xff]
  %v466 = vld [vmem:[%s1 + $0xcb8] sm:$0xff]
  %v467 = vld [vmem:[%s1 + $0xcc0] sm:$0xff]
  %v468 = vld [vmem:[%s1 + $0xcc8] sm:$0xff]
  %v469 = vld [vmem:[%s1 + $0xcd0] sm:$0xff]
  %v470 = vld [vmem:[%s1 + $0xcd8] sm:$0xff]
  %v471 = vld [vmem:[%s1 + $0xce0] sm:$0xff]
  %v472 = vld [vmem:[%s1 + $0xce8] sm:$0xff]
  %v473 = vld [vmem:[%s1 + $0xcf0] sm:$0xff]
  %v474 = vld [vmem:[%s1 + $0xcf8] sm:$0xff]
  %v475 = vld [vmem:[%s1 + $0xd00] sm:$0xff]
  %v476 = vld [vmem:[%s1 + $0xd08] sm:$0xff]
  %v477 = vld [vmem:[%s1 + $0xd10] sm:$0xff]
  %v478 = vld [vmem:[%s1 + $0xd18] sm:$0xff]
  %v479 = vld [vmem:[%s1 + $0xd20] sm:$0xff]
  %v480 = vld [vmem:[%s1 + $0xd28] sm:$0xff]
  %v481 = vld [vmem:[%s1 + $0xd30] sm:$0xff]
  %v482 = vld [vmem:[%s1 + $0xd38] sm:$0xff]
  %v483 = vld [vmem:[%s1 + $0xd40] sm:$0xff]
  %v484 = vld [vmem:[%s1 + $0xd48] sm:$0xff]
  %v485 = vld [vmem:[%s1 + $0xd50] sm:$0xff]
  %v486 = vld [vmem:[%s1 + $0xd58] sm:$0xff]
  %v487 = vld [vmem:[%s1 + $0xd60] sm:$0xff]
  %v488 = vld [vmem:[%s1 + $0xd68] sm:$0xff]
  %v489 = vld [vmem:[%s1 + $0xd70] sm:$0xff]
  %v490 = vld [vmem:[%s1 + $0xd78] sm:$0xff]
  %v491 = vld [vmem:[%s1 + $0xd80] sm:$0xff]
  %v492 = vld [vmem:[%s1 + $0xd88] sm:$0xff]
  %v493 = vld [vmem:[%s1 + $0xd90] sm:$0xff]
  %v494 = vld [vmem:[%s1 + $0xd98] sm:$0xff]
  %v495 = vld [vmem:[%s1 + $0xda0] sm:$0xff]
  %v496 = vld [vmem:[%s1 + $0xda8] sm:$0xff]
  %v497 = vld [vmem:[%s1 + $0xdb0] sm:$0xff]
  %v498 = vld [vmem:[%s1 + $0xdb8] sm:$0xff]
  %v499 = vld [vmem:[%s1 + $0xdc0] sm:$0xff]
  %v500 = vld [vmem:[%s1 + $0xdc8] sm:$0xff]
  %v501 = vld [vmem:[%s1 + $0xdd0] sm:$0xff]
  %v502 = vld [vmem:[%s1 + $0xdd8] sm:$0xff]
  %v503 = vld [vmem:[%s1 + $0xde0] sm:$0xff]
  %v504 = vld [vmem:[%s1 + $0xde8] sm:$0xff]
  %v505 = vld [vmem:[%s1 + $0xdf0] sm:$0xff]
  %v506 = vld [vmem:[%s1 + $0xdf8] sm:$0xff]
  %v507 = vld [vmem:[%s1 + $0xe00] sm:$0xff]
  %v508 = vld [vmem:[%s1 + $0xe08] sm:$0xff]
  %v509 = vld [vmem:[%s1 + $0xe10] sm:$0xff]
  %v510 = vld [vmem:[%s1 + $0xe18] sm:$0xff]
  %v511 = vld [vmem:[%s1 + $0xe20] sm:$0xff]
  %v512 = vld [vmem:[%s1 + $0xe28] sm:$0xff]
  %v513 = vld [vmem:[%s1 + $0xe30] sm:$0xff]
  %v514 = vld [vmem:[%s1 + $0xe38] sm:$0xff]
  %v515 = vld [vmem:[%s1 + $0xe40] sm:$0xff]
  %v516 = vld [vmem:[%s1 + $0xe48] sm:$0xff]
  %v517 = vld [vmem:[%s1 + $0xe50] sm:$0xff]
  %v518 = vld [vmem:[%s1 + $0xe58] sm:$0xff]
  %v519 = vld [vmem:[%s1 + $0xe60] sm:$0xff]
  %v520 = vld [vmem:[%s1 + $0xe68] sm:$0xff]
  %v521 = vld [vmem:[%s1 + $0xe70] sm:$0xff]
  %v522 = vld [vmem:[%s1 + $0xe78] sm:$0xff]
  %v523 = vld [vmem:[%s1 + $0xe80] sm:$0xff]
  %v524 = vld [vmem:[%s1 + $0xe88] sm:$0xff]
  %v525 = vld [vmem:[%s1 + $0xe90] sm:$0xff]
  %v526 = vld [vmem:[%s1 + $0xe98] sm:$0xff]
  %v527 = vld [vmem:[%s1 + $0xea0] sm:$0xff]
  %v528 = vld [vmem:[%s1 + $0xea8] sm:$0xff]
  %v529 = vld [vmem:[%s1 + $0xeb0] sm:$0xff]
  %v530 = vld [vmem:[%s1 + $0xeb8] sm:$0xff]
  %v531 = vld [vmem:[%s1 + $0xec0] sm:$0xff]
  %v532 = vld [vmem:[%s1 + $0xec8] sm:$0xff]
  %v533 = vld [vmem:[%s1 + $0xed0] sm:$0xff]
  %v534 = vld [vmem:[%s1 + $0xed8] sm:$0xff]
  %v535 = vld [vmem:[%s1 + $0xee0] sm:$0xff]
  %v536 = vld [vmem:[%s1 + $0xee8] sm:$0xff]
  %v537 = vld [vmem:[%s1 + $0xef0] sm:$0xff]
  %v538 = vld [vmem:[%s1 + $0xef8] sm:$0xff]
  %v539 = vld [vmem:[%s1 + $0xf00] sm:$0xff]
  %v540 = vld [vmem:[%s1 + $0xf08] sm:$0xff]
  %v541 = vld [vmem:[%s1 + $0xf10] sm:$0xff]
  %v542 = vld [vmem:[%s1 + $0xf18] sm:$0xff]
  %v543 = vld [vmem:[%s1 + $0xf20] sm:$0xff]
  %v544 = vld [vmem:[%s1 + $0xf28] sm:$0xff]
  %v545 = vld [vmem:[%s1 + $0xf30] sm:$0xff]
  %v546 = vld [vmem:[%s1 + $0xf38] sm:$0xff]
  %v547 = vld [vmem:[%s1 + $0xf40] sm:$0xff]
  %v548 = vld [vmem:[%s1 + $0xf48] sm:$0xff]
  %v549 = vld [vmem:[%s1 + $0xf50] sm:$0xff]
  %v550 = vld [vmem:[%s1 + $0xf58] sm:$0xff]
  %v551 = vld [vmem:[%s1 + $0xf60] sm:$0xff]
  %v552 = vld [vmem:[%s1 + $0xf68] sm:$0xff]
  %v553 = vld [vmem:[%s1 + $0xf70] sm:$0xff]
  %v554 = vld [vmem:[%s1 + $0xf78] sm:$0xff]
  %v555 = vld [vmem:[%s1 + $0xf80] sm:$0xff]
  %v556 = vld [vmem:[%s1 + $0xf88] sm:$0xff]
  %v557 = vld [vmem:[%s1 + $0xf90] sm:$0xff]
  %v558 = vld [vmem:[%s1 + $0xf98] sm:$0xff]
  %v559 = vld [vmem:[%s1 + $0xfa0] sm:$0xff]
  %v560 = vld [vmem:[%s1 + $0xfa8] sm:$0xff]
  %v561 = vld [vmem:[%s1 + $0xfb0] sm:$0xff]
  %v562 = vld [vmem:[%s1 + $0xfb8] sm:$0xff]
  %v563 = vld [vmem:[%s1 + $0xfc0] sm:$0xff]
  %v564 = vld [vmem:[%s1 + $0xfc8] sm:$0xff]
  %v565 = vld [vmem:[%s1 + $0xfd0] sm:$0xff]
  %v566 = vld [vmem:[%s1 + $0xfd8] sm:$0xff]
  %v567 = vld [vmem:[%s1 + $0xfe0] sm:$0xff]
  %v568 = vld [vmem:[%s1 + $0xfe8] sm:$0xff]
  %v569 = vld [vmem:[%s1 + $0xff0] sm:$0xff]
  %v570 = vld [vmem:[%s1 + $0xff8] sm:$0xff]
  %v579 = vunpack.c.l.b16 %v51
  %v580 = vunpack.c.h.b16 %v51
  %v581 = vunpack.c.l.b16 %v52
  %v582 = vunpack.c.h.b16 %v52
  %v583 = vunpack.c.l.b16 %v53
  %v584 = vunpack.c.h.b16 %v53
  %v585 = vunpack.c.l.b16 %v54
  %v586 = vunpack.c.h.b16 %v54
  %v587 = vunpack.c.l.b16 %v55
  %v588 = vunpack.c.h.b16 %v55
  %v589 = vunpack.c.l.b16 %v56
  %v590 = vunpack.c.h.b16 %v56
  %v591 = vunpack.c.l.b16 %v57
  %v592 = vunpack.c.h.b16 %v57
  %v593 = vunpack.c.l.b16 %v58
  %v594 = vunpack.c.h.b16 %v58
  %v595 = vpack.c.b16 %v579, %v579
  %v596 = vpack.c.b16 %v580, %v580
  %v597 = vpack.c.b16 %v581, %v581
  %v598 = vpack.c.b16 %v582, %v582
  %v599 = vpack.c.b16 %v583, %v583
  %v600 = vpack.c.b16 %v584, %v584
  %v601 = vpack.c.b16 %v585, %v585
  %v602 = vpack.c.b16 %v586, %v586
  %v603 = vpack.c.b16 %v587, %v587
  %v604 = vpack.c.b16 %v588, %v588
  %v605 = vpack.c.b16 %v589, %v589
  %v606 = vpack.c.b16 %v590, %v590
  %v607 = vpack.c.b16 %v591, %v591
  %v608 = vpack.c.b16 %v592, %v592
  %v609 = vpack.c.b16 %v593, %v593
  %v610 = vpack.c.b16 %v594, %v594
  %v1139 = vunpack.c.l.b16 %v59
  %v1140 = vunpack.c.h.b16 %v59
  %v1141 = vunpack.c.l.b16 %v60
  %v1142 = vunpack.c.h.b16 %v60
  %v1143 = vunpack.c.l.b16 %v61
  %v1144 = vunpack.c.h.b16 %v61
  %v1145 = vunpack.c.l.b16 %v62
  %v1146 = vunpack.c.h.b16 %v62
  %v1147 = vunpack.c.l.b16 %v63
  %v1148 = vunpack.c.h.b16 %v63
  %v1149 = vunpack.c.l.b16 %v64
  %v1150 = vunpack.c.h.b16 %v64
  %v1151 = vunpack.c.l.b16 %v65
  %v1152 = vunpack.c.h.b16 %v65
  %v1153 = vunpack.c.l.b16 %v66
  %v1154 = vunpack.c.h.b16 %v66
  %v1155 = vunpack.c.l.b16 %v67
  %v1156 = vunpack.c.h.b16 %v67
  %v1157 = vunpack.c.l.b16 %v68
  %v1158 = vunpack.c.h.b16 %v68
  %v1159 = vunpack.c.l.b16 %v69
  %v1160 = vunpack.c.h.b16 %v69
  %v1161 = vunpack.c.l.b16 %v70
  %v1162 = vunpack.c.h.b16 %v70
  %v1163 = vunpack.c.l.b16 %v71
  %v1164 = vunpack.c.h.b16 %v71
  %v1165 = vunpack.c.l.b16 %v72
  %v1166 = vunpack.c.h.b16 %v72
  %v1167 = vunpack.c.l.b16 %v73
  %v1168 = vunpack.c.h.b16 %v73
  %v1169 = vunpack.c.l.b16 %v74
  %v1170 = vunpack.c.h.b16 %v74
  %v1171 = vunpack.c.l.b16 %v75
  %v1172 = vunpack.c.h.b16 %v75
  %v1173 = vunpack.c.l.b16 %v76
  %v1174 = vunpack.c.h.b16 %v76
  %v1175 = vunpack.c.l.b16 %v77
  %v1176 = vunpack.c.h.b16 %v77
  %v1177 = vunpack.c.l.b16 %v78
  %v1178 = vunpack.c.h.b16 %v78
  %v1179 = vunpack.c.l.b16 %v79
  %v1180 = vunpack.c.h.b16 %v79
  %v1181 = vunpack.c.l.b16 %v80
  %v1182 = vunpack.c.h.b16 %v80
  %v1183 = vunpack.c.l.b16 %v81
  %v1184 = vunpack.c.h.b16 %v81
  %v1185 = vunpack.c.l.b16 %v82
  %v1186 = vunpack.c.h.b16 %v82
  %v1187 = vunpack.c.l.b16 %v83
  %v1188 = vunpack.c.h.b16 %v83
  %v1189 = vunpack.c.l.b16 %v84
  %v1190 = vunpack.c.h.b16 %v84
  %v1191 = vunpack.c.l.b16 %v85
  %v1192 = vunpack.c.h.b16 %v85
  %v1193 = vunpack.c.l.b16 %v86
  %v1194 = vunpack.c.h.b16 %v86
  %v1195 = vunpack.c.l.b16 %v87
  %v1196 = vunpack.c.h.b16 %v87
  %v1197 = vunpack.c.l.b16 %v88
  %v1198 = vunpack.c.h.b16 %v88
  %v1199 = vunpack.c.l.b16 %v89
  %v1200 = vunpack.c.h.b16 %v89
  %v1201 = vunpack.c.l.b16 %v90
  %v1202 = vunpack.c.h.b16 %v90
  %v1203 = vunpack.c.l.b16 %v91
  %v1204 = vunpack.c.h.b16 %v91
  %v1205 = vunpack.c.l.b16 %v92
  %v1206 = vunpack.c.h.b16 %v92
  %v1207 = vunpack.c.l.b16 %v93
  %v1208 = vunpack.c.h.b16 %v93
  %v1209 = vunpack.c.l.b16 %v94
  %v1210 = vunpack.c.h.b16 %v94
  %v1211 = vunpack.c.l.b16 %v95
  %v1212 = vunpack.c.h.b16 %v95
  %v1213 = vunpack.c.l.b16 %v96
  %v1214 = vunpack.c.h.b16 %v96
  %v1215 = vunpack.c.l.b16 %v97
  %v1216 = vunpack.c.h.b16 %v97
  %v1217 = vunpack.c.l.b16 %v98
  %v1218 = vunpack.c.h.b16 %v98
  %v1219 = vunpack.c.l.b16 %v99
  %v1220 = vunpack.c.h.b16 %v99
  %v1221 = vunpack.c.l.b16 %v100
  %v1222 = vunpack.c.h.b16 %v100
  %v1223 = vunpack.c.l.b16 %v101
  %v1224 = vunpack.c.h.b16 %v101
  %v1225 = vunpack.c.l.b16 %v102
  %v1226 = vunpack.c.h.b16 %v102
  %v1227 = vunpack.c.l.b16 %v103
  %v1228 = vunpack.c.h.b16 %v103
  %v1229 = vunpack.c.l.b16 %v104
  %v1230 = vunpack.c.h.b16 %v104
  %v1231 = vunpack.c.l.b16 %v105
  %v1232 = vunpack.c.h.b16 %v105
  %v1233 = vunpack.c.l.b16 %v106
  %v1234 = vunpack.c.h.b16 %v106
  %v1235 = vunpack.c.l.b16 %v107
  %v1236 = vunpack.c.h.b16 %v107
  %v1237 = vunpack.c.l.b16 %v108
  %v1238 = vunpack.c.h.b16 %v108
  %v1239 = vunpack.c.l.b16 %v109
  %v1240 = vunpack.c.h.b16 %v109
  %v1241 = vunpack.c.l.b16 %v110
  %v1242 = vunpack.c.h.b16 %v110
  %v1243 = vunpack.c.l.b16 %v111
  %v1244 = vunpack.c.h.b16 %v111
  %v1245 = vunpack.c.l.b16 %v112
  %v1246 = vunpack.c.h.b16 %v112
  %v1247 = vunpack.c.l.b16 %v113
  %v1248 = vunpack.c.h.b16 %v113
  %v1249 = vunpack.c.l.b16 %v114
  %v1250 = vunpack.c.h.b16 %v114
  %v1251 = vunpack.c.l.b16 %v115
  %v1252 = vunpack.c.h.b16 %v115
  %v1253 = vunpack.c.l.b16 %v116
  %v1254 = vunpack.c.h.b16 %v116
  %v1255 = vunpack.c.l.b16 %v117
  %v1256 = vunpack.c.h.b16 %v117
  %v1257 = vunpack.c.l.b16 %v118
  %v1258 = vunpack.c.h.b16 %v118
  %v1259 = vunpack.c.l.b16 %v119
  %v1260 = vunpack.c.h.b16 %v119
  %v1261 = vunpack.c.l.b16 %v120
  %v1262 = vunpack.c.h.b16 %v120
  %v1263 = vunpack.c.l.b16 %v121
  %v1264 = vunpack.c.h.b16 %v121
  %v1265 = vunpack.c.l.b16 %v122
  %v1266 = vunpack.c.h.b16 %v122
  %v1267 = vunpack.c.l.b16 %v123
  %v1268 = vunpack.c.h.b16 %v123
  %v1269 = vunpack.c.l.b16 %v124
  %v1270 = vunpack.c.h.b16 %v124
  %v1271 = vunpack.c.l.b16 %v125
  %v1272 = vunpack.c.h.b16 %v125
  %v1273 = vunpack.c.l.b16 %v126
  %v1274 = vunpack.c.h.b16 %v126
  %v1275 = vunpack.c.l.b16 %v127
  %v1276 = vunpack.c.h.b16 %v127
  %v1277 = vunpack.c.l.b16 %v128
  %v1278 = vunpack.c.h.b16 %v128
  %v1279 = vunpack.c.l.b16 %v129
  %v1280 = vunpack.c.h.b16 %v129
  %v1281 = vunpack.c.l.b16 %v130
  %v1282 = vunpack.c.h.b16 %v130
  %v1283 = vunpack.c.l.b16 %v131
  %v1284 = vunpack.c.h.b16 %v131
  %v1285 = vunpack.c.l.b16 %v132
  %v1286 = vunpack.c.h.b16 %v132
  %v1287 = vunpack.c.l.b16 %v133
  %v1288 = vunpack.c.h.b16 %v133
  %v1289 = vunpack.c.l.b16 %v134
  %v1290 = vunpack.c.h.b16 %v134
  %v1291 = vunpack.c.l.b16 %v135
  %v1292 = vunpack.c.h.b16 %v135
  %v1293 = vunpack.c.l.b16 %v136
  %v1294 = vunpack.c.h.b16 %v136
  %v1295 = vunpack.c.l.b16 %v137
  %v1296 = vunpack.c.h.b16 %v137
  %v1297 = vunpack.c.l.b16 %v138
  %v1298 = vunpack.c.h.b16 %v138
  %v1299 = vunpack.c.l.b16 %v139
  %v1300 = vunpack.c.h.b16 %v139
  %v1301 = vunpack.c.l.b16 %v140
  %v1302 = vunpack.c.h.b16 %v140
  %v1303 = vunpack.c.l.b16 %v141
  %v1304 = vunpack.c.h.b16 %v141
  %v1305 = vunpack.c.l.b16 %v142
  %v1306 = vunpack.c.h.b16 %v142
  %v1307 = vunpack.c.l.b16 %v143
  %v1308 = vunpack.c.h.b16 %v143
  %v1309 = vunpack.c.l.b16 %v144
  %v1310 = vunpack.c.h.b16 %v144
  %v1311 = vunpack.c.l.b16 %v145
  %v1312 = vunpack.c.h.b16 %v145
  %v1313 = vunpack.c.l.b16 %v146
  %v1314 = vunpack.c.h.b16 %v146
  %v1315 = vunpack.c.l.b16 %v147
  %v1316 = vunpack.c.h.b16 %v147
  %v1317 = vunpack.c.l.b16 %v148
  %v1318 = vunpack.c.h.b16 %v148
  %v1319 = vunpack.c.l.b16 %v149
  %v1320 = vunpack.c.h.b16 %v149
  %v1321 = vunpack.c.l.b16 %v150
  %v1322 = vunpack.c.h.b16 %v150
  %v1323 = vunpack.c.l.b16 %v151
  %v1324 = vunpack.c.h.b16 %v151
  %v1325 = vunpack.c.l.b16 %v152
  %v1326 = vunpack.c.h.b16 %v152
  %v1327 = vunpack.c.l.b16 %v153
  %v1328 = vunpack.c.h.b16 %v153
  %v1329 = vunpack.c.l.b16 %v154
  %v1330 = vunpack.c.h.b16 %v154
  %v1331 = vunpack.c.l.b16 %v155
  %v1332 = vunpack.c.h.b16 %v155
  %v1333 = vunpack.c.l.b16 %v156
  %v1334 = vunpack.c.h.b16 %v156
  %v1335 = vunpack.c.l.b16 %v157
  %v1336 = vunpack.c.h.b16 %v157
  %v1337 = vunpack.c.l.b16 %v158
  %v1338 = vunpack.c.h.b16 %v158
  %v1339 = vunpack.c.l.b16 %v159
  %v1340 = vunpack.c.h.b16 %v159
  %v1341 = vunpack.c.l.b16 %v160
  %v1342 = vunpack.c.h.b16 %v160
  %v1343 = vunpack.c.l.b16 %v161
  %v1344 = vunpack.c.h.b16 %v161
  %v1345 = vunpack.c.l.b16 %v162
  %v1346 = vunpack.c.h.b16 %v162
  %v1347 = vunpack.c.l.b16 %v163
  %v1348 = vunpack.c.h.b16 %v163
  %v1349 = vunpack.c.l.b16 %v164
  %v1350 = vunpack.c.h.b16 %v164
  %v1351 = vunpack.c.l.b16 %v165
  %v1352 = vunpack.c.h.b16 %v165
  %v1353 = vunpack.c.l.b16 %v166
  %v1354 = vunpack.c.h.b16 %v166
  %v1355 = vunpack.c.l.b16 %v167
  %v1356 = vunpack.c.h.b16 %v167
  %v1357 = vunpack.c.l.b16 %v168
  %v1358 = vunpack.c.h.b16 %v168
  %v1359 = vunpack.c.l.b16 %v169
  %v1360 = vunpack.c.h.b16 %v169
  %v1361 = vunpack.c.l.b16 %v170
  %v1362 = vunpack.c.h.b16 %v170
  %v1363 = vunpack.c.l.b16 %v171
  %v1364 = vunpack.c.h.b16 %v171
  %v1365 = vunpack.c.l.b16 %v172
  %v1366 = vunpack.c.h.b16 %v172
  %v1367 = vunpack.c.l.b16 %v173
  %v1368 = vunpack.c.h.b16 %v173
  %v1369 = vunpack.c.l.b16 %v174
  %v1370 = vunpack.c.h.b16 %v174
  %v1371 = vunpack.c.l.b16 %v175
  %v1372 = vunpack.c.h.b16 %v175
  %v1373 = vunpack.c.l.b16 %v176
  %v1374 = vunpack.c.h.b16 %v176
  %v1375 = vunpack.c.l.b16 %v177
  %v1376 = vunpack.c.h.b16 %v177
  %v1377 = vunpack.c.l.b16 %v178
  %v1378 = vunpack.c.h.b16 %v178
  %v1379 = vunpack.c.l.b16 %v179
  %v1380 = vunpack.c.h.b16 %v179
  %v1381 = vunpack.c.l.b16 %v180
  %v1382 = vunpack.c.h.b16 %v180
  %v1383 = vunpack.c.l.b16 %v181
  %v1384 = vunpack.c.h.b16 %v181
  %v1385 = vunpack.c.l.b16 %v182
  %v1386 = vunpack.c.h.b16 %v182
  %v1387 = vunpack.c.l.b16 %v183
  %v1388 = vunpack.c.h.b16 %v183
  %v1389 = vunpack.c.l.b16 %v184
  %v1390 = vunpack.c.h.b16 %v184
  %v1391 = vunpack.c.l.b16 %v185
  %v1392 = vunpack.c.h.b16 %v185
  %v1393 = vunpack.c.l.b16 %v186
  %v1394 = vunpack.c.h.b16 %v186
  %v1395 = vunpack.c.l.b16 %v187
  %v1396 = vunpack.c.h.b16 %v187
  %v1397 = vunpack.c.l.b16 %v188
  %v1398 = vunpack.c.h.b16 %v188
  %v1399 = vunpack.c.l.b16 %v189
  %v1400 = vunpack.c.h.b16 %v189
  %v1401 = vunpack.c.l.b16 %v190
  %v1402 = vunpack.c.h.b16 %v190
  %v1403 = vunpack.c.l.b16 %v191
  %v1404 = vunpack.c.h.b16 %v191
  %v1405 = vunpack.c.l.b16 %v192
  %v1406 = vunpack.c.h.b16 %v192
  %v1407 = vunpack.c.l.b16 %v193
  %v1408 = vunpack.c.h.b16 %v193
  %v1409 = vunpack.c.l.b16 %v194
  %v1410 = vunpack.c.h.b16 %v194
  %v1411 = vunpack.c.l.b16 %v195
  %v1412 = vunpack.c.h.b16 %v195
  %v1413 = vunpack.c.l.b16 %v196
  %v1414 = vunpack.c.h.b16 %v196
  %v1415 = vunpack.c.l.b16 %v197
  %v1416 = vunpack.c.h.b16 %v197
  %v1417 = vunpack.c.l.b16 %v198
  %v1418 = vunpack.c.h.b16 %v198
  %v1419 = vunpack.c.l.b16 %v199
  %v1420 = vunpack.c.h.b16 %v199
  %v1421 = vunpack.c.l.b16 %v200
  %v1422 = vunpack.c.h.b16 %v200
  %v1423 = vunpack.c.l.b16 %v201
  %v1424 = vunpack.c.h.b16 %v201
  %v1425 = vunpack.c.l.b16 %v202
  %v1426 = vunpack.c.h.b16 %v202
  %v1427 = vunpack.c.l.b16 %v203
  %v1428 = vunpack.c.h.b16 %v203
  %v1429 = vunpack.c.l.b16 %v204
  %v1430 = vunpack.c.h.b16 %v204
  %v1431 = vunpack.c.l.b16 %v205
  %v1432 = vunpack.c.h.b16 %v205
  %v1433 = vunpack.c.l.b16 %v206
  %v1434 = vunpack.c.h.b16 %v206
  %v1435 = vunpack.c.l.b16 %v207
  %v1436 = vunpack.c.h.b16 %v207
  %v1437 = vunpack.c.l.b16 %v208
  %v1438 = vunpack.c.h.b16 %v208
  %v1439 = vunpack.c.l.b16 %v209
  %v1440 = vunpack.c.h.b16 %v209
  %v1441 = vunpack.c.l.b16 %v210
  %v1442 = vunpack.c.h.b16 %v210
  %v1443 = vunpack.c.l.b16 %v211
  %v1444 = vunpack.c.h.b16 %v211
  %v1445 = vunpack.c.l.b16 %v212
  %v1446 = vunpack.c.h.b16 %v212
  %v1447 = vunpack.c.l.b16 %v213
  %v1448 = vunpack.c.h.b16 %v213
  %v1449 = vunpack.c.l.b16 %v214
  %v1450 = vunpack.c.h.b16 %v214
  %v1451 = vunpack.c.l.b16 %v215
  %v1452 = vunpack.c.h.b16 %v215
  %v1453 = vunpack.c.l.b16 %v216
  %v1454 = vunpack.c.h.b16 %v216
  %v1455 = vunpack.c.l.b16 %v217
  %v1456 = vunpack.c.h.b16 %v217
  %v1457 = vunpack.c.l.b16 %v218
  %v1458 = vunpack.c.h.b16 %v218
  %v1459 = vunpack.c.l.b16 %v219
  %v1460 = vunpack.c.h.b16 %v219
  %v1461 = vunpack.c.l.b16 %v220
  %v1462 = vunpack.c.h.b16 %v220
  %v1463 = vunpack.c.l.b16 %v221
  %v1464 = vunpack.c.h.b16 %v221
  %v1465 = vunpack.c.l.b16 %v222
  %v1466 = vunpack.c.h.b16 %v222
  %v1467 = vunpack.c.l.b16 %v223
  %v1468 = vunpack.c.h.b16 %v223
  %v1469 = vunpack.c.l.b16 %v224
  %v1470 = vunpack.c.h.b16 %v224
  %v1471 = vunpack.c.l.b16 %v225
  %v1472 = vunpack.c.h.b16 %v225
  %v1473 = vunpack.c.l.b16 %v226
  %v1474 = vunpack.c.h.b16 %v226
  %v1475 = vunpack.c.l.b16 %v227
  %v1476 = vunpack.c.h.b16 %v227
  %v1477 = vunpack.c.l.b16 %v228
  %v1478 = vunpack.c.h.b16 %v228
  %v1479 = vunpack.c.l.b16 %v229
  %v1480 = vunpack.c.h.b16 %v229
  %v1481 = vunpack.c.l.b16 %v230
  %v1482 = vunpack.c.h.b16 %v230
  %v1483 = vunpack.c.l.b16 %v231
  %v1484 = vunpack.c.h.b16 %v231
  %v1485 = vunpack.c.l.b16 %v232
  %v1486 = vunpack.c.h.b16 %v232
  %v1487 = vunpack.c.l.b16 %v233
  %v1488 = vunpack.c.h.b16 %v233
  %v1489 = vunpack.c.l.b16 %v234
  %v1490 = vunpack.c.h.b16 %v234
  %v1491 = vunpack.c.l.b16 %v235
  %v1492 = vunpack.c.h.b16 %v235
  %v1493 = vunpack.c.l.b16 %v236
  %v1494 = vunpack.c.h.b16 %v236
  %v1495 = vunpack.c.l.b16 %v237
  %v1496 = vunpack.c.h.b16 %v237
  %v1497 = vunpack.c.l.b16 %v238
  %v1498 = vunpack.c.h.b16 %v238
  %v1499 = vunpack.c.l.b16 %v239
  %v1500 = vunpack.c.h.b16 %v239
  %v1501 = vunpack.c.l.b16 %v240
  %v1502 = vunpack.c.h.b16 %v240
  %v1503 = vunpack.c.l.b16 %v241
  %v1504 = vunpack.c.h.b16 %v241
  %v1505 = vunpack.c.l.b16 %v242
  %v1506 = vunpack.c.h.b16 %v242
  %v1507 = vunpack.c.l.b16 %v243
  %v1508 = vunpack.c.h.b16 %v243
  %v1509 = vunpack.c.l.b16 %v244
  %v1510 = vunpack.c.h.b16 %v244
  %v1511 = vunpack.c.l.b16 %v245
  %v1512 = vunpack.c.h.b16 %v245
  %v1513 = vunpack.c.l.b16 %v246
  %v1514 = vunpack.c.h.b16 %v246
  %v1515 = vunpack.c.l.b16 %v247
  %v1516 = vunpack.c.h.b16 %v247
  %v1517 = vunpack.c.l.b16 %v248
  %v1518 = vunpack.c.h.b16 %v248
  %v1519 = vunpack.c.l.b16 %v249
  %v1520 = vunpack.c.h.b16 %v249
  %v1521 = vunpack.c.l.b16 %v250
  %v1522 = vunpack.c.h.b16 %v250
  %v1523 = vunpack.c.l.b16 %v251
  %v1524 = vunpack.c.h.b16 %v251
  %v1525 = vunpack.c.l.b16 %v252
  %v1526 = vunpack.c.h.b16 %v252
  %v1527 = vunpack.c.l.b16 %v253
  %v1528 = vunpack.c.h.b16 %v253
  %v1529 = vunpack.c.l.b16 %v254
  %v1530 = vunpack.c.h.b16 %v254
  %v1531 = vunpack.c.l.b16 %v255
  %v1532 = vunpack.c.h.b16 %v255
  %v1533 = vunpack.c.l.b16 %v256
  %v1534 = vunpack.c.h.b16 %v256
  %v1535 = vunpack.c.l.b16 %v257
  %v1536 = vunpack.c.h.b16 %v257
  %v1537 = vunpack.c.l.b16 %v258
  %v1538 = vunpack.c.h.b16 %v258
  %v1539 = vunpack.c.l.b16 %v259
  %v1540 = vunpack.c.h.b16 %v259
  %v1541 = vunpack.c.l.b16 %v260
  %v1542 = vunpack.c.h.b16 %v260
  %v1543 = vunpack.c.l.b16 %v261
  %v1544 = vunpack.c.h.b16 %v261
  %v1545 = vunpack.c.l.b16 %v262
  %v1546 = vunpack.c.h.b16 %v262
  %v1547 = vunpack.c.l.b16 %v263
  %v1548 = vunpack.c.h.b16 %v263
  %v1549 = vunpack.c.l.b16 %v264
  %v1550 = vunpack.c.h.b16 %v264
  %v1551 = vunpack.c.l.b16 %v265
  %v1552 = vunpack.c.h.b16 %v265
  %v1553 = vunpack.c.l.b16 %v266
  %v1554 = vunpack.c.h.b16 %v266
  %v1555 = vunpack.c.l.b16 %v267
  %v1556 = vunpack.c.h.b16 %v267
  %v1557 = vunpack.c.l.b16 %v268
  %v1558 = vunpack.c.h.b16 %v268
  %v1559 = vunpack.c.l.b16 %v269
  %v1560 = vunpack.c.h.b16 %v269
  %v1561 = vunpack.c.l.b16 %v270
  %v1562 = vunpack.c.h.b16 %v270
  %v1563 = vunpack.c.l.b16 %v271
  %v1564 = vunpack.c.h.b16 %v271
  %v1565 = vunpack.c.l.b16 %v272
  %v1566 = vunpack.c.h.b16 %v272
  %v1567 = vunpack.c.l.b16 %v273
  %v1568 = vunpack.c.h.b16 %v273
  %v1569 = vunpack.c.l.b16 %v274
  %v1570 = vunpack.c.h.b16 %v274
  %v1571 = vunpack.c.l.b16 %v275
  %v1572 = vunpack.c.h.b16 %v275
  %v1573 = vunpack.c.l.b16 %v276
  %v1574 = vunpack.c.h.b16 %v276
  %v1575 = vunpack.c.l.b16 %v277
  %v1576 = vunpack.c.h.b16 %v277
  %v1577 = vunpack.c.l.b16 %v278
  %v1578 = vunpack.c.h.b16 %v278
  %v1579 = vunpack.c.l.b16 %v279
  %v1580 = vunpack.c.h.b16 %v279
  %v1581 = vunpack.c.l.b16 %v280
  %v1582 = vunpack.c.h.b16 %v280
  %v1583 = vunpack.c.l.b16 %v281
  %v1584 = vunpack.c.h.b16 %v281
  %v1585 = vunpack.c.l.b16 %v282
  %v1586 = vunpack.c.h.b16 %v282
  %v1587 = vunpack.c.l.b16 %v283
  %v1588 = vunpack.c.h.b16 %v283
  %v1589 = vunpack.c.l.b16 %v284
  %v1590 = vunpack.c.h.b16 %v284
  %v1591 = vunpack.c.l.b16 %v285
  %v1592 = vunpack.c.h.b16 %v285
  %v1593 = vunpack.c.l.b16 %v286
  %v1594 = vunpack.c.h.b16 %v286
  %v1595 = vunpack.c.l.b16 %v287
  %v1596 = vunpack.c.h.b16 %v287
  %v1597 = vunpack.c.l.b16 %v288
  %v1598 = vunpack.c.h.b16 %v288
  %v1599 = vunpack.c.l.b16 %v289
  %v1600 = vunpack.c.h.b16 %v289
  %v1601 = vunpack.c.l.b16 %v290
  %v1602 = vunpack.c.h.b16 %v290
  %v1603 = vunpack.c.l.b16 %v291
  %v1604 = vunpack.c.h.b16 %v291
  %v1605 = vunpack.c.l.b16 %v292
  %v1606 = vunpack.c.h.b16 %v292
  %v1607 = vunpack.c.l.b16 %v293
  %v1608 = vunpack.c.h.b16 %v293
  %v1609 = vunpack.c.l.b16 %v294
  %v1610 = vunpack.c.h.b16 %v294
  %v1611 = vunpack.c.l.b16 %v295
  %v1612 = vunpack.c.h.b16 %v295
  %v1613 = vunpack.c.l.b16 %v296
  %v1614 = vunpack.c.h.b16 %v296
  %v1615 = vunpack.c.l.b16 %v297
  %v1616 = vunpack.c.h.b16 %v297
  %v1617 = vunpack.c.l.b16 %v298
  %v1618 = vunpack.c.h.b16 %v298
  %v1619 = vunpack.c.l.b16 %v299
  %v1620 = vunpack.c.h.b16 %v299
  %v1621 = vunpack.c.l.b16 %v300
  %v1622 = vunpack.c.h.b16 %v300
  %v1623 = vunpack.c.l.b16 %v301
  %v1624 = vunpack.c.h.b16 %v301
  %v1625 = vunpack.c.l.b16 %v302
  %v1626 = vunpack.c.h.b16 %v302
  %v1627 = vunpack.c.l.b16 %v303
  %v1628 = vunpack.c.h.b16 %v303
  %v1629 = vunpack.c.l.b16 %v304
  %v1630 = vunpack.c.h.b16 %v304
  %v1631 = vunpack.c.l.b16 %v305
  %v1632 = vunpack.c.h.b16 %v305
  %v1633 = vunpack.c.l.b16 %v306
  %v1634 = vunpack.c.h.b16 %v306
  %v1635 = vunpack.c.l.b16 %v307
  %v1636 = vunpack.c.h.b16 %v307
  %v1637 = vunpack.c.l.b16 %v308
  %v1638 = vunpack.c.h.b16 %v308
  %v1639 = vunpack.c.l.b16 %v309
  %v1640 = vunpack.c.h.b16 %v309
  %v1641 = vunpack.c.l.b16 %v310
  %v1642 = vunpack.c.h.b16 %v310
  %v1643 = vunpack.c.l.b16 %v311
  %v1644 = vunpack.c.h.b16 %v311
  %v1645 = vunpack.c.l.b16 %v312
  %v1646 = vunpack.c.h.b16 %v312
  %v1647 = vunpack.c.l.b16 %v313
  %v1648 = vunpack.c.h.b16 %v313
  %v1649 = vunpack.c.l.b16 %v314
  %v1650 = vunpack.c.h.b16 %v314
  %v1651 = vunpack.c.l.b16 %v315
  %v1652 = vunpack.c.h.b16 %v315
  %v1653 = vunpack.c.l.b16 %v316
  %v1654 = vunpack.c.h.b16 %v316
  %v1655 = vunpack.c.l.b16 %v317
  %v1656 = vunpack.c.h.b16 %v317
  %v1657 = vunpack.c.l.b16 %v318
  %v1658 = vunpack.c.h.b16 %v318
  %v1659 = vunpack.c.l.b16 %v319
  %v1660 = vunpack.c.h.b16 %v319
  %v1661 = vunpack.c.l.b16 %v320
  %v1662 = vunpack.c.h.b16 %v320
  %v1663 = vunpack.c.l.b16 %v321
  %v1664 = vunpack.c.h.b16 %v321
  %v1665 = vunpack.c.l.b16 %v322
  %v1666 = vunpack.c.h.b16 %v322
  %v1667 = vunpack.c.l.b16 %v323
  %v1668 = vunpack.c.h.b16 %v323
  %v1669 = vunpack.c.l.b16 %v324
  %v1670 = vunpack.c.h.b16 %v324
  %v1671 = vunpack.c.l.b16 %v325
  %v1672 = vunpack.c.h.b16 %v325
  %v1673 = vunpack.c.l.b16 %v326
  %v1674 = vunpack.c.h.b16 %v326
  %v1675 = vunpack.c.l.b16 %v327
  %v1676 = vunpack.c.h.b16 %v327
  %v1677 = vunpack.c.l.b16 %v328
  %v1678 = vunpack.c.h.b16 %v328
  %v1679 = vunpack.c.l.b16 %v329
  %v1680 = vunpack.c.h.b16 %v329
  %v1681 = vunpack.c.l.b16 %v330
  %v1682 = vunpack.c.h.b16 %v330
  %v1683 = vunpack.c.l.b16 %v331
  %v1684 = vunpack.c.h.b16 %v331
  %v1685 = vunpack.c.l.b16 %v332
  %v1686 = vunpack.c.h.b16 %v332
  %v1687 = vunpack.c.l.b16 %v333
  %v1688 = vunpack.c.h.b16 %v333
  %v1689 = vunpack.c.l.b16 %v334
  %v1690 = vunpack.c.h.b16 %v334
  %v1691 = vunpack.c.l.b16 %v335
  %v1692 = vunpack.c.h.b16 %v335
  %v1693 = vunpack.c.l.b16 %v336
  %v1694 = vunpack.c.h.b16 %v336
  %v1695 = vunpack.c.l.b16 %v337
  %v1696 = vunpack.c.h.b16 %v337
  %v1697 = vunpack.c.l.b16 %v338
  %v1698 = vunpack.c.h.b16 %v338
  %v1699 = vunpack.c.l.b16 %v339
  %v1700 = vunpack.c.h.b16 %v339
  %v1701 = vunpack.c.l.b16 %v340
  %v1702 = vunpack.c.h.b16 %v340
  %v1703 = vunpack.c.l.b16 %v341
  %v1704 = vunpack.c.h.b16 %v341
  %v1705 = vunpack.c.l.b16 %v342
  %v1706 = vunpack.c.h.b16 %v342
  %v1707 = vunpack.c.l.b16 %v343
  %v1708 = vunpack.c.h.b16 %v343
  %v1709 = vunpack.c.l.b16 %v344
  %v1710 = vunpack.c.h.b16 %v344
  %v1711 = vunpack.c.l.b16 %v345
  %v1712 = vunpack.c.h.b16 %v345
  %v1713 = vunpack.c.l.b16 %v346
  %v1714 = vunpack.c.h.b16 %v346
  %v1715 = vunpack.c.l.b16 %v347
  %v1716 = vunpack.c.h.b16 %v347
  %v1717 = vunpack.c.l.b16 %v348
  %v1718 = vunpack.c.h.b16 %v348
  %v1719 = vunpack.c.l.b16 %v349
  %v1720 = vunpack.c.h.b16 %v349
  %v1721 = vunpack.c.l.b16 %v350
  %v1722 = vunpack.c.h.b16 %v350
  %v1723 = vunpack.c.l.b16 %v351
  %v1724 = vunpack.c.h.b16 %v351
  %v1725 = vunpack.c.l.b16 %v352
  %v1726 = vunpack.c.h.b16 %v352
  %v1727 = vunpack.c.l.b16 %v353
  %v1728 = vunpack.c.h.b16 %v353
  %v1729 = vunpack.c.l.b16 %v354
  %v1730 = vunpack.c.h.b16 %v354
  %v1731 = vunpack.c.l.b16 %v355
  %v1732 = vunpack.c.h.b16 %v355
  %v1733 = vunpack.c.l.b16 %v356
  %v1734 = vunpack.c.h.b16 %v356
  %v1735 = vunpack.c.l.b16 %v357
  %v1736 = vunpack.c.h.b16 %v357
  %v1737 = vunpack.c.l.b16 %v358
  %v1738 = vunpack.c.h.b16 %v358
  %v1739 = vunpack.c.l.b16 %v359
  %v1740 = vunpack.c.h.b16 %v359
  %v1741 = vunpack.c.l.b16 %v360
  %v1742 = vunpack.c.h.b16 %v360
  %v1743 = vunpack.c.l.b16 %v361
  %v1744 = vunpack.c.h.b16 %v361
  %v1745 = vunpack.c.l.b16 %v362
  %v1746 = vunpack.c.h.b16 %v362
  %v1747 = vunpack.c.l.b16 %v363
  %v1748 = vunpack.c.h.b16 %v363
  %v1749 = vunpack.c.l.b16 %v364
  %v1750 = vunpack.c.h.b16 %v364
  %v1751 = vunpack.c.l.b16 %v365
  %v1752 = vunpack.c.h.b16 %v365
  %v1753 = vunpack.c.l.b16 %v366
  %v1754 = vunpack.c.h.b16 %v366
  %v1755 = vunpack.c.l.b16 %v367
  %v1756 = vunpack.c.h.b16 %v367
  %v1757 = vunpack.c.l.b16 %v368
  %v1758 = vunpack.c.h.b16 %v368
  %v1759 = vunpack.c.l.b16 %v369
  %v1760 = vunpack.c.h.b16 %v369
  %v1761 = vunpack.c.l.b16 %v370
  %v1762 = vunpack.c.h.b16 %v370
  %v1763 = vunpack.c.l.b16 %v371
  %v1764 = vunpack.c.h.b16 %v371
  %v1765 = vunpack.c.l.b16 %v372
  %v1766 = vunpack.c.h.b16 %v372
  %v1767 = vunpack.c.l.b16 %v373
  %v1768 = vunpack.c.h.b16 %v373
  %v1769 = vunpack.c.l.b16 %v374
  %v1770 = vunpack.c.h.b16 %v374
  %v1771 = vunpack.c.l.b16 %v375
  %v1772 = vunpack.c.h.b16 %v375
  %v1773 = vunpack.c.l.b16 %v376
  %v1774 = vunpack.c.h.b16 %v376
  %v1775 = vunpack.c.l.b16 %v377
  %v1776 = vunpack.c.h.b16 %v377
  %v1777 = vunpack.c.l.b16 %v378
  %v1778 = vunpack.c.h.b16 %v378
  %v1779 = vunpack.c.l.b16 %v379
  %v1780 = vunpack.c.h.b16 %v379
  %v1781 = vunpack.c.l.b16 %v380
  %v1782 = vunpack.c.h.b16 %v380
  %v1783 = vunpack.c.l.b16 %v381
  %v1784 = vunpack.c.h.b16 %v381
  %v1785 = vunpack.c.l.b16 %v382
  %v1786 = vunpack.c.h.b16 %v382
  %v1787 = vunpack.c.l.b16 %v383
  %v1788 = vunpack.c.h.b16 %v383
  %v1789 = vunpack.c.l.b16 %v384
  %v1790 = vunpack.c.h.b16 %v384
  %v1791 = vunpack.c.l.b16 %v385
  %v1792 = vunpack.c.h.b16 %v385
  %v1793 = vunpack.c.l.b16 %v386
  %v1794 = vunpack.c.h.b16 %v386
  %v1795 = vunpack.c.l.b16 %v387
  %v1796 = vunpack.c.h.b16 %v387
  %v1797 = vunpack.c.l.b16 %v388
  %v1798 = vunpack.c.h.b16 %v388
  %v1799 = vunpack.c.l.b16 %v389
  %v1800 = vunpack.c.h.b16 %v389
  %v1801 = vunpack.c.l.b16 %v390
  %v1802 = vunpack.c.h.b16 %v390
  %v1803 = vunpack.c.l.b16 %v391
  %v1804 = vunpack.c.h.b16 %v391
  %v1805 = vunpack.c.l.b16 %v392
  %v1806 = vunpack.c.h.b16 %v392
  %v1807 = vunpack.c.l.b16 %v393
  %v1808 = vunpack.c.h.b16 %v393
  %v1809 = vunpack.c.l.b16 %v394
  %v1810 = vunpack.c.h.b16 %v394
  %v1811 = vunpack.c.l.b16 %v395
  %v1812 = vunpack.c.h.b16 %v395
  %v1813 = vunpack.c.l.b16 %v396
  %v1814 = vunpack.c.h.b16 %v396
  %v1815 = vunpack.c.l.b16 %v397
  %v1816 = vunpack.c.h.b16 %v397
  %v1817 = vunpack.c.l.b16 %v398
  %v1818 = vunpack.c.h.b16 %v398
  %v1819 = vunpack.c.l.b16 %v399
  %v1820 = vunpack.c.h.b16 %v399
  %v1821 = vunpack.c.l.b16 %v400
  %v1822 = vunpack.c.h.b16 %v400
  %v1823 = vunpack.c.l.b16 %v401
  %v1824 = vunpack.c.h.b16 %v401
  %v1825 = vunpack.c.l.b16 %v402
  %v1826 = vunpack.c.h.b16 %v402
  %v1827 = vunpack.c.l.b16 %v403
  %v1828 = vunpack.c.h.b16 %v403
  %v1829 = vunpack.c.l.b16 %v404
  %v1830 = vunpack.c.h.b16 %v404
  %v1831 = vunpack.c.l.b16 %v405
  %v1832 = vunpack.c.h.b16 %v405
  %v1833 = vunpack.c.l.b16 %v406
  %v1834 = vunpack.c.h.b16 %v406
  %v1835 = vunpack.c.l.b16 %v407
  %v1836 = vunpack.c.h.b16 %v407
  %v1837 = vunpack.c.l.b16 %v408
  %v1838 = vunpack.c.h.b16 %v408
  %v1839 = vunpack.c.l.b16 %v409
  %v1840 = vunpack.c.h.b16 %v409
  %v1841 = vunpack.c.l.b16 %v410
  %v1842 = vunpack.c.h.b16 %v410
  %v1843 = vunpack.c.l.b16 %v411
  %v1844 = vunpack.c.h.b16 %v411
  %v1845 = vunpack.c.l.b16 %v412
  %v1846 = vunpack.c.h.b16 %v412
  %v1847 = vunpack.c.l.b16 %v413
  %v1848 = vunpack.c.h.b16 %v413
  %v1849 = vunpack.c.l.b16 %v414
  %v1850 = vunpack.c.h.b16 %v414
  %v1851 = vunpack.c.l.b16 %v415
  %v1852 = vunpack.c.h.b16 %v415
  %v1853 = vunpack.c.l.b16 %v416
  %v1854 = vunpack.c.h.b16 %v416
  %v1855 = vunpack.c.l.b16 %v417
  %v1856 = vunpack.c.h.b16 %v417
  %v1857 = vunpack.c.l.b16 %v418
  %v1858 = vunpack.c.h.b16 %v418
  %v1859 = vunpack.c.l.b16 %v419
  %v1860 = vunpack.c.h.b16 %v419
  %v1861 = vunpack.c.l.b16 %v420
  %v1862 = vunpack.c.h.b16 %v420
  %v1863 = vunpack.c.l.b16 %v421
  %v1864 = vunpack.c.h.b16 %v421
  %v1865 = vunpack.c.l.b16 %v422
  %v1866 = vunpack.c.h.b16 %v422
  %v1867 = vunpack.c.l.b16 %v423
  %v1868 = vunpack.c.h.b16 %v423
  %v1869 = vunpack.c.l.b16 %v424
  %v1870 = vunpack.c.h.b16 %v424
  %v1871 = vunpack.c.l.b16 %v425
  %v1872 = vunpack.c.h.b16 %v425
  %v1873 = vunpack.c.l.b16 %v426
  %v1874 = vunpack.c.h.b16 %v426
  %v1875 = vunpack.c.l.b16 %v427
  %v1876 = vunpack.c.h.b16 %v427
  %v1877 = vunpack.c.l.b16 %v428
  %v1878 = vunpack.c.h.b16 %v428
  %v1879 = vunpack.c.l.b16 %v429
  %v1880 = vunpack.c.h.b16 %v429
  %v1881 = vunpack.c.l.b16 %v430
  %v1882 = vunpack.c.h.b16 %v430
  %v1883 = vunpack.c.l.b16 %v431
  %v1884 = vunpack.c.h.b16 %v431
  %v1885 = vunpack.c.l.b16 %v432
  %v1886 = vunpack.c.h.b16 %v432
  %v1887 = vunpack.c.l.b16 %v433
  %v1888 = vunpack.c.h.b16 %v433
  %v1889 = vunpack.c.l.b16 %v434
  %v1890 = vunpack.c.h.b16 %v434
  %v1891 = vunpack.c.l.b16 %v435
  %v1892 = vunpack.c.h.b16 %v435
  %v1893 = vunpack.c.l.b16 %v436
  %v1894 = vunpack.c.h.b16 %v436
  %v1895 = vunpack.c.l.b16 %v437
  %v1896 = vunpack.c.h.b16 %v437
  %v1897 = vunpack.c.l.b16 %v438
  %v1898 = vunpack.c.h.b16 %v438
  %v1899 = vunpack.c.l.b16 %v439
  %v1900 = vunpack.c.h.b16 %v439
  %v1901 = vunpack.c.l.b16 %v440
  %v1902 = vunpack.c.h.b16 %v440
  %v1903 = vunpack.c.l.b16 %v441
  %v1904 = vunpack.c.h.b16 %v441
  %v1905 = vunpack.c.l.b16 %v442
  %v1906 = vunpack.c.h.b16 %v442
  %v1907 = vunpack.c.l.b16 %v443
  %v1908 = vunpack.c.h.b16 %v443
  %v1909 = vunpack.c.l.b16 %v444
  %v1910 = vunpack.c.h.b16 %v444
  %v1911 = vunpack.c.l.b16 %v445
  %v1912 = vunpack.c.h.b16 %v445
  %v1913 = vunpack.c.l.b16 %v446
  %v1914 = vunpack.c.h.b16 %v446
  %v1915 = vunpack.c.l.b16 %v447
  %v1916 = vunpack.c.h.b16 %v447
  %v1917 = vunpack.c.l.b16 %v448
  %v1918 = vunpack.c.h.b16 %v448
  %v1919 = vunpack.c.l.b16 %v449
  %v1920 = vunpack.c.h.b16 %v449
  %v1921 = vunpack.c.l.b16 %v450
  %v1922 = vunpack.c.h.b16 %v450
  %v1923 = vunpack.c.l.b16 %v451
  %v1924 = vunpack.c.h.b16 %v451
  %v1925 = vunpack.c.l.b16 %v452
  %v1926 = vunpack.c.h.b16 %v452
  %v1927 = vunpack.c.l.b16 %v453
  %v1928 = vunpack.c.h.b16 %v453
  %v1929 = vunpack.c.l.b16 %v454
  %v1930 = vunpack.c.h.b16 %v454
  %v1931 = vunpack.c.l.b16 %v455
  %v1932 = vunpack.c.h.b16 %v455
  %v1933 = vunpack.c.l.b16 %v456
  %v1934 = vunpack.c.h.b16 %v456
  %v1935 = vunpack.c.l.b16 %v457
  %v1936 = vunpack.c.h.b16 %v457
  %v1937 = vunpack.c.l.b16 %v458
  %v1938 = vunpack.c.h.b16 %v458
  %v1939 = vunpack.c.l.b16 %v459
  %v1940 = vunpack.c.h.b16 %v459
  %v1941 = vunpack.c.l.b16 %v460
  %v1942 = vunpack.c.h.b16 %v460
  %v1943 = vunpack.c.l.b16 %v461
  %v1944 = vunpack.c.h.b16 %v461
  %v1945 = vunpack.c.l.b16 %v462
  %v1946 = vunpack.c.h.b16 %v462
  %v1947 = vunpack.c.l.b16 %v463
  %v1948 = vunpack.c.h.b16 %v463
  %v1949 = vunpack.c.l.b16 %v464
  %v1950 = vunpack.c.h.b16 %v464
  %v1951 = vunpack.c.l.b16 %v465
  %v1952 = vunpack.c.h.b16 %v465
  %v1953 = vunpack.c.l.b16 %v466
  %v1954 = vunpack.c.h.b16 %v466
  %v1955 = vunpack.c.l.b16 %v467
  %v1956 = vunpack.c.h.b16 %v467
  %v1957 = vunpack.c.l.b16 %v468
  %v1958 = vunpack.c.h.b16 %v468
  %v1959 = vunpack.c.l.b16 %v469
  %v1960 = vunpack.c.h.b16 %v469
  %v1961 = vunpack.c.l.b16 %v470
  %v1962 = vunpack.c.h.b16 %v470
  %v1963 = vunpack.c.l.b16 %v471
  %v1964 = vunpack.c.h.b16 %v471
  %v1965 = vunpack.c.l.b16 %v472
  %v1966 = vunpack.c.h.b16 %v472
  %v1967 = vunpack.c.l.b16 %v473
  %v1968 = vunpack.c.h.b16 %v473
  %v1969 = vunpack.c.l.b16 %v474
  %v1970 = vunpack.c.h.b16 %v474
  %v1971 = vunpack.c.l.b16 %v475
  %v1972 = vunpack.c.h.b16 %v475
  %v1973 = vunpack.c.l.b16 %v476
  %v1974 = vunpack.c.h.b16 %v476
  %v1975 = vunpack.c.l.b16 %v477
  %v1976 = vunpack.c.h.b16 %v477
  %v1977 = vunpack.c.l.b16 %v478
  %v1978 = vunpack.c.h.b16 %v478
  %v1979 = vunpack.c.l.b16 %v479
  %v1980 = vunpack.c.h.b16 %v479
  %v1981 = vunpack.c.l.b16 %v480
  %v1982 = vunpack.c.h.b16 %v480
  %v1983 = vunpack.c.l.b16 %v481
  %v1984 = vunpack.c.h.b16 %v481
  %v1985 = vunpack.c.l.b16 %v482
  %v1986 = vunpack.c.h.b16 %v482
  %v1987 = vunpack.c.l.b16 %v483
  %v1988 = vunpack.c.h.b16 %v483
  %v1989 = vunpack.c.l.b16 %v484
  %v1990 = vunpack.c.h.b16 %v484
  %v1991 = vunpack.c.l.b16 %v485
  %v1992 = vunpack.c.h.b16 %v485
  %v1993 = vunpack.c.l.b16 %v486
  %v1994 = vunpack.c.h.b16 %v486
  %v1995 = vunpack.c.l.b16 %v487
  %v1996 = vunpack.c.h.b16 %v487
  %v1997 = vunpack.c.l.b16 %v488
  %v1998 = vunpack.c.h.b16 %v488
  %v1999 = vunpack.c.l.b16 %v489
  %v2000 = vunpack.c.h.b16 %v489
  %v2001 = vunpack.c.l.b16 %v490
  %v2002 = vunpack.c.h.b16 %v490
  %v2003 = vunpack.c.l.b16 %v491
  %v2004 = vunpack.c.h.b16 %v491
  %v2005 = vunpack.c.l.b16 %v492
  %v2006 = vunpack.c.h.b16 %v492
  %v2007 = vunpack.c.l.b16 %v493
  %v2008 = vunpack.c.h.b16 %v493
  %v2009 = vunpack.c.l.b16 %v494
  %v2010 = vunpack.c.h.b16 %v494
  %v2011 = vunpack.c.l.b16 %v495
  %v2012 = vunpack.c.h.b16 %v495
  %v2013 = vunpack.c.l.b16 %v496
  %v2014 = vunpack.c.h.b16 %v496
  %v2015 = vunpack.c.l.b16 %v497
  %v2016 = vunpack.c.h.b16 %v497
  %v2017 = vunpack.c.l.b16 %v498
  %v2018 = vunpack.c.h.b16 %v498
  %v2019 = vunpack.c.l.b16 %v499
  %v2020 = vunpack.c.h.b16 %v499
  %v2021 = vunpack.c.l.b16 %v500
  %v2022 = vunpack.c.h.b16 %v500
  %v2023 = vunpack.c.l.b16 %v501
  %v2024 = vunpack.c.h.b16 %v501
  %v2025 = vunpack.c.l.b16 %v502
  %v2026 = vunpack.c.h.b16 %v502
  %v2027 = vunpack.c.l.b16 %v503
  %v2028 = vunpack.c.h.b16 %v503
  %v2029 = vunpack.c.l.b16 %v504
  %v2030 = vunpack.c.h.b16 %v504
  %v2031 = vunpack.c.l.b16 %v505
  %v2032 = vunpack.c.h.b16 %v505
  %v2033 = vunpack.c.l.b16 %v506
  %v2034 = vunpack.c.h.b16 %v506
  %v2035 = vunpack.c.l.b16 %v507
  %v2036 = vunpack.c.h.b16 %v507
  %v2037 = vunpack.c.l.b16 %v508
  %v2038 = vunpack.c.h.b16 %v508
  %v2039 = vunpack.c.l.b16 %v509
  %v2040 = vunpack.c.h.b16 %v509
  %v2041 = vunpack.c.l.b16 %v510
  %v2042 = vunpack.c.h.b16 %v510
  %v2043 = vunpack.c.l.b16 %v511
  %v2044 = vunpack.c.h.b16 %v511
  %v2045 = vunpack.c.l.b16 %v512
  %v2046 = vunpack.c.h.b16 %v512
  %v2047 = vunpack.c.l.b16 %v513
  %v2048 = vunpack.c.h.b16 %v513
  %v2049 = vunpack.c.l.b16 %v514
  %v2050 = vunpack.c.h.b16 %v514
  %v2051 = vunpack.c.l.b16 %v515
  %v2052 = vunpack.c.h.b16 %v515
  %v2053 = vunpack.c.l.b16 %v516
  %v2054 = vunpack.c.h.b16 %v516
  %v2055 = vunpack.c.l.b16 %v517
  %v2056 = vunpack.c.h.b16 %v517
  %v2057 = vunpack.c.l.b16 %v518
  %v2058 = vunpack.c.h.b16 %v518
  %v2059 = vunpack.c.l.b16 %v519
  %v2060 = vunpack.c.h.b16 %v519
  %v2061 = vunpack.c.l.b16 %v520
  %v2062 = vunpack.c.h.b16 %v520
  %v2063 = vunpack.c.l.b16 %v521
  %v2064 = vunpack.c.h.b16 %v521
  %v2065 = vunpack.c.l.b16 %v522
  %v2066 = vunpack.c.h.b16 %v522
  %v2067 = vunpack.c.l.b16 %v523
  %v2068 = vunpack.c.h.b16 %v523
  %v2069 = vunpack.c.l.b16 %v524
  %v2070 = vunpack.c.h.b16 %v524
  %v2071 = vunpack.c.l.b16 %v525
  %v2072 = vunpack.c.h.b16 %v525
  %v2073 = vunpack.c.l.b16 %v526
  %v2074 = vunpack.c.h.b16 %v526
  %v2075 = vunpack.c.l.b16 %v527
  %v2076 = vunpack.c.h.b16 %v527
  %v2077 = vunpack.c.l.b16 %v528
  %v2078 = vunpack.c.h.b16 %v528
  %v2079 = vunpack.c.l.b16 %v529
  %v2080 = vunpack.c.h.b16 %v529
  %v2081 = vunpack.c.l.b16 %v530
  %v2082 = vunpack.c.h.b16 %v530
  %v2083 = vunpack.c.l.b16 %v531
  %v2084 = vunpack.c.h.b16 %v531
  %v2085 = vunpack.c.l.b16 %v532
  %v2086 = vunpack.c.h.b16 %v532
  %v2087 = vunpack.c.l.b16 %v533
  %v2088 = vunpack.c.h.b16 %v533
  %v2089 = vunpack.c.l.b16 %v534
  %v2090 = vunpack.c.h.b16 %v534
  %v2091 = vunpack.c.l.b16 %v535
  %v2092 = vunpack.c.h.b16 %v535
  %v2093 = vunpack.c.l.b16 %v536
  %v2094 = vunpack.c.h.b16 %v536
  %v2095 = vunpack.c.l.b16 %v537
  %v2096 = vunpack.c.h.b16 %v537
  %v2097 = vunpack.c.l.b16 %v538
  %v2098 = vunpack.c.h.b16 %v538
  %v2099 = vunpack.c.l.b16 %v539
  %v2100 = vunpack.c.h.b16 %v539
  %v2101 = vunpack.c.l.b16 %v540
  %v2102 = vunpack.c.h.b16 %v540
  %v2103 = vunpack.c.l.b16 %v541
  %v2104 = vunpack.c.h.b16 %v541
  %v2105 = vunpack.c.l.b16 %v542
  %v2106 = vunpack.c.h.b16 %v542
  %v2107 = vunpack.c.l.b16 %v543
  %v2108 = vunpack.c.h.b16 %v543
  %v2109 = vunpack.c.l.b16 %v544
  %v2110 = vunpack.c.h.b16 %v544
  %v2111 = vunpack.c.l.b16 %v545
  %v2112 = vunpack.c.h.b16 %v545
  %v2113 = vunpack.c.l.b16 %v546
  %v2114 = vunpack.c.h.b16 %v546
  %v2115 = vunpack.c.l.b16 %v547
  %v2116 = vunpack.c.h.b16 %v547
  %v2117 = vunpack.c.l.b16 %v548
  %v2118 = vunpack.c.h.b16 %v548
  %v2119 = vunpack.c.l.b16 %v549
  %v2120 = vunpack.c.h.b16 %v549
  %v2121 = vunpack.c.l.b16 %v550
  %v2122 = vunpack.c.h.b16 %v550
  %v2123 = vunpack.c.l.b16 %v551
  %v2124 = vunpack.c.h.b16 %v551
  %v2125 = vunpack.c.l.b16 %v552
  %v2126 = vunpack.c.h.b16 %v552
  %v2127 = vunpack.c.l.b16 %v553
  %v2128 = vunpack.c.h.b16 %v553
  %v2129 = vunpack.c.l.b16 %v554
  %v2130 = vunpack.c.h.b16 %v554
  %v2131 = vunpack.c.l.b16 %v555
  %v2132 = vunpack.c.h.b16 %v555
  %v2133 = vunpack.c.l.b16 %v556
  %v2134 = vunpack.c.h.b16 %v556
  %v2135 = vunpack.c.l.b16 %v557
  %v2136 = vunpack.c.h.b16 %v557
  %v2137 = vunpack.c.l.b16 %v558
  %v2138 = vunpack.c.h.b16 %v558
  %v2139 = vunpack.c.l.b16 %v559
  %v2140 = vunpack.c.h.b16 %v559
  %v2141 = vunpack.c.l.b16 %v560
  %v2142 = vunpack.c.h.b16 %v560
  %v2143 = vunpack.c.l.b16 %v561
  %v2144 = vunpack.c.h.b16 %v561
  %v2145 = vunpack.c.l.b16 %v562
  %v2146 = vunpack.c.h.b16 %v562
  %v2147 = vunpack.c.l.b16 %v563
  %v2148 = vunpack.c.h.b16 %v563
  %v2149 = vunpack.c.l.b16 %v564
  %v2150 = vunpack.c.h.b16 %v564
  %v2151 = vunpack.c.l.b16 %v565
  %v2152 = vunpack.c.h.b16 %v565
  %v2153 = vunpack.c.l.b16 %v566
  %v2154 = vunpack.c.h.b16 %v566
  %v2155 = vunpack.c.l.b16 %v567
  %v2156 = vunpack.c.h.b16 %v567
  %v2157 = vunpack.c.l.b16 %v568
  %v2158 = vunpack.c.h.b16 %v568
  %v2159 = vunpack.c.l.b16 %v569
  %v2160 = vunpack.c.h.b16 %v569
  %v2161 = vunpack.c.l.b16 %v570
  %v2162 = vunpack.c.h.b16 %v570
  %v2163 = vpack.c.b16 %v1143, %v1139
  %v2164 = vpack.c.b16 %v1144, %v1140
  %v2165 = vpack.c.b16 %v1145, %v1141
  %v2166 = vpack.c.b16 %v1146, %v1142
  %v2167 = vpack.c.b16 %v1151, %v1147
  %v2168 = vpack.c.b16 %v1152, %v1148
  %v2169 = vpack.c.b16 %v1153, %v1149
  %v2170 = vpack.c.b16 %v1154, %v1150
  %v2171 = vpack.c.b16 %v1159, %v1155
  %v2172 = vpack.c.b16 %v1160, %v1156
  %v2173 = vpack.c.b16 %v1161, %v1157
  %v2174 = vpack.c.b16 %v1162, %v1158
  %v2175 = vpack.c.b16 %v1167, %v1163
  %v2176 = vpack.c.b16 %v1168, %v1164
  %v2177 = vpack.c.b16 %v1169, %v1165
  %v2178 = vpack.c.b16 %v1170, %v1166
  %v2179 = vpack.c.b16 %v1175, %v1171
  %v2180 = vpack.c.b16 %v1176, %v1172
  %v2181 = vpack.c.b16 %v1177, %v1173
  %v2182 = vpack.c.b16 %v1178, %v1174
  %v2183 = vpack.c.b16 %v1183, %v1179
  %v2184 = vpack.c.b16 %v1184, %v1180
  %v2185 = vpack.c.b16 %v1185, %v1181
  %v2186 = vpack.c.b16 %v1186, %v1182
  %v2187 = vpack.c.b16 %v1191, %v1187
  %v2188 = vpack.c.b16 %v1192, %v1188
  %v2189 = vpack.c.b16 %v1193, %v1189
  %v2190 = vpack.c.b16 %v1194, %v1190
  %v2191 = vpack.c.b16 %v1199, %v1195
  %v2192 = vpack.c.b16 %v1200, %v1196
  %v2193 = vpack.c.b16 %v1201, %v1197
  %v2194 = vpack.c.b16 %v1202, %v1198
  %v2195 = vpack.c.b16 %v1207, %v1203
  %v2196 = vpack.c.b16 %v1208, %v1204
  %v2197 = vpack.c.b16 %v1209, %v1205
  %v2198 = vpack.c.b16 %v1210, %v1206
  %v2199 = vpack.c.b16 %v1215, %v1211
  %v2200 = vpack.c.b16 %v1216, %v1212
  %v2201 = vpack.c.b16 %v1217, %v1213
  %v2202 = vpack.c.b16 %v1218, %v1214
  %v2203 = vpack.c.b16 %v1223, %v1219
  %v2204 = vpack.c.b16 %v1224, %v1220
  %v2205 = vpack.c.b16 %v1225, %v1221
  %v2206 = vpack.c.b16 %v1226, %v1222
  %v2207 = vpack.c.b16 %v1231, %v1227
  %v2208 = vpack.c.b16 %v1232, %v1228
  %v2209 = vpack.c.b16 %v1233, %v1229
  %v2210 = vpack.c.b16 %v1234, %v1230
  %v2211 = vpack.c.b16 %v1239, %v1235
  %v2212 = vpack.c.b16 %v1240, %v1236
  %v2213 = vpack.c.b16 %v1241, %v1237
  %v2214 = vpack.c.b16 %v1242, %v1238
  %v2215 = vpack.c.b16 %v1247, %v1243
  %v2216 = vpack.c.b16 %v1248, %v1244
  %v2217 = vpack.c.b16 %v1249, %v1245
  %v2218 = vpack.c.b16 %v1250, %v1246
  %v2219 = vpack.c.b16 %v1255, %v1251
  %v2220 = vpack.c.b16 %v1256, %v1252
  %v2221 = vpack.c.b16 %v1257, %v1253
  %v2222 = vpack.c.b16 %v1258, %v1254
  %v2223 = vpack.c.b16 %v1263, %v1259
  %v2224 = vpack.c.b16 %v1264, %v1260
  %v2225 = vpack.c.b16 %v1265, %v1261
  %v2226 = vpack.c.b16 %v1266, %v1262
  %v2227 = vpack.c.b16 %v1271, %v1267
  %v2228 = vpack.c.b16 %v1272, %v1268
  %v2229 = vpack.c.b16 %v1273, %v1269
  %v2230 = vpack.c.b16 %v1274, %v1270
  %v2231 = vpack.c.b16 %v1279, %v1275
  %v2232 = vpack.c.b16 %v1280, %v1276
  %v2233 = vpack.c.b16 %v1281, %v1277
  %v2234 = vpack.c.b16 %v1282, %v1278
  %v2235 = vpack.c.b16 %v1287, %v1283
  %v2236 = vpack.c.b16 %v1288, %v1284
  %v2237 = vpack.c.b16 %v1289, %v1285
  %v2238 = vpack.c.b16 %v1290, %v1286
  %v2239 = vpack.c.b16 %v1295, %v1291
  %v2240 = vpack.c.b16 %v1296, %v1292
  %v2241 = vpack.c.b16 %v1297, %v1293
  %v2242 = vpack.c.b16 %v1298, %v1294
  %v2243 = vpack.c.b16 %v1303, %v1299
  %v2244 = vpack.c.b16 %v1304, %v1300
  %v2245 = vpack.c.b16 %v1305, %v1301
  %v2246 = vpack.c.b16 %v1306, %v1302
  %v2247 = vpack.c.b16 %v1311, %v1307
  %v2248 = vpack.c.b16 %v1312, %v1308
  %v2249 = vpack.c.b16 %v1313, %v1309
  %v2250 = vpack.c.b16 %v1314, %v1310
  %v2251 = vpack.c.b16 %v1319, %v1315
  %v2252 = vpack.c.b16 %v1320, %v1316
  %v2253 = vpack.c.b16 %v1321, %v1317
  %v2254 = vpack.c.b16 %v1322, %v1318
  %v2255 = vpack.c.b16 %v1327, %v1323
  %v2256 = vpack.c.b16 %v1328, %v1324
  %v2257 = vpack.c.b16 %v1329, %v1325
  %v2258 = vpack.c.b16 %v1330, %v1326
  %v2259 = vpack.c.b16 %v1335, %v1331
  %v2260 = vpack.c.b16 %v1336, %v1332
  %v2261 = vpack.c.b16 %v1337, %v1333
  %v2262 = vpack.c.b16 %v1338, %v1334
  %v2263 = vpack.c.b16 %v1343, %v1339
  %v2264 = vpack.c.b16 %v1344, %v1340
  %v2265 = vpack.c.b16 %v1345, %v1341
  %v2266 = vpack.c.b16 %v1346, %v1342
  %v2267 = vpack.c.b16 %v1351, %v1347
  %v2268 = vpack.c.b16 %v1352, %v1348
  %v2269 = vpack.c.b16 %v1353, %v1349
  %v2270 = vpack.c.b16 %v1354, %v1350
  %v2271 = vpack.c.b16 %v1359, %v1355
  %v2272 = vpack.c.b16 %v1360, %v1356
  %v2273 = vpack.c.b16 %v1361, %v1357
  %v2274 = vpack.c.b16 %v1362, %v1358
  %v2275 = vpack.c.b16 %v1367, %v1363
  %v2276 = vpack.c.b16 %v1368, %v1364
  %v2277 = vpack.c.b16 %v1369, %v1365
  %v2278 = vpack.c.b16 %v1370, %v1366
  %v2279 = vpack.c.b16 %v1375, %v1371
  %v2280 = vpack.c.b16 %v1376, %v1372
  %v2281 = vpack.c.b16 %v1377, %v1373
  %v2282 = vpack.c.b16 %v1378, %v1374
  %v2283 = vpack.c.b16 %v1383, %v1379
  %v2284 = vpack.c.b16 %v1384, %v1380
  %v2285 = vpack.c.b16 %v1385, %v1381
  %v2286 = vpack.c.b16 %v1386, %v1382
  %v2287 = vpack.c.b16 %v1391, %v1387
  %v2288 = vpack.c.b16 %v1392, %v1388
  %v2289 = vpack.c.b16 %v1393, %v1389
  %v2290 = vpack.c.b16 %v1394, %v1390
  %v2291 = vpack.c.b16 %v1399, %v1395
  %v2292 = vpack.c.b16 %v1400, %v1396
  %v2293 = vpack.c.b16 %v1401, %v1397
  %v2294 = vpack.c.b16 %v1402, %v1398
  %v2295 = vpack.c.b16 %v1407, %v1403
  %v2296 = vpack.c.b16 %v1408, %v1404
  %v2297 = vpack.c.b16 %v1409, %v1405
  %v2298 = vpack.c.b16 %v1410, %v1406
  %v2299 = vpack.c.b16 %v1415, %v1411
  %v2300 = vpack.c.b16 %v1416, %v1412
  %v2301 = vpack.c.b16 %v1417, %v1413
  %v2302 = vpack.c.b16 %v1418, %v1414
  %v2303 = vpack.c.b16 %v1423, %v1419
  %v2304 = vpack.c.b16 %v1424, %v1420
  %v2305 = vpack.c.b16 %v1425, %v1421
  %v2306 = vpack.c.b16 %v1426, %v1422
  %v2307 = vpack.c.b16 %v1431, %v1427
  %v2308 = vpack.c.b16 %v1432, %v1428
  %v2309 = vpack.c.b16 %v1433, %v1429
  %v2310 = vpack.c.b16 %v1434, %v1430
  %v2311 = vpack.c.b16 %v1439, %v1435
  %v2312 = vpack.c.b16 %v1440, %v1436
  %v2313 = vpack.c.b16 %v1441, %v1437
  %v2314 = vpack.c.b16 %v1442, %v1438
  %v2315 = vpack.c.b16 %v1447, %v1443
  %v2316 = vpack.c.b16 %v1448, %v1444
  %v2317 = vpack.c.b16 %v1449, %v1445
  %v2318 = vpack.c.b16 %v1450, %v1446
  %v2319 = vpack.c.b16 %v1455, %v1451
  %v2320 = vpack.c.b16 %v1456, %v1452
  %v2321 = vpack.c.b16 %v1457, %v1453
  %v2322 = vpack.c.b16 %v1458, %v1454
  %v2323 = vpack.c.b16 %v1463, %v1459
  %v2324 = vpack.c.b16 %v1464, %v1460
  %v2325 = vpack.c.b16 %v1465, %v1461
  %v2326 = vpack.c.b16 %v1466, %v1462
  %v2327 = vpack.c.b16 %v1471, %v1467
  %v2328 = vpack.c.b16 %v1472, %v1468
  %v2329 = vpack.c.b16 %v1473, %v1469
  %v2330 = vpack.c.b16 %v1474, %v1470
  %v2331 = vpack.c.b16 %v1479, %v1475
  %v2332 = vpack.c.b16 %v1480, %v1476
  %v2333 = vpack.c.b16 %v1481, %v1477
  %v2334 = vpack.c.b16 %v1482, %v1478
  %v2335 = vpack.c.b16 %v1487, %v1483
  %v2336 = vpack.c.b16 %v1488, %v1484
  %v2337 = vpack.c.b16 %v1489, %v1485
  %v2338 = vpack.c.b16 %v1490, %v1486
  %v2339 = vpack.c.b16 %v1495, %v1491
  %v2340 = vpack.c.b16 %v1496, %v1492
  %v2341 = vpack.c.b16 %v1497, %v1493
  %v2342 = vpack.c.b16 %v1498, %v1494
  %v2343 = vpack.c.b16 %v1503, %v1499
  %v2344 = vpack.c.b16 %v1504, %v1500
  %v2345 = vpack.c.b16 %v1505, %v1501
  %v2346 = vpack.c.b16 %v1506, %v1502
  %v2347 = vpack.c.b16 %v1511, %v1507
  %v2348 = vpack.c.b16 %v1512, %v1508
  %v2349 = vpack.c.b16 %v1513, %v1509
  %v2350 = vpack.c.b16 %v1514, %v1510
  %v2351 = vpack.c.b16 %v1519, %v1515
  %v2352 = vpack.c.b16 %v1520, %v1516
  %v2353 = vpack.c.b16 %v1521, %v1517
  %v2354 = vpack.c.b16 %v1522, %v1518
  %v2355 = vpack.c.b16 %v1527, %v1523
  %v2356 = vpack.c.b16 %v1528, %v1524
  %v2357 = vpack.c.b16 %v1529, %v1525
  %v2358 = vpack.c.b16 %v1530, %v1526
  %v2359 = vpack.c.b16 %v1535, %v1531
  %v2360 = vpack.c.b16 %v1536, %v1532
  %v2361 = vpack.c.b16 %v1537, %v1533
  %v2362 = vpack.c.b16 %v1538, %v1534
  %v2363 = vpack.c.b16 %v1543, %v1539
  %v2364 = vpack.c.b16 %v1544, %v1540
  %v2365 = vpack.c.b16 %v1545, %v1541
  %v2366 = vpack.c.b16 %v1546, %v1542
  %v2367 = vpack.c.b16 %v1551, %v1547
  %v2368 = vpack.c.b16 %v1552, %v1548
  %v2369 = vpack.c.b16 %v1553, %v1549
  %v2370 = vpack.c.b16 %v1554, %v1550
  %v2371 = vpack.c.b16 %v1559, %v1555
  %v2372 = vpack.c.b16 %v1560, %v1556
  %v2373 = vpack.c.b16 %v1561, %v1557
  %v2374 = vpack.c.b16 %v1562, %v1558
  %v2375 = vpack.c.b16 %v1567, %v1563
  %v2376 = vpack.c.b16 %v1568, %v1564
  %v2377 = vpack.c.b16 %v1569, %v1565
  %v2378 = vpack.c.b16 %v1570, %v1566
  %v2379 = vpack.c.b16 %v1575, %v1571
  %v2380 = vpack.c.b16 %v1576, %v1572
  %v2381 = vpack.c.b16 %v1577, %v1573
  %v2382 = vpack.c.b16 %v1578, %v1574
  %v2383 = vpack.c.b16 %v1583, %v1579
  %v2384 = vpack.c.b16 %v1584, %v1580
  %v2385 = vpack.c.b16 %v1585, %v1581
  %v2386 = vpack.c.b16 %v1586, %v1582
  %v2387 = vpack.c.b16 %v1591, %v1587
  %v2388 = vpack.c.b16 %v1592, %v1588
  %v2389 = vpack.c.b16 %v1593, %v1589
  %v2390 = vpack.c.b16 %v1594, %v1590
  %v2391 = vpack.c.b16 %v1599, %v1595
  %v2392 = vpack.c.b16 %v1600, %v1596
  %v2393 = vpack.c.b16 %v1601, %v1597
  %v2394 = vpack.c.b16 %v1602, %v1598
  %v2395 = vpack.c.b16 %v1607, %v1603
  %v2396 = vpack.c.b16 %v1608, %v1604
  %v2397 = vpack.c.b16 %v1609, %v1605
  %v2398 = vpack.c.b16 %v1610, %v1606
  %v2399 = vpack.c.b16 %v1615, %v1611
  %v2400 = vpack.c.b16 %v1616, %v1612
  %v2401 = vpack.c.b16 %v1617, %v1613
  %v2402 = vpack.c.b16 %v1618, %v1614
  %v2403 = vpack.c.b16 %v1623, %v1619
  %v2404 = vpack.c.b16 %v1624, %v1620
  %v2405 = vpack.c.b16 %v1625, %v1621
  %v2406 = vpack.c.b16 %v1626, %v1622
  %v2407 = vpack.c.b16 %v1631, %v1627
  %v2408 = vpack.c.b16 %v1632, %v1628
  %v2409 = vpack.c.b16 %v1633, %v1629
  %v2410 = vpack.c.b16 %v1634, %v1630
  %v2411 = vpack.c.b16 %v1639, %v1635
  %v2412 = vpack.c.b16 %v1640, %v1636
  %v2413 = vpack.c.b16 %v1641, %v1637
  %v2414 = vpack.c.b16 %v1642, %v1638
  %v2415 = vpack.c.b16 %v1647, %v1643
  %v2416 = vpack.c.b16 %v1648, %v1644
  %v2417 = vpack.c.b16 %v1649, %v1645
  %v2418 = vpack.c.b16 %v1650, %v1646
  %v2419 = vpack.c.b16 %v1655, %v1651
  %v2420 = vpack.c.b16 %v1656, %v1652
  %v2421 = vpack.c.b16 %v1657, %v1653
  %v2422 = vpack.c.b16 %v1658, %v1654
  %v2423 = vpack.c.b16 %v1663, %v1659
  %v2424 = vpack.c.b16 %v1664, %v1660
  %v2425 = vpack.c.b16 %v1665, %v1661
  %v2426 = vpack.c.b16 %v1666, %v1662
  %v2427 = vpack.c.b16 %v1671, %v1667
  %v2428 = vpack.c.b16 %v1672, %v1668
  %v2429 = vpack.c.b16 %v1673, %v1669
  %v2430 = vpack.c.b16 %v1674, %v1670
  %v2431 = vpack.c.b16 %v1679, %v1675
  %v2432 = vpack.c.b16 %v1680, %v1676
  %v2433 = vpack.c.b16 %v1681, %v1677
  %v2434 = vpack.c.b16 %v1682, %v1678
  %v2435 = vpack.c.b16 %v1687, %v1683
  %v2436 = vpack.c.b16 %v1688, %v1684
  %v2437 = vpack.c.b16 %v1689, %v1685
  %v2438 = vpack.c.b16 %v1690, %v1686
  %v2439 = vpack.c.b16 %v1695, %v1691
  %v2440 = vpack.c.b16 %v1696, %v1692
  %v2441 = vpack.c.b16 %v1697, %v1693
  %v2442 = vpack.c.b16 %v1698, %v1694
  %v2443 = vpack.c.b16 %v1703, %v1699
  %v2444 = vpack.c.b16 %v1704, %v1700
  %v2445 = vpack.c.b16 %v1705, %v1701
  %v2446 = vpack.c.b16 %v1706, %v1702
  %v2447 = vpack.c.b16 %v1711, %v1707
  %v2448 = vpack.c.b16 %v1712, %v1708
  %v2449 = vpack.c.b16 %v1713, %v1709
  %v2450 = vpack.c.b16 %v1714, %v1710
  %v2451 = vpack.c.b16 %v1719, %v1715
  %v2452 = vpack.c.b16 %v1720, %v1716
  %v2453 = vpack.c.b16 %v1721, %v1717
  %v2454 = vpack.c.b16 %v1722, %v1718
  %v2455 = vpack.c.b16 %v1727, %v1723
  %v2456 = vpack.c.b16 %v1728, %v1724
  %v2457 = vpack.c.b16 %v1729, %v1725
  %v2458 = vpack.c.b16 %v1730, %v1726
  %v2459 = vpack.c.b16 %v1735, %v1731
  %v2460 = vpack.c.b16 %v1736, %v1732
  %v2461 = vpack.c.b16 %v1737, %v1733
  %v2462 = vpack.c.b16 %v1738, %v1734
  %v2463 = vpack.c.b16 %v1743, %v1739
  %v2464 = vpack.c.b16 %v1744, %v1740
  %v2465 = vpack.c.b16 %v1745, %v1741
  %v2466 = vpack.c.b16 %v1746, %v1742
  %v2467 = vpack.c.b16 %v1751, %v1747
  %v2468 = vpack.c.b16 %v1752, %v1748
  %v2469 = vpack.c.b16 %v1753, %v1749
  %v2470 = vpack.c.b16 %v1754, %v1750
  %v2471 = vpack.c.b16 %v1759, %v1755
  %v2472 = vpack.c.b16 %v1760, %v1756
  %v2473 = vpack.c.b16 %v1761, %v1757
  %v2474 = vpack.c.b16 %v1762, %v1758
  %v2475 = vpack.c.b16 %v1767, %v1763
  %v2476 = vpack.c.b16 %v1768, %v1764
  %v2477 = vpack.c.b16 %v1769, %v1765
  %v2478 = vpack.c.b16 %v1770, %v1766
  %v2479 = vpack.c.b16 %v1775, %v1771
  %v2480 = vpack.c.b16 %v1776, %v1772
  %v2481 = vpack.c.b16 %v1777, %v1773
  %v2482 = vpack.c.b16 %v1778, %v1774
  %v2483 = vpack.c.b16 %v1783, %v1779
  %v2484 = vpack.c.b16 %v1784, %v1780
  %v2485 = vpack.c.b16 %v1785, %v1781
  %v2486 = vpack.c.b16 %v1786, %v1782
  %v2487 = vpack.c.b16 %v1791, %v1787
  %v2488 = vpack.c.b16 %v1792, %v1788
  %v2489 = vpack.c.b16 %v1793, %v1789
  %v2490 = vpack.c.b16 %v1794, %v1790
  %v2491 = vpack.c.b16 %v1799, %v1795
  %v2492 = vpack.c.b16 %v1800, %v1796
  %v2493 = vpack.c.b16 %v1801, %v1797
  %v2494 = vpack.c.b16 %v1802, %v1798
  %v2495 = vpack.c.b16 %v1807, %v1803
  %v2496 = vpack.c.b16 %v1808, %v1804
  %v2497 = vpack.c.b16 %v1809, %v1805
  %v2498 = vpack.c.b16 %v1810, %v1806
  %v2499 = vpack.c.b16 %v1815, %v1811
  %v2500 = vpack.c.b16 %v1816, %v1812
  %v2501 = vpack.c.b16 %v1817, %v1813
  %v2502 = vpack.c.b16 %v1818, %v1814
  %v2503 = vpack.c.b16 %v1823, %v1819
  %v2504 = vpack.c.b16 %v1824, %v1820
  %v2505 = vpack.c.b16 %v1825, %v1821
  %v2506 = vpack.c.b16 %v1826, %v1822
  %v2507 = vpack.c.b16 %v1831, %v1827
  %v2508 = vpack.c.b16 %v1832, %v1828
  %v2509 = vpack.c.b16 %v1833, %v1829
  %v2510 = vpack.c.b16 %v1834, %v1830
  %v2511 = vpack.c.b16 %v1839, %v1835
  %v2512 = vpack.c.b16 %v1840, %v1836
  %v2513 = vpack.c.b16 %v1841, %v1837
  %v2514 = vpack.c.b16 %v1842, %v1838
  %v2515 = vpack.c.b16 %v1847, %v1843
  %v2516 = vpack.c.b16 %v1848, %v1844
  %v2517 = vpack.c.b16 %v1849, %v1845
  %v2518 = vpack.c.b16 %v1850, %v1846
  %v2519 = vpack.c.b16 %v1855, %v1851
  %v2520 = vpack.c.b16 %v1856, %v1852
  %v2521 = vpack.c.b16 %v1857, %v1853
  %v2522 = vpack.c.b16 %v1858, %v1854
  %v2523 = vpack.c.b16 %v1863, %v1859
  %v2524 = vpack.c.b16 %v1864, %v1860
  %v2525 = vpack.c.b16 %v1865, %v1861
  %v2526 = vpack.c.b16 %v1866, %v1862
  %v2527 = vpack.c.b16 %v1871, %v1867
  %v2528 = vpack.c.b16 %v1872, %v1868
  %v2529 = vpack.c.b16 %v1873, %v1869
  %v2530 = vpack.c.b16 %v1874, %v1870
  %v2531 = vpack.c.b16 %v1879, %v1875
  %v2532 = vpack.c.b16 %v1880, %v1876
  %v2533 = vpack.c.b16 %v1881, %v1877
  %v2534 = vpack.c.b16 %v1882, %v1878
  %v2535 = vpack.c.b16 %v1887, %v1883
  %v2536 = vpack.c.b16 %v1888, %v1884
  %v2537 = vpack.c.b16 %v1889, %v1885
  %v2538 = vpack.c.b16 %v1890, %v1886
  %v2539 = vpack.c.b16 %v1895, %v1891
  %v2540 = vpack.c.b16 %v1896, %v1892
  %v2541 = vpack.c.b16 %v1897, %v1893
  %v2542 = vpack.c.b16 %v1898, %v1894
  %v2543 = vpack.c.b16 %v1903, %v1899
  %v2544 = vpack.c.b16 %v1904, %v1900
  %v2545 = vpack.c.b16 %v1905, %v1901
  %v2546 = vpack.c.b16 %v1906, %v1902
  %v2547 = vpack.c.b16 %v1911, %v1907
  %v2548 = vpack.c.b16 %v1912, %v1908
  %v2549 = vpack.c.b16 %v1913, %v1909
  %v2550 = vpack.c.b16 %v1914, %v1910
  %v2551 = vpack.c.b16 %v1919, %v1915
  %v2552 = vpack.c.b16 %v1920, %v1916
  %v2553 = vpack.c.b16 %v1921, %v1917
  %v2554 = vpack.c.b16 %v1922, %v1918
  %v2555 = vpack.c.b16 %v1927, %v1923
  %v2556 = vpack.c.b16 %v1928, %v1924
  %v2557 = vpack.c.b16 %v1929, %v1925
  %v2558 = vpack.c.b16 %v1930, %v1926
  %v2559 = vpack.c.b16 %v1935, %v1931
  %v2560 = vpack.c.b16 %v1936, %v1932
  %v2561 = vpack.c.b16 %v1937, %v1933
  %v2562 = vpack.c.b16 %v1938, %v1934
  %v2563 = vpack.c.b16 %v1943, %v1939
  %v2564 = vpack.c.b16 %v1944, %v1940
  %v2565 = vpack.c.b16 %v1945, %v1941
  %v2566 = vpack.c.b16 %v1946, %v1942
  %v2567 = vpack.c.b16 %v1951, %v1947
  %v2568 = vpack.c.b16 %v1952, %v1948
  %v2569 = vpack.c.b16 %v1953, %v1949
  %v2570 = vpack.c.b16 %v1954, %v1950
  %v2571 = vpack.c.b16 %v1959, %v1955
  %v2572 = vpack.c.b16 %v1960, %v1956
  %v2573 = vpack.c.b16 %v1961, %v1957
  %v2574 = vpack.c.b16 %v1962, %v1958
  %v2575 = vpack.c.b16 %v1967, %v1963
  %v2576 = vpack.c.b16 %v1968, %v1964
  %v2577 = vpack.c.b16 %v1969, %v1965
  %v2578 = vpack.c.b16 %v1970, %v1966
  %v2579 = vpack.c.b16 %v1975, %v1971
  %v2580 = vpack.c.b16 %v1976, %v1972
  %v2581 = vpack.c.b16 %v1977, %v1973
  %v2582 = vpack.c.b16 %v1978, %v1974
  %v2583 = vpack.c.b16 %v1983, %v1979
  %v2584 = vpack.c.b16 %v1984, %v1980
  %v2585 = vpack.c.b16 %v1985, %v1981
  %v2586 = vpack.c.b16 %v1986, %v1982
  %v2587 = vpack.c.b16 %v1991, %v1987
  %v2588 = vpack.c.b16 %v1992, %v1988
  %v2589 = vpack.c.b16 %v1993, %v1989
  %v2590 = vpack.c.b16 %v1994, %v1990
  %v2591 = vpack.c.b16 %v1999, %v1995
  %v2592 = vpack.c.b16 %v2000, %v1996
  %v2593 = vpack.c.b16 %v2001, %v1997
  %v2594 = vpack.c.b16 %v2002, %v1998
  %v2595 = vpack.c.b16 %v2007, %v2003
  %v2596 = vpack.c.b16 %v2008, %v2004
  %v2597 = vpack.c.b16 %v2009, %v2005
  %v2598 = vpack.c.b16 %v2010, %v2006
  %v2599 = vpack.c.b16 %v2015, %v2011
  %v2600 = vpack.c.b16 %v2016, %v2012
  %v2601 = vpack.c.b16 %v2017, %v2013
  %v2602 = vpack.c.b16 %v2018, %v2014
  %v2603 = vpack.c.b16 %v2023, %v2019
  %v2604 = vpack.c.b16 %v2024, %v2020
  %v2605 = vpack.c.b16 %v2025, %v2021
  %v2606 = vpack.c.b16 %v2026, %v2022
  %v2607 = vpack.c.b16 %v2031, %v2027
  %v2608 = vpack.c.b16 %v2032, %v2028
  %v2609 = vpack.c.b16 %v2033, %v2029
  %v2610 = vpack.c.b16 %v2034, %v2030
  %v2611 = vpack.c.b16 %v2039, %v2035
  %v2612 = vpack.c.b16 %v2040, %v2036
  %v2613 = vpack.c.b16 %v2041, %v2037
  %v2614 = vpack.c.b16 %v2042, %v2038
  %v2615 = vpack.c.b16 %v2047, %v2043
  %v2616 = vpack.c.b16 %v2048, %v2044
  %v2617 = vpack.c.b16 %v2049, %v2045
  %v2618 = vpack.c.b16 %v2050, %v2046
  %v2619 = vpack.c.b16 %v2055, %v2051
  %v2620 = vpack.c.b16 %v2056, %v2052
  %v2621 = vpack.c.b16 %v2057, %v2053
  %v2622 = vpack.c.b16 %v2058, %v2054
  %v2623 = vpack.c.b16 %v2063, %v2059
  %v2624 = vpack.c.b16 %v2064, %v2060
  %v2625 = vpack.c.b16 %v2065, %v2061
  %v2626 = vpack.c.b16 %v2066, %v2062
  %v2627 = vpack.c.b16 %v2071, %v2067
  %v2628 = vpack.c.b16 %v2072, %v2068
  %v2629 = vpack.c.b16 %v2073, %v2069
  %v2630 = vpack.c.b16 %v2074, %v2070
  %v2631 = vpack.c.b16 %v2079, %v2075
  %v2632 = vpack.c.b16 %v2080, %v2076
  %v2633 = vpack.c.b16 %v2081, %v2077
  %v2634 = vpack.c.b16 %v2082, %v2078
  %v2635 = vpack.c.b16 %v2087, %v2083
  %v2636 = vpack.c.b16 %v2088, %v2084
  %v2637 = vpack.c.b16 %v2089, %v2085
  %v2638 = vpack.c.b16 %v2090, %v2086
  %v2639 = vpack.c.b16 %v2095, %v2091
  %v2640 = vpack.c.b16 %v2096, %v2092
  %v2641 = vpack.c.b16 %v2097, %v2093
  %v2642 = vpack.c.b16 %v2098, %v2094
  %v2643 = vpack.c.b16 %v2103, %v2099
  %v2644 = vpack.c.b16 %v2104, %v2100
  %v2645 = vpack.c.b16 %v2105, %v2101
  %v2646 = vpack.c.b16 %v2106, %v2102
  %v2647 = vpack.c.b16 %v2111, %v2107
  %v2648 = vpack.c.b16 %v2112, %v2108
  %v2649 = vpack.c.b16 %v2113, %v2109
  %v2650 = vpack.c.b16 %v2114, %v2110
  %v2651 = vpack.c.b16 %v2119, %v2115
  %v2652 = vpack.c.b16 %v2120, %v2116
  %v2653 = vpack.c.b16 %v2121, %v2117
  %v2654 = vpack.c.b16 %v2122, %v2118
  %v2655 = vpack.c.b16 %v2127, %v2123
  %v2656 = vpack.c.b16 %v2128, %v2124
  %v2657 = vpack.c.b16 %v2129, %v2125
  %v2658 = vpack.c.b16 %v2130, %v2126
  %v2659 = vpack.c.b16 %v2135, %v2131
  %v2660 = vpack.c.b16 %v2136, %v2132
  %v2661 = vpack.c.b16 %v2137, %v2133
  %v2662 = vpack.c.b16 %v2138, %v2134
  %v2663 = vpack.c.b16 %v2143, %v2139
  %v2664 = vpack.c.b16 %v2144, %v2140
  %v2665 = vpack.c.b16 %v2145, %v2141
  %v2666 = vpack.c.b16 %v2146, %v2142
  %v2667 = vpack.c.b16 %v2151, %v2147
  %v2668 = vpack.c.b16 %v2152, %v2148
  %v2669 = vpack.c.b16 %v2153, %v2149
  %v2670 = vpack.c.b16 %v2154, %v2150
  %v2671 = vpack.c.b16 %v2159, %v2155
  %v2672 = vpack.c.b16 %v2160, %v2156
  %v2673 = vpack.c.b16 %v2161, %v2157
  %v2674 = vpack.c.b16 %v2162, %v2158
  %3187 = vmatprep.subr.bf16.mxu0 %v2164
  %3188 = vmatpush1.bf16.msra.mxu0 %v2163
  %3189 = vmatprep.subr.bf16.mxu0 %v2168
  %3190 = vmatpush1.bf16.msra.mxu0 %v2167
  %3191 = vmatprep.subr.bf16.mxu0 %v2172
  %3192 = vmatpush1.bf16.msra.mxu0 %v2171
  %3193 = vmatprep.subr.bf16.mxu0 %v2176
  %3194 = vmatpush1.bf16.msra.mxu0 %v2175
  %3195 = vmatprep.subr.bf16.mxu0 %v2180
  %3196 = vmatpush1.bf16.msra.mxu0 %v2179
  %3197 = vmatprep.subr.bf16.mxu0 %v2184
  %3198 = vmatpush1.bf16.msra.mxu0 %v2183
  %3199 = vmatprep.subr.bf16.mxu0 %v2188
  %3200 = vmatpush1.bf16.msra.mxu0 %v2187
  %3201 = vmatprep.subr.bf16.mxu0 %v2192
  %3202 = vmatpush1.bf16.msra.mxu0 %v2191
  %3203 = vmatprep.subr.bf16.mxu0 %v2196
  %3204 = vmatpush1.bf16.msra.mxu0 %v2195
  %3205 = vmatprep.subr.bf16.mxu0 %v2200
  %3206 = vmatpush1.bf16.msra.mxu0 %v2199
  %3207 = vmatprep.subr.bf16.mxu0 %v2204
  %3208 = vmatpush1.bf16.msra.mxu0 %v2203
  %3209 = vmatprep.subr.bf16.mxu0 %v2208
  %3210 = vmatpush1.bf16.msra.mxu0 %v2207
  %3211 = vmatprep.subr.bf16.mxu0 %v2212
  %3212 = vmatpush1.bf16.msra.mxu0 %v2211
  %3213 = vmatprep.subr.bf16.mxu0 %v2216
  %3214 = vmatpush1.bf16.msra.mxu0 %v2215
  %3215 = vmatprep.subr.bf16.mxu0 %v2220
  %3216 = vmatpush1.bf16.msra.mxu0 %v2219
  %3217 = vmatprep.subr.bf16.mxu0 %v2224
  %3218 = vmatpush1.bf16.msra.mxu0 %v2223
  %3219 = vmatprep.mubr.bf16.mxu0 %v596
  %3220 = vmatmul.mubr.bf16.gmra.mrb[0].mxu0 %v595
  %v3221 = vpop.f32.mrb[0].mxu0
  %v3222 = vadd.f32 0.0, %v3221
  %v3223 = vpop.f32.mrb[0].mxu0
  %v3224 = vadd.f32 0.0, %v3223
  %v3225 = vpop.f32.mrb[0].mxu0
  %v3226 = vpop.f32.mrb[0].mxu0
  %3227 = vdwg.mxu0
  %3228 = vmatprep.subr.bf16.mxu0 %v2228
  %3229 = vmatpush1.bf16.msra.mxu0 %v2227
  %3230 = vmatprep.subr.bf16.mxu0 %v2232
  %3231 = vmatpush1.bf16.msra.mxu0 %v2231
  %3232 = vmatprep.subr.bf16.mxu0 %v2236
  %3233 = vmatpush1.bf16.msra.mxu0 %v2235
  %3234 = vmatprep.subr.bf16.mxu0 %v2240
  %3235 = vmatpush1.bf16.msra.mxu0 %v2239
  %3236 = vmatprep.subr.bf16.mxu0 %v2244
  %3237 = vmatpush1.bf16.msra.mxu0 %v2243
  %3238 = vmatprep.subr.bf16.mxu0 %v2248
  %3239 = vmatpush1.bf16.msra.mxu0 %v2247
  %3240 = vmatprep.subr.bf16.mxu0 %v2252
  %3241 = vmatpush1.bf16.msra.mxu0 %v2251
  %3242 = vmatprep.subr.bf16.mxu0 %v2256
  %3243 = vmatpush1.bf16.msra.mxu0 %v2255
  %3244 = vmatprep.subr.bf16.mxu0 %v2260
  %3245 = vmatpush1.bf16.msra.mxu0 %v2259
  %3246 = vmatprep.subr.bf16.mxu0 %v2264
  %3247 = vmatpush1.bf16.msra.mxu0 %v2263
  %3248 = vmatprep.subr.bf16.mxu0 %v2268
  %3249 = vmatpush1.bf16.msra.mxu0 %v2267
  %3250 = vmatprep.subr.bf16.mxu0 %v2272
  %3251 = vmatpush1.bf16.msra.mxu0 %v2271
  %3252 = vmatprep.subr.bf16.mxu0 %v2276
  %3253 = vmatpush1.bf16.msra.mxu0 %v2275
  %3254 = vmatprep.subr.bf16.mxu0 %v2280
  %3255 = vmatpush1.bf16.msra.mxu0 %v2279
  %3256 = vmatprep.subr.bf16.mxu0 %v2284
  %3257 = vmatpush1.bf16.msra.mxu0 %v2283
  %3258 = vmatprep.subr.bf16.mxu0 %v2288
  %3259 = vmatpush1.bf16.msra.mxu0 %v2287
  %3260 = vmatprep.mubr.bf16.mxu0 %v598
  %3261 = vmatmul.mubr.bf16.gmra.mrb[0].mxu0 %v597
  %v3262 = vpop.f32.mrb[0].mxu0
  %v3263 = vadd.f32 %v3222, %v3262
  %v3264 = vpop.f32.mrb[0].mxu0
  %v3265 = vadd.f32 %v3224, %v3264
  %v3266 = vpop.f32.mrb[0].mxu0
  %v3267 = vpop.f32.mrb[0].mxu0
  %3268 = vdwg.mxu0
  %3269 = vmatprep.subr.bf16.mxu0 %v2292
  %3270 = vmatpush1.bf16.msra.mxu0 %v2291
  %3271 = vmatprep.subr.bf16.mxu0 %v2296
  %3272 = vmatpush1.bf16.msra.mxu0 %v2295
  %3273 = vmatprep.subr.bf16.mxu0 %v2300
  %3274 = vmatpush1.bf16.msra.mxu0 %v2299
  %3275 = vmatprep.subr.bf16.mxu0 %v2304
  %3276 = vmatpush1.bf16.msra.mxu0 %v2303
  %3277 = vmatprep.subr.bf16.mxu0 %v2308
  %3278 = vmatpush1.bf16.msra.mxu0 %v2307
  %3279 = vmatprep.subr.bf16.mxu0 %v2312
  %3280 = vmatpush1.bf16.msra.mxu0 %v2311
  %3281 = vmatprep.subr.bf16.mxu0 %v2316
  %3282 = vmatpush1.bf16.msra.mxu0 %v2315
  %3283 = vmatprep.subr.bf16.mxu0 %v2320
  %3284 = vmatpush1.bf16.msra.mxu0 %v2319
  %3285 = vmatprep.subr.bf16.mxu0 %v2324
  %3286 = vmatpush1.bf16.msra.mxu0 %v2323
  %3287 = vmatprep.subr.bf16.mxu0 %v2328
  %3288 = vmatpush1.bf16.msra.mxu0 %v2327
  %3289 = vmatprep.subr.bf16.mxu0 %v2332
  %3290 = vmatpush1.bf16.msra.mxu0 %v2331
  %3291 = vmatprep.subr.bf16.mxu0 %v2336
  %3292 = vmatpush1.bf16.msra.mxu0 %v2335
  %3293 = vmatprep.subr.bf16.mxu0 %v2340
  %3294 = vmatpush1.bf16.msra.mxu0 %v2339
  %3295 = vmatprep.subr.bf16.mxu0 %v2344
  %3296 = vmatpush1.bf16.msra.mxu0 %v2343
  %3297 = vmatprep.subr.bf16.mxu0 %v2348
  %3298 = vmatpush1.bf16.msra.mxu0 %v2347
  %3299 = vmatprep.subr.bf16.mxu0 %v2352
  %3300 = vmatpush1.bf16.msra.mxu0 %v2351
  %3301 = vmatprep.mubr.bf16.mxu0 %v600
  %3302 = vmatmul.mubr.bf16.gmra.mrb[0].mxu0 %v599
  %v3303 = vpop.f32.mrb[0].mxu0
  %v3304 = vadd.f32 %v3263, %v3303
  %v3305 = vpop.f32.mrb[0].mxu0
  %v3306 = vadd.f32 %v3265, %v3305
  %v3307 = vpop.f32.mrb[0].mxu0
  %v3308 = vpop.f32.mrb[0].mxu0
  %3309 = vdwg.mxu0
  %3310 = vmatprep.subr.bf16.mxu0 %v2356
  %3311 = vmatpush1.bf16.msra.mxu0 %v2355
  %3312 = vmatprep.subr.bf16.mxu0 %v2360
  %3313 = vmatpush1.bf16.msra.mxu0 %v2359
  %3314 = vmatprep.subr.bf16.mxu0 %v2364
  %3315 = vmatpush1.bf16.msra.mxu0 %v2363
  %3316 = vmatprep.subr.bf16.mxu0 %v2368
  %3317 = vmatpush1.bf16.msra.mxu0 %v2367
  %3318 = vmatprep.subr.bf16.mxu0 %v2372
  %3319 = vmatpush1.bf16.msra.mxu0 %v2371
  %3320 = vmatprep.subr.bf16.mxu0 %v2376
  %3321 = vmatpush1.bf16.msra.mxu0 %v2375
  %3322 = vmatprep.subr.bf16.mxu0 %v2380
  %3323 = vmatpush1.bf16.msra.mxu0 %v2379
  %3324 = vmatprep.subr.bf16.mxu0 %v2384
  %3325 = vmatpush1.bf16.msra.mxu0 %v2383
  %3326 = vmatprep.subr.bf16.mxu0 %v2388
  %3327 = vmatpush1.bf16.msra.mxu0 %v2387
  %3328 = vmatprep.subr.bf16.mxu0 %v2392
  %3329 = vmatpush1.bf16.msra.mxu0 %v2391
  %3330 = vmatprep.subr.bf16.mxu0 %v2396
  %3331 = vmatpush1.bf16.msra.mxu0 %v2395
  %3332 = vmatprep.subr.bf16.mxu0 %v2400
  %3333 = vmatpush1.bf16.msra.mxu0 %v2399
  %3334 = vmatprep.subr.bf16.mxu0 %v2404
  %3335 = vmatpush1.bf16.msra.mxu0 %v2403
  %3336 = vmatprep.subr.bf16.mxu0 %v2408
  %3337 = vmatpush1.bf16.msra.mxu0 %v2407
  %3338 = vmatprep.subr.bf16.mxu0 %v2412
  %3339 = vmatpush1.bf16.msra.mxu0 %v2411
  %3340 = vmatprep.subr.bf16.mxu0 %v2416
  %3341 = vmatpush1.bf16.msra.mxu0 %v2415
  %3342 = vmatprep.mubr.bf16.mxu0 %v602
  %3343 = vmatmul.mubr.bf16.gmra.mrb[0].mxu0 %v601
  %v3344 = vpop.f32.mrb[0].mxu0
  %v3345 = vadd.f32 %v3304, %v3344
  %v3346 = vpop.f32.mrb[0].mxu0
  %v3347 = vadd.f32 %v3306, %v3346
  %v3348 = vpop.f32.mrb[0].mxu0
  %v3349 = vpop.f32.mrb[0].mxu0
  %3350 = vdwg.mxu0
  %3351 = vmatprep.subr.bf16.mxu0 %v2420
  %3352 = vmatpush1.bf16.msra.mxu0 %v2419
  %3353 = vmatprep.subr.bf16.mxu0 %v2424
  %3354 = vmatpush1.bf16.msra.mxu0 %v2423
  %3355 = vmatprep.subr.bf16.mxu0 %v2428
  %3356 = vmatpush1.bf16.msra.mxu0 %v2427
  %3357 = vmatprep.subr.bf16.mxu0 %v2432
  %3358 = vmatpush1.bf16.msra.mxu0 %v2431
  %3359 = vmatprep.subr.bf16.mxu0 %v2436
  %3360 = vmatpush1.bf16.msra.mxu0 %v2435
  %3361 = vmatprep.subr.bf16.mxu0 %v2440
  %3362 = vmatpush1.bf16.msra.mxu0 %v2439
  %3363 = vmatprep.subr.bf16.mxu0 %v2444
  %3364 = vmatpush1.bf16.msra.mxu0 %v2443
  %3365 = vmatprep.subr.bf16.mxu0 %v2448
  %3366 = vmatpush1.bf16.msra.mxu0 %v2447
  %3367 = vmatprep.subr.bf16.mxu0 %v2452
  %3368 = vmatpush1.bf16.msra.mxu0 %v2451
  %3369 = vmatprep.subr.bf16.mxu0 %v2456
  %3370 = vmatpush1.bf16.msra.mxu0 %v2455
  %3371 = vmatprep.subr.bf16.mxu0 %v2460
  %3372 = vmatpush1.bf16.msra.mxu0 %v2459
  %3373 = vmatprep.subr.bf16.mxu0 %v2464
  %3374 = vmatpush1.bf16.msra.mxu0 %v2463
  %3375 = vmatprep.subr.bf16.mxu0 %v2468
  %3376 = vmatpush1.bf16.msra.mxu0 %v2467
  %3377 = vmatprep.subr.bf16.mxu0 %v2472
  %3378 = vmatpush1.bf16.msra.mxu0 %v2471
  %3379 = vmatprep.subr.bf16.mxu0 %v2476
  %3380 = vmatpush1.bf16.msra.mxu0 %v2475
  %3381 = vmatprep.subr.bf16.mxu0 %v2480
  %3382 = vmatpush1.bf16.msra.mxu0 %v2479
  %3383 = vmatprep.mubr.bf16.mxu0 %v604
  %3384 = vmatmul.mubr.bf16.gmra.mrb[0].mxu0 %v603
  %v3385 = vpop.f32.mrb[0].mxu0
  %v3386 = vadd.f32 %v3345, %v3385
  %v3387 = vpop.f32.mrb[0].mxu0
  %v3388 = vadd.f32 %v3347, %v3387
  %v3389 = vpop.f32.mrb[0].mxu0
  %v3390 = vpop.f32.mrb[0].mxu0
  %3391 = vdwg.mxu0
  %3392 = vmatprep.subr.bf16.mxu0 %v2484
  %3393 = vmatpush1.bf16.msra.mxu0 %v2483
  %3394 = vmatprep.subr.bf16.mxu0 %v2488
  %3395 = vmatpush1.bf16.msra.mxu0 %v2487
  %3396 = vmatprep.subr.bf16.mxu0 %v2492
  %3397 = vmatpush1.bf16.msra.mxu0 %v2491
  %3398 = vmatprep.subr.bf16.mxu0 %v2496
  %3399 = vmatpush1.bf16.msra.mxu0 %v2495
  %3400 = vmatprep.subr.bf16.mxu0 %v2500
  %3401 = vmatpush1.bf16.msra.mxu0 %v2499
  %3402 = vmatprep.subr.bf16.mxu0 %v2504
  %3403 = vmatpush1.bf16.msra.mxu0 %v2503
  %3404 = vmatprep.subr.bf16.mxu0 %v2508
  %3405 = vmatpush1.bf16.msra.mxu0 %v2507
  %3406 = vmatprep.subr.bf16.mxu0 %v2512
  %3407 = vmatpush1.bf16.msra.mxu0 %v2511
  %3408 = vmatprep.subr.bf16.mxu0 %v2516
  %3409 = vmatpush1.bf16.msra.mxu0 %v2515
  %3410 = vmatprep.subr.bf16.mxu0 %v2520
  %3411 = vmatpush1.bf16.msra.mxu0 %v2519
  %3412 = vmatprep.subr.bf16.mxu0 %v2524
  %3413 = vmatpush1.bf16.msra.mxu0 %v2523
  %3414 = vmatprep.subr.bf16.mxu0 %v2528
  %3415 = vmatpush1.bf16.msra.mxu0 %v2527
  %3416 = vmatprep.subr.bf16.mxu0 %v2532
  %3417 = vmatpush1.bf16.msra.mxu0 %v2531
  %3418 = vmatprep.subr.bf16.mxu0 %v2536
  %3419 = vmatpush1.bf16.msra.mxu0 %v2535
  %3420 = vmatprep.subr.bf16.mxu0 %v2540
  %3421 = vmatpush1.bf16.msra.mxu0 %v2539
  %3422 = vmatprep.subr.bf16.mxu0 %v2544
  %3423 = vmatpush1.bf16.msra.mxu0 %v2543
  %3424 = vmatprep.mubr.bf16.mxu0 %v606
  %3425 = vmatmul.mubr.bf16.gmra.mrb[0].mxu0 %v605
  %v3426 = vpop.f32.mrb[0].mxu0
  %v3427 = vadd.f32 %v3386, %v3426
  %v3428 = vpop.f32.mrb[0].mxu0
  %v3429 = vadd.f32 %v3388, %v3428
  %v3430 = vpop.f32.mrb[0].mxu0
  %v3431 = vpop.f32.mrb[0].mxu0
  %3432 = vdwg.mxu0
  %3433 = vmatprep.subr.bf16.mxu0 %v2548
  %3434 = vmatpush1.bf16.msra.mxu0 %v2547
  %3435 = vmatprep.subr.bf16.mxu0 %v2552
  %3436 = vmatpush1.bf16.msra.mxu0 %v2551
  %3437 = vmatprep.subr.bf16.mxu0 %v2556
  %3438 = vmatpush1.bf16.msra.mxu0 %v2555
  %3439 = vmatprep.subr.bf16.mxu0 %v2560
  %3440 = vmatpush1.bf16.msra.mxu0 %v2559
  %3441 = vmatprep.subr.bf16.mxu0 %v2564
  %3442 = vmatpush1.bf16.msra.mxu0 %v2563
  %3443 = vmatprep.subr.bf16.mxu0 %v2568
  %3444 = vmatpush1.bf16.msra.mxu0 %v2567
  %3445 = vmatprep.subr.bf16.mxu0 %v2572
  %3446 = vmatpush1.bf16.msra.mxu0 %v2571
  %3447 = vmatprep.subr.bf16.mxu0 %v2576
  %3448 = vmatpush1.bf16.msra.mxu0 %v2575
  %3449 = vmatprep.subr.bf16.mxu0 %v2580
  %3450 = vmatpush1.bf16.msra.mxu0 %v2579
  %3451 = vmatprep.subr.bf16.mxu0 %v2584
  %3452 = vmatpush1.bf16.msra.mxu0 %v2583
  %3453 = vmatprep.subr.bf16.mxu0 %v2588
  %3454 = vmatpush1.bf16.msra.mxu0 %v2587
  %3455 = vmatprep.subr.bf16.mxu0 %v2592
  %3456 = vmatpush1.bf16.msra.mxu0 %v2591
  %3457 = vmatprep.subr.bf16.mxu0 %v2596
  %3458 = vmatpush1.bf16.msra.mxu0 %v2595
  %3459 = vmatprep.subr.bf16.mxu0 %v2600
  %3460 = vmatpush1.bf16.msra.mxu0 %v2599
  %3461 = vmatprep.subr.bf16.mxu0 %v2604
  %3462 = vmatpush1.bf16.msra.mxu0 %v2603
  %3463 = vmatprep.subr.bf16.mxu0 %v2608
  %3464 = vmatpush1.bf16.msra.mxu0 %v2607
  %3465 = vmatprep.mubr.bf16.mxu0 %v608
  %3466 = vmatmul.mubr.bf16.gmra.mrb[0].mxu0 %v607
  %v3467 = vpop.f32.mrb[0].mxu0
  %v3468 = vadd.f32 %v3427, %v3467
  %v3469 = vpop.f32.mrb[0].mxu0
  %v3470 = vadd.f32 %v3429, %v3469
  %v3471 = vpop.f32.mrb[0].mxu0
  %v3472 = vpop.f32.mrb[0].mxu0
  %3473 = vdwg.mxu0
  %3474 = vmatprep.subr.bf16.mxu0 %v2612
  %3475 = vmatpush1.bf16.msra.mxu0 %v2611
  %3476 = vmatprep.subr.bf16.mxu0 %v2616
  %3477 = vmatpush1.bf16.msra.mxu0 %v2615
  %3478 = vmatprep.subr.bf16.mxu0 %v2620
  %3479 = vmatpush1.bf16.msra.mxu0 %v2619
  %3480 = vmatprep.subr.bf16.mxu0 %v2624
  %3481 = vmatpush1.bf16.msra.mxu0 %v2623
  %3482 = vmatprep.subr.bf16.mxu0 %v2628
  %3483 = vmatpush1.bf16.msra.mxu0 %v2627
  %3484 = vmatprep.subr.bf16.mxu0 %v2632
  %3485 = vmatpush1.bf16.msra.mxu0 %v2631
  %3486 = vmatprep.subr.bf16.mxu0 %v2636
  %3487 = vmatpush1.bf16.msra.mxu0 %v2635
  %3488 = vmatprep.subr.bf16.mxu0 %v2640
  %3489 = vmatpush1.bf16.msra.mxu0 %v2639
  %3490 = vmatprep.subr.bf16.mxu0 %v2644
  %3491 = vmatpush1.bf16.msra.mxu0 %v2643
  %3492 = vmatprep.subr.bf16.mxu0 %v2648
  %3493 = vmatpush1.bf16.msra.mxu0 %v2647
  %3494 = vmatprep.subr.bf16.mxu0 %v2652
  %3495 = vmatpush1.bf16.msra.mxu0 %v2651
  %3496 = vmatprep.subr.bf16.mxu0 %v2656
  %3497 = vmatpush1.bf16.msra.mxu0 %v2655
  %3498 = vmatprep.subr.bf16.mxu0 %v2660
  %3499 = vmatpush1.bf16.msra.mxu0 %v2659
  %3500 = vmatprep.subr.bf16.mxu0 %v2664
  %3501 = vmatpush1.bf16.msra.mxu0 %v2663
  %3502 = vmatprep.subr.bf16.mxu0 %v2668
  %3503 = vmatpush1.bf16.msra.mxu0 %v2667
  %3504 = vmatprep.subr.bf16.mxu0 %v2672
  %3505 = vmatpush1.bf16.msra.mxu0 %v2671
  %3506 = vmatprep.mubr.bf16.mxu0 %v610
  %3507 = vmatmul.mubr.bf16.gmra.mrb[0].mxu0 %v609
  %v3508 = vpop.f32.mrb[0].mxu0
  %v3509 = vadd.f32 %v3468, %v3508
  %v3510 = vpop.f32.mrb[0].mxu0
  %v3511 = vadd.f32 %v3470, %v3510
  %v3512 = vpop.f32.mrb[0].mxu0
  %v3513 = vpop.f32.mrb[0].mxu0
  %3514 = vdwg.mxu0
  %3515 = vmatprep.subr.bf16.mxu0 %v2166
  %3516 = vmatpush1.bf16.msra.mxu0 %v2165
  %3517 = vmatprep.subr.bf16.mxu0 %v2170
  %3518 = vmatpush1.bf16.msra.mxu0 %v2169
  %3519 = vmatprep.subr.bf16.mxu0 %v2174
  %3520 = vmatpush1.bf16.msra.mxu0 %v2173
  %3521 = vmatprep.subr.bf16.mxu0 %v2178
  %3522 = vmatpush1.bf16.msra.mxu0 %v2177
  %3523 = vmatprep.subr.bf16.mxu0 %v2182
  %3524 = vmatpush1.bf16.msra.mxu0 %v2181
  %3525 = vmatprep.subr.bf16.mxu0 %v2186
  %3526 = vmatpush1.bf16.msra.mxu0 %v2185
  %3527 = vmatprep.subr.bf16.mxu0 %v2190
  %3528 = vmatpush1.bf16.msra.mxu0 %v2189
  %3529 = vmatprep.subr.bf16.mxu0 %v2194
  %3530 = vmatpush1.bf16.msra.mxu0 %v2193
  %3531 = vmatprep.subr.bf16.mxu0 %v2198
  %3532 = vmatpush1.bf16.msra.mxu0 %v2197
  %3533 = vmatprep.subr.bf16.mxu0 %v2202
  %3534 = vmatpush1.bf16.msra.mxu0 %v2201
  %3535 = vmatprep.subr.bf16.mxu0 %v2206
  %3536 = vmatpush1.bf16.msra.mxu0 %v2205
  %3537 = vmatprep.subr.bf16.mxu0 %v2210
  %3538 = vmatpush1.bf16.msra.mxu0 %v2209
  %3539 = vmatprep.subr.bf16.mxu0 %v2214
  %3540 = vmatpush1.bf16.msra.mxu0 %v2213
  %3541 = vmatprep.subr.bf16.mxu0 %v2218
  %3542 = vmatpush1.bf16.msra.mxu0 %v2217
  %3543 = vmatprep.subr.bf16.mxu0 %v2222
  %3544 = vmatpush1.bf16.msra.mxu0 %v2221
  %3545 = vmatprep.subr.bf16.mxu0 %v2226
  %3546 = vmatpush1.bf16.msra.mxu0 %v2225
  %3547 = vmatprep.mubr.bf16.mxu0 %v596
  %3548 = vmatmul.mubr.bf16.gmra.mrb[0].mxu0 %v595
  %v3549 = vpop.f32.mrb[0].mxu0
  %v3550 = vadd.f32 0.0, %v3549
  %v3551 = vpop.f32.mrb[0].mxu0
  %v3552 = vadd.f32 0.0, %v3551
  %v3553 = vpop.f32.mrb[0].mxu0
  %v3554 = vpop.f32.mrb[0].mxu0
  %3555 = vdwg.mxu0
  %3556 = vmatprep.subr.bf16.mxu0 %v2230
  %3557 = vmatpush1.bf16.msra.mxu0 %v2229
  %3558 = vmatprep.subr.bf16.mxu0 %v2234
  %3559 = vmatpush1.bf16.msra.mxu0 %v2233
  %3560 = vmatprep.subr.bf16.mxu0 %v2238
  %3561 = vmatpush1.bf16.msra.mxu0 %v2237
  %3562 = vmatprep.subr.bf16.mxu0 %v2242
  %3563 = vmatpush1.bf16.msra.mxu0 %v2241
  %3564 = vmatprep.subr.bf16.mxu0 %v2246
  %3565 = vmatpush1.bf16.msra.mxu0 %v2245
  %3566 = vmatprep.subr.bf16.mxu0 %v2250
  %3567 = vmatpush1.bf16.msra.mxu0 %v2249
  %3568 = vmatprep.subr.bf16.mxu0 %v2254
  %3569 = vmatpush1.bf16.msra.mxu0 %v2253
  %3570 = vmatprep.subr.bf16.mxu0 %v2258
  %3571 = vmatpush1.bf16.msra.mxu0 %v2257
  %3572 = vmatprep.subr.bf16.mxu0 %v2262
  %3573 = vmatpush1.bf16.msra.mxu0 %v2261
  %3574 = vmatprep.subr.bf16.mxu0 %v2266
  %3575 = vmatpush1.bf16.msra.mxu0 %v2265
  %3576 = vmatprep.subr.bf16.mxu0 %v2270
  %3577 = vmatpush1.bf16.msra.mxu0 %v2269
  %3578 = vmatprep.subr.bf16.mxu0 %v2274
  %3579 = vmatpush1.bf16.msra.mxu0 %v2273
  %3580 = vmatprep.subr.bf16.mxu0 %v2278
  %3581 = vmatpush1.bf16.msra.mxu0 %v2277
  %3582 = vmatprep.subr.bf16.mxu0 %v2282
  %3583 = vmatpush1.bf16.msra.mxu0 %v2281
  %3584 = vmatprep.subr.bf16.mxu0 %v2286
  %3585 = vmatpush1.bf16.msra.mxu0 %v2285
  %3586 = vmatprep.subr.bf16.mxu0 %v2290
  %3587 = vmatpush1.bf16.msra.mxu0 %v2289
  %3588 = vmatprep.mubr.bf16.mxu0 %v598
  %3589 = vmatmul.mubr.bf16.gmra.mrb[0].mxu0 %v597
  %v3590 = vpop.f32.mrb[0].mxu0
  %v3591 = vadd.f32 %v3550, %v3590
  %v3592 = vpop.f32.mrb[0].mxu0
  %v3593 = vadd.f32 %v3552, %v3592
  %v3594 = vpop.f32.mrb[0].mxu0
  %v3595 = vpop.f32.mrb[0].mxu0
  %3596 = vdwg.mxu0
  %3597 = vmatprep.subr.bf16.mxu0 %v2294
  %3598 = vmatpush1.bf16.msra.mxu0 %v2293
  %3599 = vmatprep.subr.bf16.mxu0 %v2298
  %3600 = vmatpush1.bf16.msra.mxu0 %v2297
  %3601 = vmatprep.subr.bf16.mxu0 %v2302
  %3602 = vmatpush1.bf16.msra.mxu0 %v2301
  %3603 = vmatprep.subr.bf16.mxu0 %v2306
  %3604 = vmatpush1.bf16.msra.mxu0 %v2305
  %3605 = vmatprep.subr.bf16.mxu0 %v2310
  %3606 = vmatpush1.bf16.msra.mxu0 %v2309
  %3607 = vmatprep.subr.bf16.mxu0 %v2314
  %3608 = vmatpush1.bf16.msra.mxu0 %v2313
  %3609 = vmatprep.subr.bf16.mxu0 %v2318
  %3610 = vmatpush1.bf16.msra.mxu0 %v2317
  %3611 = vmatprep.subr.bf16.mxu0 %v2322
  %3612 = vmatpush1.bf16.msra.mxu0 %v2321
  %3613 = vmatprep.subr.bf16.mxu0 %v2326
  %3614 = vmatpush1.bf16.msra.mxu0 %v2325
  %3615 = vmatprep.subr.bf16.mxu0 %v2330
  %3616 = vmatpush1.bf16.msra.mxu0 %v2329
  %3617 = vmatprep.subr.bf16.mxu0 %v2334
  %3618 = vmatpush1.bf16.msra.mxu0 %v2333
  %3619 = vmatprep.subr.bf16.mxu0 %v2338
  %3620 = vmatpush1.bf16.msra.mxu0 %v2337
  %3621 = vmatprep.subr.bf16.mxu0 %v2342
  %3622 = vmatpush1.bf16.msra.mxu0 %v2341
  %3623 = vmatprep.subr.bf16.mxu0 %v2346
  %3624 = vmatpush1.bf16.msra.mxu0 %v2345
  %3625 = vmatprep.subr.bf16.mxu0 %v2350
  %3626 = vmatpush1.bf16.msra.mxu0 %v2349
  %3627 = vmatprep.subr.bf16.mxu0 %v2354
  %3628 = vmatpush1.bf16.msra.mxu0 %v2353
  %3629 = vmatprep.mubr.bf16.mxu0 %v600
  %3630 = vmatmul.mubr.bf16.gmra.mrb[0].mxu0 %v599
  %v3631 = vpop.f32.mrb[0].mxu0
  %v3632 = vadd.f32 %v3591, %v3631
  %v3633 = vpop.f32.mrb[0].mxu0
  %v3634 = vadd.f32 %v3593, %v3633
  %v3635 = vpop.f32.mrb[0].mxu0
  %v3636 = vpop.f32.mrb[0].mxu0
  %3637 = vdwg.mxu0
  %3638 = vmatprep.subr.bf16.mxu0 %v2358
  %3639 = vmatpush1.bf16.msra.mxu0 %v2357
  %3640 = vmatprep.subr.bf16.mxu0 %v2362
  %3641 = vmatpush1.bf16.msra.mxu0 %v2361
  %3642 = vmatprep.subr.bf16.mxu0 %v2366
  %3643 = vmatpush1.bf16.msra.mxu0 %v2365
  %3644 = vmatprep.subr.bf16.mxu0 %v2370
  %3645 = vmatpush1.bf16.msra.mxu0 %v2369
  %3646 = vmatprep.subr.bf16.mxu0 %v2374
  %3647 = vmatpush1.bf16.msra.mxu0 %v2373
  %3648 = vmatprep.subr.bf16.mxu0 %v2378
  %3649 = vmatpush1.bf16.msra.mxu0 %v2377
  %3650 = vmatprep.subr.bf16.mxu0 %v2382
  %3651 = vmatpush1.bf16.msra.mxu0 %v2381
  %3652 = vmatprep.subr.bf16.mxu0 %v2386
  %3653 = vmatpush1.bf16.msra.mxu0 %v2385
  %3654 = vmatprep.subr.bf16.mxu0 %v2390
  %3655 = vmatpush1.bf16.msra.mxu0 %v2389
  %3656 = vmatprep.subr.bf16.mxu0 %v2394
  %3657 = vmatpush1.bf16.msra.mxu0 %v2393
  %3658 = vmatprep.subr.bf16.mxu0 %v2398
  %3659 = vmatpush1.bf16.msra.mxu0 %v2397
  %3660 = vmatprep.subr.bf16.mxu0 %v2402
  %3661 = vmatpush1.bf16.msra.mxu0 %v2401
  %3662 = vmatprep.subr.bf16.mxu0 %v2406
  %3663 = vmatpush1.bf16.msra.mxu0 %v2405
  %3664 = vmatprep.subr.bf16.mxu0 %v2410
  %3665 = vmatpush1.bf16.msra.mxu0 %v2409
  %3666 = vmatprep.subr.bf16.mxu0 %v2414
  %3667 = vmatpush1.bf16.msra.mxu0 %v2413
  %3668 = vmatprep.subr.bf16.mxu0 %v2418
  %3669 = vmatpush1.bf16.msra.mxu0 %v2417
  %3670 = vmatprep.mubr.bf16.mxu0 %v602
  %3671 = vmatmul.mubr.bf16.gmra.mrb[0].mxu0 %v601
  %v3672 = vpop.f32.mrb[0].mxu0
  %v3673 = vadd.f32 %v3632, %v3672
  %v3674 = vpop.f32.mrb[0].mxu0
  %v3675 = vadd.f32 %v3634, %v3674
  %v3676 = vpop.f32.mrb[0].mxu0
  %v3677 = vpop.f32.mrb[0].mxu0
  %3678 = vdwg.mxu0
  %3679 = vmatprep.subr.bf16.mxu0 %v2422
  %3680 = vmatpush1.bf16.msra.mxu0 %v2421
  %3681 = vmatprep.subr.bf16.mxu0 %v2426
  %3682 = vmatpush1.bf16.msra.mxu0 %v2425
  %3683 = vmatprep.subr.bf16.mxu0 %v2430
  %3684 = vmatpush1.bf16.msra.mxu0 %v2429
  %3685 = vmatprep.subr.bf16.mxu0 %v2434
  %3686 = vmatpush1.bf16.msra.mxu0 %v2433
  %3687 = vmatprep.subr.bf16.mxu0 %v2438
  %3688 = vmatpush1.bf16.msra.mxu0 %v2437
  %3689 = vmatprep.subr.bf16.mxu0 %v2442
  %3690 = vmatpush1.bf16.msra.mxu0 %v2441
  %3691 = vmatprep.subr.bf16.mxu0 %v2446
  %3692 = vmatpush1.bf16.msra.mxu0 %v2445
  %3693 = vmatprep.subr.bf16.mxu0 %v2450
  %3694 = vmatpush1.bf16.msra.mxu0 %v2449
  %3695 = vmatprep.subr.bf16.mxu0 %v2454
  %3696 = vmatpush1.bf16.msra.mxu0 %v2453
  %3697 = vmatprep.subr.bf16.mxu0 %v2458
  %3698 = vmatpush1.bf16.msra.mxu0 %v2457
  %3699 = vmatprep.subr.bf16.mxu0 %v2462
  %3700 = vmatpush1.bf16.msra.mxu0 %v2461
  %3701 = vmatprep.subr.bf16.mxu0 %v2466
  %3702 = vmatpush1.bf16.msra.mxu0 %v2465
  %3703 = vmatprep.subr.bf16.mxu0 %v2470
  %3704 = vmatpush1.bf16.msra.mxu0 %v2469
  %3705 = vmatprep.subr.bf16.mxu0 %v2474
  %3706 = vmatpush1.bf16.msra.mxu0 %v2473
  %3707 = vmatprep.subr.bf16.mxu0 %v2478
  %3708 = vmatpush1.bf16.msra.mxu0 %v2477
  %3709 = vmatprep.subr.bf16.mxu0 %v2482
  %3710 = vmatpush1.bf16.msra.mxu0 %v2481
  %3711 = vmatprep.mubr.bf16.mxu0 %v604
  %3712 = vmatmul.mubr.bf16.gmra.mrb[0].mxu0 %v603
  %v3713 = vpop.f32.mrb[0].mxu0
  %v3714 = vadd.f32 %v3673, %v3713
  %v3715 = vpop.f32.mrb[0].mxu0
  %v3716 = vadd.f32 %v3675, %v3715
  %v3717 = vpop.f32.mrb[0].mxu0
  %v3718 = vpop.f32.mrb[0].mxu0
  %3719 = vdwg.mxu0
  %3720 = vmatprep.subr.bf16.mxu0 %v2486
  %3721 = vmatpush1.bf16.msra.mxu0 %v2485
  %3722 = vmatprep.subr.bf16.mxu0 %v2490
  %3723 = vmatpush1.bf16.msra.mxu0 %v2489
  %3724 = vmatprep.subr.bf16.mxu0 %v2494
  %3725 = vmatpush1.bf16.msra.mxu0 %v2493
  %3726 = vmatprep.subr.bf16.mxu0 %v2498
  %3727 = vmatpush1.bf16.msra.mxu0 %v2497
  %3728 = vmatprep.subr.bf16.mxu0 %v2502
  %3729 = vmatpush1.bf16.msra.mxu0 %v2501
  %3730 = vmatprep.subr.bf16.mxu0 %v2506
  %3731 = vmatpush1.bf16.msra.mxu0 %v2505
  %3732 = vmatprep.subr.bf16.mxu0 %v2510
  %3733 = vmatpush1.bf16.msra.mxu0 %v2509
  %3734 = vmatprep.subr.bf16.mxu0 %v2514
  %3735 = vmatpush1.bf16.msra.mxu0 %v2513
  %3736 = vmatprep.subr.bf16.mxu0 %v2518
  %3737 = vmatpush1.bf16.msra.mxu0 %v2517
  %3738 = vmatprep.subr.bf16.mxu0 %v2522
  %3739 = vmatpush1.bf16.msra.mxu0 %v2521
  %3740 = vmatprep.subr.bf16.mxu0 %v2526
  %3741 = vmatpush1.bf16.msra.mxu0 %v2525
  %3742 = vmatprep.subr.bf16.mxu0 %v2530
  %3743 = vmatpush1.bf16.msra.mxu0 %v2529
  %3744 = vmatprep.subr.bf16.mxu0 %v2534
  %3745 = vmatpush1.bf16.msra.mxu0 %v2533
  %3746 = vmatprep.subr.bf16.mxu0 %v2538
  %3747 = vmatpush1.bf16.msra.mxu0 %v2537
  %3748 = vmatprep.subr.bf16.mxu0 %v2542
  %3749 = vmatpush1.bf16.msra.mxu0 %v2541
  %3750 = vmatprep.subr.bf16.mxu0 %v2546
  %3751 = vmatpush1.bf16.msra.mxu0 %v2545
  %3752 = vmatprep.mubr.bf16.mxu0 %v606
  %3753 = vmatmul.mubr.bf16.gmra.mrb[0].mxu0 %v605
  %v3754 = vpop.f32.mrb[0].mxu0
  %v3755 = vadd.f32 %v3714, %v3754
  %v3756 = vpop.f32.mrb[0].mxu0
  %v3757 = vadd.f32 %v3716, %v3756
  %v3758 = vpop.f32.mrb[0].mxu0
  %v3759 = vpop.f32.mrb[0].mxu0
  %3760 = vdwg.mxu0
  %3761 = vmatprep.subr.bf16.mxu0 %v2550
  %3762 = vmatpush1.bf16.msra.mxu0 %v2549
  %3763 = vmatprep.subr.bf16.mxu0 %v2554
  %3764 = vmatpush1.bf16.msra.mxu0 %v2553
  %3765 = vmatprep.subr.bf16.mxu0 %v2558
  %3766 = vmatpush1.bf16.msra.mxu0 %v2557
  %3767 = vmatprep.subr.bf16.mxu0 %v2562
  %3768 = vmatpush1.bf16.msra.mxu0 %v2561
  %3769 = vmatprep.subr.bf16.mxu0 %v2566
  %3770 = vmatpush1.bf16.msra.mxu0 %v2565
  %3771 = vmatprep.subr.bf16.mxu0 %v2570
  %3772 = vmatpush1.bf16.msra.mxu0 %v2569
  %3773 = vmatprep.subr.bf16.mxu0 %v2574
  %3774 = vmatpush1.bf16.msra.mxu0 %v2573
  %3775 = vmatprep.subr.bf16.mxu0 %v2578
  %3776 = vmatpush1.bf16.msra.mxu0 %v2577
  %3777 = vmatprep.subr.bf16.mxu0 %v2582
  %3778 = vmatpush1.bf16.msra.mxu0 %v2581
  %3779 = vmatprep.subr.bf16.mxu0 %v2586
  %3780 = vmatpush1.bf16.msra.mxu0 %v2585
  %3781 = vmatprep.subr.bf16.mxu0 %v2590
  %3782 = vmatpush1.bf16.msra.mxu0 %v2589
  %3783 = vmatprep.subr.bf16.mxu0 %v2594
  %3784 = vmatpush1.bf16.msra.mxu0 %v2593
  %3785 = vmatprep.subr.bf16.mxu0 %v2598
  %3786 = vmatpush1.bf16.msra.mxu0 %v2597
  %3787 = vmatprep.subr.bf16.mxu0 %v2602
  %3788 = vmatpush1.bf16.msra.mxu0 %v2601
  %3789 = vmatprep.subr.bf16.mxu0 %v2606
  %3790 = vmatpush1.bf16.msra.mxu0 %v2605
  %3791 = vmatprep.subr.bf16.mxu0 %v2610
  %3792 = vmatpush1.bf16.msra.mxu0 %v2609
  %3793 = vmatprep.mubr.bf16.mxu0 %v608
  %3794 = vmatmul.mubr.bf16.gmra.mrb[0].mxu0 %v607
  %v3795 = vpop.f32.mrb[0].mxu0
  %v3796 = vadd.f32 %v3755, %v3795
  %v3797 = vpop.f32.mrb[0].mxu0
  %v3798 = vadd.f32 %v3757, %v3797
  %v3799 = vpop.f32.mrb[0].mxu0
  %v3800 = vpop.f32.mrb[0].mxu0
  %3801 = vdwg.mxu0
  %3802 = vmatprep.subr.bf16.mxu0 %v2614
  %3803 = vmatpush1.bf16.msra.mxu0 %v2613
  %3804 = vmatprep.subr.bf16.mxu0 %v2618
  %3805 = vmatpush1.bf16.msra.mxu0 %v2617
  %3806 = vmatprep.subr.bf16.mxu0 %v2622
  %3807 = vmatpush1.bf16.msra.mxu0 %v2621
  %3808 = vmatprep.subr.bf16.mxu0 %v2626
  %3809 = vmatpush1.bf16.msra.mxu0 %v2625
  %3810 = vmatprep.subr.bf16.mxu0 %v2630
  %3811 = vmatpush1.bf16.msra.mxu0 %v2629
  %3812 = vmatprep.subr.bf16.mxu0 %v2634
  %3813 = vmatpush1.bf16.msra.mxu0 %v2633
  %3814 = vmatprep.subr.bf16.mxu0 %v2638
  %3815 = vmatpush1.bf16.msra.mxu0 %v2637
  %3816 = vmatprep.subr.bf16.mxu0 %v2642
  %3817 = vmatpush1.bf16.msra.mxu0 %v2641
  %3818 = vmatprep.subr.bf16.mxu0 %v2646
  %3819 = vmatpush1.bf16.msra.mxu0 %v2645
  %3820 = vmatprep.subr.bf16.mxu0 %v2650
  %3821 = vmatpush1.bf16.msra.mxu0 %v2649
  %3822 = vmatprep.subr.bf16.mxu0 %v2654
  %3823 = vmatpush1.bf16.msra.mxu0 %v2653
  %3824 = vmatprep.subr.bf16.mxu0 %v2658
  %3825 = vmatpush1.bf16.msra.mxu0 %v2657
  %3826 = vmatprep.subr.bf16.mxu0 %v2662
  %3827 = vmatpush1.bf16.msra.mxu0 %v2661
  %3828 = vmatprep.subr.bf16.mxu0 %v2666
  %3829 = vmatpush1.bf16.msra.mxu0 %v2665
  %3830 = vmatprep.subr.bf16.mxu0 %v2670
  %3831 = vmatpush1.bf16.msra.mxu0 %v2669
  %3832 = vmatprep.subr.bf16.mxu0 %v2674
  %3833 = vmatpush1.bf16.msra.mxu0 %v2673
  %3834 = vmatprep.mubr.bf16.mxu0 %v610
  %3835 = vmatmul.mubr.bf16.gmra.mrb[0].mxu0 %v609
  %v3836 = vpop.f32.mrb[0].mxu0
  %v3837 = vadd.f32 %v3796, %v3836
  %v3838 = vpop.f32.mrb[0].mxu0
  %v3839 = vadd.f32 %v3798, %v3838
  %v3840 = vpop.f32.mrb[0].mxu0
  %v3841 = vpop.f32.mrb[0].mxu0
  %3842 = vdwg.mxu0
  %v3843 = vadd.f32 %v47, %v3509
  %v3844 = vadd.f32 %v48, %v3511
  %v3845 = vadd.f32 %v49, %v3837
  %v3846 = vadd.f32 %v50, %v3839
  %3847 = vst [vmem:[#allocation2] sm:$0xff] %v3843
  %3848 = vst [vmem:[#allocation2 + $0x8] sm:$0xff] %v3844
  %3849 = vst [vmem:[#allocation2 + $0x10] sm:$0xff] %v3845
  %3850 = vst [vmem:[#allocation2 + $0x18] sm:$0xff] %v3846
  // Predicated region
  $region50: #{mohapatra_forward.5} parent=0 // pred_check
    %p3851 = pneg %p39
  $region51: #{mohapatra_forward.5} parent=0 // pred_check_branch
    %3853 = sbr.rel (%p3851) target = $region53
  $region52: #{mohapatra_forward.5} parent=0 // pred_region
    %v3854 = vld [vmem:[#allocation2] sm:$0xff]
    %v3855 = vld [vmem:[#allocation2 + $0x8] sm:$0xff]
    %v3856 = vld [vmem:[#allocation2 + $0x10] sm:$0xff]
    %v3857 = vld [vmem:[#allocation2 + $0x18] sm:$0xff]
    %v3858 = vld [vmem:[%s2] sm:$0xf]
    %v3860 = vlaneseq
    %v3861 = vshrl.u32 %v3860, 7
    %v3862 = vsub.s32 0, %v3861
    %v3863 = vrot.slane %v3858, %v3862
    %v3864 = vlaneseq
    %v3865 = vshrl.u32 %v3864, 7
    %v3866 = vsub.s32 1, %v3865
    %v3867 = vrot.slane %v3858, %v3866
    %v3868 = vlaneseq
    %v3869 = vshrl.u32 %v3868, 7
    %v3870 = vsub.s32 2, %v3869
    %v3871 = vrot.slane %v3858, %v3870
    %v3872 = vlaneseq
    %v3873 = vshrl.u32 %v3872, 7
    %v3874 = vsub.s32 3, %v3873
    %v3875 = vrot.slane %v3858, %v3874
    %v3880 = vadd.f32 %v3854, %v3863
    %v3881 = vadd.f32 %v3855, %v3867
    %v3882 = vadd.f32 %v3856, %v3871
    %v3883 = vadd.f32 %v3857, %v3875
    %vm3884 = vcmp.ge.f32.partialorder %v3880, 0.0
    %vm3885 = vcmp.ge.f32.partialorder %v3881, 0.0
    %vm3886 = vcmp.ge.f32.partialorder %v3882, 0.0
    %vm3887 = vcmp.ge.f32.partialorder %v3883, 0.0
    %v3888 = vmul.f32 %v3880, 0.01
    %v3889 = vmul.f32 %v3881, 0.01
    %v3890 = vmul.f32 %v3882, 0.01
    %v3891 = vmul.f32 %v3883, 0.01
    %v3892 = vsel %vm3884, %v3880, %v3888
    %v3893 = vsel %vm3885, %v3881, %v3889
    %v3894 = vsel %vm3886, %v3882, %v3890
    %v3895 = vsel %vm3887, %v3883, %v3891
    %v3896 = vpack.c.bf16 %v3892, %v3892
    %v3897 = vpack.c.bf16 %v3893, %v3893
    %v3898 = vpack.c.bf16 %v3894, %v3894
    %v3899 = vpack.c.bf16 %v3895, %v3895
    %v3900 = vld [vmem:[%s3] sm:$0xff]
    %v3901 = vld [vmem:[%s3 + $0x8] sm:$0xff]
    %v3902 = vld [vmem:[%s3 + $0x10] sm:$0xff]
    %v3903 = vld [vmem:[%s3 + $0x18] sm:$0xff]
    %v3904 = vld [vmem:[%s3 + $0x20] sm:$0xff]
    %v3905 = vld [vmem:[%s3 + $0x28] sm:$0xff]
    %v3906 = vld [vmem:[%s3 + $0x30] sm:$0xff]
    %v3907 = vld [vmem:[%s3 + $0x38] sm:$0xff]
    %v3908 = vld [vmem:[%s3 + $0x40] sm:$0xff]
    %v3909 = vld [vmem:[%s3 + $0x48] sm:$0xff]
    %v3910 = vld [vmem:[%s3 + $0x50] sm:$0xff]
    %v3911 = vld [vmem:[%s3 + $0x58] sm:$0xff]
    %v3912 = vld [vmem:[%s3 + $0x60] sm:$0xff]
    %v3913 = vld [vmem:[%s3 + $0x68] sm:$0xff]
    %v3914 = vld [vmem:[%s3 + $0x70] sm:$0xff]
    %v3915 = vld [vmem:[%s3 + $0x78] sm:$0xff]
    %v3916 = vld [vmem:[%s3 + $0x80] sm:$0xff]
    %v3917 = vld [vmem:[%s3 + $0x88] sm:$0xff]
    %v3918 = vld [vmem:[%s3 + $0x90] sm:$0xff]
    %v3919 = vld [vmem:[%s3 + $0x98] sm:$0xff]
    %v3920 = vld [vmem:[%s3 + $0xa0] sm:$0xff]
    %v3921 = vld [vmem:[%s3 + $0xa8] sm:$0xff]
    %v3922 = vld [vmem:[%s3 + $0xb0] sm:$0xff]
    %v3923 = vld [vmem:[%s3 + $0xb8] sm:$0xff]
    %v3924 = vld [vmem:[%s3 + $0xc0] sm:$0xff]
    %v3925 = vld [vmem:[%s3 + $0xc8] sm:$0xff]
    %v3926 = vld [vmem:[%s3 + $0xd0] sm:$0xff]
    %v3927 = vld [vmem:[%s3 + $0xd8] sm:$0xff]
    %v3928 = vld [vmem:[%s3 + $0xe0] sm:$0xff]
    %v3929 = vld [vmem:[%s3 + $0xe8] sm:$0xff]
    %v3930 = vld [vmem:[%s3 + $0xf0] sm:$0xff]
    %v3931 = vld [vmem:[%s3 + $0xf8] sm:$0xff]
    %v3932 = vld [vmem:[%s3 + $0x100] sm:$0xff]
    %v3933 = vld [vmem:[%s3 + $0x108] sm:$0xff]
    %v3934 = vld [vmem:[%s3 + $0x110] sm:$0xff]
    %v3935 = vld [vmem:[%s3 + $0x118] sm:$0xff]
    %v3936 = vld [vmem:[%s3 + $0x120] sm:$0xff]
    %v3937 = vld [vmem:[%s3 + $0x128] sm:$0xff]
    %v3938 = vld [vmem:[%s3 + $0x130] sm:$0xff]
    %v3939 = vld [vmem:[%s3 + $0x138] sm:$0xff]
    %v3940 = vld [vmem:[%s3 + $0x140] sm:$0xff]
    %v3941 = vld [vmem:[%s3 + $0x148] sm:$0xff]
    %v3942 = vld [vmem:[%s3 + $0x150] sm:$0xff]
    %v3943 = vld [vmem:[%s3 + $0x158] sm:$0xff]
    %v3944 = vld [vmem:[%s3 + $0x160] sm:$0xff]
    %v3945 = vld [vmem:[%s3 + $0x168] sm:$0xff]
    %v3946 = vld [vmem:[%s3 + $0x170] sm:$0xff]
    %v3947 = vld [vmem:[%s3 + $0x178] sm:$0xff]
    %v3948 = vld [vmem:[%s3 + $0x180] sm:$0xff]
    %v3949 = vld [vmem:[%s3 + $0x188] sm:$0xff]
    %v3950 = vld [vmem:[%s3 + $0x190] sm:$0xff]
    %v3951 = vld [vmem:[%s3 + $0x198] sm:$0xff]
    %v3952 = vld [vmem:[%s3 + $0x1a0] sm:$0xff]
    %v3953 = vld [vmem:[%s3 + $0x1a8] sm:$0xff]
    %v3954 = vld [vmem:[%s3 + $0x1b0] sm:$0xff]
    %v3955 = vld [vmem:[%s3 + $0x1b8] sm:$0xff]
    %v3956 = vld [vmem:[%s3 + $0x1c0] sm:$0xff]
    %v3957 = vld [vmem:[%s3 + $0x1c8] sm:$0xff]
    %v3958 = vld [vmem:[%s3 + $0x1d0] sm:$0xff]
    %v3959 = vld [vmem:[%s3 + $0x1d8] sm:$0xff]
    %v3960 = vld [vmem:[%s3 + $0x1e0] sm:$0xff]
    %v3961 = vld [vmem:[%s3 + $0x1e8] sm:$0xff]
    %v3962 = vld [vmem:[%s3 + $0x1f0] sm:$0xff]
    %v3963 = vld [vmem:[%s3 + $0x1f8] sm:$0xff]
    %v3964 = vld [vmem:[%s4] sm:$0x3]
    %v3966 = vlaneseq
    %v3967 = vshrl.u32 %v3966, 7
    %v3968 = vsub.s32 0, %v3967
    %v3969 = vrot.slane %v3964, %v3968
    %v3970 = vlaneseq
    %v3971 = vshrl.u32 %v3970, 7
    %v3972 = vsub.s32 1, %v3971
    %v3973 = vrot.slane %v3964, %v3972
    %v4040 = vunpack.c.l.b16 %v3900
    %v4041 = vunpack.c.h.b16 %v3900
    %v4042 = vunpack.c.l.b16 %v3901
    %v4043 = vunpack.c.h.b16 %v3901
    %v4044 = vunpack.c.l.b16 %v3902
    %v4045 = vunpack.c.h.b16 %v3902
    %v4046 = vunpack.c.l.b16 %v3903
    %v4047 = vunpack.c.h.b16 %v3903
    %v4048 = vunpack.c.l.b16 %v3904
    %v4049 = vunpack.c.h.b16 %v3904
    %v4050 = vunpack.c.l.b16 %v3905
    %v4051 = vunpack.c.h.b16 %v3905
    %v4052 = vunpack.c.l.b16 %v3906
    %v4053 = vunpack.c.h.b16 %v3906
    %v4054 = vunpack.c.l.b16 %v3907
    %v4055 = vunpack.c.h.b16 %v3907
    %v4056 = vunpack.c.l.b16 %v3908
    %v4057 = vunpack.c.h.b16 %v3908
    %v4058 = vunpack.c.l.b16 %v3909
    %v4059 = vunpack.c.h.b16 %v3909
    %v4060 = vunpack.c.l.b16 %v3910
    %v4061 = vunpack.c.h.b16 %v3910
    %v4062 = vunpack.c.l.b16 %v3911
    %v4063 = vunpack.c.h.b16 %v3911
    %v4064 = vunpack.c.l.b16 %v3912
    %v4065 = vunpack.c.h.b16 %v3912
    %v4066 = vunpack.c.l.b16 %v3913
    %v4067 = vunpack.c.h.b16 %v3913
    %v4068 = vunpack.c.l.b16 %v3914
    %v4069 = vunpack.c.h.b16 %v3914
    %v4070 = vunpack.c.l.b16 %v3915
    %v4071 = vunpack.c.h.b16 %v3915
    %v4072 = vunpack.c.l.b16 %v3916
    %v4073 = vunpack.c.h.b16 %v3916
    %v4074 = vunpack.c.l.b16 %v3917
    %v4075 = vunpack.c.h.b16 %v3917
    %v4076 = vunpack.c.l.b16 %v3918
    %v4077 = vunpack.c.h.b16 %v3918
    %v4078 = vunpack.c.l.b16 %v3919
    %v4079 = vunpack.c.h.b16 %v3919
    %v4080 = vunpack.c.l.b16 %v3920
    %v4081 = vunpack.c.h.b16 %v3920
    %v4082 = vunpack.c.l.b16 %v3921
    %v4083 = vunpack.c.h.b16 %v3921
    %v4084 = vunpack.c.l.b16 %v3922
    %v4085 = vunpack.c.h.b16 %v3922
    %v4086 = vunpack.c.l.b16 %v3923
    %v4087 = vunpack.c.h.b16 %v3923
    %v4088 = vunpack.c.l.b16 %v3924
    %v4089 = vunpack.c.h.b16 %v3924
    %v4090 = vunpack.c.l.b16 %v3925
    %v4091 = vunpack.c.h.b16 %v3925
    %v4092 = vunpack.c.l.b16 %v3926
    %v4093 = vunpack.c.h.b16 %v3926
    %v4094 = vunpack.c.l.b16 %v3927
    %v4095 = vunpack.c.h.b16 %v3927
    %v4096 = vunpack.c.l.b16 %v3928
    %v4097 = vunpack.c.h.b16 %v3928
    %v4098 = vunpack.c.l.b16 %v3929
    %v4099 = vunpack.c.h.b16 %v3929
    %v4100 = vunpack.c.l.b16 %v3930
    %v4101 = vunpack.c.h.b16 %v3930
    %v4102 = vunpack.c.l.b16 %v3931
    %v4103 = vunpack.c.h.b16 %v3931
    %v4104 = vunpack.c.l.b16 %v3932
    %v4105 = vunpack.c.h.b16 %v3932
    %v4106 = vunpack.c.l.b16 %v3933
    %v4107 = vunpack.c.h.b16 %v3933
    %v4108 = vunpack.c.l.b16 %v3934
    %v4109 = vunpack.c.h.b16 %v3934
    %v4110 = vunpack.c.l.b16 %v3935
    %v4111 = vunpack.c.h.b16 %v3935
    %v4112 = vunpack.c.l.b16 %v3936
    %v4113 = vunpack.c.h.b16 %v3936
    %v4114 = vunpack.c.l.b16 %v3937
    %v4115 = vunpack.c.h.b16 %v3937
    %v4116 = vunpack.c.l.b16 %v3938
    %v4117 = vunpack.c.h.b16 %v3938
    %v4118 = vunpack.c.l.b16 %v3939
    %v4119 = vunpack.c.h.b16 %v3939
    %v4120 = vunpack.c.l.b16 %v3940
    %v4121 = vunpack.c.h.b16 %v3940
    %v4122 = vunpack.c.l.b16 %v3941
    %v4123 = vunpack.c.h.b16 %v3941
    %v4124 = vunpack.c.l.b16 %v3942
    %v4125 = vunpack.c.h.b16 %v3942
    %v4126 = vunpack.c.l.b16 %v3943
    %v4127 = vunpack.c.h.b16 %v3943
    %v4128 = vunpack.c.l.b16 %v3944
    %v4129 = vunpack.c.h.b16 %v3944
    %v4130 = vunpack.c.l.b16 %v3945
    %v4131 = vunpack.c.h.b16 %v3945
    %v4132 = vunpack.c.l.b16 %v3946
    %v4133 = vunpack.c.h.b16 %v3946
    %v4134 = vunpack.c.l.b16 %v3947
    %v4135 = vunpack.c.h.b16 %v3947
    %v4136 = vunpack.c.l.b16 %v3948
    %v4137 = vunpack.c.h.b16 %v3948
    %v4138 = vunpack.c.l.b16 %v3949
    %v4139 = vunpack.c.h.b16 %v3949
    %v4140 = vunpack.c.l.b16 %v3950
    %v4141 = vunpack.c.h.b16 %v3950
    %v4142 = vunpack.c.l.b16 %v3951
    %v4143 = vunpack.c.h.b16 %v3951
    %v4144 = vunpack.c.l.b16 %v3952
    %v4145 = vunpack.c.h.b16 %v3952
    %v4146 = vunpack.c.l.b16 %v3953
    %v4147 = vunpack.c.h.b16 %v3953
    %v4148 = vunpack.c.l.b16 %v3954
    %v4149 = vunpack.c.h.b16 %v3954
    %v4150 = vunpack.c.l.b16 %v3955
    %v4151 = vunpack.c.h.b16 %v3955
    %v4152 = vunpack.c.l.b16 %v3956
    %v4153 = vunpack.c.h.b16 %v3956
    %v4154 = vunpack.c.l.b16 %v3957
    %v4155 = vunpack.c.h.b16 %v3957
    %v4156 = vunpack.c.l.b16 %v3958
    %v4157 = vunpack.c.h.b16 %v3958
    %v4158 = vunpack.c.l.b16 %v3959
    %v4159 = vunpack.c.h.b16 %v3959
    %v4160 = vunpack.c.l.b16 %v3960
    %v4161 = vunpack.c.h.b16 %v3960
    %v4162 = vunpack.c.l.b16 %v3961
    %v4163 = vunpack.c.h.b16 %v3961
    %v4164 = vunpack.c.l.b16 %v3962
    %v4165 = vunpack.c.h.b16 %v3962
    %v4166 = vunpack.c.l.b16 %v3963
    %v4167 = vunpack.c.h.b16 %v3963
    %v4168 = vpack.c.b16 %v4042, %v4040
    %v4169 = vpack.c.b16 %v4043, %v4041
    %v4170 = vpack.c.b16 %v4046, %v4044
    %v4171 = vpack.c.b16 %v4047, %v4045
    %v4172 = vpack.c.b16 %v4050, %v4048
    %v4173 = vpack.c.b16 %v4051, %v4049
    %v4174 = vpack.c.b16 %v4054, %v4052
    %v4175 = vpack.c.b16 %v4055, %v4053
    %v4176 = vpack.c.b16 %v4058, %v4056
    %v4177 = vpack.c.b16 %v4059, %v4057
    %v4178 = vpack.c.b16 %v4062, %v4060
    %v4179 = vpack.c.b16 %v4063, %v4061
    %v4180 = vpack.c.b16 %v4066, %v4064
    %v4181 = vpack.c.b16 %v4067, %v4065
    %v4182 = vpack.c.b16 %v4070, %v4068
    %v4183 = vpack.c.b16 %v4071, %v4069
    %v4184 = vpack.c.b16 %v4074, %v4072
    %v4185 = vpack.c.b16 %v4075, %v4073
    %v4186 = vpack.c.b16 %v4078, %v4076
    %v4187 = vpack.c.b16 %v4079, %v4077
    %v4188 = vpack.c.b16 %v4082, %v4080
    %v4189 = vpack.c.b16 %v4083, %v4081
    %v4190 = vpack.c.b16 %v4086, %v4084
    %v4191 = vpack.c.b16 %v4087, %v4085
    %v4192 = vpack.c.b16 %v4090, %v4088
    %v4193 = vpack.c.b16 %v4091, %v4089
    %v4194 = vpack.c.b16 %v4094, %v4092
    %v4195 = vpack.c.b16 %v4095, %v4093
    %v4196 = vpack.c.b16 %v4098, %v4096
    %v4197 = vpack.c.b16 %v4099, %v4097
    %v4198 = vpack.c.b16 %v4102, %v4100
    %v4199 = vpack.c.b16 %v4103, %v4101
    %v4200 = vpack.c.b16 %v4106, %v4104
    %v4201 = vpack.c.b16 %v4107, %v4105
    %v4202 = vpack.c.b16 %v4110, %v4108
    %v4203 = vpack.c.b16 %v4111, %v4109
    %v4204 = vpack.c.b16 %v4114, %v4112
    %v4205 = vpack.c.b16 %v4115, %v4113
    %v4206 = vpack.c.b16 %v4118, %v4116
    %v4207 = vpack.c.b16 %v4119, %v4117
    %v4208 = vpack.c.b16 %v4122, %v4120
    %v4209 = vpack.c.b16 %v4123, %v4121
    %v4210 = vpack.c.b16 %v4126, %v4124
    %v4211 = vpack.c.b16 %v4127, %v4125
    %v4212 = vpack.c.b16 %v4130, %v4128
    %v4213 = vpack.c.b16 %v4131, %v4129
    %v4214 = vpack.c.b16 %v4134, %v4132
    %v4215 = vpack.c.b16 %v4135, %v4133
    %v4216 = vpack.c.b16 %v4138, %v4136
    %v4217 = vpack.c.b16 %v4139, %v4137
    %v4218 = vpack.c.b16 %v4142, %v4140
    %v4219 = vpack.c.b16 %v4143, %v4141
    %v4220 = vpack.c.b16 %v4146, %v4144
    %v4221 = vpack.c.b16 %v4147, %v4145
    %v4222 = vpack.c.b16 %v4150, %v4148
    %v4223 = vpack.c.b16 %v4151, %v4149
    %v4224 = vpack.c.b16 %v4154, %v4152
    %v4225 = vpack.c.b16 %v4155, %v4153
    %v4226 = vpack.c.b16 %v4158, %v4156
    %v4227 = vpack.c.b16 %v4159, %v4157
    %v4228 = vpack.c.b16 %v4162, %v4160
    %v4229 = vpack.c.b16 %v4163, %v4161
    %v4230 = vpack.c.b16 %v4166, %v4164
    %v4231 = vpack.c.b16 %v4167, %v4165
    %4296 = vmatprep.subr.bf16.mxu0 %v4169
    %4297 = vmatpush1.bf16.msra.mxu0 %v4168
    %4298 = vmatprep.subr.bf16.mxu0 %v4171
    %4299 = vmatpush1.bf16.msra.mxu0 %v4170
    %4300 = vmatprep.subr.bf16.mxu0 %v4173
    %4301 = vmatpush1.bf16.msra.mxu0 %v4172
    %4302 = vmatprep.subr.bf16.mxu0 %v4175
    %4303 = vmatpush1.bf16.msra.mxu0 %v4174
    %4304 = vmatprep.subr.bf16.mxu0 %v4177
    %4305 = vmatpush1.bf16.msra.mxu0 %v4176
    %4306 = vmatprep.subr.bf16.mxu0 %v4179
    %4307 = vmatpush1.bf16.msra.mxu0 %v4178
    %4308 = vmatprep.subr.bf16.mxu0 %v4181
    %4309 = vmatpush1.bf16.msra.mxu0 %v4180
    %4310 = vmatprep.subr.bf16.mxu0 %v4183
    %4311 = vmatpush1.bf16.msra.mxu0 %v4182
    %4312 = vmatprep.subr.bf16.mxu0 %v4185
    %4313 = vmatpush1.bf16.msra.mxu0 %v4184
    %4314 = vmatprep.subr.bf16.mxu0 %v4187
    %4315 = vmatpush1.bf16.msra.mxu0 %v4186
    %4316 = vmatprep.subr.bf16.mxu0 %v4189
    %4317 = vmatpush1.bf16.msra.mxu0 %v4188
    %4318 = vmatprep.subr.bf16.mxu0 %v4191
    %4319 = vmatpush1.bf16.msra.mxu0 %v4190
    %4320 = vmatprep.subr.bf16.mxu0 %v4193
    %4321 = vmatpush1.bf16.msra.mxu0 %v4192
    %4322 = vmatprep.subr.bf16.mxu0 %v4195
    %4323 = vmatpush1.bf16.msra.mxu0 %v4194
    %4324 = vmatprep.subr.bf16.mxu0 %v4197
    %4325 = vmatpush1.bf16.msra.mxu0 %v4196
    %4326 = vmatprep.subr.bf16.mxu0 %v4199
    %4327 = vmatpush1.bf16.msra.mxu0 %v4198
    %4328 = vmatprep.mubr.bf16.mxu0 %v3897
    %4329 = vmatmul.mubr.bf16.gmra.mrb[0].mxu0 %v3896
    %v4330 = vpop.f32.mrb[0].mxu0
    %v4331 = vadd.f32 %v3969, %v4330
    %v4332 = vpop.f32.mrb[0].mxu0
    %v4333 = vadd.f32 %v3973, %v4332
    %v4334 = vpop.f32.mrb[0].mxu0
    %v4335 = vpop.f32.mrb[0].mxu0
    %4336 = vdwg.mxu0
    %4337 = vmatprep.subr.bf16.mxu0 %v4201
    %4338 = vmatpush1.bf16.msra.mxu0 %v4200
    %4339 = vmatprep.subr.bf16.mxu0 %v4203
    %4340 = vmatpush1.bf16.msra.mxu0 %v4202
    %4341 = vmatprep.subr.bf16.mxu0 %v4205
    %4342 = vmatpush1.bf16.msra.mxu0 %v4204
    %4343 = vmatprep.subr.bf16.mxu0 %v4207
    %4344 = vmatpush1.bf16.msra.mxu0 %v4206
    %4345 = vmatprep.subr.bf16.mxu0 %v4209
    %4346 = vmatpush1.bf16.msra.mxu0 %v4208
    %4347 = vmatprep.subr.bf16.mxu0 %v4211
    %4348 = vmatpush1.bf16.msra.mxu0 %v4210
    %4349 = vmatprep.subr.bf16.mxu0 %v4213
    %4350 = vmatpush1.bf16.msra.mxu0 %v4212
    %4351 = vmatprep.subr.bf16.mxu0 %v4215
    %4352 = vmatpush1.bf16.msra.mxu0 %v4214
    %4353 = vmatprep.subr.bf16.mxu0 %v4217
    %4354 = vmatpush1.bf16.msra.mxu0 %v4216
    %4355 = vmatprep.subr.bf16.mxu0 %v4219
    %4356 = vmatpush1.bf16.msra.mxu0 %v4218
    %4357 = vmatprep.subr.bf16.mxu0 %v4221
    %4358 = vmatpush1.bf16.msra.mxu0 %v4220
    %4359 = vmatprep.subr.bf16.mxu0 %v4223
    %4360 = vmatpush1.bf16.msra.mxu0 %v4222
    %4361 = vmatprep.subr.bf16.mxu0 %v4225
    %4362 = vmatpush1.bf16.msra.mxu0 %v4224
    %4363 = vmatprep.subr.bf16.mxu0 %v4227
    %4364 = vmatpush1.bf16.msra.mxu0 %v4226
    %4365 = vmatprep.subr.bf16.mxu0 %v4229
    %4366 = vmatpush1.bf16.msra.mxu0 %v4228
    %4367 = vmatprep.subr.bf16.mxu0 %v4231
    %4368 = vmatpush1.bf16.msra.mxu0 %v4230
    %4369 = vmatprep.mubr.bf16.mxu0 %v3899
    %4370 = vmatmul.mubr.bf16.gmra.mrb[0].mxu0 %v3898
    %v4371 = vpop.f32.mrb[0].mxu0
    %v4372 = vadd.f32 %v4331, %v4371
    %v4373 = vpop.f32.mrb[0].mxu0
    %v4374 = vadd.f32 %v4333, %v4373
    %v4375 = vpop.f32.mrb[0].mxu0
    %v4376 = vpop.f32.mrb[0].mxu0
    %4377 = vdwg.mxu0
    %vm4378 = vcmp.ge.f32.partialorder %v4372, 0.0
    %vm4379 = vcmp.ge.f32.partialorder %v4374, 0.0
    %v4380 = vmul.f32 %v4372, 0.01
    %v4381 = vmul.f32 %v4374, 0.01
    %v4382 = vsel %vm4378, %v4372, %v4380
    %v4383 = vsel %vm4379, %v4374, %v4381
    %v4384 = vpack.c.bf16 %v4382, %v4382
    %v4385 = vpack.c.bf16 %v4383, %v4383
    %v4386 = vld [vmem:[%s5] sm:$0xf]
    %v4387 = vld [vmem:[%s5 + $0x4] sm:$0xf]
    %v4388 = vld [vmem:[%s5 + $0x8] sm:$0xf]
    %v4389 = vld [vmem:[%s5 + $0xc] sm:$0xf]
    %v4390 = vld [vmem:[%s5 + $0x10] sm:$0xf]
    %v4391 = vld [vmem:[%s5 + $0x14] sm:$0xf]
    %v4392 = vld [vmem:[%s5 + $0x18] sm:$0xf]
    %v4393 = vld [vmem:[%s5 + $0x1c] sm:$0xf]
    %v4394 = vld [vmem:[%s5 + $0x20] sm:$0xf]
    %v4395 = vld [vmem:[%s5 + $0x24] sm:$0xf]
    %v4396 = vld [vmem:[%s5 + $0x28] sm:$0xf]
    %v4397 = vld [vmem:[%s5 + $0x2c] sm:$0xf]
    %v4398 = vld [vmem:[%s5 + $0x30] sm:$0xf]
    %v4399 = vld [vmem:[%s5 + $0x34] sm:$0xf]
    %v4400 = vld [vmem:[%s5 + $0x38] sm:$0xf]
    %v4401 = vld [vmem:[%s5 + $0x3c] sm:$0xf]
    %v4402 = vld [vmem:[%s5 + $0x40] sm:$0xf]
    %v4403 = vld [vmem:[%s5 + $0x44] sm:$0xf]
    %v4404 = vld [vmem:[%s5 + $0x48] sm:$0xf]
    %v4405 = vld [vmem:[%s5 + $0x4c] sm:$0xf]
    %v4406 = vld [vmem:[%s5 + $0x50] sm:$0xf]
    %v4407 = vld [vmem:[%s5 + $0x54] sm:$0xf]
    %v4408 = vld [vmem:[%s5 + $0x58] sm:$0xf]
    %v4409 = vld [vmem:[%s5 + $0x5c] sm:$0xf]
    %v4410 = vld [vmem:[%s5 + $0x60] sm:$0xf]
    %v4411 = vld [vmem:[%s5 + $0x64] sm:$0xf]
    %v4412 = vld [vmem:[%s5 + $0x68] sm:$0xf]
    %v4413 = vld [vmem:[%s5 + $0x6c] sm:$0xf]
    %v4414 = vld [vmem:[%s5 + $0x70] sm:$0xf]
    %v4415 = vld [vmem:[%s5 + $0x74] sm:$0xf]
    %v4416 = vld [vmem:[%s5 + $0x78] sm:$0xf]
    %v4417 = vld [vmem:[%s5 + $0x7c] sm:$0xf]
    %v4418 = vld [vmem:[%s6] sm:$0x1]
    %v4420 = vlaneseq
    %v4421 = vshrl.u32 %v4420, 7
    %v4422 = vsub.s32 0, %v4421
    %v4423 = vrot.slane %v4418, %v4422
    %v4457 = vunpack.c.l.b16 %v4386
    %v4458 = vunpack.c.l.b16 %v4387
    %v4459 = vunpack.c.l.b16 %v4388
    %v4460 = vunpack.c.l.b16 %v4389
    %v4461 = vunpack.c.l.b16 %v4390
    %v4462 = vunpack.c.l.b16 %v4391
    %v4463 = vunpack.c.l.b16 %v4392
    %v4464 = vunpack.c.l.b16 %v4393
    %v4465 = vunpack.c.l.b16 %v4394
    %v4466 = vunpack.c.l.b16 %v4395
    %v4467 = vunpack.c.l.b16 %v4396
    %v4468 = vunpack.c.l.b16 %v4397
    %v4469 = vunpack.c.l.b16 %v4398
    %v4470 = vunpack.c.l.b16 %v4399
    %v4471 = vunpack.c.l.b16 %v4400
    %v4472 = vunpack.c.l.b16 %v4401
    %v4473 = vunpack.c.l.b16 %v4402
    %v4474 = vunpack.c.l.b16 %v4403
    %v4475 = vunpack.c.l.b16 %v4404
    %v4476 = vunpack.c.l.b16 %v4405
    %v4477 = vunpack.c.l.b16 %v4406
    %v4478 = vunpack.c.l.b16 %v4407
    %v4479 = vunpack.c.l.b16 %v4408
    %v4480 = vunpack.c.l.b16 %v4409
    %v4481 = vunpack.c.l.b16 %v4410
    %v4482 = vunpack.c.l.b16 %v4411
    %v4483 = vunpack.c.l.b16 %v4412
    %v4484 = vunpack.c.l.b16 %v4413
    %v4485 = vunpack.c.l.b16 %v4414
    %v4486 = vunpack.c.l.b16 %v4415
    %v4487 = vunpack.c.l.b16 %v4416
    %v4488 = vunpack.c.l.b16 %v4417
    %v4489 = vpack.c.b16 %v4458, %v4457
    %v4490 = vpack.c.b16 %v4460, %v4459
    %v4491 = vpack.c.b16 %v4462, %v4461
    %v4492 = vpack.c.b16 %v4464, %v4463
    %v4493 = vpack.c.b16 %v4466, %v4465
    %v4494 = vpack.c.b16 %v4468, %v4467
    %v4495 = vpack.c.b16 %v4470, %v4469
    %v4496 = vpack.c.b16 %v4472, %v4471
    %v4497 = vpack.c.b16 %v4474, %v4473
    %v4498 = vpack.c.b16 %v4476, %v4475
    %v4499 = vpack.c.b16 %v4478, %v4477
    %v4500 = vpack.c.b16 %v4480, %v4479
    %v4501 = vpack.c.b16 %v4482, %v4481
    %v4502 = vpack.c.b16 %v4484, %v4483
    %v4503 = vpack.c.b16 %v4486, %v4485
    %v4504 = vpack.c.b16 %v4488, %v4487
    %4521 = vmatprep.subr.bf16.mxu0 0
    %4522 = vmatpush1.bf16.msra.mxu0 %v4489
    %4523 = vmatprep.subr.bf16.mxu0 0
    %4524 = vmatpush1.bf16.msra.mxu0 %v4490
    %4525 = vmatprep.subr.bf16.mxu0 0
    %4526 = vmatpush1.bf16.msra.mxu0 %v4491
    %4527 = vmatprep.subr.bf16.mxu0 0
    %4528 = vmatpush1.bf16.msra.mxu0 %v4492
    %4529 = vmatprep.subr.bf16.mxu0 0
    %4530 = vmatpush1.bf16.msra.mxu0 %v4493
    %4531 = vmatprep.subr.bf16.mxu0 0
    %4532 = vmatpush1.bf16.msra.mxu0 %v4494
    %4533 = vmatprep.subr.bf16.mxu0 0
    %4534 = vmatpush1.bf16.msra.mxu0 %v4495
    %4535 = vmatprep.subr.bf16.mxu0 0
    %4536 = vmatpush1.bf16.msra.mxu0 %v4496
    %4537 = vmatprep.subr.bf16.mxu0 0
    %4538 = vmatpush1.bf16.msra.mxu0 %v4497
    %4539 = vmatprep.subr.bf16.mxu0 0
    %4540 = vmatpush1.bf16.msra.mxu0 %v4498
    %4541 = vmatprep.subr.bf16.mxu0 0
    %4542 = vmatpush1.bf16.msra.mxu0 %v4499
    %4543 = vmatprep.subr.bf16.mxu0 0
    %4544 = vmatpush1.bf16.msra.mxu0 %v4500
    %4545 = vmatprep.subr.bf16.mxu0 0
    %4546 = vmatpush1.bf16.msra.mxu0 %v4501
    %4547 = vmatprep.subr.bf16.mxu0 0
    %4548 = vmatpush1.bf16.msra.mxu0 %v4502
    %4549 = vmatprep.subr.bf16.mxu0 0
    %4550 = vmatpush1.bf16.msra.mxu0 %v4503
    %4551 = vmatprep.subr.bf16.mxu0 0
    %4552 = vmatpush1.bf16.msra.mxu0 %v4504
    %4553 = vmatprep.mubr.bf16.mxu0 %v4385
    %4554 = vmatmul.mubr.bf16.gmra.mrb[0].mxu0 %v4384
    %v4555 = vpop.f32.mrb[0].mxu0
    %v4556 = vadd.f32 %v4423, %v4555
    %v4557 = vpop.f32.mrb[0].mxu0
    %v4558 = vpop.f32.mrb[0].mxu0
    %v4559 = vpop.f32.mrb[0].mxu0
    %4560 = vdwg.mxu0
    %vm4561 = vcmp.ge.f32.partialorder %v4556, 0.0
    %v4562 = vmul.f32 %v4556, 0.01
    %v4563 = vsel %vm4561, %v4556, %v4562
    %v4564 = vpack.c.bf16 %v4563, %v4563
    %v4565 = vld [vmem:[%s7] sm:$0xf]
    %v4566 = vld [vmem:[%s7 + $0x4] sm:$0xf]
    %v4567 = vld [vmem:[%s7 + $0x8] sm:$0xf]
    %v4568 = vld [vmem:[%s7 + $0xc] sm:$0xf]
    %v4569 = vld [vmem:[%s7 + $0x10] sm:$0xf]
    %v4570 = vld [vmem:[%s7 + $0x14] sm:$0xf]
    %v4571 = vld [vmem:[%s7 + $0x18] sm:$0xf]
    %v4572 = vld [vmem:[%s7 + $0x1c] sm:$0xf]
    %v4573 = vld [vmem:[%s7 + $0x20] sm:$0xf]
    %v4574 = vld [vmem:[%s7 + $0x24] sm:$0xf]
    %v4575 = vld [vmem:[%s7 + $0x28] sm:$0xf]
    %v4576 = vld [vmem:[%s7 + $0x2c] sm:$0xf]
    %v4577 = vld [vmem:[%s7 + $0x30] sm:$0xf]
    %v4578 = vld [vmem:[%s7 + $0x34] sm:$0xf]
    %v4579 = vld [vmem:[%s7 + $0x38] sm:$0xf]
    %v4580 = vld [vmem:[%s7 + $0x3c] sm:$0xf]
    %v4581 = vld [vmem:[%s8] sm:$0x1]
    %v4583 = vlaneseq
    %v4584 = vshrl.u32 %v4583, 7
    %v4585 = vsub.s32 0, %v4584
    %v4586 = vrot.slane %v4581, %v4585
    %v4604 = vunpack.c.l.b16 %v4565
    %v4605 = vunpack.c.l.b16 %v4566
    %v4606 = vunpack.c.l.b16 %v4567
    %v4607 = vunpack.c.l.b16 %v4568
    %v4608 = vunpack.c.l.b16 %v4569
    %v4609 = vunpack.c.l.b16 %v4570
    %v4610 = vunpack.c.l.b16 %v4571
    %v4611 = vunpack.c.l.b16 %v4572
    %v4612 = vunpack.c.l.b16 %v4573
    %v4613 = vunpack.c.l.b16 %v4574
    %v4614 = vunpack.c.l.b16 %v4575
    %v4615 = vunpack.c.l.b16 %v4576
    %v4616 = vunpack.c.l.b16 %v4577
    %v4617 = vunpack.c.l.b16 %v4578
    %v4618 = vunpack.c.l.b16 %v4579
    %v4619 = vunpack.c.l.b16 %v4580
    %v4620 = vpack.c.b16 %v4605, %v4604
    %v4621 = vpack.c.b16 %v4607, %v4606
    %v4622 = vpack.c.b16 %v4609, %v4608
    %v4623 = vpack.c.b16 %v4611, %v4610
    %v4624 = vpack.c.b16 %v4613, %v4612
    %v4625 = vpack.c.b16 %v4615, %v4614
    %v4626 = vpack.c.b16 %v4617, %v4616
    %v4627 = vpack.c.b16 %v4619, %v4618
    %4636 = vmatprep.subr.bf16.mxu0 0
    %4637 = vmatpush1.bf16.msra.mxu0 %v4620
    %4638 = vmatprep.subr.bf16.mxu0 0
    %4639 = vmatpush1.bf16.msra.mxu0 %v4621
    %4640 = vmatprep.subr.bf16.mxu0 0
    %4641 = vmatpush1.bf16.msra.mxu0 %v4622
    %4642 = vmatprep.subr.bf16.mxu0 0
    %4643 = vmatpush1.bf16.msra.mxu0 %v4623
    %4644 = vmatprep.subr.bf16.mxu0 0
    %4645 = vmatpush1.bf16.msra.mxu0 %v4624
    %4646 = vmatprep.subr.bf16.mxu0 0
    %4647 = vmatpush1.bf16.msra.mxu0 %v4625
    %4648 = vmatprep.subr.bf16.mxu0 0
    %4649 = vmatpush1.bf16.msra.mxu0 %v4626
    %4650 = vmatprep.subr.bf16.mxu0 0
    %4651 = vmatpush1.bf16.msra.mxu0 %v4627
    %4652 = vmatprep.subr.bf16.mxu0 0
    %4653 = vmatpush1.bf16.msra.mxu0 0
    %4654 = vmatprep.subr.bf16.mxu0 0
    %4655 = vmatpush1.bf16.msra.mxu0 0
    %4656 = vmatprep.subr.bf16.mxu0 0
    %4657 = vmatpush1.bf16.msra.mxu0 0
    %4658 = vmatprep.subr.bf16.mxu0 0
    %4659 = vmatpush1.bf16.msra.mxu0 0
    %4660 = vmatprep.subr.bf16.mxu0 0
    %4661 = vmatpush1.bf16.msra.mxu0 0
    %4662 = vmatprep.subr.bf16.mxu0 0
    %4663 = vmatpush1.bf16.msra.mxu0 0
    %4664 = vmatprep.subr.bf16.mxu0 0
    %4665 = vmatpush1.bf16.msra.mxu0 0
    %4666 = vmatprep.subr.bf16.mxu0 0
    %4667 = vmatpush1.bf16.msra.mxu0 0
    %4668 = vmatprep.mubr.bf16.mxu0 0
    %4669 = vmatmul.mubr.bf16.gmra.mrb[0].mxu0 %v4564
    %v4670 = vpop.f32.mrb[0].mxu0
    %v4671 = vadd.f32 %v4586, %v4670
    %v4672 = vpop.f32.mrb[0].mxu0
    %v4673 = vpop.f32.mrb[0].mxu0
    %v4674 = vpop.f32.mrb[0].mxu0
    %4675 = vdwg.mxu0
    %vm4676 = vcmp.ge.f32.partialorder %v4671, 0.0
    %v4677 = vmul.f32 %v4671, 0.01
    %v4678 = vsel %vm4676, %v4671, %v4677
    %v4679 = vpack.c.bf16 %v4678, %v4678
    %v4680 = vld [vmem:[%s9] sm:$0xf]
    %v4681 = vld [vmem:[%s9 + $0x4] sm:$0xf]
    %v4682 = vld [vmem:[%s9 + $0x8] sm:$0xf]
    %v4683 = vld [vmem:[%s9 + $0xc] sm:$0xf]
    %v4684 = vld [vmem:[%s9 + $0x10] sm:$0xf]
    %v4685 = vld [vmem:[%s9 + $0x14] sm:$0xf]
    %v4686 = vld [vmem:[%s9 + $0x18] sm:$0xf]
    %v4687 = vld [vmem:[%s9 + $0x1c] sm:$0xf]
    %v4688 = vld [vmem:[%s9 + $0x20] sm:$0xf]
    %v4689 = vld [vmem:[%s9 + $0x24] sm:$0xf]
    %v4690 = vld [vmem:[%s9 + $0x28] sm:$0xf]
    %v4691 = vld [vmem:[%s9 + $0x2c] sm:$0xf]
    %v4692 = vld [vmem:[%s9 + $0x30] sm:$0xf]
    %v4693 = vld [vmem:[%s9 + $0x34] sm:$0xf]
    %v4694 = vld [vmem:[%s9 + $0x38] sm:$0xf]
    %v4695 = vld [vmem:[%s9 + $0x3c] sm:$0xf]
    %v4696 = vld [vmem:[%s10] sm:$0x1]
    %v4698 = vlaneseq
    %v4699 = vshrl.u32 %v4698, 7
    %v4700 = vsub.s32 0, %v4699
    %v4701 = vrot.slane %v4696, %v4700
    %v4719 = vunpack.c.l.b16 %v4680
    %v4720 = vunpack.c.l.b16 %v4681
    %v4721 = vunpack.c.l.b16 %v4682
    %v4722 = vunpack.c.l.b16 %v4683
    %v4723 = vunpack.c.l.b16 %v4684
    %v4724 = vunpack.c.l.b16 %v4685
    %v4725 = vunpack.c.l.b16 %v4686
    %v4726 = vunpack.c.l.b16 %v4687
    %v4727 = vunpack.c.l.b16 %v4688
    %v4728 = vunpack.c.l.b16 %v4689
    %v4729 = vunpack.c.l.b16 %v4690
    %v4730 = vunpack.c.l.b16 %v4691
    %v4731 = vunpack.c.l.b16 %v4692
    %v4732 = vunpack.c.l.b16 %v4693
    %v4733 = vunpack.c.l.b16 %v4694
    %v4734 = vunpack.c.l.b16 %v4695
    %v4735 = vpack.c.b16 %v4720, %v4719
    %v4736 = vpack.c.b16 %v4722, %v4721
    %v4737 = vpack.c.b16 %v4724, %v4723
    %v4738 = vpack.c.b16 %v4726, %v4725
    %v4739 = vpack.c.b16 %v4728, %v4727
    %v4740 = vpack.c.b16 %v4730, %v4729
    %v4741 = vpack.c.b16 %v4732, %v4731
    %v4742 = vpack.c.b16 %v4734, %v4733
    %4751 = vmatprep.subr.bf16.mxu0 0
    %4752 = vmatpush1.bf16.msra.mxu0 %v4735
    %4753 = vmatprep.subr.bf16.mxu0 0
    %4754 = vmatpush1.bf16.msra.mxu0 %v4736
    %4755 = vmatprep.subr.bf16.mxu0 0
    %4756 = vmatpush1.bf16.msra.mxu0 %v4737
    %4757 = vmatprep.subr.bf16.mxu0 0
    %4758 = vmatpush1.bf16.msra.mxu0 %v4738
    %4759 = vmatprep.subr.bf16.mxu0 0
    %4760 = vmatpush1.bf16.msra.mxu0 %v4739
    %4761 = vmatprep.subr.bf16.mxu0 0
    %4762 = vmatpush1.bf16.msra.mxu0 %v4740
    %4763 = vmatprep.subr.bf16.mxu0 0
    %4764 = vmatpush1.bf16.msra.mxu0 %v4741
    %4765 = vmatprep.subr.bf16.mxu0 0
    %4766 = vmatpush1.bf16.msra.mxu0 %v4742
    %4767 = vmatprep.subr.bf16.mxu0 0
    %4768 = vmatpush1.bf16.msra.mxu0 0
    %4769 = vmatprep.subr.bf16.mxu0 0
    %4770 = vmatpush1.bf16.msra.mxu0 0
    %4771 = vmatprep.subr.bf16.mxu0 0
    %4772 = vmatpush1.bf16.msra.mxu0 0
    %4773 = vmatprep.subr.bf16.mxu0 0
    %4774 = vmatpush1.bf16.msra.mxu0 0
    %4775 = vmatprep.subr.bf16.mxu0 0
    %4776 = vmatpush1.bf16.msra.mxu0 0
    %4777 = vmatprep.subr.bf16.mxu0 0
    %4778 = vmatpush1.bf16.msra.mxu0 0
    %4779 = vmatprep.subr.bf16.mxu0 0
    %4780 = vmatpush1.bf16.msra.mxu0 0
    %4781 = vmatprep.subr.bf16.mxu0 0
    %4782 = vmatpush1.bf16.msra.mxu0 0
    %4783 = vmatprep.mubr.bf16.mxu0 0
    %4784 = vmatmul.mubr.bf16.gmra.mrb[0].mxu0 %v4679
    %v4785 = vpop.f32.mrb[0].mxu0
    %v4786 = vadd.f32 %v4701, %v4785
    %v4787 = vpop.f32.mrb[0].mxu0
    %v4788 = vpop.f32.mrb[0].mxu0
    %v4789 = vpop.f32.mrb[0].mxu0
    %4790 = vdwg.mxu0
    %4791 = vst [vmem:[%s11] sm:$0xff] %v4786
  $region53: #{mohapatra_forward.5} parent=0 // pred_fallthru
    _
  // Predicated region
  $region54: #{mohapatra_forward.5} parent=0 // pred_check
    _
  $region55: #{mohapatra_forward.5} parent=0 // pred_check_branch
    %4793 = sbr.rel (0) target = $region57
  $region56: #{mohapatra_forward.5} parent=0 // pred_region
    _
  $region57: #{mohapatra_forward.5} parent=0 // pred_fallthru
    _
  // Predicated region
  $region58: #{mohapatra_forward.5} parent=0 // pred_check
    _
  $region59: #{mohapatra_forward.5} parent=0 // pred_check_branch
    %4795 = sbr.rel (0) target = $region61
  $region60: #{mohapatra_forward.5} parent=0 // pred_region
    _
  $region61: #{mohapatra_forward.5} parent=0 // pred_fallthru
    _

</llo_original>
